<compile_context>
chip_gen: v7x
topology: tpu7x:2x2x1
jax: 0.10.0
libtpu: 0.0.40
codegen_flags: <defaults>
</compile_context>

<pallas_src>
import numpy as np

import jax
import jax.numpy as jnp
from jax import lax
from jax.experimental import pallas as pl
from jax.experimental.pallas import tpu as pltpu

EPS = 1e-5                       # PyTorch BatchNorm default eps
_HI = lax.Precision.HIGHEST      # exact weight preprocessing / reference

# Set to jnp.bfloat16 to run the MXU in native bf16 (worth it once shapes are
# compute-bound); kept f32 here so the tiny model matches the f32 reference tightly.
DOT_DTYPE = jnp.float32


# --------------------------- BatchNorm folding (eval) -----------------------

def fold_bn_conv(W, b, bn):
    g, be, m, v = bn
    s = g / jnp.sqrt(v + EPS)
    return W * s[:, None, None], (b - m) * s + be


def fold_bn_linear(W, b, bn):
    g, be, m, v = bn
    s = g / jnp.sqrt(v + EPS)
    return W * s[:, None], (b - m) * s + be


# ------------------ conv -> dense banded operator (wrapper side) ------------
# Activations are flattened per sample in length-major order: flat[l*C + c] = x[c, l].

def conv1d_as_matrix(W, L_in, stride=1, pad=1):
    """PyTorch Conv1d weight W: (Cout, Cin, K) -> M (L_in*Cin, L_out*Cout) with
    flat_out = flat_in @ M."""
    Cout, Cin, K = W.shape
    L_out = (L_in + 2 * pad - K) // stride + 1
    S = np.zeros((L_in, K, L_out), np.float32)
    for t in range(L_out):
        for k in range(K):
            li = t * stride + k - pad
            if 0 <= li < L_in:
                S[li, k, t] = 1.0
    M = jnp.einsum('lkt,ock->lcto', jnp.asarray(S), W.astype(jnp.float32),
                   precision=_HI)
    return M.reshape(L_in * Cin, L_out * Cout)


def conv_transpose1d_as_matrix(Wt, L_in, stride=2, pad=1):
    """PyTorch ConvTranspose1d weight Wt: (Cin, Cout, K) -> M (L_in*Cin, L_out*Cout)."""
    Cin, Cout, K = Wt.shape
    L_out = (L_in - 1) * stride - 2 * pad + K
    S = np.zeros((L_in, K, L_out), np.float32)
    for m in range(L_in):
        for k in range(K):
            n = m * stride + k - pad
            if 0 <= n < L_out:
                S[m, k, n] = 1.0
    M = jnp.einsum('mkn,iok->mino', jnp.asarray(S), Wt.astype(jnp.float32),
                   precision=_HI)
    return M.reshape(L_in * Cin, L_out * Cout)


def prepare_fused_params(params, in_ch, base, cond_dim, L):
    """One-time weight preprocessing: BN folding + conv/linear -> dense operators
    over flattened per-sample activations, cond projections tiled over length."""
    b1c, b2c, b4c, b8c = base, 2 * base, 4 * base, 8 * base
    L1, L2, L4, L8 = L, L // 2, L // 4, L // 8

    def row(b, n_tile=1):
        return jnp.tile(b.astype(jnp.float32), (n_tile,)).reshape(1, -1)

    def conv_block(p, Lin, down):
        W1, c1 = fold_bn_conv(p['conv1_w'], p['conv1_b'], p['bn1'])
        W2, c2 = fold_bn_conv(p['conv2_w'], p['conv2_b'], p['bn2'])
        d = dict(m1=conv1d_as_matrix(W1, Lin), b1=row(c1, Lin),
                 m2=conv1d_as_matrix(W2, Lin), b2=row(c2, Lin),
                 cw=jnp.tile(p['cond_w'].T.astype(jnp.float32), (1, Lin)),
                 cb=row(p['cond_b'], Lin))
        if down:
            d['mp'] = conv1d_as_matrix(p['pool_w'], Lin, stride=2, pad=1)
            d['bp'] = row(p['pool_b'], Lin // 2)
        return d

    def up_block(p, Lin, cout):
        Lout = 2 * Lin
        W1, c1 = fold_bn_conv(p['conv1_w'], p['conv1_b'], p['bn1'])
        W2, c2 = fold_bn_conv(p['conv2_w'], p['conv2_b'], p['bn2'])
        return dict(
            mup=conv_transpose1d_as_matrix(p['up_w'], Lin), bup=row(p['up_b'], Lout),
            msk=conv1d_as_matrix(p['skip_w'], Lout, pad=0), bsk=row(p['skip_b'], Lout),
            # conv1 acts on cat([x_up, skip_proj], channels): split its weight.
            m1a=conv1d_as_matrix(W1[:, :cout, :], Lout),
            m1b=conv1d_as_matrix(W1[:, cout:, :], Lout),
            b1=row(c1, Lout),
            m2=conv1d_as_matrix(W2, Lout), b2=row(c2, Lout),
            cw=jnp.tile(p['cond_w'].T.astype(jnp.float32), (1, Lout)),
            cb=row(p['cond_b'], Lout))

    def dense(p, C, L8_):
        flat = C * L8_
        g = np.arange(flat)
        perm = (g % C) * L8_ + (g // C)   # my flat index (l*C+c) -> torch Flatten index (c*L8+l)
        W1, c1 = fold_bn_linear(p['l1_w'], p['l1_b'], p['bn1'])
        W2, c2 = fold_bn_linear(p['l2_w'], p['l2_b'], p['bn2'])
        return dict(
            m1=W1.T[perm, :], b1=row(c1),
            m2=W2.T, b2=row(c2),
            m3=p['l3_w'][perm, :].T, b3=row(p['l3_b'][perm]),
            mc1=p['c1_w'].T, bc1=row(p['c1_b']),
            mc2=p['c2_w'][perm, :].T, bc2=row(p['c2_b'][perm]))

    return dict(
        enc1=conv_block(params['enc1'], L1, False),
        enc2=conv_block(params['enc2'], L1, True),
        enc3=conv_block(params['enc3'], L2, True),
        bott_conv=conv_block(params['bott_conv'], L4, True),
        dense=dense(params['bott_dense'], b8c, L8),
        dec1=up_block(params['dec1'], L8, b4c),
        dec2=up_block(params['dec2'], L4, b2c),
        dec3=up_block(params['dec3'], L2, b1c),
        final=dict(m=conv1d_as_matrix(params['final_w'], L1),
                   b=row(params['final_b'], L1)),
    )


# ------------------------- the single fused Pallas kernel -------------------

def _make_unet_kernel(treedef, n_leaves, dot_dtype):
    def kernel(*refs):
        x_ref, cond_ref = refs[0], refs[1]
        w_refs = refs[2:2 + n_leaves]
        out_ref = refs[2 + n_leaves]
        W = jax.tree_util.tree_unflatten(treedef, w_refs)

        cond = cond_ref[...]

        def mm(a, m_ref, b_ref):
            y = jnp.dot(a.astype(dot_dtype), m_ref[...].astype(dot_dtype),
                        preferred_element_type=jnp.float32)
            return y + b_ref[...]

        def silu(v):
            return v * jax.nn.sigmoid(v)

        def conv_block(h, p, down):
            h = silu(mm(h, p['m1'], p['b1']))          # conv1 + BN + SiLU (Dropout=id)
            h = silu(mm(h, p['m2'], p['b2']))          # conv2 + BN + SiLU
            h = h + mm(cond, p['cw'], p['cb'])         # fused cond projection, tiled over L
            if down:
                h = mm(h, p['mp'], p['bp'])            # strided pool conv
            return h

        def up_block(h, skip, p):
            xu = mm(h, p['mup'], p['bup'])             # ConvTranspose1d(k=4,s=2,p=1)
            sp = mm(skip, p['msk'], p['bsk'])          # 1x1 skip conv
            z = (jnp.dot(xu.astype(dot_dtype), p['m1a'][...].astype(dot_dtype),
                         preferred_element_type=jnp.float32)
                 + jnp.dot(sp.astype(dot_dtype), p['m1b'][...].astype(dot_dtype),
                           preferred_element_type=jnp.float32)
                 + p['b1'][...])                        # conv1 over channel-concat
            z = silu(z)
            z = silu(mm(z, p['m2'], p['b2']))
            return z + mm(cond, p['cw'], p['cb'])

        x = x_ref[...]
        e1 = conv_block(x, W['enc1'], False)
        e2 = conv_block(e1, W['enc2'], True)
        e3 = conv_block(e2, W['enc3'], True)
        h = conv_block(e3, W['bott_conv'], True)

        d = W['dense']
        z = silu(mm(h, d['m1'], d['b1']))
        z = silu(mm(z, d['m2'], d['b2']))
        z = mm(z, d['m3'], d['b3'])
        c = silu(mm(cond, d['mc1'], d['bc1']))
        c = mm(c, d['mc2'], d['bc2'])
        h = z + c

        h = up_block(h, e3, W['dec1'])
        h = up_block(h, e2, W['dec2'])
        h = up_block(h, e1, W['dec3'])
        out_ref[...] = mm(h, W['final']['m'], W['final']['b'])

    return kernel


def unet1d_forward_pallas(big, x_flat, cond, *, dot_dtype=DOT_DTYPE,
                          vmem_limit_bytes=32 * 1024 * 1024):
    """Whole UNet1D_Large forward in ONE pallas_call.

    x_flat: (B, L*in_ch) per-sample length-major flattened input.
    cond:   (B, cond_dim).
    All weights + activations are VMEM-resident (whole-array blocks, no grid).
    """
    leaves, treedef = jax.tree_util.tree_flatten(big)
    Bn = x_flat.shape[0]
    out_dim = big['final']['m'].shape[1]
    kernel = _make_unet_kernel(treedef, len(leaves), dot_dtype)
    return pl.pallas_call(
        kernel,
        out_shape=jax.ShapeDtypeStruct((Bn, out_dim), jnp.float32),
        # ~3 MiB of weights; explicit cap keeps this portable to v7x (64 MiB VMEM).
        compiler_params=pltpu.CompilerParams(vmem_limit_bytes=vmem_limit_bytes),
    )(x_flat.astype(jnp.float32), cond.astype(jnp.float32), *leaves)


# ---------------------------- parameter init --------------------------------

def init_params(key, in_ch, base, cond_dim, L):
    keys = iter(jax.random.split(key, 512))

    def w(shape, fan_in):
        return jax.random.normal(next(keys), shape, jnp.float32) / (fan_in ** 0.5)

    def bias(shape):
        return 0.01 * jax.random.normal(next(keys), shape, jnp.float32)

    def bn(c):
        g = 1.0 + 0.1 * jax.random.normal(next(keys), (c,), jnp.float32)
        be = 0.1 * jax.random.normal(next(keys), (c,), jnp.float32)
        m = 0.1 * jax.random.normal(next(keys), (c,), jnp.float32)
        v = 1.0 + 0.1 * jnp.abs(jax.random.normal(next(keys), (c,), jnp.float32))
        return (g, be, m, v)

    def conv_block_p(cin, cout, down):
        p = dict(conv1_w=w((cout, cin, 3), cin * 3), conv1_b=bias((cout,)), bn1=bn(cout),
                 conv2_w=w((cout, cout, 3), cout * 3), conv2_b=bias((cout,)), bn2=bn(cout),
                 cond_w=w((cout, cond_dim), cond_dim), cond_b=bias((cout,)))
        if down:
            p['pool_w'] = w((cout, cout, 4), cout * 4)
            p['pool_b'] = bias((cout,))
        return p

    def dense_p(flat, hidden):
        return dict(l1_w=w((2 * hidden, flat), flat), l1_b=bias((2 * hidden,)), bn1=bn(2 * hidden),
                    l2_w=w((hidden, 2 * hidden), 2 * hidden), l2_b=bias((hidden,)), bn2=bn(hidden),
                    l3_w=w((flat, hidden), hidden), l3_b=bias((flat,)),
                    c1_w=w((hidden, cond_dim), cond_dim), c1_b=bias((hidden,)),
                    c2_w=w((flat, hidden), hidden), c2_b=bias((flat,)))

    def up_block_p(cin, cout, skip_c):
        return dict(up_w=w((cin, cout, 4), cin * 4), up_b=bias((cout,)),
                    skip_w=w((cout, skip_c, 1), skip_c), skip_b=bias((cout,)),
                    conv1_w=w((cout, cout * 2, 3), cout * 2 * 3), conv1_b=bias((cout,)), bn1=bn(cout),
                    conv2_w=w((cout, cout, 3), cout * 3), conv2_b=bias((cout,)), bn2=bn(cout),
                    cond_w=w((cout, cond_dim), cond_dim), cond_b=bias((cout,)))

    Lb = L // 8
    return dict(
        enc1=conv_block_p(in_ch, base, False),
        enc2=conv_block_p(base, 2 * base, True),
        enc3=conv_block_p(2 * base, 4 * base, True),
        bott_conv=conv_block_p(4 * base, 8 * base, True),
        bott_dense=dense_p(8 * base * Lb, 16 * base),
        dec1=up_block_p(8 * base, 4 * base, 4 * base),
        dec2=up_block_p(4 * base, 2 * base, 2 * base),
        dec3=up_block_p(2 * base, base, base),
        final_w=w((in_ch, base, 3), base * 3),
        final_b=bias((in_ch,)),
    )


# ------------------- pure-JAX reference (NCL, eval mode) --------------------

def _ref_conv1d(x, W, b, stride, pad):
    y = lax.conv_general_dilated(x, W, (stride,), [(pad, pad)],
                                 dimension_numbers=('NCH', 'OIH', 'NCH'),
                                 precision=_HI)
    return y + b[None, :, None]


def _ref_conv_transpose1d(x, Wt, b):
    W = jnp.transpose(Wt[:, :, ::-1], (1, 0, 2))
    y = lax.conv_general_dilated(x, W, (1,), [(2, 2)], lhs_dilation=(2,),
                                 dimension_numbers=('NCH', 'OIH', 'NCH'),
                                 precision=_HI)
    return y + b[None, :, None]


def _ref_bn(x, bn):
    g, be, m, v = bn
    if x.ndim == 3:
        return (x - m[None, :, None]) / jnp.sqrt(v[None, :, None] + EPS) * g[None, :, None] + be[None, :, None]
    return (x - m) / jnp.sqrt(v + EPS) * g + be


def _ref_silu(x):
    return x * jax.nn.sigmoid(x)


def _ref_linear(x, W, b):
    return jnp.dot(x, W.T, precision=_HI) + b


def _ref_conv_block(x, cond, p, down):
    h = _ref_silu(_ref_bn(_ref_conv1d(x, p['conv1_w'], p['conv1_b'], 1, 1), p['bn1']))
    h = _ref_silu(_ref_bn(_ref_conv1d(h, p['conv2_w'], p['conv2_b'], 1, 1), p['bn2']))
    h = h + _ref_linear(cond, p['cond_w'], p['cond_b'])[:, :, None]
    if down:
        h = _ref_conv1d(h, p['pool_w'], p['pool_b'], 2, 1)
    return h


def _ref_dense_bottleneck(x, cond, p):
    Bn, C, L8 = x.shape
    flat = x.reshape(Bn, C * L8)
    h = _ref_silu(_ref_bn(_ref_linear(flat, p['l1_w'], p['l1_b']), p['bn1']))
    h = _ref_silu(_ref_bn(_ref_linear(h, p['l2_w'], p['l2_b']), p['bn2']))
    h = _ref_linear(h, p['l3_w'], p['l3_b'])
    c = _ref_silu(_ref_linear(cond, p['c1_w'], p['c1_b']))
    c = _ref_linear(c, p['c2_w'], p['c2_b'])
    return (h + c).reshape(Bn, C, L8)


def _ref_up_block(x, skip, cond, p):
    x = _ref_conv_transpose1d(x, p['up_w'], p['up_b'])
    sp = _ref_conv1d(skip, p['skip_w'], p['skip_b'], 1, 0)
    x = jnp.concatenate([x, sp], axis=1)
    x = _ref_silu(_ref_bn(_ref_conv1d(x, p['conv1_w'], p['conv1_b'], 1, 1), p['bn1']))
    x = _ref_silu(_ref_bn(_ref_conv1d(x, p['conv2_w'], p['conv2_b'], 1, 1), p['bn2']))
    return x + _ref_linear(cond, p['cond_w'], p['cond_b'])[:, :, None]


def unet1d_forward_ref(params, x_ncl, cond):
    e1 = _ref_conv_block(x_ncl, cond, params['enc1'], False)
    e2 = _ref_conv_block(e1, cond, params['enc2'], True)
    e3 = _ref_conv_block(e2, cond, params['enc3'], True)
    b = _ref_conv_block(e3, cond, params['bott_conv'], True)
    b = _ref_dense_bottleneck(b, cond, params['bott_dense'])
    d1 = _ref_up_block(b, e3, cond, params['dec1'])
    d2 = _ref_up_block(d1, e2, cond, params['dec2'])
    d3 = _ref_up_block(d2, e1, cond, params['dec3'])
    return _ref_conv1d(d3, params['final_w'], params['final_b'], 1, 1)


# ----------------------------------- main ------------------------------------

if __name__ == "__main__":
    in_ch, base, cond_dim, L, Bn = 4, 8, 8, 16, 2

    key = jax.random.PRNGKey(0)
    pkey, xkey, ckey = jax.random.split(key, 3)
    params = init_params(pkey, in_ch, base, cond_dim, L)
    x_ncl = jax.random.normal(xkey, (Bn, in_ch, L), jnp.float32)   # PyTorch NCL input
    cond = jax.random.normal(ckey, (Bn, cond_dim), jnp.float32)

    # One-time weight preprocessing (BN fold + dense banded conv operators).
    big = prepare_fused_params(params, in_ch, base, cond_dim, L)

    # Fused Pallas forward: flatten input per-sample in length-major (l*C + c) order.
    x_flat = jnp.transpose(x_ncl, (0, 2, 1)).reshape(Bn, L * in_ch)
    fwd = jax.jit(unet1d_forward_pallas)
    out_flat = fwd(big, x_flat, cond)
    jax.block_until_ready(out_flat)
    out_ncl = jnp.transpose(out_flat.reshape(Bn, L, in_ch), (0, 2, 1))

    # Pure-JAX reference in PyTorch's NCL layout (eval-mode semantics).
    ref = unet1d_forward_ref(params, x_ncl, cond)

    assert out_ncl.shape == (Bn, in_ch, L), out_ncl.shape
    assert bool(jnp.all(jnp.isfinite(out_ncl)))
    max_err = float(jnp.max(jnp.abs(out_ncl - ref)))
    assert max_err < 5e-2, f"mismatch vs reference: {max_err}"

    print("KERNEL_OK")
</pallas_src>

<mosaic_0001>
module attributes {stable_mosaic.version = 11 : i64} {
  func.func @kernel(%arg0: memref<2x64xf32, #tpu.memory_space<vmem>>, %arg1: memref<2x8xf32, #tpu.memory_space<vmem>>, %arg2: memref<1x256xf32, #tpu.memory_space<vmem>>, %arg3: memref<1x256xf32, #tpu.memory_space<vmem>>, %arg4: memref<1x128xf32, #tpu.memory_space<vmem>>, %arg5: memref<1x256xf32, #tpu.memory_space<vmem>>, %arg6: memref<8x256xf32, #tpu.memory_space<vmem>>, %arg7: memref<128x256xf32, #tpu.memory_space<vmem>>, %arg8: memref<256x256xf32, #tpu.memory_space<vmem>>, %arg9: memref<256x128xf32, #tpu.memory_space<vmem>>, %arg10: memref<1x128xf32, #tpu.memory_space<vmem>>, %arg11: memref<1x128xf32, #tpu.memory_space<vmem>>, %arg12: memref<1x128xf32, #tpu.memory_space<vmem>>, %arg13: memref<1x128xf32, #tpu.memory_space<vmem>>, %arg14: memref<1x128xf32, #tpu.memory_space<vmem>>, %arg15: memref<8x128xf32, #tpu.memory_space<vmem>>, %arg16: memref<128x128xf32, #tpu.memory_space<vmem>>, %arg17: memref<128x128xf32, #tpu.memory_space<vmem>>, %arg18: memref<128x128xf32, #tpu.memory_space<vmem>>, %arg19: memref<128x128xf32, #tpu.memory_space<vmem>>, %arg20: memref<128x128xf32, #tpu.memory_space<vmem>>, %arg21: memref<1x128xf32, #tpu.memory_space<vmem>>, %arg22: memref<1x128xf32, #tpu.memory_space<vmem>>, %arg23: memref<1x128xf32, #tpu.memory_space<vmem>>, %arg24: memref<1x128xf32, #tpu.memory_space<vmem>>, %arg25: memref<1x128xf32, #tpu.memory_space<vmem>>, %arg26: memref<8x128xf32, #tpu.memory_space<vmem>>, %arg27: memref<128x128xf32, #tpu.memory_space<vmem>>, %arg28: memref<128x128xf32, #tpu.memory_space<vmem>>, %arg29: memref<128x128xf32, #tpu.memory_space<vmem>>, %arg30: memref<128x128xf32, #tpu.memory_space<vmem>>, %arg31: memref<128x128xf32, #tpu.memory_space<vmem>>, %arg32: memref<1x128xf32, #tpu.memory_space<vmem>>, %arg33: memref<1x128xf32, #tpu.memory_space<vmem>>, %arg34: memref<1x128xf32, #tpu.memory_space<vmem>>, %arg35: memref<1x128xf32, #tpu.memory_space<vmem>>, %arg36: memref<1x128xf32, #tpu.memory_space<vmem>>, %arg37: memref<8x128xf32, #tpu.memory_space<vmem>>, %arg38: memref<128x128xf32, #tpu.memory_space<vmem>>, %arg39: memref<128x128xf32, #tpu.memory_space<vmem>>, %arg40: memref<128x128xf32, #tpu.memory_space<vmem>>, %arg41: memref<128x128xf32, #tpu.memory_space<vmem>>, %arg42: memref<128x128xf32, #tpu.memory_space<vmem>>, %arg43: memref<1x256xf32, #tpu.memory_space<vmem>>, %arg44: memref<1x128xf32, #tpu.memory_space<vmem>>, %arg45: memref<1x128xf32, #tpu.memory_space<vmem>>, %arg46: memref<1x128xf32, #tpu.memory_space<vmem>>, %arg47: memref<1x128xf32, #tpu.memory_space<vmem>>, %arg48: memref<128x256xf32, #tpu.memory_space<vmem>>, %arg49: memref<256x128xf32, #tpu.memory_space<vmem>>, %arg50: memref<128x128xf32, #tpu.memory_space<vmem>>, %arg51: memref<8x128xf32, #tpu.memory_space<vmem>>, %arg52: memref<128x128xf32, #tpu.memory_space<vmem>>, %arg53: memref<1x128xf32, #tpu.memory_space<vmem>>, %arg54: memref<1x128xf32, #tpu.memory_space<vmem>>, %arg55: memref<1x128xf32, #tpu.memory_space<vmem>>, %arg56: memref<8x128xf32, #tpu.memory_space<vmem>>, %arg57: memref<64x128xf32, #tpu.memory_space<vmem>>, %arg58: memref<128x128xf32, #tpu.memory_space<vmem>>, %arg59: memref<1x256xf32, #tpu.memory_space<vmem>>, %arg60: memref<1x256xf32, #tpu.memory_space<vmem>>, %arg61: memref<1x128xf32, #tpu.memory_space<vmem>>, %arg62: memref<1x256xf32, #tpu.memory_space<vmem>>, %arg63: memref<8x256xf32, #tpu.memory_space<vmem>>, %arg64: memref<128x256xf32, #tpu.memory_space<vmem>>, %arg65: memref<256x256xf32, #tpu.memory_space<vmem>>, %arg66: memref<256x128xf32, #tpu.memory_space<vmem>>, %arg67: memref<1x256xf32, #tpu.memory_space<vmem>>, %arg68: memref<1x256xf32, #tpu.memory_space<vmem>>, %arg69: memref<1x128xf32, #tpu.memory_space<vmem>>, %arg70: memref<1x256xf32, #tpu.memory_space<vmem>>, %arg71: memref<8x256xf32, #tpu.memory_space<vmem>>, %arg72: memref<128x256xf32, #tpu.memory_space<vmem>>, %arg73: memref<256x256xf32, #tpu.memory_space<vmem>>, %arg74: memref<256x128xf32, #tpu.memory_space<vmem>>, %arg75: memref<1x64xf32, #tpu.memory_space<vmem>>, %arg76: memref<128x64xf32, #tpu.memory_space<vmem>>, %arg77: memref<2x64xf32, #tpu.memory_space<vmem>>) attributes {dimension_semantics = [], scalar_prefetch = 0 : i64, scratch_operands = 0 : i64, tpu.core_type = #tpu.core_type<tc>} {
    %c0 = arith.constant 0 : index
    %c0_0 = arith.constant 0 : index
    %0 = vector.load %arg1[%c0, %c0_0] : memref<2x8xf32, #tpu.memory_space<vmem>>, vector<2x8xf32>
    %c0_1 = arith.constant 0 : index
    %c0_2 = arith.constant 0 : index
    %1 = vector.load %arg0[%c0_1, %c0_2] : memref<2x64xf32, #tpu.memory_space<vmem>>, vector<2x64xf32>
    %c0_3 = arith.constant 0 : index
    %c0_4 = arith.constant 0 : index
    %2 = vector.load %arg57[%c0_3, %c0_4] : memref<64x128xf32, #tpu.memory_space<vmem>>, vector<64x128xf32>
    %cst = arith.constant dense<0.000000e+00> : vector<2x128xf32>
    %3 = tpu.matmul %1, %2, %cst {dimension_numbers = #tpu.dot_dimension_numbers<[1], [0], [0], [1], [0, 0, 1, 1], [], []>} : vector<2x64xf32>, vector<64x128xf32>, vector<2x128xf32> -> vector<2x128xf32>
    %c0_5 = arith.constant 0 : index
    %c0_6 = arith.constant 0 : index
    %4 = vector.load %arg53[%c0_5, %c0_6] : memref<1x128xf32, #tpu.memory_space<vmem>>, vector<1x128xf32>
    %5 = vector.broadcast %4 : vector<1x128xf32> to vector<2x128xf32>
    %6 = arith.addf %3, %5 : vector<2x128xf32>
    %7 = arith.negf %6 : vector<2x128xf32>
    %8 = math.exp %7 : vector<2x128xf32>
    %cst_7 = arith.constant 1.000000e+00 : f32
    %9 = vector.broadcast %cst_7 : f32 to vector<2x128xf32>
    %10 = arith.addf %9, %8 : vector<2x128xf32>
    %11 = arith.divf %9, %10 : vector<2x128xf32>
    %12 = arith.mulf %6, %11 : vector<2x128xf32>
    %c0_8 = arith.constant 0 : index
    %c0_9 = arith.constant 0 : index
    %13 = vector.load %arg58[%c0_8, %c0_9] : memref<128x128xf32, #tpu.memory_space<vmem>>, vector<128x128xf32>
    %cst_10 = arith.constant dense<0.000000e+00> : vector<2x128xf32>
    %14 = tpu.matmul %12, %13, %cst_10 {dimension_numbers = #tpu.dot_dimension_numbers<[1], [0], [0], [1], [0, 0, 1, 1], [], []>} : vector<2x128xf32>, vector<128x128xf32>, vector<2x128xf32> -> vector<2x128xf32>
    %c0_11 = arith.constant 0 : index
    %c0_12 = arith.constant 0 : index
    %15 = vector.load %arg54[%c0_11, %c0_12] : memref<1x128xf32, #tpu.memory_space<vmem>>, vector<1x128xf32>
    %16 = vector.broadcast %15 : vector<1x128xf32> to vector<2x128xf32>
    %17 = arith.addf %14, %16 : vector<2x128xf32>
    %18 = arith.negf %17 : vector<2x128xf32>
    %19 = math.exp %18 : vector<2x128xf32>
    %cst_13 = arith.constant 1.000000e+00 : f32
    %20 = vector.broadcast %cst_13 : f32 to vector<2x128xf32>
    %21 = arith.addf %20, %19 : vector<2x128xf32>
    %22 = arith.divf %20, %21 : vector<2x128xf32>
    %23 = arith.mulf %17, %22 : vector<2x128xf32>
    %c0_14 = arith.constant 0 : index
    %c0_15 = arith.constant 0 : index
    %24 = vector.load %arg56[%c0_14, %c0_15] : memref<8x128xf32, #tpu.memory_space<vmem>>, vector<8x128xf32>
    %cst_16 = arith.constant dense<0.000000e+00> : vector<2x128xf32>
    %25 = tpu.matmul %0, %24, %cst_16 {dimension_numbers = #tpu.dot_dimension_numbers<[1], [0], [0], [1], [0, 0, 1, 1], [], []>} : vector<2x8xf32>, vector<8x128xf32>, vector<2x128xf32> -> vector<2x128xf32>
    %c0_17 = arith.constant 0 : index
    %c0_18 = arith.constant 0 : index
    %26 = vector.load %arg55[%c0_17, %c0_18] : memref<1x128xf32, #tpu.memory_space<vmem>>, vector<1x128xf32>
    %27 = vector.broadcast %26 : vector<1x128xf32> to vector<2x128xf32>
    %28 = arith.addf %25, %27 : vector<2x128xf32>
    %29 = arith.addf %23, %28 : vector<2x128xf32>
    %c0_19 = arith.constant 0 : index
    %c0_20 = arith.constant 0 : index
    %30 = vector.load %arg64[%c0_19, %c0_20] : memref<128x256xf32, #tpu.memory_space<vmem>>, vector<128x256xf32>
    %cst_21 = arith.constant dense<0.000000e+00> : vector<2x256xf32>
    %31 = tpu.matmul %29, %30, %cst_21 {dimension_numbers = #tpu.dot_dimension_numbers<[1], [0], [0], [1], [0, 0, 1, 1], [], []>} : vector<2x128xf32>, vector<128x256xf32>, vector<2x256xf32> -> vector<2x256xf32>
    %c0_22 = arith.constant 0 : index
    %c0_23 = arith.constant 0 : index
    %32 = vector.load %arg59[%c0_22, %c0_23] : memref<1x256xf32, #tpu.memory_space<vmem>>, vector<1x256xf32>
    %33 = vector.broadcast %32 : vector<1x256xf32> to vector<2x256xf32>
    %34 = arith.addf %31, %33 : vector<2x256xf32>
    %35 = arith.negf %34 : vector<2x256xf32>
    %36 = math.exp %35 : vector<2x256xf32>
    %cst_24 = arith.constant 1.000000e+00 : f32
    %37 = vector.broadcast %cst_24 : f32 to vector<2x256xf32>
    %38 = arith.addf %37, %36 : vector<2x256xf32>
    %39 = arith.divf %37, %38 : vector<2x256xf32>
    %40 = arith.mulf %34, %39 : vector<2x256xf32>
    %c0_25 = arith.constant 0 : index
    %c0_26 = arith.constant 0 : index
    %41 = vector.load %arg65[%c0_25, %c0_26] : memref<256x256xf32, #tpu.memory_space<vmem>>, vector<256x256xf32>
    %cst_27 = arith.constant dense<0.000000e+00> : vector<2x256xf32>
    %42 = tpu.matmul %40, %41, %cst_27 {dimension_numbers = #tpu.dot_dimension_numbers<[1], [0], [0], [1], [0, 0, 1, 1], [], []>} : vector<2x256xf32>, vector<256x256xf32>, vector<2x256xf32> -> vector<2x256xf32>
    %c0_28 = arith.constant 0 : index
    %c0_29 = arith.constant 0 : index
    %43 = vector.load %arg60[%c0_28, %c0_29] : memref<1x256xf32, #tpu.memory_space<vmem>>, vector<1x256xf32>
    %44 = vector.broadcast %43 : vector<1x256xf32> to vector<2x256xf32>
    %45 = arith.addf %42, %44 : vector<2x256xf32>
    %46 = arith.negf %45 : vector<2x256xf32>
    %47 = math.exp %46 : vector<2x256xf32>
    %cst_30 = arith.constant 1.000000e+00 : f32
    %48 = vector.broadcast %cst_30 : f32 to vector<2x256xf32>
    %49 = arith.addf %48, %47 : vector<2x256xf32>
    %50 = arith.divf %48, %49 : vector<2x256xf32>
    %51 = arith.mulf %45, %50 : vector<2x256xf32>
    %c0_31 = arith.constant 0 : index
    %c0_32 = arith.constant 0 : index
    %52 = vector.load %arg63[%c0_31, %c0_32] : memref<8x256xf32, #tpu.memory_space<vmem>>, vector<8x256xf32>
    %cst_33 = arith.constant dense<0.000000e+00> : vector<2x256xf32>
    %53 = tpu.matmul %0, %52, %cst_33 {dimension_numbers = #tpu.dot_dimension_numbers<[1], [0], [0], [1], [0, 0, 1, 1], [], []>} : vector<2x8xf32>, vector<8x256xf32>, vector<2x256xf32> -> vector<2x256xf32>
    %c0_34 = arith.constant 0 : index
    %c0_35 = arith.constant 0 : index
    %54 = vector.load %arg62[%c0_34, %c0_35] : memref<1x256xf32, #tpu.memory_space<vmem>>, vector<1x256xf32>
    %55 = vector.broadcast %54 : vector<1x256xf32> to vector<2x256xf32>
    %56 = arith.addf %53, %55 : vector<2x256xf32>
    %57 = arith.addf %51, %56 : vector<2x256xf32>
    %c0_36 = arith.constant 0 : index
    %c0_37 = arith.constant 0 : index
    %58 = vector.load %arg66[%c0_36, %c0_37] : memref<256x128xf32, #tpu.memory_space<vmem>>, vector<256x128xf32>
    %cst_38 = arith.constant dense<0.000000e+00> : vector<2x128xf32>
    %59 = tpu.matmul %57, %58, %cst_38 {dimension_numbers = #tpu.dot_dimension_numbers<[1], [0], [0], [1], [0, 0, 1, 1], [], []>} : vector<2x256xf32>, vector<256x128xf32>, vector<2x128xf32> -> vector<2x128xf32>
    %c0_39 = arith.constant 0 : index
    %c0_40 = arith.constant 0 : index
    %60 = vector.load %arg61[%c0_39, %c0_40] : memref<1x128xf32, #tpu.memory_space<vmem>>, vector<1x128xf32>
    %61 = vector.broadcast %60 : vector<1x128xf32> to vector<2x128xf32>
    %62 = arith.addf %59, %61 : vector<2x128xf32>
    %c0_41 = arith.constant 0 : index
    %c0_42 = arith.constant 0 : index
    %63 = vector.load %arg72[%c0_41, %c0_42] : memref<128x256xf32, #tpu.memory_space<vmem>>, vector<128x256xf32>
    %cst_43 = arith.constant dense<0.000000e+00> : vector<2x256xf32>
    %64 = tpu.matmul %62, %63, %cst_43 {dimension_numbers = #tpu.dot_dimension_numbers<[1], [0], [0], [1], [0, 0, 1, 1], [], []>} : vector<2x128xf32>, vector<128x256xf32>, vector<2x256xf32> -> vector<2x256xf32>
    %c0_44 = arith.constant 0 : index
    %c0_45 = arith.constant 0 : index
    %65 = vector.load %arg67[%c0_44, %c0_45] : memref<1x256xf32, #tpu.memory_space<vmem>>, vector<1x256xf32>
    %66 = vector.broadcast %65 : vector<1x256xf32> to vector<2x256xf32>
    %67 = arith.addf %64, %66 : vector<2x256xf32>
    %68 = arith.negf %67 : vector<2x256xf32>
    %69 = math.exp %68 : vector<2x256xf32>
    %cst_46 = arith.constant 1.000000e+00 : f32
    %70 = vector.broadcast %cst_46 : f32 to vector<2x256xf32>
    %71 = arith.addf %70, %69 : vector<2x256xf32>
    %72 = arith.divf %70, %71 : vector<2x256xf32>
    %73 = arith.mulf %67, %72 : vector<2x256xf32>
    %c0_47 = arith.constant 0 : index
    %c0_48 = arith.constant 0 : index
    %74 = vector.load %arg73[%c0_47, %c0_48] : memref<256x256xf32, #tpu.memory_space<vmem>>, vector<256x256xf32>
    %cst_49 = arith.constant dense<0.000000e+00> : vector<2x256xf32>
    %75 = tpu.matmul %73, %74, %cst_49 {dimension_numbers = #tpu.dot_dimension_numbers<[1], [0], [0], [1], [0, 0, 1, 1], [], []>} : vector<2x256xf32>, vector<256x256xf32>, vector<2x256xf32> -> vector<2x256xf32>
    %c0_50 = arith.constant 0 : index
    %c0_51 = arith.constant 0 : index
    %76 = vector.load %arg68[%c0_50, %c0_51] : memref<1x256xf32, #tpu.memory_space<vmem>>, vector<1x256xf32>
    %77 = vector.broadcast %76 : vector<1x256xf32> to vector<2x256xf32>
    %78 = arith.addf %75, %77 : vector<2x256xf32>
    %79 = arith.negf %78 : vector<2x256xf32>
    %80 = math.exp %79 : vector<2x256xf32>
    %cst_52 = arith.constant 1.000000e+00 : f32
    %81 = vector.broadcast %cst_52 : f32 to vector<2x256xf32>
    %82 = arith.addf %81, %80 : vector<2x256xf32>
    %83 = arith.divf %81, %82 : vector<2x256xf32>
    %84 = arith.mulf %78, %83 : vector<2x256xf32>
    %c0_53 = arith.constant 0 : index
    %c0_54 = arith.constant 0 : index
    %85 = vector.load %arg71[%c0_53, %c0_54] : memref<8x256xf32, #tpu.memory_space<vmem>>, vector<8x256xf32>
    %cst_55 = arith.constant dense<0.000000e+00> : vector<2x256xf32>
    %86 = tpu.matmul %0, %85, %cst_55 {dimension_numbers = #tpu.dot_dimension_numbers<[1], [0], [0], [1], [0, 0, 1, 1], [], []>} : vector<2x8xf32>, vector<8x256xf32>, vector<2x256xf32> -> vector<2x256xf32>
    %c0_56 = arith.constant 0 : index
    %c0_57 = arith.constant 0 : index
    %87 = vector.load %arg70[%c0_56, %c0_57] : memref<1x256xf32, #tpu.memory_space<vmem>>, vector<1x256xf32>
    %88 = vector.broadcast %87 : vector<1x256xf32> to vector<2x256xf32>
    %89 = arith.addf %86, %88 : vector<2x256xf32>
    %90 = arith.addf %84, %89 : vector<2x256xf32>
    %c0_58 = arith.constant 0 : index
    %c0_59 = arith.constant 0 : index
    %91 = vector.load %arg74[%c0_58, %c0_59] : memref<256x128xf32, #tpu.memory_space<vmem>>, vector<256x128xf32>
    %cst_60 = arith.constant dense<0.000000e+00> : vector<2x128xf32>
    %92 = tpu.matmul %90, %91, %cst_60 {dimension_numbers = #tpu.dot_dimension_numbers<[1], [0], [0], [1], [0, 0, 1, 1], [], []>} : vector<2x256xf32>, vector<256x128xf32>, vector<2x128xf32> -> vector<2x128xf32>
    %c0_61 = arith.constant 0 : index
    %c0_62 = arith.constant 0 : index
    %93 = vector.load %arg69[%c0_61, %c0_62] : memref<1x128xf32, #tpu.memory_space<vmem>>, vector<1x128xf32>
    %94 = vector.broadcast %93 : vector<1x128xf32> to vector<2x128xf32>
    %95 = arith.addf %92, %94 : vector<2x128xf32>
    %c0_63 = arith.constant 0 : index
    %c0_64 = arith.constant 0 : index
    %96 = vector.load %arg7[%c0_63, %c0_64] : memref<128x256xf32, #tpu.memory_space<vmem>>, vector<128x256xf32>
    %cst_65 = arith.constant dense<0.000000e+00> : vector<2x256xf32>
    %97 = tpu.matmul %95, %96, %cst_65 {dimension_numbers = #tpu.dot_dimension_numbers<[1], [0], [0], [1], [0, 0, 1, 1], [], []>} : vector<2x128xf32>, vector<128x256xf32>, vector<2x256xf32> -> vector<2x256xf32>
    %c0_66 = arith.constant 0 : index
    %c0_67 = arith.constant 0 : index
    %98 = vector.load %arg2[%c0_66, %c0_67] : memref<1x256xf32, #tpu.memory_space<vmem>>, vector<1x256xf32>
    %99 = vector.broadcast %98 : vector<1x256xf32> to vector<2x256xf32>
    %100 = arith.addf %97, %99 : vector<2x256xf32>
    %101 = arith.negf %100 : vector<2x256xf32>
    %102 = math.exp %101 : vector<2x256xf32>
    %cst_68 = arith.constant 1.000000e+00 : f32
    %103 = vector.broadcast %cst_68 : f32 to vector<2x256xf32>
    %104 = arith.addf %103, %102 : vector<2x256xf32>
    %105 = arith.divf %103, %104 : vector<2x256xf32>
    %106 = arith.mulf %100, %105 : vector<2x256xf32>
    %c0_69 = arith.constant 0 : index
    %c0_70 = arith.constant 0 : index
    %107 = vector.load %arg8[%c0_69, %c0_70] : memref<256x256xf32, #tpu.memory_space<vmem>>, vector<256x256xf32>
    %cst_71 = arith.constant dense<0.000000e+00> : vector<2x256xf32>
    %108 = tpu.matmul %106, %107, %cst_71 {dimension_numbers = #tpu.dot_dimension_numbers<[1], [0], [0], [1], [0, 0, 1, 1], [], []>} : vector<2x256xf32>, vector<256x256xf32>, vector<2x256xf32> -> vector<2x256xf32>
    %c0_72 = arith.constant 0 : index
    %c0_73 = arith.constant 0 : index
    %109 = vector.load %arg3[%c0_72, %c0_73] : memref<1x256xf32, #tpu.memory_space<vmem>>, vector<1x256xf32>
    %110 = vector.broadcast %109 : vector<1x256xf32> to vector<2x256xf32>
    %111 = arith.addf %108, %110 : vector<2x256xf32>
    %112 = arith.negf %111 : vector<2x256xf32>
    %113 = math.exp %112 : vector<2x256xf32>
    %cst_74 = arith.constant 1.000000e+00 : f32
    %114 = vector.broadcast %cst_74 : f32 to vector<2x256xf32>
    %115 = arith.addf %114, %113 : vector<2x256xf32>
    %116 = arith.divf %114, %115 : vector<2x256xf32>
    %117 = arith.mulf %111, %116 : vector<2x256xf32>
    %c0_75 = arith.constant 0 : index
    %c0_76 = arith.constant 0 : index
    %118 = vector.load %arg6[%c0_75, %c0_76] : memref<8x256xf32, #tpu.memory_space<vmem>>, vector<8x256xf32>
    %cst_77 = arith.constant dense<0.000000e+00> : vector<2x256xf32>
    %119 = tpu.matmul %0, %118, %cst_77 {dimension_numbers = #tpu.dot_dimension_numbers<[1], [0], [0], [1], [0, 0, 1, 1], [], []>} : vector<2x8xf32>, vector<8x256xf32>, vector<2x256xf32> -> vector<2x256xf32>
    %c0_78 = arith.constant 0 : index
    %c0_79 = arith.constant 0 : index
    %120 = vector.load %arg5[%c0_78, %c0_79] : memref<1x256xf32, #tpu.memory_space<vmem>>, vector<1x256xf32>
    %121 = vector.broadcast %120 : vector<1x256xf32> to vector<2x256xf32>
    %122 = arith.addf %119, %121 : vector<2x256xf32>
    %123 = arith.addf %117, %122 : vector<2x256xf32>
    %c0_80 = arith.constant 0 : index
    %c0_81 = arith.constant 0 : index
    %124 = vector.load %arg9[%c0_80, %c0_81] : memref<256x128xf32, #tpu.memory_space<vmem>>, vector<256x128xf32>
    %cst_82 = arith.constant dense<0.000000e+00> : vector<2x128xf32>
    %125 = tpu.matmul %123, %124, %cst_82 {dimension_numbers = #tpu.dot_dimension_numbers<[1], [0], [0], [1], [0, 0, 1, 1], [], []>} : vector<2x256xf32>, vector<256x128xf32>, vector<2x128xf32> -> vector<2x128xf32>
    %c0_83 = arith.constant 0 : index
    %c0_84 = arith.constant 0 : index
    %126 = vector.load %arg4[%c0_83, %c0_84] : memref<1x128xf32, #tpu.memory_space<vmem>>, vector<1x128xf32>
    %127 = vector.broadcast %126 : vector<1x128xf32> to vector<2x128xf32>
    %128 = arith.addf %125, %127 : vector<2x128xf32>
    %c0_85 = arith.constant 0 : index
    %c0_86 = arith.constant 0 : index
    %129 = vector.load %arg48[%c0_85, %c0_86] : memref<128x256xf32, #tpu.memory_space<vmem>>, vector<128x256xf32>
    %cst_87 = arith.constant dense<0.000000e+00> : vector<2x256xf32>
    %130 = tpu.matmul %128, %129, %cst_87 {dimension_numbers = #tpu.dot_dimension_numbers<[1], [0], [0], [1], [0, 0, 1, 1], [], []>} : vector<2x128xf32>, vector<128x256xf32>, vector<2x256xf32> -> vector<2x256xf32>
    %c0_88 = arith.constant 0 : index
    %c0_89 = arith.constant 0 : index
    %131 = vector.load %arg43[%c0_88, %c0_89] : memref<1x256xf32, #tpu.memory_space<vmem>>, vector<1x256xf32>
    %132 = vector.broadcast %131 : vector<1x256xf32> to vector<2x256xf32>
    %133 = arith.addf %130, %132 : vector<2x256xf32>
    %134 = arith.negf %133 : vector<2x256xf32>
    %135 = math.exp %134 : vector<2x256xf32>
    %cst_90 = arith.constant 1.000000e+00 : f32
    %136 = vector.broadcast %cst_90 : f32 to vector<2x256xf32>
    %137 = arith.addf %136, %135 : vector<2x256xf32>
    %138 = arith.divf %136, %137 : vector<2x256xf32>
    %139 = arith.mulf %133, %138 : vector<2x256xf32>
    %c0_91 = arith.constant 0 : index
    %c0_92 = arith.constant 0 : index
    %140 = vector.load %arg49[%c0_91, %c0_92] : memref<256x128xf32, #tpu.memory_space<vmem>>, vector<256x128xf32>
    %cst_93 = arith.constant dense<0.000000e+00> : vector<2x128xf32>
    %141 = tpu.matmul %139, %140, %cst_93 {dimension_numbers = #tpu.dot_dimension_numbers<[1], [0], [0], [1], [0, 0, 1, 1], [], []>} : vector<2x256xf32>, vector<256x128xf32>, vector<2x128xf32> -> vector<2x128xf32>
    %c0_94 = arith.constant 0 : index
    %c0_95 = arith.constant 0 : index
    %142 = vector.load %arg44[%c0_94, %c0_95] : memref<1x128xf32, #tpu.memory_space<vmem>>, vector<1x128xf32>
    %143 = vector.broadcast %142 : vector<1x128xf32> to vector<2x128xf32>
    %144 = arith.addf %141, %143 : vector<2x128xf32>
    %145 = arith.negf %144 : vector<2x128xf32>
    %146 = math.exp %145 : vector<2x128xf32>
    %cst_96 = arith.constant 1.000000e+00 : f32
    %147 = vector.broadcast %cst_96 : f32 to vector<2x128xf32>
    %148 = arith.addf %147, %146 : vector<2x128xf32>
    %149 = arith.divf %147, %148 : vector<2x128xf32>
    %150 = arith.mulf %144, %149 : vector<2x128xf32>
    %c0_97 = arith.constant 0 : index
    %c0_98 = arith.constant 0 : index
    %151 = vector.load %arg50[%c0_97, %c0_98] : memref<128x128xf32, #tpu.memory_space<vmem>>, vector<128x128xf32>
    %cst_99 = arith.constant dense<0.000000e+00> : vector<2x128xf32>
    %152 = tpu.matmul %150, %151, %cst_99 {dimension_numbers = #tpu.dot_dimension_numbers<[1], [0], [0], [1], [0, 0, 1, 1], [], []>} : vector<2x128xf32>, vector<128x128xf32>, vector<2x128xf32> -> vector<2x128xf32>
    %c0_100 = arith.constant 0 : index
    %c0_101 = arith.constant 0 : index
    %153 = vector.load %arg45[%c0_100, %c0_101] : memref<1x128xf32, #tpu.memory_space<vmem>>, vector<1x128xf32>
    %154 = vector.broadcast %153 : vector<1x128xf32> to vector<2x128xf32>
    %155 = arith.addf %152, %154 : vector<2x128xf32>
    %c0_102 = arith.constant 0 : index
    %c0_103 = arith.constant 0 : index
    %156 = vector.load %arg51[%c0_102, %c0_103] : memref<8x128xf32, #tpu.memory_space<vmem>>, vector<8x128xf32>
    %cst_104 = arith.constant dense<0.000000e+00> : vector<2x128xf32>
    %157 = tpu.matmul %0, %156, %cst_104 {dimension_numbers = #tpu.dot_dimension_numbers<[1], [0], [0], [1], [0, 0, 1, 1], [], []>} : vector<2x8xf32>, vector<8x128xf32>, vector<2x128xf32> -> vector<2x128xf32>
    %c0_105 = arith.constant 0 : index
    %c0_106 = arith.constant 0 : index
    %158 = vector.load %arg46[%c0_105, %c0_106] : memref<1x128xf32, #tpu.memory_space<vmem>>, vector<1x128xf32>
    %159 = vector.broadcast %158 : vector<1x128xf32> to vector<2x128xf32>
    %160 = arith.addf %157, %159 : vector<2x128xf32>
    %161 = arith.negf %160 : vector<2x128xf32>
    %162 = math.exp %161 : vector<2x128xf32>
    %cst_107 = arith.constant 1.000000e+00 : f32
    %163 = vector.broadcast %cst_107 : f32 to vector<2x128xf32>
    %164 = arith.addf %163, %162 : vector<2x128xf32>
    %165 = arith.divf %163, %164 : vector<2x128xf32>
    %166 = arith.mulf %160, %165 : vector<2x128xf32>
    %c0_108 = arith.constant 0 : index
    %c0_109 = arith.constant 0 : index
    %167 = vector.load %arg52[%c0_108, %c0_109] : memref<128x128xf32, #tpu.memory_space<vmem>>, vector<128x128xf32>
    %cst_110 = arith.constant dense<0.000000e+00> : vector<2x128xf32>
    %168 = tpu.matmul %166, %167, %cst_110 {dimension_numbers = #tpu.dot_dimension_numbers<[1], [0], [0], [1], [0, 0, 1, 1], [], []>} : vector<2x128xf32>, vector<128x128xf32>, vector<2x128xf32> -> vector<2x128xf32>
    %c0_111 = arith.constant 0 : index
    %c0_112 = arith.constant 0 : index
    %169 = vector.load %arg47[%c0_111, %c0_112] : memref<1x128xf32, #tpu.memory_space<vmem>>, vector<1x128xf32>
    %170 = vector.broadcast %169 : vector<1x128xf32> to vector<2x128xf32>
    %171 = arith.addf %168, %170 : vector<2x128xf32>
    %172 = arith.addf %155, %171 : vector<2x128xf32>
    %c0_113 = arith.constant 0 : index
    %c0_114 = arith.constant 0 : index
    %173 = vector.load %arg20[%c0_113, %c0_114] : memref<128x128xf32, #tpu.memory_space<vmem>>, vector<128x128xf32>
    %cst_115 = arith.constant dense<0.000000e+00> : vector<2x128xf32>
    %174 = tpu.matmul %172, %173, %cst_115 {dimension_numbers = #tpu.dot_dimension_numbers<[1], [0], [0], [1], [0, 0, 1, 1], [], []>} : vector<2x128xf32>, vector<128x128xf32>, vector<2x128xf32> -> vector<2x128xf32>
    %c0_116 = arith.constant 0 : index
    %c0_117 = arith.constant 0 : index
    %175 = vector.load %arg13[%c0_116, %c0_117] : memref<1x128xf32, #tpu.memory_space<vmem>>, vector<1x128xf32>
    %176 = vector.broadcast %175 : vector<1x128xf32> to vector<2x128xf32>
    %177 = arith.addf %174, %176 : vector<2x128xf32>
    %c0_118 = arith.constant 0 : index
    %c0_119 = arith.constant 0 : index
    %178 = vector.load %arg19[%c0_118, %c0_119] : memref<128x128xf32, #tpu.memory_space<vmem>>, vector<128x128xf32>
    %cst_120 = arith.constant dense<0.000000e+00> : vector<2x128xf32>
    %179 = tpu.matmul %95, %178, %cst_120 {dimension_numbers = #tpu.dot_dimension_numbers<[1], [0], [0], [1], [0, 0, 1, 1], [], []>} : vector<2x128xf32>, vector<128x128xf32>, vector<2x128xf32> -> vector<2x128xf32>
    %c0_121 = arith.constant 0 : index
    %c0_122 = arith.constant 0 : index
    %180 = vector.load %arg12[%c0_121, %c0_122] : memref<1x128xf32, #tpu.memory_space<vmem>>, vector<1x128xf32>
    %181 = vector.broadcast %180 : vector<1x128xf32> to vector<2x128xf32>
    %182 = arith.addf %179, %181 : vector<2x128xf32>
    %c0_123 = arith.constant 0 : index
    %c0_124 = arith.constant 0 : index
    %183 = vector.load %arg16[%c0_123, %c0_124] : memref<128x128xf32, #tpu.memory_space<vmem>>, vector<128x128xf32>
    %cst_125 = arith.constant dense<0.000000e+00> : vector<2x128xf32>
    %184 = tpu.matmul %177, %183, %cst_125 {dimension_numbers = #tpu.dot_dimension_numbers<[1], [0], [0], [1], [0, 0, 1, 1], [], []>} : vector<2x128xf32>, vector<128x128xf32>, vector<2x128xf32> -> vector<2x128xf32>
    %c0_126 = arith.constant 0 : index
    %c0_127 = arith.constant 0 : index
    %185 = vector.load %arg17[%c0_126, %c0_127] : memref<128x128xf32, #tpu.memory_space<vmem>>, vector<128x128xf32>
    %cst_128 = arith.constant dense<0.000000e+00> : vector<2x128xf32>
    %186 = tpu.matmul %182, %185, %cst_128 {dimension_numbers = #tpu.dot_dimension_numbers<[1], [0], [0], [1], [0, 0, 1, 1], [], []>} : vector<2x128xf32>, vector<128x128xf32>, vector<2x128xf32> -> vector<2x128xf32>
    %187 = arith.addf %184, %186 : vector<2x128xf32>
    %c0_129 = arith.constant 0 : index
    %c0_130 = arith.constant 0 : index
    %188 = vector.load %arg10[%c0_129, %c0_130] : memref<1x128xf32, #tpu.memory_space<vmem>>, vector<1x128xf32>
    %189 = vector.broadcast %188 : vector<1x128xf32> to vector<2x128xf32>
    %190 = arith.addf %187, %189 : vector<2x128xf32>
    %191 = arith.negf %190 : vector<2x128xf32>
    %192 = math.exp %191 : vector<2x128xf32>
    %cst_131 = arith.constant 1.000000e+00 : f32
    %193 = vector.broadcast %cst_131 : f32 to vector<2x128xf32>
    %194 = arith.addf %193, %192 : vector<2x128xf32>
    %195 = arith.divf %193, %194 : vector<2x128xf32>
    %196 = arith.mulf %190, %195 : vector<2x128xf32>
    %c0_132 = arith.constant 0 : index
    %c0_133 = arith.constant 0 : index
    %197 = vector.load %arg18[%c0_132, %c0_133] : memref<128x128xf32, #tpu.memory_space<vmem>>, vector<128x128xf32>
    %cst_134 = arith.constant dense<0.000000e+00> : vector<2x128xf32>
    %198 = tpu.matmul %196, %197, %cst_134 {dimension_numbers = #tpu.dot_dimension_numbers<[1], [0], [0], [1], [0, 0, 1, 1], [], []>} : vector<2x128xf32>, vector<128x128xf32>, vector<2x128xf32> -> vector<2x128xf32>
    %c0_135 = arith.constant 0 : index
    %c0_136 = arith.constant 0 : index
    %199 = vector.load %arg11[%c0_135, %c0_136] : memref<1x128xf32, #tpu.memory_space<vmem>>, vector<1x128xf32>
    %200 = vector.broadcast %199 : vector<1x128xf32> to vector<2x128xf32>
    %201 = arith.addf %198, %200 : vector<2x128xf32>
    %202 = arith.negf %201 : vector<2x128xf32>
    %203 = math.exp %202 : vector<2x128xf32>
    %cst_137 = arith.constant 1.000000e+00 : f32
    %204 = vector.broadcast %cst_137 : f32 to vector<2x128xf32>
    %205 = arith.addf %204, %203 : vector<2x128xf32>
    %206 = arith.divf %204, %205 : vector<2x128xf32>
    %207 = arith.mulf %201, %206 : vector<2x128xf32>
    %c0_138 = arith.constant 0 : index
    %c0_139 = arith.constant 0 : index
    %208 = vector.load %arg15[%c0_138, %c0_139] : memref<8x128xf32, #tpu.memory_space<vmem>>, vector<8x128xf32>
    %cst_140 = arith.constant dense<0.000000e+00> : vector<2x128xf32>
    %209 = tpu.matmul %0, %208, %cst_140 {dimension_numbers = #tpu.dot_dimension_numbers<[1], [0], [0], [1], [0, 0, 1, 1], [], []>} : vector<2x8xf32>, vector<8x128xf32>, vector<2x128xf32> -> vector<2x128xf32>
    %c0_141 = arith.constant 0 : index
    %c0_142 = arith.constant 0 : index
    %210 = vector.load %arg14[%c0_141, %c0_142] : memref<1x128xf32, #tpu.memory_space<vmem>>, vector<1x128xf32>
    %211 = vector.broadcast %210 : vector<1x128xf32> to vector<2x128xf32>
    %212 = arith.addf %209, %211 : vector<2x128xf32>
    %213 = arith.addf %207, %212 : vector<2x128xf32>
    %c0_143 = arith.constant 0 : index
    %c0_144 = arith.constant 0 : index
    %214 = vector.load %arg31[%c0_143, %c0_144] : memref<128x128xf32, #tpu.memory_space<vmem>>, vector<128x128xf32>
    %cst_145 = arith.constant dense<0.000000e+00> : vector<2x128xf32>
    %215 = tpu.matmul %213, %214, %cst_145 {dimension_numbers = #tpu.dot_dimension_numbers<[1], [0], [0], [1], [0, 0, 1, 1], [], []>} : vector<2x128xf32>, vector<128x128xf32>, vector<2x128xf32> -> vector<2x128xf32>
    %c0_146 = arith.constant 0 : index
    %c0_147 = arith.constant 0 : index
    %216 = vector.load %arg24[%c0_146, %c0_147] : memref<1x128xf32, #tpu.memory_space<vmem>>, vector<1x128xf32>
    %217 = vector.broadcast %216 : vector<1x128xf32> to vector<2x128xf32>
    %218 = arith.addf %215, %217 : vector<2x128xf32>
    %c0_148 = arith.constant 0 : index
    %c0_149 = arith.constant 0 : index
    %219 = vector.load %arg30[%c0_148, %c0_149] : memref<128x128xf32, #tpu.memory_space<vmem>>, vector<128x128xf32>
    %cst_150 = arith.constant dense<0.000000e+00> : vector<2x128xf32>
    %220 = tpu.matmul %62, %219, %cst_150 {dimension_numbers = #tpu.dot_dimension_numbers<[1], [0], [0], [1], [0, 0, 1, 1], [], []>} : vector<2x128xf32>, vector<128x128xf32>, vector<2x128xf32> -> vector<2x128xf32>
    %c0_151 = arith.constant 0 : index
    %c0_152 = arith.constant 0 : index
    %221 = vector.load %arg23[%c0_151, %c0_152] : memref<1x128xf32, #tpu.memory_space<vmem>>, vector<1x128xf32>
    %222 = vector.broadcast %221 : vector<1x128xf32> to vector<2x128xf32>
    %223 = arith.addf %220, %222 : vector<2x128xf32>
    %c0_153 = arith.constant 0 : index
    %c0_154 = arith.constant 0 : index
    %224 = vector.load %arg27[%c0_153, %c0_154] : memref<128x128xf32, #tpu.memory_space<vmem>>, vector<128x128xf32>
    %cst_155 = arith.constant dense<0.000000e+00> : vector<2x128xf32>
    %225 = tpu.matmul %218, %224, %cst_155 {dimension_numbers = #tpu.dot_dimension_numbers<[1], [0], [0], [1], [0, 0, 1, 1], [], []>} : vector<2x128xf32>, vector<128x128xf32>, vector<2x128xf32> -> vector<2x128xf32>
    %c0_156 = arith.constant 0 : index
    %c0_157 = arith.constant 0 : index
    %226 = vector.load %arg28[%c0_156, %c0_157] : memref<128x128xf32, #tpu.memory_space<vmem>>, vector<128x128xf32>
    %cst_158 = arith.constant dense<0.000000e+00> : vector<2x128xf32>
    %227 = tpu.matmul %223, %226, %cst_158 {dimension_numbers = #tpu.dot_dimension_numbers<[1], [0], [0], [1], [0, 0, 1, 1], [], []>} : vector<2x128xf32>, vector<128x128xf32>, vector<2x128xf32> -> vector<2x128xf32>
    %228 = arith.addf %225, %227 : vector<2x128xf32>
    %c0_159 = arith.constant 0 : index
    %c0_160 = arith.constant 0 : index
    %229 = vector.load %arg21[%c0_159, %c0_160] : memref<1x128xf32, #tpu.memory_space<vmem>>, vector<1x128xf32>
    %230 = vector.broadcast %229 : vector<1x128xf32> to vector<2x128xf32>
    %231 = arith.addf %228, %230 : vector<2x128xf32>
    %232 = arith.negf %231 : vector<2x128xf32>
    %233 = math.exp %232 : vector<2x128xf32>
    %cst_161 = arith.constant 1.000000e+00 : f32
    %234 = vector.broadcast %cst_161 : f32 to vector<2x128xf32>
    %235 = arith.addf %234, %233 : vector<2x128xf32>
    %236 = arith.divf %234, %235 : vector<2x128xf32>
    %237 = arith.mulf %231, %236 : vector<2x128xf32>
    %c0_162 = arith.constant 0 : index
    %c0_163 = arith.constant 0 : index
    %238 = vector.load %arg29[%c0_162, %c0_163] : memref<128x128xf32, #tpu.memory_space<vmem>>, vector<128x128xf32>
    %cst_164 = arith.constant dense<0.000000e+00> : vector<2x128xf32>
    %239 = tpu.matmul %237, %238, %cst_164 {dimension_numbers = #tpu.dot_dimension_numbers<[1], [0], [0], [1], [0, 0, 1, 1], [], []>} : vector<2x128xf32>, vector<128x128xf32>, vector<2x128xf32> -> vector<2x128xf32>
    %c0_165 = arith.constant 0 : index
    %c0_166 = arith.constant 0 : index
    %240 = vector.load %arg22[%c0_165, %c0_166] : memref<1x128xf32, #tpu.memory_space<vmem>>, vector<1x128xf32>
    %241 = vector.broadcast %240 : vector<1x128xf32> to vector<2x128xf32>
    %242 = arith.addf %239, %241 : vector<2x128xf32>
    %243 = arith.negf %242 : vector<2x128xf32>
    %244 = math.exp %243 : vector<2x128xf32>
    %cst_167 = arith.constant 1.000000e+00 : f32
    %245 = vector.broadcast %cst_167 : f32 to vector<2x128xf32>
    %246 = arith.addf %245, %244 : vector<2x128xf32>
    %247 = arith.divf %245, %246 : vector<2x128xf32>
    %248 = arith.mulf %242, %247 : vector<2x128xf32>
    %c0_168 = arith.constant 0 : index
    %c0_169 = arith.constant 0 : index
    %249 = vector.load %arg26[%c0_168, %c0_169] : memref<8x128xf32, #tpu.memory_space<vmem>>, vector<8x128xf32>
    %cst_170 = arith.constant dense<0.000000e+00> : vector<2x128xf32>
    %250 = tpu.matmul %0, %249, %cst_170 {dimension_numbers = #tpu.dot_dimension_numbers<[1], [0], [0], [1], [0, 0, 1, 1], [], []>} : vector<2x8xf32>, vector<8x128xf32>, vector<2x128xf32> -> vector<2x128xf32>
    %c0_171 = arith.constant 0 : index
    %c0_172 = arith.constant 0 : index
    %251 = vector.load %arg25[%c0_171, %c0_172] : memref<1x128xf32, #tpu.memory_space<vmem>>, vector<1x128xf32>
    %252 = vector.broadcast %251 : vector<1x128xf32> to vector<2x128xf32>
    %253 = arith.addf %250, %252 : vector<2x128xf32>
    %254 = arith.addf %248, %253 : vector<2x128xf32>
    %c0_173 = arith.constant 0 : index
    %c0_174 = arith.constant 0 : index
    %255 = vector.load %arg42[%c0_173, %c0_174] : memref<128x128xf32, #tpu.memory_space<vmem>>, vector<128x128xf32>
    %cst_175 = arith.constant dense<0.000000e+00> : vector<2x128xf32>
    %256 = tpu.matmul %254, %255, %cst_175 {dimension_numbers = #tpu.dot_dimension_numbers<[1], [0], [0], [1], [0, 0, 1, 1], [], []>} : vector<2x128xf32>, vector<128x128xf32>, vector<2x128xf32> -> vector<2x128xf32>
    %c0_176 = arith.constant 0 : index
    %c0_177 = arith.constant 0 : index
    %257 = vector.load %arg35[%c0_176, %c0_177] : memref<1x128xf32, #tpu.memory_space<vmem>>, vector<1x128xf32>
    %258 = vector.broadcast %257 : vector<1x128xf32> to vector<2x128xf32>
    %259 = arith.addf %256, %258 : vector<2x128xf32>
    %c0_178 = arith.constant 0 : index
    %c0_179 = arith.constant 0 : index
    %260 = vector.load %arg41[%c0_178, %c0_179] : memref<128x128xf32, #tpu.memory_space<vmem>>, vector<128x128xf32>
    %cst_180 = arith.constant dense<0.000000e+00> : vector<2x128xf32>
    %261 = tpu.matmul %29, %260, %cst_180 {dimension_numbers = #tpu.dot_dimension_numbers<[1], [0], [0], [1], [0, 0, 1, 1], [], []>} : vector<2x128xf32>, vector<128x128xf32>, vector<2x128xf32> -> vector<2x128xf32>
    %c0_181 = arith.constant 0 : index
    %c0_182 = arith.constant 0 : index
    %262 = vector.load %arg34[%c0_181, %c0_182] : memref<1x128xf32, #tpu.memory_space<vmem>>, vector<1x128xf32>
    %263 = vector.broadcast %262 : vector<1x128xf32> to vector<2x128xf32>
    %264 = arith.addf %261, %263 : vector<2x128xf32>
    %c0_183 = arith.constant 0 : index
    %c0_184 = arith.constant 0 : index
    %265 = vector.load %arg38[%c0_183, %c0_184] : memref<128x128xf32, #tpu.memory_space<vmem>>, vector<128x128xf32>
    %cst_185 = arith.constant dense<0.000000e+00> : vector<2x128xf32>
    %266 = tpu.matmul %259, %265, %cst_185 {dimension_numbers = #tpu.dot_dimension_numbers<[1], [0], [0], [1], [0, 0, 1, 1], [], []>} : vector<2x128xf32>, vector<128x128xf32>, vector<2x128xf32> -> vector<2x128xf32>
    %c0_186 = arith.constant 0 : index
    %c0_187 = arith.constant 0 : index
    %267 = vector.load %arg39[%c0_186, %c0_187] : memref<128x128xf32, #tpu.memory_space<vmem>>, vector<128x128xf32>
    %cst_188 = arith.constant dense<0.000000e+00> : vector<2x128xf32>
    %268 = tpu.matmul %264, %267, %cst_188 {dimension_numbers = #tpu.dot_dimension_numbers<[1], [0], [0], [1], [0, 0, 1, 1], [], []>} : vector<2x128xf32>, vector<128x128xf32>, vector<2x128xf32> -> vector<2x128xf32>
    %269 = arith.addf %266, %268 : vector<2x128xf32>
    %c0_189 = arith.constant 0 : index
    %c0_190 = arith.constant 0 : index
    %270 = vector.load %arg32[%c0_189, %c0_190] : memref<1x128xf32, #tpu.memory_space<vmem>>, vector<1x128xf32>
    %271 = vector.broadcast %270 : vector<1x128xf32> to vector<2x128xf32>
    %272 = arith.addf %269, %271 : vector<2x128xf32>
    %273 = arith.negf %272 : vector<2x128xf32>
    %274 = math.exp %273 : vector<2x128xf32>
    %cst_191 = arith.constant 1.000000e+00 : f32
    %275 = vector.broadcast %cst_191 : f32 to vector<2x128xf32>
    %276 = arith.addf %275, %274 : vector<2x128xf32>
    %277 = arith.divf %275, %276 : vector<2x128xf32>
    %278 = arith.mulf %272, %277 : vector<2x128xf32>
    %c0_192 = arith.constant 0 : index
    %c0_193 = arith.constant 0 : index
    %279 = vector.load %arg40[%c0_192, %c0_193] : memref<128x128xf32, #tpu.memory_space<vmem>>, vector<128x128xf32>
    %cst_194 = arith.constant dense<0.000000e+00> : vector<2x128xf32>
    %280 = tpu.matmul %278, %279, %cst_194 {dimension_numbers = #tpu.dot_dimension_numbers<[1], [0], [0], [1], [0, 0, 1, 1], [], []>} : vector<2x128xf32>, vector<128x128xf32>, vector<2x128xf32> -> vector<2x128xf32>
    %c0_195 = arith.constant 0 : index
    %c0_196 = arith.constant 0 : index
    %281 = vector.load %arg33[%c0_195, %c0_196] : memref<1x128xf32, #tpu.memory_space<vmem>>, vector<1x128xf32>
    %282 = vector.broadcast %281 : vector<1x128xf32> to vector<2x128xf32>
    %283 = arith.addf %280, %282 : vector<2x128xf32>
    %284 = arith.negf %283 : vector<2x128xf32>
    %285 = math.exp %284 : vector<2x128xf32>
    %cst_197 = arith.constant 1.000000e+00 : f32
    %286 = vector.broadcast %cst_197 : f32 to vector<2x128xf32>
    %287 = arith.addf %286, %285 : vector<2x128xf32>
    %288 = arith.divf %286, %287 : vector<2x128xf32>
    %289 = arith.mulf %283, %288 : vector<2x128xf32>
    %c0_198 = arith.constant 0 : index
    %c0_199 = arith.constant 0 : index
    %290 = vector.load %arg37[%c0_198, %c0_199] : memref<8x128xf32, #tpu.memory_space<vmem>>, vector<8x128xf32>
    %cst_200 = arith.constant dense<0.000000e+00> : vector<2x128xf32>
    %291 = tpu.matmul %0, %290, %cst_200 {dimension_numbers = #tpu.dot_dimension_numbers<[1], [0], [0], [1], [0, 0, 1, 1], [], []>} : vector<2x8xf32>, vector<8x128xf32>, vector<2x128xf32> -> vector<2x128xf32>
    %c0_201 = arith.constant 0 : index
    %c0_202 = arith.constant 0 : index
    %292 = vector.load %arg36[%c0_201, %c0_202] : memref<1x128xf32, #tpu.memory_space<vmem>>, vector<1x128xf32>
    %293 = vector.broadcast %292 : vector<1x128xf32> to vector<2x128xf32>
    %294 = arith.addf %291, %293 : vector<2x128xf32>
    %295 = arith.addf %289, %294 : vector<2x128xf32>
    %c0_203 = arith.constant 0 : index
    %c0_204 = arith.constant 0 : index
    %296 = vector.load %arg76[%c0_203, %c0_204] : memref<128x64xf32, #tpu.memory_space<vmem>>, vector<128x64xf32>
    %cst_205 = arith.constant dense<0.000000e+00> : vector<2x64xf32>
    %297 = tpu.matmul %295, %296, %cst_205 {dimension_numbers = #tpu.dot_dimension_numbers<[1], [0], [0], [1], [0, 0, 1, 1], [], []>} : vector<2x128xf32>, vector<128x64xf32>, vector<2x64xf32> -> vector<2x64xf32>
    %c0_206 = arith.constant 0 : index
    %c0_207 = arith.constant 0 : index
    %298 = vector.load %arg75[%c0_206, %c0_207] : memref<1x64xf32, #tpu.memory_space<vmem>>, vector<1x64xf32>
    %299 = vector.broadcast %298 : vector<1x64xf32> to vector<2x64xf32>
    %300 = arith.addf %297, %299 : vector<2x64xf32>
    %c0_208 = arith.constant 0 : index
    %c0_209 = arith.constant 0 : index
    %301 = vector.load %arg77[%c0_208, %c0_209] : memref<2x64xf32, #tpu.memory_space<vmem>>, vector<2x64xf32>
    tpu.vector_store %arg77[%c0_208, %c0_209], %300 {strides = array<i32>} : memref<2x64xf32, #tpu.memory_space<vmem>>, vector<2x64xf32>,
    return
  }
}

</mosaic_0001>

<llo_original>
// kernel: unet1d_forward_pallas.1
$region0: #{unet1d_forward_pallas.1}
  #allocation0 [shape = 'u32[]', space=smem, size = 0x4, offset = 0x4, fixed_abs, tag = 'smem constant byte address 0x4 - core index']
  #allocation1 [shape = 'u32[144,128]{1,0:T(1,128)}', space=vmem, size = 0x12000, scoped, tag = 'internal scratch']
  %s0 = inlined_call_operand.smem [shape: u32[78], index: -1, kind: input, shape index: {}]
  %s1 = sld [smem:[%s0]]
  %s2 = scalar_lea.smem %s0, 1
  %s3 = sld [smem:[%s2]]
  %s4 = scalar_lea.smem %s0, 2
  %s5 = sld [smem:[%s4]]
  %s6 = scalar_lea.smem %s0, 3
  %s7 = sld [smem:[%s6]]
  %s8 = scalar_lea.smem %s0, 4
  %s9 = sld [smem:[%s8]]
  %s10 = scalar_lea.smem %s0, 5
  %s11 = sld [smem:[%s10]]
  %s12 = scalar_lea.smem %s0, 6
  %s13 = sld [smem:[%s12]]
  %s14 = scalar_lea.smem %s0, 7
  %s15 = sld [smem:[%s14]]
  %s16 = scalar_lea.smem %s0, 8
  %s17 = sld [smem:[%s16]]
  %s18 = scalar_lea.smem %s0, 9
  %s19 = sld [smem:[%s18]]
  %s20 = scalar_lea.smem %s0, 10
  %s21 = sld [smem:[%s20]]
  %s22 = scalar_lea.smem %s0, 11
  %s23 = sld [smem:[%s22]]
  %s24 = scalar_lea.smem %s0, 12
  %s25 = sld [smem:[%s24]]
  %s26 = scalar_lea.smem %s0, 13
  %s27 = sld [smem:[%s26]]
  %s28 = scalar_lea.smem %s0, 14
  %s29 = sld [smem:[%s28]]
  %s30 = scalar_lea.smem %s0, 15
  %s31 = sld [smem:[%s30]]
  %s32 = scalar_lea.smem %s0, 16
  %s33 = sld [smem:[%s32]]
  %s34 = scalar_lea.smem %s0, 17
  %s35 = sld [smem:[%s34]]
  %s36 = scalar_lea.smem %s0, 18
  %s37 = sld [smem:[%s36]]
  %s38 = scalar_lea.smem %s0, 19
  %s39 = sld [smem:[%s38]]
  %s40 = scalar_lea.smem %s0, 20
  %s41 = sld [smem:[%s40]]
  %s42 = scalar_lea.smem %s0, 21
  %s43 = sld [smem:[%s42]]
  %s44 = scalar_lea.smem %s0, 22
  %s45 = sld [smem:[%s44]]
  %s46 = scalar_lea.smem %s0, 23
  %s47 = sld [smem:[%s46]]
  %s48 = scalar_lea.smem %s0, 24
  %s49 = sld [smem:[%s48]]
  %s50 = scalar_lea.smem %s0, 25
  %s51 = sld [smem:[%s50]]
  %s52 = scalar_lea.smem %s0, 26
  %s53 = sld [smem:[%s52]]
  %s54 = scalar_lea.smem %s0, 27
  %s55 = sld [smem:[%s54]]
  %s56 = scalar_lea.smem %s0, 28
  %s57 = sld [smem:[%s56]]
  %s58 = scalar_lea.smem %s0, 29
  %s59 = sld [smem:[%s58]]
  %s60 = scalar_lea.smem %s0, 30
  %s61 = sld [smem:[%s60]]
  %s62 = scalar_lea.smem %s0, 31
  %s63 = sld [smem:[%s62]]
  %s64 = scalar_lea.smem %s0, 32
  %s65 = sld [smem:[%s64]]
  %s66 = scalar_lea.smem %s0, 33
  %s67 = sld [smem:[%s66]]
  %s68 = scalar_lea.smem %s0, 34
  %s69 = sld [smem:[%s68]]
  %s70 = scalar_lea.smem %s0, 35
  %s71 = sld [smem:[%s70]]
  %s72 = scalar_lea.smem %s0, 36
  %s73 = sld [smem:[%s72]]
  %s74 = scalar_lea.smem %s0, 37
  %s75 = sld [smem:[%s74]]
  %s76 = scalar_lea.smem %s0, 38
  %s77 = sld [smem:[%s76]]
  %s78 = scalar_lea.smem %s0, 39
  %s79 = sld [smem:[%s78]]
  %s80 = scalar_lea.smem %s0, 40
  %s81 = sld [smem:[%s80]]
  %s82 = scalar_lea.smem %s0, 41
  %s83 = sld [smem:[%s82]]
  %s84 = scalar_lea.smem %s0, 42
  %s85 = sld [smem:[%s84]]
  %s86 = scalar_lea.smem %s0, 43
  %s87 = sld [smem:[%s86]]
  %s88 = scalar_lea.smem %s0, 44
  %s89 = sld [smem:[%s88]]
  %s90 = scalar_lea.smem %s0, 45
  %s91 = sld [smem:[%s90]]
  %s92 = scalar_lea.smem %s0, 46
  %s93 = sld [smem:[%s92]]
  %s94 = scalar_lea.smem %s0, 47
  %s95 = sld [smem:[%s94]]
  %s96 = scalar_lea.smem %s0, 48
  %s97 = sld [smem:[%s96]]
  %s98 = scalar_lea.smem %s0, 49
  %s99 = sld [smem:[%s98]]
  %s100 = scalar_lea.smem %s0, 50
  %s101 = sld [smem:[%s100]]
  %s102 = scalar_lea.smem %s0, 51
  %s103 = sld [smem:[%s102]]
  %s104 = scalar_lea.smem %s0, 52
  %s105 = sld [smem:[%s104]]
  %s106 = scalar_lea.smem %s0, 53
  %s107 = sld [smem:[%s106]]
  %s108 = scalar_lea.smem %s0, 54
  %s109 = sld [smem:[%s108]]
  %s110 = scalar_lea.smem %s0, 55
  %s111 = sld [smem:[%s110]]
  %s112 = scalar_lea.smem %s0, 56
  %s113 = sld [smem:[%s112]]
  %s114 = scalar_lea.smem %s0, 57
  %s115 = sld [smem:[%s114]]
  %s116 = scalar_lea.smem %s0, 58
  %s117 = sld [smem:[%s116]]
  %s118 = scalar_lea.smem %s0, 59
  %s119 = sld [smem:[%s118]]
  %s120 = scalar_lea.smem %s0, 60
  %s121 = sld [smem:[%s120]]
  %s122 = scalar_lea.smem %s0, 61
  %s123 = sld [smem:[%s122]]
  %s124 = scalar_lea.smem %s0, 62
  %s125 = sld [smem:[%s124]]
  %s126 = scalar_lea.smem %s0, 63
  %s127 = sld [smem:[%s126]]
  %s128 = scalar_lea.smem %s0, 64
  %s129 = sld [smem:[%s128]]
  %s130 = scalar_lea.smem %s0, 65
  %s131 = sld [smem:[%s130]]
  %s132 = scalar_lea.smem %s0, 66
  %s133 = sld [smem:[%s132]]
  %s134 = scalar_lea.smem %s0, 67
  %s135 = sld [smem:[%s134]]
  %s136 = scalar_lea.smem %s0, 68
  %s137 = sld [smem:[%s136]]
  %s138 = scalar_lea.smem %s0, 69
  %s139 = sld [smem:[%s138]]
  %s140 = scalar_lea.smem %s0, 70
  %s141 = sld [smem:[%s140]]
  %s142 = scalar_lea.smem %s0, 71
  %s143 = sld [smem:[%s142]]
  %s144 = scalar_lea.smem %s0, 72
  %s145 = sld [smem:[%s144]]
  %s146 = scalar_lea.smem %s0, 73
  %s147 = sld [smem:[%s146]]
  %s148 = scalar_lea.smem %s0, 74
  %s149 = sld [smem:[%s148]]
  %s150 = scalar_lea.smem %s0, 75
  %s151 = sld [smem:[%s150]]
  %s152 = scalar_lea.smem %s0, 76
  %s153 = sld [smem:[%s152]]
  %s154 = scalar_lea.smem %s0, 77
  %s155 = sld [smem:[%s154]]
  %s156 = sld [smem:[#allocation0]]
  $region598: #{unet1d_forward_pallas.1} parent=0
    _
  %s158 = ssub.s32 1, %s156
  %s159 = scalar_select 0, %s158, %s156
  $region1: #{unet1d_forward_pallas.1} parent=0
    #allocation2 [shape = 'u8[1024]{0}', space=vmem, size = 0x400, scoped, tag = 'input window, operand 2, single buffered']
    #allocation3 [shape = 's32[1]{0}', space=sflag, size = 0x4, scoped, tag = 'scoped memory for unet1d_forward_pallas.1']
    #allocation4 [shape = 's32[1]{0}', space=sflag, size = 0x4, scoped, tag = 'scoped memory for unet1d_forward_pallas.1']
    #allocation5 [shape = 'u8[1024]{0}', space=vmem, size = 0x400, scoped, tag = 'input window, operand 3, single buffered']
    #allocation6 [shape = 's32[1]{0}', space=sflag, size = 0x4, scoped, tag = 'scoped memory for unet1d_forward_pallas.1']
    #allocation7 [shape = 'u8[1024]{0}', space=vmem, size = 0x400, scoped, tag = 'input window, operand 5, single buffered']
    #allocation8 [shape = 'u8[8192]{0}', space=vmem, size = 0x2000, scoped, tag = 'input window, operand 6, single buffered']
    #allocation9 [shape = 's32[1]{0}', space=sflag, size = 0x4, scoped, tag = 'scoped memory for unet1d_forward_pallas.1']
    #allocation10 [shape = 'u8[131072]{0}', space=vmem, size = 0x20000, scoped, tag = 'input window, operand 7, single buffered']
    #allocation11 [shape = 'u8[262144]{0}', space=vmem, size = 0x40000, scoped, tag = 'input window, operand 8, single buffered']
    #allocation12 [shape = 's32[1]{0}', space=sflag, size = 0x4, scoped, tag = 'scoped memory for unet1d_forward_pallas.1']
    #allocation13 [shape = 'u8[131072]{0}', space=vmem, size = 0x20000, scoped, tag = 'input window, operand 9, single buffered']
    #allocation14 [shape = 'u8[512]{0}', space=vmem, size = 0x400, scoped, tag = 'input window, operand 10, single buffered']
    #allocation15 [shape = 's32[1]{0}', space=sflag, size = 0x4, scoped, tag = 'scoped memory for unet1d_forward_pallas.1']
    #allocation16 [shape = 'u8[512]{0}', space=vmem, size = 0x400, scoped, tag = 'input window, operand 11, single buffered']
    #allocation17 [shape = 'u8[512]{0}', space=vmem, size = 0x400, scoped, tag = 'input window, operand 12, single buffered']
    #allocation18 [shape = 's32[1]{0}', space=sflag, size = 0x4, scoped, tag = 'scoped memory for unet1d_forward_pallas.1']
    #allocation19 [shape = 'u8[512]{0}', space=vmem, size = 0x400, scoped, tag = 'input window, operand 13, single buffered']
    #allocation20 [shape = 'u8[512]{0}', space=vmem, size = 0x400, scoped, tag = 'input window, operand 14, single buffered']
    #allocation21 [shape = 's32[1]{0}', space=sflag, size = 0x4, scoped, tag = 'scoped memory for unet1d_forward_pallas.1']
    #allocation22 [shape = 'u8[4096]{0}', space=vmem, size = 0x1000, scoped, tag = 'input window, operand 15, single buffered']
    #allocation23 [shape = 'u8[65536]{0}', space=vmem, size = 0x10000, scoped, tag = 'input window, operand 16, single buffered']
    #allocation24 [shape = 's32[1]{0}', space=sflag, size = 0x4, scoped, tag = 'scoped memory for unet1d_forward_pallas.1']
    #allocation25 [shape = 'u8[65536]{0}', space=vmem, size = 0x10000, scoped, tag = 'input window, operand 17, single buffered']
    #allocation26 [shape = 'u8[65536]{0}', space=vmem, size = 0x10000, scoped, tag = 'input window, operand 18, single buffered']
    #allocation27 [shape = 's32[1]{0}', space=sflag, size = 0x4, scoped, tag = 'scoped memory for unet1d_forward_pallas.1']
    #allocation28 [shape = 'u8[65536]{0}', space=vmem, size = 0x10000, scoped, tag = 'input window, operand 19, single buffered']
    #allocation29 [shape = 'u8[65536]{0}', space=vmem, size = 0x10000, scoped, tag = 'input window, operand 20, single buffered']
    #allocation30 [shape = 's32[1]{0}', space=sflag, size = 0x4, scoped, tag = 'scoped memory for unet1d_forward_pallas.1']
    #allocation31 [shape = 'u8[512]{0}', space=vmem, size = 0x400, scoped, tag = 'input window, operand 21, single buffered']
    #allocation32 [shape = 'u8[512]{0}', space=vmem, size = 0x400, scoped, tag = 'input window, operand 22, single buffered']
    #allocation33 [shape = 's32[1]{0}', space=sflag, size = 0x4, scoped, tag = 'scoped memory for unet1d_forward_pallas.1']
    #allocation34 [shape = 'u8[512]{0}', space=vmem, size = 0x400, scoped, tag = 'input window, operand 23, single buffered']
    #allocation35 [shape = 'u8[512]{0}', space=vmem, size = 0x400, scoped, tag = 'input window, operand 24, single buffered']
    #allocation36 [shape = 's32[1]{0}', space=sflag, size = 0x4, scoped, tag = 'scoped memory for unet1d_forward_pallas.1']
    #allocation37 [shape = 'u8[512]{0}', space=vmem, size = 0x400, scoped, tag = 'input window, operand 25, single buffered']
    #allocation38 [shape = 'u8[4096]{0}', space=vmem, size = 0x1000, scoped, tag = 'input window, operand 26, single buffered']
    #allocation39 [shape = 's32[1]{0}', space=sflag, size = 0x4, scoped, tag = 'scoped memory for unet1d_forward_pallas.1']
    #allocation40 [shape = 'u8[65536]{0}', space=vmem, size = 0x10000, scoped, tag = 'input window, operand 27, single buffered']
    #allocation41 [shape = 'u8[65536]{0}', space=vmem, size = 0x10000, scoped, tag = 'input window, operand 28, single buffered']
    #allocation42 [shape = 's32[1]{0}', space=sflag, size = 0x4, scoped, tag = 'scoped memory for unet1d_forward_pallas.1']
    #allocation43 [shape = 'u8[65536]{0}', space=vmem, size = 0x10000, scoped, tag = 'input window, operand 29, single buffered']
    #allocation44 [shape = 'u8[65536]{0}', space=vmem, size = 0x10000, scoped, tag = 'input window, operand 30, single buffered']
    #allocation45 [shape = 's32[1]{0}', space=sflag, size = 0x4, scoped, tag = 'scoped memory for unet1d_forward_pallas.1']
    #allocation46 [shape = 'u8[65536]{0}', space=vmem, size = 0x10000, scoped, tag = 'input window, operand 31, single buffered']
    #allocation47 [shape = 'u8[512]{0}', space=vmem, size = 0x400, scoped, tag = 'input window, operand 32, single buffered']
    #allocation48 [shape = 's32[1]{0}', space=sflag, size = 0x4, scoped, tag = 'scoped memory for unet1d_forward_pallas.1']
    #allocation49 [shape = 'u8[512]{0}', space=vmem, size = 0x400, scoped, tag = 'input window, operand 33, single buffered']
    #allocation50 [shape = 'u8[512]{0}', space=vmem, size = 0x400, scoped, tag = 'input window, operand 34, single buffered']
    #allocation51 [shape = 's32[1]{0}', space=sflag, size = 0x4, scoped, tag = 'scoped memory for unet1d_forward_pallas.1']
    #allocation52 [shape = 'u8[512]{0}', space=vmem, size = 0x400, scoped, tag = 'input window, operand 35, single buffered']
    #allocation53 [shape = 'u8[512]{0}', space=vmem, size = 0x400, scoped, tag = 'input window, operand 36, single buffered']
    #allocation54 [shape = 's32[1]{0}', space=sflag, size = 0x4, scoped, tag = 'scoped memory for unet1d_forward_pallas.1']
    #allocation55 [shape = 'u8[4096]{0}', space=vmem, size = 0x1000, scoped, tag = 'input window, operand 37, single buffered']
    #allocation56 [shape = 'u8[65536]{0}', space=vmem, size = 0x10000, scoped, tag = 'input window, operand 38, single buffered']
    #allocation57 [shape = 's32[1]{0}', space=sflag, size = 0x4, scoped, tag = 'scoped memory for unet1d_forward_pallas.1']
    #allocation58 [shape = 'u8[65536]{0}', space=vmem, size = 0x10000, scoped, tag = 'input window, operand 39, single buffered']
    #allocation59 [shape = 'u8[65536]{0}', space=vmem, size = 0x10000, scoped, tag = 'input window, operand 40, single buffered']
    #allocation60 [shape = 's32[1]{0}', space=sflag, size = 0x4, scoped, tag = 'scoped memory for unet1d_forward_pallas.1']
    #allocation61 [shape = 'u8[65536]{0}', space=vmem, size = 0x10000, scoped, tag = 'input window, operand 41, single buffered']
    #allocation62 [shape = 'u8[65536]{0}', space=vmem, size = 0x10000, scoped, tag = 'input window, operand 42, single buffered']
    #allocation63 [shape = 's32[1]{0}', space=sflag, size = 0x4, scoped, tag = 'scoped memory for unet1d_forward_pallas.1']
    #allocation64 [shape = 'u8[1024]{0}', space=vmem, size = 0x400, scoped, tag = 'input window, operand 43, single buffered']
    #allocation65 [shape = 'u8[512]{0}', space=vmem, size = 0x400, scoped, tag = 'input window, operand 44, single buffered']
    #allocation66 [shape = 's32[1]{0}', space=sflag, size = 0x4, scoped, tag = 'scoped memory for unet1d_forward_pallas.1']
    #allocation67 [shape = 'u8[512]{0}', space=vmem, size = 0x400, scoped, tag = 'input window, operand 45, single buffered']
    #allocation68 [shape = 'u8[512]{0}', space=vmem, size = 0x400, scoped, tag = 'input window, operand 46, single buffered']
    #allocation69 [shape = 's32[1]{0}', space=sflag, size = 0x4, scoped, tag = 'scoped memory for unet1d_forward_pallas.1']
    #allocation70 [shape = 'u8[512]{0}', space=vmem, size = 0x400, scoped, tag = 'input window, operand 47, single buffered']
    #allocation71 [shape = 'u8[131072]{0}', space=vmem, size = 0x20000, scoped, tag = 'input window, operand 49, single buffered']
    #allocation72 [shape = 's32[1]{0}', space=sflag, size = 0x4, scoped, tag = 'scoped memory for unet1d_forward_pallas.1']
    #allocation73 [shape = 'u8[65536]{0}', space=vmem, size = 0x10000, scoped, tag = 'input window, operand 50, single buffered']
    #allocation74 [shape = 'u8[4096]{0}', space=vmem, size = 0x1000, scoped, tag = 'input window, operand 51, single buffered']
    #allocation75 [shape = 's32[1]{0}', space=sflag, size = 0x4, scoped, tag = 'scoped memory for unet1d_forward_pallas.1']
    #allocation76 [shape = 'u8[65536]{0}', space=vmem, size = 0x10000, scoped, tag = 'input window, operand 52, single buffered']
    #allocation77 [shape = 'u8[512]{0}', space=vmem, size = 0x400, scoped, tag = 'input window, operand 53, single buffered']
    #allocation78 [shape = 's32[1]{0}', space=sflag, size = 0x4, scoped, tag = 'scoped memory for unet1d_forward_pallas.1']
    #allocation79 [shape = 'u8[512]{0}', space=vmem, size = 0x400, scoped, tag = 'input window, operand 54, single buffered']
    #allocation80 [shape = 'u8[512]{0}', space=vmem, size = 0x400, scoped, tag = 'input window, operand 55, single buffered']
    #allocation81 [shape = 's32[1]{0}', space=sflag, size = 0x4, scoped, tag = 'scoped memory for unet1d_forward_pallas.1']
    #allocation82 [shape = 'u8[4096]{0}', space=vmem, size = 0x1000, scoped, tag = 'input window, operand 56, single buffered']
    #allocation83 [shape = 'u8[32768]{0}', space=vmem, size = 0x8000, scoped, tag = 'input window, operand 57, single buffered']
    #allocation84 [shape = 's32[1]{0}', space=sflag, size = 0x4, scoped, tag = 'scoped memory for unet1d_forward_pallas.1']
    #allocation85 [shape = 'u8[1024]{0}', space=vmem, size = 0x400, scoped, tag = 'input window, operand 59, single buffered']
    #allocation86 [shape = 'u8[1024]{0}', space=vmem, size = 0x400, scoped, tag = 'input window, operand 60, single buffered']
    #allocation87 [shape = 's32[1]{0}', space=sflag, size = 0x4, scoped, tag = 'scoped memory for unet1d_forward_pallas.1']
    #allocation88 [shape = 'u8[512]{0}', space=vmem, size = 0x400, scoped, tag = 'input window, operand 61, single buffered']
    #allocation89 [shape = 'u8[1024]{0}', space=vmem, size = 0x400, scoped, tag = 'input window, operand 62, single buffered']
    #allocation90 [shape = 's32[1]{0}', space=sflag, size = 0x4, scoped, tag = 'scoped memory for unet1d_forward_pallas.1']
    #allocation91 [shape = 'u8[8192]{0}', space=vmem, size = 0x2000, scoped, tag = 'input window, operand 63, single buffered']
    #allocation92 [shape = 'u8[131072]{0}', space=vmem, size = 0x20000, scoped, tag = 'input window, operand 64, single buffered']
    #allocation93 [shape = 's32[1]{0}', space=sflag, size = 0x4, scoped, tag = 'scoped memory for unet1d_forward_pallas.1']
    #allocation94 [shape = 'u8[262144]{0}', space=vmem, size = 0x40000, scoped, tag = 'input window, operand 65, single buffered']
    #allocation95 [shape = 'u8[131072]{0}', space=vmem, size = 0x20000, scoped, tag = 'input window, operand 66, single buffered']
    #allocation96 [shape = 's32[1]{0}', space=sflag, size = 0x4, scoped, tag = 'scoped memory for unet1d_forward_pallas.1']
    #allocation97 [shape = 'u8[1024]{0}', space=vmem, size = 0x400, scoped, tag = 'input window, operand 67, single buffered']
    #allocation98 [shape = 'u8[1024]{0}', space=vmem, size = 0x400, scoped, tag = 'input window, operand 68, single buffered']
    #allocation99 [shape = 's32[1]{0}', space=sflag, size = 0x4, scoped, tag = 'scoped memory for unet1d_forward_pallas.1']
    #allocation100 [shape = 'u8[512]{0}', space=vmem, size = 0x400, scoped, tag = 'input window, operand 69, single buffered']
    #allocation101 [shape = 'u8[1024]{0}', space=vmem, size = 0x400, scoped, tag = 'input window, operand 70, single buffered']
    #allocation102 [shape = 's32[1]{0}', space=sflag, size = 0x4, scoped, tag = 'scoped memory for unet1d_forward_pallas.1']
    #allocation103 [shape = 'u8[8192]{0}', space=vmem, size = 0x2000, scoped, tag = 'input window, operand 71, single buffered']
    #allocation104 [shape = 'u8[131072]{0}', space=vmem, size = 0x20000, scoped, tag = 'input window, operand 72, single buffered']
    #allocation105 [shape = 's32[1]{0}', space=sflag, size = 0x4, scoped, tag = 'scoped memory for unet1d_forward_pallas.1']
    #allocation106 [shape = 'u8[262144]{0}', space=vmem, size = 0x40000, scoped, tag = 'input window, operand 73, single buffered']
    #allocation107 [shape = 'u8[131072]{0}', space=vmem, size = 0x20000, scoped, tag = 'input window, operand 74, single buffered']
    #allocation108 [shape = 's32[1]{0}', space=sflag, size = 0x4, scoped, tag = 'scoped memory for unet1d_forward_pallas.1']
    #allocation109 [shape = 'u8[1024]{0}', space=vmem, size = 0x400, scoped, tag = 'output window, operand 0, single buffered']
    %160 = vsyncpa [#allocation3], 0
    %161 = vsyncpa [#allocation6], 0
    %162 = vsyncpa [#allocation9], 0
    %163 = vsyncpa [#allocation12], 0
    %164 = vsyncpa [#allocation15], 0
    %165 = vsyncpa [#allocation18], 0
    %166 = vsyncpa [#allocation21], 0
    %167 = vsyncpa [#allocation24], 0
    %168 = vsyncpa [#allocation27], 0
    %169 = vsyncpa [#allocation30], 0
    %170 = vsyncpa [#allocation33], 0
    %171 = vsyncpa [#allocation36], 0
    %172 = vsyncpa [#allocation39], 0
    %173 = vsyncpa [#allocation42], 0
    %174 = vsyncpa [#allocation45], 0
    %175 = vsyncpa [#allocation48], 0
    %176 = vsyncpa [#allocation51], 0
    %177 = vsyncpa [#allocation54], 0
    %178 = vsyncpa [#allocation57], 0
    %179 = vsyncpa [#allocation60], 0
    %180 = vsyncpa [#allocation63], 0
    %181 = vsyncpa [#allocation66], 0
    %182 = vsyncpa [#allocation69], 0
    %183 = vsyncpa [#allocation72], 0
    %184 = vsyncpa [#allocation75], 0
    %185 = vsyncpa [#allocation78], 0
    %186 = vsyncpa [#allocation81], 0
    %187 = vsyncpa [#allocation84], 0
    %188 = vsyncpa [#allocation87], 0
    %189 = vsyncpa [#allocation90], 0
    %190 = vsyncpa [#allocation93], 0
    %191 = vsyncpa [#allocation96], 0
    %192 = vsyncpa [#allocation99], 0
    %193 = vsyncpa [#allocation102], 0
    %194 = vsyncpa [#allocation105], 0
    %195 = vsyncpa [#allocation108], 0
    %196 = vsyncpa [#allocation4], 0
    // Predicated region
    $region2: #{unet1d_forward_pallas.1} parent=1 // pred_check
      _
    $region3: #{unet1d_forward_pallas.1} parent=1 // pred_check_branch
      %198 = sbr.rel (0) target = $region5
    $region4: #{unet1d_forward_pallas.1} parent=1 // pred_region
      _
    $region5: #{unet1d_forward_pallas.1} parent=1 // pred_fallthru
      _
    // Predicated region
    $region6: #{unet1d_forward_pallas.1} parent=1 // pred_check
      _
    $region7: #{unet1d_forward_pallas.1} parent=1 // pred_check_branch
      %200 = sbr.rel (0) target = $region9
    $region8: #{unet1d_forward_pallas.1} parent=1 // pred_region
      _
    $region9: #{unet1d_forward_pallas.1} parent=1 // pred_fallthru
      _
    // Predicated region
    $region10: #{unet1d_forward_pallas.1} parent=1 // pred_check
      _
    $region11: #{unet1d_forward_pallas.1} parent=1 // pred_check_branch
      %202 = sbr.rel (0) target = $region13
    $region12: #{unet1d_forward_pallas.1} parent=1 // pred_region
      %s204 = ssub.s32 32, 32
      %205 = vsyncadd [#allocation3], %s204
      %s207 = sshll.u32 [#allocation2], 4
      %s208 = int_to_ptr.vmem [resolvable:$true] %s207
      %210 = dma.hbm_to_vmem [thread:$0]  %s5, 32, %s208, [#allocation3]
    $region13: #{unet1d_forward_pallas.1} parent=1 // pred_fallthru
      _
    // Predicated region
    $region14: #{unet1d_forward_pallas.1} parent=1 // pred_check
      _
    $region15: #{unet1d_forward_pallas.1} parent=1 // pred_check_branch
      %212 = sbr.rel (0) target = $region17
    $region16: #{unet1d_forward_pallas.1} parent=1 // pred_region
      %s214 = ssub.s32 32, 32
      %215 = vsyncadd [#allocation6], %s214
      %s217 = sshll.u32 [#allocation5], 4
      %s218 = int_to_ptr.vmem [resolvable:$true] %s217
      %220 = dma.hbm_to_vmem [thread:$0]  %s7, 32, %s218, [#allocation6]
    $region17: #{unet1d_forward_pallas.1} parent=1 // pred_fallthru
      _
    // Predicated region
    $region18: #{unet1d_forward_pallas.1} parent=1 // pred_check
      _
    $region19: #{unet1d_forward_pallas.1} parent=1 // pred_check_branch
      %222 = sbr.rel (0) target = $region21
    $region20: #{unet1d_forward_pallas.1} parent=1 // pred_region
      _
    $region21: #{unet1d_forward_pallas.1} parent=1 // pred_fallthru
      _
    // Predicated region
    $region22: #{unet1d_forward_pallas.1} parent=1 // pred_check
      _
    $region23: #{unet1d_forward_pallas.1} parent=1 // pred_check_branch
      %224 = sbr.rel (0) target = $region25
    $region24: #{unet1d_forward_pallas.1} parent=1 // pred_region
      %s226 = ssub.s32 32, 32
      %227 = vsyncadd [#allocation6], %s226
      %s229 = sshll.u32 [#allocation7], 4
      %s230 = int_to_ptr.vmem [resolvable:$true] %s229
      %232 = dma.hbm_to_vmem [thread:$0]  %s11, 32, %s230, [#allocation6]
    $region25: #{unet1d_forward_pallas.1} parent=1 // pred_fallthru
      _
    // Predicated region
    $region26: #{unet1d_forward_pallas.1} parent=1 // pred_check
      _
    $region27: #{unet1d_forward_pallas.1} parent=1 // pred_check_branch
      %234 = sbr.rel (0) target = $region29
    $region28: #{unet1d_forward_pallas.1} parent=1 // pred_region
      %s236 = ssub.s32 256, 256
      %237 = vsyncadd [#allocation9], %s236
      %s239 = sshll.u32 [#allocation8], 4
      %s240 = int_to_ptr.vmem [resolvable:$true] %s239
      %242 = dma.hbm_to_vmem [thread:$0]  %s13, 256, %s240, [#allocation9]
    $region29: #{unet1d_forward_pallas.1} parent=1 // pred_fallthru
      _
    // Predicated region
    $region30: #{unet1d_forward_pallas.1} parent=1 // pred_check
      _
    $region31: #{unet1d_forward_pallas.1} parent=1 // pred_check_branch
      %244 = sbr.rel (0) target = $region33
    $region32: #{unet1d_forward_pallas.1} parent=1 // pred_region
      %s246 = ssub.s32 4096, 4096
      %247 = vsyncadd [#allocation9], %s246
      %s248 = sshll.u32 [#allocation10], 4
      %s249 = int_to_ptr.vmem [resolvable:$true] %s248
      %254 = dma.hbm_to_vmem [thread:$0]  %s15, 4096, %s249, [#allocation9], 256, 256, 16
    $region33: #{unet1d_forward_pallas.1} parent=1 // pred_fallthru
      _
    // Predicated region
    $region34: #{unet1d_forward_pallas.1} parent=1 // pred_check
      _
    $region35: #{unet1d_forward_pallas.1} parent=1 // pred_check_branch
      %256 = sbr.rel (0) target = $region37
    $region36: #{unet1d_forward_pallas.1} parent=1 // pred_region
      %s258 = ssub.s32 8192, 8192
      %259 = vsyncadd [#allocation12], %s258
      %s260 = sshll.u32 [#allocation11], 4
      %s261 = int_to_ptr.vmem [resolvable:$true] %s260
      %266 = dma.hbm_to_vmem [thread:$0]  %s17, 8192, %s261, [#allocation12], 256, 256, 16
    $region37: #{unet1d_forward_pallas.1} parent=1 // pred_fallthru
      _
    // Predicated region
    $region38: #{unet1d_forward_pallas.1} parent=1 // pred_check
      _
    $region39: #{unet1d_forward_pallas.1} parent=1 // pred_check_branch
      %268 = sbr.rel (0) target = $region41
    $region40: #{unet1d_forward_pallas.1} parent=1 // pred_region
      %s270 = ssub.s32 4096, 4096
      %271 = vsyncadd [#allocation12], %s270
      %s272 = sshll.u32 [#allocation13], 4
      %s273 = int_to_ptr.vmem [resolvable:$true] %s272
      %278 = dma.hbm_to_vmem [thread:$0]  %s19, 4096, %s273, [#allocation12], 128, 128, 8
    $region41: #{unet1d_forward_pallas.1} parent=1 // pred_fallthru
      _
    // Predicated region
    $region42: #{unet1d_forward_pallas.1} parent=1 // pred_check
      _
    $region43: #{unet1d_forward_pallas.1} parent=1 // pred_check_branch
      %280 = sbr.rel (0) target = $region45
    $region44: #{unet1d_forward_pallas.1} parent=1 // pred_region
      %s282 = ssub.s32 16, 16
      %283 = vsyncadd [#allocation15], %s282
      %s285 = sshll.u32 [#allocation14], 4
      %s286 = int_to_ptr.vmem [resolvable:$true] %s285
      %288 = dma.hbm_to_vmem [thread:$0]  %s21, 16, %s286, [#allocation15]
    $region45: #{unet1d_forward_pallas.1} parent=1 // pred_fallthru
      _
    // Predicated region
    $region46: #{unet1d_forward_pallas.1} parent=1 // pred_check
      _
    $region47: #{unet1d_forward_pallas.1} parent=1 // pred_check_branch
      %290 = sbr.rel (0) target = $region49
    $region48: #{unet1d_forward_pallas.1} parent=1 // pred_region
      %s292 = ssub.s32 16, 16
      %293 = vsyncadd [#allocation15], %s292
      %s295 = sshll.u32 [#allocation16], 4
      %s296 = int_to_ptr.vmem [resolvable:$true] %s295
      %298 = dma.hbm_to_vmem [thread:$0]  %s23, 16, %s296, [#allocation15]
    $region49: #{unet1d_forward_pallas.1} parent=1 // pred_fallthru
      _
    // Predicated region
    $region50: #{unet1d_forward_pallas.1} parent=1 // pred_check
      _
    $region51: #{unet1d_forward_pallas.1} parent=1 // pred_check_branch
      %300 = sbr.rel (0) target = $region53
    $region52: #{unet1d_forward_pallas.1} parent=1 // pred_region
      %s302 = ssub.s32 16, 16
      %303 = vsyncadd [#allocation18], %s302
      %s305 = sshll.u32 [#allocation17], 4
      %s306 = int_to_ptr.vmem [resolvable:$true] %s305
      %308 = dma.hbm_to_vmem [thread:$0]  %s25, 16, %s306, [#allocation18]
    $region53: #{unet1d_forward_pallas.1} parent=1 // pred_fallthru
      _
    // Predicated region
    $region54: #{unet1d_forward_pallas.1} parent=1 // pred_check
      _
    $region55: #{unet1d_forward_pallas.1} parent=1 // pred_check_branch
      %310 = sbr.rel (0) target = $region57
    $region56: #{unet1d_forward_pallas.1} parent=1 // pred_region
      %s312 = ssub.s32 16, 16
      %313 = vsyncadd [#allocation18], %s312
      %s315 = sshll.u32 [#allocation19], 4
      %s316 = int_to_ptr.vmem [resolvable:$true] %s315
      %318 = dma.hbm_to_vmem [thread:$0]  %s27, 16, %s316, [#allocation18]
    $region57: #{unet1d_forward_pallas.1} parent=1 // pred_fallthru
      _
    // Predicated region
    $region58: #{unet1d_forward_pallas.1} parent=1 // pred_check
      _
    $region59: #{unet1d_forward_pallas.1} parent=1 // pred_check_branch
      %320 = sbr.rel (0) target = $region61
    $region60: #{unet1d_forward_pallas.1} parent=1 // pred_region
      %s322 = ssub.s32 16, 16
      %323 = vsyncadd [#allocation21], %s322
      %s325 = sshll.u32 [#allocation20], 4
      %s326 = int_to_ptr.vmem [resolvable:$true] %s325
      %328 = dma.hbm_to_vmem [thread:$0]  %s29, 16, %s326, [#allocation21]
    $region61: #{unet1d_forward_pallas.1} parent=1 // pred_fallthru
      _
    // Predicated region
    $region62: #{unet1d_forward_pallas.1} parent=1 // pred_check
      _
    $region63: #{unet1d_forward_pallas.1} parent=1 // pred_check_branch
      %330 = sbr.rel (0) target = $region65
    $region64: #{unet1d_forward_pallas.1} parent=1 // pred_region
      %s332 = ssub.s32 128, 128
      %333 = vsyncadd [#allocation21], %s332
      %s335 = sshll.u32 [#allocation22], 4
      %s336 = int_to_ptr.vmem [resolvable:$true] %s335
      %338 = dma.hbm_to_vmem [thread:$0]  %s31, 128, %s336, [#allocation21]
    $region65: #{unet1d_forward_pallas.1} parent=1 // pred_fallthru
      _
    // Predicated region
    $region66: #{unet1d_forward_pallas.1} parent=1 // pred_check
      _
    $region67: #{unet1d_forward_pallas.1} parent=1 // pred_check_branch
      %340 = sbr.rel (0) target = $region69
    $region68: #{unet1d_forward_pallas.1} parent=1 // pred_region
      %s342 = ssub.s32 2048, 2048
      %343 = vsyncadd [#allocation24], %s342
      %s344 = sshll.u32 [#allocation23], 4
      %s345 = int_to_ptr.vmem [resolvable:$true] %s344
      %350 = dma.hbm_to_vmem [thread:$0]  %s33, 2048, %s345, [#allocation24], 128, 128, 8
    $region69: #{unet1d_forward_pallas.1} parent=1 // pred_fallthru
      _
    // Predicated region
    $region70: #{unet1d_forward_pallas.1} parent=1 // pred_check
      _
    $region71: #{unet1d_forward_pallas.1} parent=1 // pred_check_branch
      %352 = sbr.rel (0) target = $region73
    $region72: #{unet1d_forward_pallas.1} parent=1 // pred_region
      %s354 = ssub.s32 2048, 2048
      %355 = vsyncadd [#allocation24], %s354
      %s356 = sshll.u32 [#allocation25], 4
      %s357 = int_to_ptr.vmem [resolvable:$true] %s356
      %362 = dma.hbm_to_vmem [thread:$0]  %s35, 2048, %s357, [#allocation24], 128, 128, 8
    $region73: #{unet1d_forward_pallas.1} parent=1 // pred_fallthru
      _
    // Predicated region
    $region74: #{unet1d_forward_pallas.1} parent=1 // pred_check
      _
    $region75: #{unet1d_forward_pallas.1} parent=1 // pred_check_branch
      %364 = sbr.rel (0) target = $region77
    $region76: #{unet1d_forward_pallas.1} parent=1 // pred_region
      %s366 = ssub.s32 2048, 2048
      %367 = vsyncadd [#allocation27], %s366
      %s368 = sshll.u32 [#allocation26], 4
      %s369 = int_to_ptr.vmem [resolvable:$true] %s368
      %374 = dma.hbm_to_vmem [thread:$0]  %s37, 2048, %s369, [#allocation27], 128, 128, 8
    $region77: #{unet1d_forward_pallas.1} parent=1 // pred_fallthru
      _
    // Predicated region
    $region78: #{unet1d_forward_pallas.1} parent=1 // pred_check
      _
    $region79: #{unet1d_forward_pallas.1} parent=1 // pred_check_branch
      %376 = sbr.rel (0) target = $region81
    $region80: #{unet1d_forward_pallas.1} parent=1 // pred_region
      %s378 = ssub.s32 2048, 2048
      %379 = vsyncadd [#allocation27], %s378
      %s380 = sshll.u32 [#allocation28], 4
      %s381 = int_to_ptr.vmem [resolvable:$true] %s380
      %386 = dma.hbm_to_vmem [thread:$0]  %s39, 2048, %s381, [#allocation27], 128, 128, 8
    $region81: #{unet1d_forward_pallas.1} parent=1 // pred_fallthru
      _
    // Predicated region
    $region82: #{unet1d_forward_pallas.1} parent=1 // pred_check
      _
    $region83: #{unet1d_forward_pallas.1} parent=1 // pred_check_branch
      %388 = sbr.rel (0) target = $region85
    $region84: #{unet1d_forward_pallas.1} parent=1 // pred_region
      %s390 = ssub.s32 2048, 2048
      %391 = vsyncadd [#allocation30], %s390
      %s392 = sshll.u32 [#allocation29], 4
      %s393 = int_to_ptr.vmem [resolvable:$true] %s392
      %398 = dma.hbm_to_vmem [thread:$0]  %s41, 2048, %s393, [#allocation30], 128, 128, 8
    $region85: #{unet1d_forward_pallas.1} parent=1 // pred_fallthru
      _
    // Predicated region
    $region86: #{unet1d_forward_pallas.1} parent=1 // pred_check
      _
    $region87: #{unet1d_forward_pallas.1} parent=1 // pred_check_branch
      %400 = sbr.rel (0) target = $region89
    $region88: #{unet1d_forward_pallas.1} parent=1 // pred_region
      %s402 = ssub.s32 16, 16
      %403 = vsyncadd [#allocation30], %s402
      %s405 = sshll.u32 [#allocation31], 4
      %s406 = int_to_ptr.vmem [resolvable:$true] %s405
      %408 = dma.hbm_to_vmem [thread:$0]  %s43, 16, %s406, [#allocation30]
    $region89: #{unet1d_forward_pallas.1} parent=1 // pred_fallthru
      _
    // Predicated region
    $region90: #{unet1d_forward_pallas.1} parent=1 // pred_check
      _
    $region91: #{unet1d_forward_pallas.1} parent=1 // pred_check_branch
      %410 = sbr.rel (0) target = $region93
    $region92: #{unet1d_forward_pallas.1} parent=1 // pred_region
      %s412 = ssub.s32 16, 16
      %413 = vsyncadd [#allocation33], %s412
      %s415 = sshll.u32 [#allocation32], 4
      %s416 = int_to_ptr.vmem [resolvable:$true] %s415
      %418 = dma.hbm_to_vmem [thread:$0]  %s45, 16, %s416, [#allocation33]
    $region93: #{unet1d_forward_pallas.1} parent=1 // pred_fallthru
      _
    // Predicated region
    $region94: #{unet1d_forward_pallas.1} parent=1 // pred_check
      _
    $region95: #{unet1d_forward_pallas.1} parent=1 // pred_check_branch
      %420 = sbr.rel (0) target = $region97
    $region96: #{unet1d_forward_pallas.1} parent=1 // pred_region
      %s422 = ssub.s32 16, 16
      %423 = vsyncadd [#allocation33], %s422
      %s425 = sshll.u32 [#allocation34], 4
      %s426 = int_to_ptr.vmem [resolvable:$true] %s425
      %428 = dma.hbm_to_vmem [thread:$0]  %s47, 16, %s426, [#allocation33]
    $region97: #{unet1d_forward_pallas.1} parent=1 // pred_fallthru
      _
    // Predicated region
    $region98: #{unet1d_forward_pallas.1} parent=1 // pred_check
      _
    $region99: #{unet1d_forward_pallas.1} parent=1 // pred_check_branch
      %430 = sbr.rel (0) target = $region101
    $region100: #{unet1d_forward_pallas.1} parent=1 // pred_region
      %s432 = ssub.s32 16, 16
      %433 = vsyncadd [#allocation36], %s432
      %s435 = sshll.u32 [#allocation35], 4
      %s436 = int_to_ptr.vmem [resolvable:$true] %s435
      %438 = dma.hbm_to_vmem [thread:$0]  %s49, 16, %s436, [#allocation36]
    $region101: #{unet1d_forward_pallas.1} parent=1 // pred_fallthru
      _
    // Predicated region
    $region102: #{unet1d_forward_pallas.1} parent=1 // pred_check
      _
    $region103: #{unet1d_forward_pallas.1} parent=1 // pred_check_branch
      %440 = sbr.rel (0) target = $region105
    $region104: #{unet1d_forward_pallas.1} parent=1 // pred_region
      %s442 = ssub.s32 16, 16
      %443 = vsyncadd [#allocation36], %s442
      %s445 = sshll.u32 [#allocation37], 4
      %s446 = int_to_ptr.vmem [resolvable:$true] %s445
      %448 = dma.hbm_to_vmem [thread:$0]  %s51, 16, %s446, [#allocation36]
    $region105: #{unet1d_forward_pallas.1} parent=1 // pred_fallthru
      _
    // Predicated region
    $region106: #{unet1d_forward_pallas.1} parent=1 // pred_check
      _
    $region107: #{unet1d_forward_pallas.1} parent=1 // pred_check_branch
      %450 = sbr.rel (0) target = $region109
    $region108: #{unet1d_forward_pallas.1} parent=1 // pred_region
      %s452 = ssub.s32 128, 128
      %453 = vsyncadd [#allocation39], %s452
      %s455 = sshll.u32 [#allocation38], 4
      %s456 = int_to_ptr.vmem [resolvable:$true] %s455
      %458 = dma.hbm_to_vmem [thread:$0]  %s53, 128, %s456, [#allocation39]
    $region109: #{unet1d_forward_pallas.1} parent=1 // pred_fallthru
      _
    // Predicated region
    $region110: #{unet1d_forward_pallas.1} parent=1 // pred_check
      _
    $region111: #{unet1d_forward_pallas.1} parent=1 // pred_check_branch
      %460 = sbr.rel (0) target = $region113
    $region112: #{unet1d_forward_pallas.1} parent=1 // pred_region
      %s462 = ssub.s32 2048, 2048
      %463 = vsyncadd [#allocation39], %s462
      %s464 = sshll.u32 [#allocation40], 4
      %s465 = int_to_ptr.vmem [resolvable:$true] %s464
      %470 = dma.hbm_to_vmem [thread:$0]  %s55, 2048, %s465, [#allocation39], 128, 128, 8
    $region113: #{unet1d_forward_pallas.1} parent=1 // pred_fallthru
      _
    // Predicated region
    $region114: #{unet1d_forward_pallas.1} parent=1 // pred_check
      _
    $region115: #{unet1d_forward_pallas.1} parent=1 // pred_check_branch
      %472 = sbr.rel (0) target = $region117
    $region116: #{unet1d_forward_pallas.1} parent=1 // pred_region
      %s474 = ssub.s32 2048, 2048
      %475 = vsyncadd [#allocation42], %s474
      %s476 = sshll.u32 [#allocation41], 4
      %s477 = int_to_ptr.vmem [resolvable:$true] %s476
      %482 = dma.hbm_to_vmem [thread:$0]  %s57, 2048, %s477, [#allocation42], 128, 128, 8
    $region117: #{unet1d_forward_pallas.1} parent=1 // pred_fallthru
      _
    // Predicated region
    $region118: #{unet1d_forward_pallas.1} parent=1 // pred_check
      _
    $region119: #{unet1d_forward_pallas.1} parent=1 // pred_check_branch
      %484 = sbr.rel (0) target = $region121
    $region120: #{unet1d_forward_pallas.1} parent=1 // pred_region
      %s486 = ssub.s32 2048, 2048
      %487 = vsyncadd [#allocation42], %s486
      %s488 = sshll.u32 [#allocation43], 4
      %s489 = int_to_ptr.vmem [resolvable:$true] %s488
      %494 = dma.hbm_to_vmem [thread:$0]  %s59, 2048, %s489, [#allocation42], 128, 128, 8
    $region121: #{unet1d_forward_pallas.1} parent=1 // pred_fallthru
      _
    // Predicated region
    $region122: #{unet1d_forward_pallas.1} parent=1 // pred_check
      _
    $region123: #{unet1d_forward_pallas.1} parent=1 // pred_check_branch
      %496 = sbr.rel (0) target = $region125
    $region124: #{unet1d_forward_pallas.1} parent=1 // pred_region
      %s498 = ssub.s32 2048, 2048
      %499 = vsyncadd [#allocation45], %s498
      %s500 = sshll.u32 [#allocation44], 4
      %s501 = int_to_ptr.vmem [resolvable:$true] %s500
      %506 = dma.hbm_to_vmem [thread:$0]  %s61, 2048, %s501, [#allocation45], 128, 128, 8
    $region125: #{unet1d_forward_pallas.1} parent=1 // pred_fallthru
      _
    // Predicated region
    $region126: #{unet1d_forward_pallas.1} parent=1 // pred_check
      _
    $region127: #{unet1d_forward_pallas.1} parent=1 // pred_check_branch
      %508 = sbr.rel (0) target = $region129
    $region128: #{unet1d_forward_pallas.1} parent=1 // pred_region
      %s510 = ssub.s32 2048, 2048
      %511 = vsyncadd [#allocation45], %s510
      %s512 = sshll.u32 [#allocation46], 4
      %s513 = int_to_ptr.vmem [resolvable:$true] %s512
      %518 = dma.hbm_to_vmem [thread:$0]  %s63, 2048, %s513, [#allocation45], 128, 128, 8
    $region129: #{unet1d_forward_pallas.1} parent=1 // pred_fallthru
      _
    // Predicated region
    $region130: #{unet1d_forward_pallas.1} parent=1 // pred_check
      _
    $region131: #{unet1d_forward_pallas.1} parent=1 // pred_check_branch
      %520 = sbr.rel (0) target = $region133
    $region132: #{unet1d_forward_pallas.1} parent=1 // pred_region
      %s522 = ssub.s32 16, 16
      %523 = vsyncadd [#allocation48], %s522
      %s525 = sshll.u32 [#allocation47], 4
      %s526 = int_to_ptr.vmem [resolvable:$true] %s525
      %528 = dma.hbm_to_vmem [thread:$0]  %s65, 16, %s526, [#allocation48]
    $region133: #{unet1d_forward_pallas.1} parent=1 // pred_fallthru
      _
    // Predicated region
    $region134: #{unet1d_forward_pallas.1} parent=1 // pred_check
      _
    $region135: #{unet1d_forward_pallas.1} parent=1 // pred_check_branch
      %530 = sbr.rel (0) target = $region137
    $region136: #{unet1d_forward_pallas.1} parent=1 // pred_region
      %s532 = ssub.s32 16, 16
      %533 = vsyncadd [#allocation48], %s532
      %s535 = sshll.u32 [#allocation49], 4
      %s536 = int_to_ptr.vmem [resolvable:$true] %s535
      %538 = dma.hbm_to_vmem [thread:$0]  %s67, 16, %s536, [#allocation48]
    $region137: #{unet1d_forward_pallas.1} parent=1 // pred_fallthru
      _
    // Predicated region
    $region138: #{unet1d_forward_pallas.1} parent=1 // pred_check
      _
    $region139: #{unet1d_forward_pallas.1} parent=1 // pred_check_branch
      %540 = sbr.rel (0) target = $region141
    $region140: #{unet1d_forward_pallas.1} parent=1 // pred_region
      %s542 = ssub.s32 16, 16
      %543 = vsyncadd [#allocation51], %s542
      %s545 = sshll.u32 [#allocation50], 4
      %s546 = int_to_ptr.vmem [resolvable:$true] %s545
      %548 = dma.hbm_to_vmem [thread:$0]  %s69, 16, %s546, [#allocation51]
    $region141: #{unet1d_forward_pallas.1} parent=1 // pred_fallthru
      _
    // Predicated region
    $region142: #{unet1d_forward_pallas.1} parent=1 // pred_check
      _
    $region143: #{unet1d_forward_pallas.1} parent=1 // pred_check_branch
      %550 = sbr.rel (0) target = $region145
    $region144: #{unet1d_forward_pallas.1} parent=1 // pred_region
      %s552 = ssub.s32 16, 16
      %553 = vsyncadd [#allocation51], %s552
      %s555 = sshll.u32 [#allocation52], 4
      %s556 = int_to_ptr.vmem [resolvable:$true] %s555
      %558 = dma.hbm_to_vmem [thread:$0]  %s71, 16, %s556, [#allocation51]
    $region145: #{unet1d_forward_pallas.1} parent=1 // pred_fallthru
      _
    // Predicated region
    $region146: #{unet1d_forward_pallas.1} parent=1 // pred_check
      _
    $region147: #{unet1d_forward_pallas.1} parent=1 // pred_check_branch
      %560 = sbr.rel (0) target = $region149
    $region148: #{unet1d_forward_pallas.1} parent=1 // pred_region
      %s562 = ssub.s32 16, 16
      %563 = vsyncadd [#allocation54], %s562
      %s565 = sshll.u32 [#allocation53], 4
      %s566 = int_to_ptr.vmem [resolvable:$true] %s565
      %568 = dma.hbm_to_vmem [thread:$0]  %s73, 16, %s566, [#allocation54]
    $region149: #{unet1d_forward_pallas.1} parent=1 // pred_fallthru
      _
    // Predicated region
    $region150: #{unet1d_forward_pallas.1} parent=1 // pred_check
      _
    $region151: #{unet1d_forward_pallas.1} parent=1 // pred_check_branch
      %570 = sbr.rel (0) target = $region153
    $region152: #{unet1d_forward_pallas.1} parent=1 // pred_region
      %s572 = ssub.s32 128, 128
      %573 = vsyncadd [#allocation54], %s572
      %s575 = sshll.u32 [#allocation55], 4
      %s576 = int_to_ptr.vmem [resolvable:$true] %s575
      %578 = dma.hbm_to_vmem [thread:$0]  %s75, 128, %s576, [#allocation54]
    $region153: #{unet1d_forward_pallas.1} parent=1 // pred_fallthru
      _
    // Predicated region
    $region154: #{unet1d_forward_pallas.1} parent=1 // pred_check
      _
    $region155: #{unet1d_forward_pallas.1} parent=1 // pred_check_branch
      %580 = sbr.rel (0) target = $region157
    $region156: #{unet1d_forward_pallas.1} parent=1 // pred_region
      %s582 = ssub.s32 2048, 2048
      %583 = vsyncadd [#allocation57], %s582
      %s584 = sshll.u32 [#allocation56], 4
      %s585 = int_to_ptr.vmem [resolvable:$true] %s584
      %590 = dma.hbm_to_vmem [thread:$0]  %s77, 2048, %s585, [#allocation57], 128, 128, 8
    $region157: #{unet1d_forward_pallas.1} parent=1 // pred_fallthru
      _
    // Predicated region
    $region158: #{unet1d_forward_pallas.1} parent=1 // pred_check
      _
    $region159: #{unet1d_forward_pallas.1} parent=1 // pred_check_branch
      %592 = sbr.rel (0) target = $region161
    $region160: #{unet1d_forward_pallas.1} parent=1 // pred_region
      %s594 = ssub.s32 2048, 2048
      %595 = vsyncadd [#allocation57], %s594
      %s596 = sshll.u32 [#allocation58], 4
      %s597 = int_to_ptr.vmem [resolvable:$true] %s596
      %602 = dma.hbm_to_vmem [thread:$0]  %s79, 2048, %s597, [#allocation57], 128, 128, 8
    $region161: #{unet1d_forward_pallas.1} parent=1 // pred_fallthru
      _
    // Predicated region
    $region162: #{unet1d_forward_pallas.1} parent=1 // pred_check
      _
    $region163: #{unet1d_forward_pallas.1} parent=1 // pred_check_branch
      %604 = sbr.rel (0) target = $region165
    $region164: #{unet1d_forward_pallas.1} parent=1 // pred_region
      %s606 = ssub.s32 2048, 2048
      %607 = vsyncadd [#allocation60], %s606
      %s608 = sshll.u32 [#allocation59], 4
      %s609 = int_to_ptr.vmem [resolvable:$true] %s608
      %614 = dma.hbm_to_vmem [thread:$0]  %s81, 2048, %s609, [#allocation60], 128, 128, 8
    $region165: #{unet1d_forward_pallas.1} parent=1 // pred_fallthru
      _
    // Predicated region
    $region166: #{unet1d_forward_pallas.1} parent=1 // pred_check
      _
    $region167: #{unet1d_forward_pallas.1} parent=1 // pred_check_branch
      %616 = sbr.rel (0) target = $region169
    $region168: #{unet1d_forward_pallas.1} parent=1 // pred_region
      %s618 = ssub.s32 2048, 2048
      %619 = vsyncadd [#allocation60], %s618
      %s620 = sshll.u32 [#allocation61], 4
      %s621 = int_to_ptr.vmem [resolvable:$true] %s620
      %626 = dma.hbm_to_vmem [thread:$0]  %s83, 2048, %s621, [#allocation60], 128, 128, 8
    $region169: #{unet1d_forward_pallas.1} parent=1 // pred_fallthru
      _
    // Predicated region
    $region170: #{unet1d_forward_pallas.1} parent=1 // pred_check
      _
    $region171: #{unet1d_forward_pallas.1} parent=1 // pred_check_branch
      %628 = sbr.rel (0) target = $region173
    $region172: #{unet1d_forward_pallas.1} parent=1 // pred_region
      %s630 = ssub.s32 2048, 2048
      %631 = vsyncadd [#allocation63], %s630
      %s632 = sshll.u32 [#allocation62], 4
      %s633 = int_to_ptr.vmem [resolvable:$true] %s632
      %638 = dma.hbm_to_vmem [thread:$0]  %s85, 2048, %s633, [#allocation63], 128, 128, 8
    $region173: #{unet1d_forward_pallas.1} parent=1 // pred_fallthru
      _
    // Predicated region
    $region174: #{unet1d_forward_pallas.1} parent=1 // pred_check
      _
    $region175: #{unet1d_forward_pallas.1} parent=1 // pred_check_branch
      %640 = sbr.rel (0) target = $region177
    $region176: #{unet1d_forward_pallas.1} parent=1 // pred_region
      %s642 = ssub.s32 32, 32
      %643 = vsyncadd [#allocation63], %s642
      %s645 = sshll.u32 [#allocation64], 4
      %s646 = int_to_ptr.vmem [resolvable:$true] %s645
      %648 = dma.hbm_to_vmem [thread:$0]  %s87, 32, %s646, [#allocation63]
    $region177: #{unet1d_forward_pallas.1} parent=1 // pred_fallthru
      _
    // Predicated region
    $region178: #{unet1d_forward_pallas.1} parent=1 // pred_check
      _
    $region179: #{unet1d_forward_pallas.1} parent=1 // pred_check_branch
      %650 = sbr.rel (0) target = $region181
    $region180: #{unet1d_forward_pallas.1} parent=1 // pred_region
      %s652 = ssub.s32 16, 16
      %653 = vsyncadd [#allocation66], %s652
      %s655 = sshll.u32 [#allocation65], 4
      %s656 = int_to_ptr.vmem [resolvable:$true] %s655
      %658 = dma.hbm_to_vmem [thread:$0]  %s89, 16, %s656, [#allocation66]
    $region181: #{unet1d_forward_pallas.1} parent=1 // pred_fallthru
      _
    // Predicated region
    $region182: #{unet1d_forward_pallas.1} parent=1 // pred_check
      _
    $region183: #{unet1d_forward_pallas.1} parent=1 // pred_check_branch
      %660 = sbr.rel (0) target = $region185
    $region184: #{unet1d_forward_pallas.1} parent=1 // pred_region
      %s662 = ssub.s32 16, 16
      %663 = vsyncadd [#allocation66], %s662
      %s665 = sshll.u32 [#allocation67], 4
      %s666 = int_to_ptr.vmem [resolvable:$true] %s665
      %668 = dma.hbm_to_vmem [thread:$0]  %s91, 16, %s666, [#allocation66]
    $region185: #{unet1d_forward_pallas.1} parent=1 // pred_fallthru
      _
    // Predicated region
    $region186: #{unet1d_forward_pallas.1} parent=1 // pred_check
      _
    $region187: #{unet1d_forward_pallas.1} parent=1 // pred_check_branch
      %670 = sbr.rel (0) target = $region189
    $region188: #{unet1d_forward_pallas.1} parent=1 // pred_region
      %s672 = ssub.s32 16, 16
      %673 = vsyncadd [#allocation69], %s672
      %s675 = sshll.u32 [#allocation68], 4
      %s676 = int_to_ptr.vmem [resolvable:$true] %s675
      %678 = dma.hbm_to_vmem [thread:$0]  %s93, 16, %s676, [#allocation69]
    $region189: #{unet1d_forward_pallas.1} parent=1 // pred_fallthru
      _
    // Predicated region
    $region190: #{unet1d_forward_pallas.1} parent=1 // pred_check
      _
    $region191: #{unet1d_forward_pallas.1} parent=1 // pred_check_branch
      %680 = sbr.rel (0) target = $region193
    $region192: #{unet1d_forward_pallas.1} parent=1 // pred_region
      %s682 = ssub.s32 16, 16
      %683 = vsyncadd [#allocation69], %s682
      %s685 = sshll.u32 [#allocation70], 4
      %s686 = int_to_ptr.vmem [resolvable:$true] %s685
      %688 = dma.hbm_to_vmem [thread:$0]  %s95, 16, %s686, [#allocation69]
    $region193: #{unet1d_forward_pallas.1} parent=1 // pred_fallthru
      _
    // Predicated region
    $region194: #{unet1d_forward_pallas.1} parent=1 // pred_check
      _
    $region195: #{unet1d_forward_pallas.1} parent=1 // pred_check_branch
      %690 = sbr.rel (0) target = $region197
    $region196: #{unet1d_forward_pallas.1} parent=1 // pred_region
      _
    $region197: #{unet1d_forward_pallas.1} parent=1 // pred_fallthru
      _
    // Predicated region
    $region198: #{unet1d_forward_pallas.1} parent=1 // pred_check
      _
    $region199: #{unet1d_forward_pallas.1} parent=1 // pred_check_branch
      %692 = sbr.rel (0) target = $region201
    $region200: #{unet1d_forward_pallas.1} parent=1 // pred_region
      %s694 = ssub.s32 4096, 4096
      %695 = vsyncadd [#allocation72], %s694
      %s696 = sshll.u32 [#allocation71], 4
      %s697 = int_to_ptr.vmem [resolvable:$true] %s696
      %702 = dma.hbm_to_vmem [thread:$0]  %s99, 4096, %s697, [#allocation72], 128, 128, 8
    $region201: #{unet1d_forward_pallas.1} parent=1 // pred_fallthru
      _
    // Predicated region
    $region202: #{unet1d_forward_pallas.1} parent=1 // pred_check
      _
    $region203: #{unet1d_forward_pallas.1} parent=1 // pred_check_branch
      %704 = sbr.rel (0) target = $region205
    $region204: #{unet1d_forward_pallas.1} parent=1 // pred_region
      %s706 = ssub.s32 2048, 2048
      %707 = vsyncadd [#allocation72], %s706
      %s708 = sshll.u32 [#allocation73], 4
      %s709 = int_to_ptr.vmem [resolvable:$true] %s708
      %714 = dma.hbm_to_vmem [thread:$0]  %s101, 2048, %s709, [#allocation72], 128, 128, 8
    $region205: #{unet1d_forward_pallas.1} parent=1 // pred_fallthru
      _
    // Predicated region
    $region206: #{unet1d_forward_pallas.1} parent=1 // pred_check
      _
    $region207: #{unet1d_forward_pallas.1} parent=1 // pred_check_branch
      %716 = sbr.rel (0) target = $region209
    $region208: #{unet1d_forward_pallas.1} parent=1 // pred_region
      %s718 = ssub.s32 128, 128
      %719 = vsyncadd [#allocation75], %s718
      %s721 = sshll.u32 [#allocation74], 4
      %s722 = int_to_ptr.vmem [resolvable:$true] %s721
      %724 = dma.hbm_to_vmem [thread:$0]  %s103, 128, %s722, [#allocation75]
    $region209: #{unet1d_forward_pallas.1} parent=1 // pred_fallthru
      _
    // Predicated region
    $region210: #{unet1d_forward_pallas.1} parent=1 // pred_check
      _
    $region211: #{unet1d_forward_pallas.1} parent=1 // pred_check_branch
      %726 = sbr.rel (0) target = $region213
    $region212: #{unet1d_forward_pallas.1} parent=1 // pred_region
      %s728 = ssub.s32 2048, 2048
      %729 = vsyncadd [#allocation75], %s728
      %s730 = sshll.u32 [#allocation76], 4
      %s731 = int_to_ptr.vmem [resolvable:$true] %s730
      %736 = dma.hbm_to_vmem [thread:$0]  %s105, 2048, %s731, [#allocation75], 128, 128, 8
    $region213: #{unet1d_forward_pallas.1} parent=1 // pred_fallthru
      _
    // Predicated region
    $region214: #{unet1d_forward_pallas.1} parent=1 // pred_check
      _
    $region215: #{unet1d_forward_pallas.1} parent=1 // pred_check_branch
      %738 = sbr.rel (0) target = $region217
    $region216: #{unet1d_forward_pallas.1} parent=1 // pred_region
      %s740 = ssub.s32 16, 16
      %741 = vsyncadd [#allocation78], %s740
      %s743 = sshll.u32 [#allocation77], 4
      %s744 = int_to_ptr.vmem [resolvable:$true] %s743
      %746 = dma.hbm_to_vmem [thread:$0]  %s107, 16, %s744, [#allocation78]
    $region217: #{unet1d_forward_pallas.1} parent=1 // pred_fallthru
      _
    // Predicated region
    $region218: #{unet1d_forward_pallas.1} parent=1 // pred_check
      _
    $region219: #{unet1d_forward_pallas.1} parent=1 // pred_check_branch
      %748 = sbr.rel (0) target = $region221
    $region220: #{unet1d_forward_pallas.1} parent=1 // pred_region
      %s750 = ssub.s32 16, 16
      %751 = vsyncadd [#allocation78], %s750
      %s753 = sshll.u32 [#allocation79], 4
      %s754 = int_to_ptr.vmem [resolvable:$true] %s753
      %756 = dma.hbm_to_vmem [thread:$0]  %s109, 16, %s754, [#allocation78]
    $region221: #{unet1d_forward_pallas.1} parent=1 // pred_fallthru
      _
    // Predicated region
    $region222: #{unet1d_forward_pallas.1} parent=1 // pred_check
      _
    $region223: #{unet1d_forward_pallas.1} parent=1 // pred_check_branch
      %758 = sbr.rel (0) target = $region225
    $region224: #{unet1d_forward_pallas.1} parent=1 // pred_region
      %s760 = ssub.s32 16, 16
      %761 = vsyncadd [#allocation81], %s760
      %s763 = sshll.u32 [#allocation80], 4
      %s764 = int_to_ptr.vmem [resolvable:$true] %s763
      %766 = dma.hbm_to_vmem [thread:$0]  %s111, 16, %s764, [#allocation81]
    $region225: #{unet1d_forward_pallas.1} parent=1 // pred_fallthru
      _
    // Predicated region
    $region226: #{unet1d_forward_pallas.1} parent=1 // pred_check
      _
    $region227: #{unet1d_forward_pallas.1} parent=1 // pred_check_branch
      %768 = sbr.rel (0) target = $region229
    $region228: #{unet1d_forward_pallas.1} parent=1 // pred_region
      %s770 = ssub.s32 128, 128
      %771 = vsyncadd [#allocation81], %s770
      %s773 = sshll.u32 [#allocation82], 4
      %s774 = int_to_ptr.vmem [resolvable:$true] %s773
      %776 = dma.hbm_to_vmem [thread:$0]  %s113, 128, %s774, [#allocation81]
    $region229: #{unet1d_forward_pallas.1} parent=1 // pred_fallthru
      _
    // Predicated region
    $region230: #{unet1d_forward_pallas.1} parent=1 // pred_check
      _
    $region231: #{unet1d_forward_pallas.1} parent=1 // pred_check_branch
      %778 = sbr.rel (0) target = $region233
    $region232: #{unet1d_forward_pallas.1} parent=1 // pred_region
      %s780 = ssub.s32 1024, 1024
      %781 = vsyncadd [#allocation84], %s780
      %s782 = sshll.u32 [#allocation83], 4
      %s783 = int_to_ptr.vmem [resolvable:$true] %s782
      %788 = dma.hbm_to_vmem [thread:$0]  %s115, 1024, %s783, [#allocation84], 128, 128, 8
    $region233: #{unet1d_forward_pallas.1} parent=1 // pred_fallthru
      _
    // Predicated region
    $region234: #{unet1d_forward_pallas.1} parent=1 // pred_check
      _
    $region235: #{unet1d_forward_pallas.1} parent=1 // pred_check_branch
      %790 = sbr.rel (0) target = $region237
    $region236: #{unet1d_forward_pallas.1} parent=1 // pred_region
      _
    $region237: #{unet1d_forward_pallas.1} parent=1 // pred_fallthru
      _
    // Predicated region
    $region238: #{unet1d_forward_pallas.1} parent=1 // pred_check
      _
    $region239: #{unet1d_forward_pallas.1} parent=1 // pred_check_branch
      %792 = sbr.rel (0) target = $region241
    $region240: #{unet1d_forward_pallas.1} parent=1 // pred_region
      %s794 = ssub.s32 32, 32
      %795 = vsyncadd [#allocation84], %s794
      %s797 = sshll.u32 [#allocation85], 4
      %s798 = int_to_ptr.vmem [resolvable:$true] %s797
      %800 = dma.hbm_to_vmem [thread:$0]  %s119, 32, %s798, [#allocation84]
    $region241: #{unet1d_forward_pallas.1} parent=1 // pred_fallthru
      _
    // Predicated region
    $region242: #{unet1d_forward_pallas.1} parent=1 // pred_check
      _
    $region243: #{unet1d_forward_pallas.1} parent=1 // pred_check_branch
      %802 = sbr.rel (0) target = $region245
    $region244: #{unet1d_forward_pallas.1} parent=1 // pred_region
      %s804 = ssub.s32 32, 32
      %805 = vsyncadd [#allocation87], %s804
      %s807 = sshll.u32 [#allocation86], 4
      %s808 = int_to_ptr.vmem [resolvable:$true] %s807
      %810 = dma.hbm_to_vmem [thread:$0]  %s121, 32, %s808, [#allocation87]
    $region245: #{unet1d_forward_pallas.1} parent=1 // pred_fallthru
      _
    // Predicated region
    $region246: #{unet1d_forward_pallas.1} parent=1 // pred_check
      _
    $region247: #{unet1d_forward_pallas.1} parent=1 // pred_check_branch
      %812 = sbr.rel (0) target = $region249
    $region248: #{unet1d_forward_pallas.1} parent=1 // pred_region
      %s814 = ssub.s32 16, 16
      %815 = vsyncadd [#allocation87], %s814
      %s817 = sshll.u32 [#allocation88], 4
      %s818 = int_to_ptr.vmem [resolvable:$true] %s817
      %820 = dma.hbm_to_vmem [thread:$0]  %s123, 16, %s818, [#allocation87]
    $region249: #{unet1d_forward_pallas.1} parent=1 // pred_fallthru
      _
    // Predicated region
    $region250: #{unet1d_forward_pallas.1} parent=1 // pred_check
      _
    $region251: #{unet1d_forward_pallas.1} parent=1 // pred_check_branch
      %822 = sbr.rel (0) target = $region253
    $region252: #{unet1d_forward_pallas.1} parent=1 // pred_region
      %s824 = ssub.s32 32, 32
      %825 = vsyncadd [#allocation90], %s824
      %s827 = sshll.u32 [#allocation89], 4
      %s828 = int_to_ptr.vmem [resolvable:$true] %s827
      %830 = dma.hbm_to_vmem [thread:$0]  %s125, 32, %s828, [#allocation90]
    $region253: #{unet1d_forward_pallas.1} parent=1 // pred_fallthru
      _
    // Predicated region
    $region254: #{unet1d_forward_pallas.1} parent=1 // pred_check
      _
    $region255: #{unet1d_forward_pallas.1} parent=1 // pred_check_branch
      %832 = sbr.rel (0) target = $region257
    $region256: #{unet1d_forward_pallas.1} parent=1 // pred_region
      %s834 = ssub.s32 256, 256
      %835 = vsyncadd [#allocation90], %s834
      %s837 = sshll.u32 [#allocation91], 4
      %s838 = int_to_ptr.vmem [resolvable:$true] %s837
      %840 = dma.hbm_to_vmem [thread:$0]  %s127, 256, %s838, [#allocation90]
    $region257: #{unet1d_forward_pallas.1} parent=1 // pred_fallthru
      _
    // Predicated region
    $region258: #{unet1d_forward_pallas.1} parent=1 // pred_check
      _
    $region259: #{unet1d_forward_pallas.1} parent=1 // pred_check_branch
      %842 = sbr.rel (0) target = $region261
    $region260: #{unet1d_forward_pallas.1} parent=1 // pred_region
      %s844 = ssub.s32 4096, 4096
      %845 = vsyncadd [#allocation93], %s844
      %s846 = sshll.u32 [#allocation92], 4
      %s847 = int_to_ptr.vmem [resolvable:$true] %s846
      %852 = dma.hbm_to_vmem [thread:$0]  %s129, 4096, %s847, [#allocation93], 256, 256, 16
    $region261: #{unet1d_forward_pallas.1} parent=1 // pred_fallthru
      _
    // Predicated region
    $region262: #{unet1d_forward_pallas.1} parent=1 // pred_check
      _
    $region263: #{unet1d_forward_pallas.1} parent=1 // pred_check_branch
      %854 = sbr.rel (0) target = $region265
    $region264: #{unet1d_forward_pallas.1} parent=1 // pred_region
      %s856 = ssub.s32 8192, 8192
      %857 = vsyncadd [#allocation93], %s856
      %s858 = sshll.u32 [#allocation94], 4
      %s859 = int_to_ptr.vmem [resolvable:$true] %s858
      %864 = dma.hbm_to_vmem [thread:$0]  %s131, 8192, %s859, [#allocation93], 256, 256, 16
    $region265: #{unet1d_forward_pallas.1} parent=1 // pred_fallthru
      _
    // Predicated region
    $region266: #{unet1d_forward_pallas.1} parent=1 // pred_check
      _
    $region267: #{unet1d_forward_pallas.1} parent=1 // pred_check_branch
      %866 = sbr.rel (0) target = $region269
    $region268: #{unet1d_forward_pallas.1} parent=1 // pred_region
      %s868 = ssub.s32 4096, 4096
      %869 = vsyncadd [#allocation96], %s868
      %s870 = sshll.u32 [#allocation95], 4
      %s871 = int_to_ptr.vmem [resolvable:$true] %s870
      %876 = dma.hbm_to_vmem [thread:$0]  %s133, 4096, %s871, [#allocation96], 128, 128, 8
    $region269: #{unet1d_forward_pallas.1} parent=1 // pred_fallthru
      _
    // Predicated region
    $region270: #{unet1d_forward_pallas.1} parent=1 // pred_check
      _
    $region271: #{unet1d_forward_pallas.1} parent=1 // pred_check_branch
      %878 = sbr.rel (0) target = $region273
    $region272: #{unet1d_forward_pallas.1} parent=1 // pred_region
      %s880 = ssub.s32 32, 32
      %881 = vsyncadd [#allocation96], %s880
      %s883 = sshll.u32 [#allocation97], 4
      %s884 = int_to_ptr.vmem [resolvable:$true] %s883
      %886 = dma.hbm_to_vmem [thread:$0]  %s135, 32, %s884, [#allocation96]
    $region273: #{unet1d_forward_pallas.1} parent=1 // pred_fallthru
      _
    // Predicated region
    $region274: #{unet1d_forward_pallas.1} parent=1 // pred_check
      _
    $region275: #{unet1d_forward_pallas.1} parent=1 // pred_check_branch
      %888 = sbr.rel (0) target = $region277
    $region276: #{unet1d_forward_pallas.1} parent=1 // pred_region
      %s890 = ssub.s32 32, 32
      %891 = vsyncadd [#allocation99], %s890
      %s893 = sshll.u32 [#allocation98], 4
      %s894 = int_to_ptr.vmem [resolvable:$true] %s893
      %896 = dma.hbm_to_vmem [thread:$0]  %s137, 32, %s894, [#allocation99]
    $region277: #{unet1d_forward_pallas.1} parent=1 // pred_fallthru
      _
    // Predicated region
    $region278: #{unet1d_forward_pallas.1} parent=1 // pred_check
      _
    $region279: #{unet1d_forward_pallas.1} parent=1 // pred_check_branch
      %898 = sbr.rel (0) target = $region281
    $region280: #{unet1d_forward_pallas.1} parent=1 // pred_region
      %s900 = ssub.s32 16, 16
      %901 = vsyncadd [#allocation99], %s900
      %s903 = sshll.u32 [#allocation100], 4
      %s904 = int_to_ptr.vmem [resolvable:$true] %s903
      %906 = dma.hbm_to_vmem [thread:$0]  %s139, 16, %s904, [#allocation99]
    $region281: #{unet1d_forward_pallas.1} parent=1 // pred_fallthru
      _
    // Predicated region
    $region282: #{unet1d_forward_pallas.1} parent=1 // pred_check
      _
    $region283: #{unet1d_forward_pallas.1} parent=1 // pred_check_branch
      %908 = sbr.rel (0) target = $region285
    $region284: #{unet1d_forward_pallas.1} parent=1 // pred_region
      %s910 = ssub.s32 32, 32
      %911 = vsyncadd [#allocation102], %s910
      %s913 = sshll.u32 [#allocation101], 4
      %s914 = int_to_ptr.vmem [resolvable:$true] %s913
      %916 = dma.hbm_to_vmem [thread:$0]  %s141, 32, %s914, [#allocation102]
    $region285: #{unet1d_forward_pallas.1} parent=1 // pred_fallthru
      _
    // Predicated region
    $region286: #{unet1d_forward_pallas.1} parent=1 // pred_check
      _
    $region287: #{unet1d_forward_pallas.1} parent=1 // pred_check_branch
      %918 = sbr.rel (0) target = $region289
    $region288: #{unet1d_forward_pallas.1} parent=1 // pred_region
      %s920 = ssub.s32 256, 256
      %921 = vsyncadd [#allocation102], %s920
      %s923 = sshll.u32 [#allocation103], 4
      %s924 = int_to_ptr.vmem [resolvable:$true] %s923
      %926 = dma.hbm_to_vmem [thread:$0]  %s143, 256, %s924, [#allocation102]
    $region289: #{unet1d_forward_pallas.1} parent=1 // pred_fallthru
      _
    // Predicated region
    $region290: #{unet1d_forward_pallas.1} parent=1 // pred_check
      _
    $region291: #{unet1d_forward_pallas.1} parent=1 // pred_check_branch
      %928 = sbr.rel (0) target = $region293
    $region292: #{unet1d_forward_pallas.1} parent=1 // pred_region
      %s930 = ssub.s32 4096, 4096
      %931 = vsyncadd [#allocation105], %s930
      %s932 = sshll.u32 [#allocation104], 4
      %s933 = int_to_ptr.vmem [resolvable:$true] %s932
      %938 = dma.hbm_to_vmem [thread:$0]  %s145, 4096, %s933, [#allocation105], 256, 256, 16
    $region293: #{unet1d_forward_pallas.1} parent=1 // pred_fallthru
      _
    // Predicated region
    $region294: #{unet1d_forward_pallas.1} parent=1 // pred_check
      _
    $region295: #{unet1d_forward_pallas.1} parent=1 // pred_check_branch
      %940 = sbr.rel (0) target = $region297
    $region296: #{unet1d_forward_pallas.1} parent=1 // pred_region
      %s942 = ssub.s32 8192, 8192
      %943 = vsyncadd [#allocation105], %s942
      %s944 = sshll.u32 [#allocation106], 4
      %s945 = int_to_ptr.vmem [resolvable:$true] %s944
      %950 = dma.hbm_to_vmem [thread:$0]  %s147, 8192, %s945, [#allocation105], 256, 256, 16
    $region297: #{unet1d_forward_pallas.1} parent=1 // pred_fallthru
      _
    // Predicated region
    $region298: #{unet1d_forward_pallas.1} parent=1 // pred_check
      _
    $region299: #{unet1d_forward_pallas.1} parent=1 // pred_check_branch
      %952 = sbr.rel (0) target = $region301
    $region300: #{unet1d_forward_pallas.1} parent=1 // pred_region
      %s954 = ssub.s32 4096, 4096
      %955 = vsyncadd [#allocation108], %s954
      %s956 = sshll.u32 [#allocation107], 4
      %s957 = int_to_ptr.vmem [resolvable:$true] %s956
      %962 = dma.hbm_to_vmem [thread:$0]  %s149, 4096, %s957, [#allocation108], 128, 128, 8
    $region301: #{unet1d_forward_pallas.1} parent=1 // pred_fallthru
      _
    // Predicated region
    $region302: #{unet1d_forward_pallas.1} parent=1 // pred_check
      _
    $region303: #{unet1d_forward_pallas.1} parent=1 // pred_check_branch
      %964 = sbr.rel (0) target = $region305
    $region304: #{unet1d_forward_pallas.1} parent=1 // pred_region
      _
    $region305: #{unet1d_forward_pallas.1} parent=1 // pred_fallthru
      _
    // Predicated region
    $region306: #{unet1d_forward_pallas.1} parent=1 // pred_check
      _
    $region307: #{unet1d_forward_pallas.1} parent=1 // pred_check_branch
      %966 = sbr.rel (0) target = $region309
    $region308: #{unet1d_forward_pallas.1} parent=1 // pred_region
      _
    $region309: #{unet1d_forward_pallas.1} parent=1 // pred_fallthru
      _
    // Predicated region
    $region310: #{unet1d_forward_pallas.1} parent=1 // pred_check
      _
    $region311: #{unet1d_forward_pallas.1} parent=1 // pred_check_branch
      %968 = sbr.rel (0) target = $region313
    $region312: #{unet1d_forward_pallas.1} parent=1 // pred_region
      %969 = dma.done [#allocation3], 32
    $region313: #{unet1d_forward_pallas.1} parent=1 // pred_fallthru
      _
    // Predicated region
    $region314: #{unet1d_forward_pallas.1} parent=1 // pred_check
      _
    $region315: #{unet1d_forward_pallas.1} parent=1 // pred_check_branch
      %971 = sbr.rel (0) target = $region317
    $region316: #{unet1d_forward_pallas.1} parent=1 // pred_region
      %972 = dma.done [#allocation6], 32
    $region317: #{unet1d_forward_pallas.1} parent=1 // pred_fallthru
      _
    // Predicated region
    $region318: #{unet1d_forward_pallas.1} parent=1 // pred_check
      _
    $region319: #{unet1d_forward_pallas.1} parent=1 // pred_check_branch
      %974 = sbr.rel (0) target = $region321
    $region320: #{unet1d_forward_pallas.1} parent=1 // pred_region
      %975 = dma.done [#allocation6], 32
    $region321: #{unet1d_forward_pallas.1} parent=1 // pred_fallthru
      _
    // Predicated region
    $region322: #{unet1d_forward_pallas.1} parent=1 // pred_check
      _
    $region323: #{unet1d_forward_pallas.1} parent=1 // pred_check_branch
      %977 = sbr.rel (0) target = $region325
    $region324: #{unet1d_forward_pallas.1} parent=1 // pred_region
      %978 = dma.done [#allocation9], 256
    $region325: #{unet1d_forward_pallas.1} parent=1 // pred_fallthru
      _
    // Predicated region
    $region326: #{unet1d_forward_pallas.1} parent=1 // pred_check
      _
    $region327: #{unet1d_forward_pallas.1} parent=1 // pred_check_branch
      %980 = sbr.rel (0) target = $region329
    $region328: #{unet1d_forward_pallas.1} parent=1 // pred_region
      %981 = dma.done [#allocation9], 4096
    $region329: #{unet1d_forward_pallas.1} parent=1 // pred_fallthru
      _
    // Predicated region
    $region330: #{unet1d_forward_pallas.1} parent=1 // pred_check
      _
    $region331: #{unet1d_forward_pallas.1} parent=1 // pred_check_branch
      %983 = sbr.rel (0) target = $region333
    $region332: #{unet1d_forward_pallas.1} parent=1 // pred_region
      %984 = dma.done [#allocation12], 8192
    $region333: #{unet1d_forward_pallas.1} parent=1 // pred_fallthru
      _
    // Predicated region
    $region334: #{unet1d_forward_pallas.1} parent=1 // pred_check
      _
    $region335: #{unet1d_forward_pallas.1} parent=1 // pred_check_branch
      %986 = sbr.rel (0) target = $region337
    $region336: #{unet1d_forward_pallas.1} parent=1 // pred_region
      %987 = dma.done [#allocation12], 4096
    $region337: #{unet1d_forward_pallas.1} parent=1 // pred_fallthru
      _
    // Predicated region
    $region338: #{unet1d_forward_pallas.1} parent=1 // pred_check
      _
    $region339: #{unet1d_forward_pallas.1} parent=1 // pred_check_branch
      %989 = sbr.rel (0) target = $region341
    $region340: #{unet1d_forward_pallas.1} parent=1 // pred_region
      %990 = dma.done [#allocation15], 16
    $region341: #{unet1d_forward_pallas.1} parent=1 // pred_fallthru
      _
    // Predicated region
    $region342: #{unet1d_forward_pallas.1} parent=1 // pred_check
      _
    $region343: #{unet1d_forward_pallas.1} parent=1 // pred_check_branch
      %992 = sbr.rel (0) target = $region345
    $region344: #{unet1d_forward_pallas.1} parent=1 // pred_region
      %993 = dma.done [#allocation15], 16
    $region345: #{unet1d_forward_pallas.1} parent=1 // pred_fallthru
      _
    // Predicated region
    $region346: #{unet1d_forward_pallas.1} parent=1 // pred_check
      _
    $region347: #{unet1d_forward_pallas.1} parent=1 // pred_check_branch
      %995 = sbr.rel (0) target = $region349
    $region348: #{unet1d_forward_pallas.1} parent=1 // pred_region
      %996 = dma.done [#allocation18], 16
    $region349: #{unet1d_forward_pallas.1} parent=1 // pred_fallthru
      _
    // Predicated region
    $region350: #{unet1d_forward_pallas.1} parent=1 // pred_check
      _
    $region351: #{unet1d_forward_pallas.1} parent=1 // pred_check_branch
      %998 = sbr.rel (0) target = $region353
    $region352: #{unet1d_forward_pallas.1} parent=1 // pred_region
      %999 = dma.done [#allocation18], 16
    $region353: #{unet1d_forward_pallas.1} parent=1 // pred_fallthru
      _
    // Predicated region
    $region354: #{unet1d_forward_pallas.1} parent=1 // pred_check
      _
    $region355: #{unet1d_forward_pallas.1} parent=1 // pred_check_branch
      %1001 = sbr.rel (0) target = $region357
    $region356: #{unet1d_forward_pallas.1} parent=1 // pred_region
      %1002 = dma.done [#allocation21], 16
    $region357: #{unet1d_forward_pallas.1} parent=1 // pred_fallthru
      _
    // Predicated region
    $region358: #{unet1d_forward_pallas.1} parent=1 // pred_check
      _
    $region359: #{unet1d_forward_pallas.1} parent=1 // pred_check_branch
      %1004 = sbr.rel (0) target = $region361
    $region360: #{unet1d_forward_pallas.1} parent=1 // pred_region
      %1005 = dma.done [#allocation21], 128
    $region361: #{unet1d_forward_pallas.1} parent=1 // pred_fallthru
      _
    // Predicated region
    $region362: #{unet1d_forward_pallas.1} parent=1 // pred_check
      _
    $region363: #{unet1d_forward_pallas.1} parent=1 // pred_check_branch
      %1007 = sbr.rel (0) target = $region365
    $region364: #{unet1d_forward_pallas.1} parent=1 // pred_region
      %1008 = dma.done [#allocation24], 2048
    $region365: #{unet1d_forward_pallas.1} parent=1 // pred_fallthru
      _
    // Predicated region
    $region366: #{unet1d_forward_pallas.1} parent=1 // pred_check
      _
    $region367: #{unet1d_forward_pallas.1} parent=1 // pred_check_branch
      %1010 = sbr.rel (0) target = $region369
    $region368: #{unet1d_forward_pallas.1} parent=1 // pred_region
      %1011 = dma.done [#allocation24], 2048
    $region369: #{unet1d_forward_pallas.1} parent=1 // pred_fallthru
      _
    // Predicated region
    $region370: #{unet1d_forward_pallas.1} parent=1 // pred_check
      _
    $region371: #{unet1d_forward_pallas.1} parent=1 // pred_check_branch
      %1013 = sbr.rel (0) target = $region373
    $region372: #{unet1d_forward_pallas.1} parent=1 // pred_region
      %1014 = dma.done [#allocation27], 2048
    $region373: #{unet1d_forward_pallas.1} parent=1 // pred_fallthru
      _
    // Predicated region
    $region374: #{unet1d_forward_pallas.1} parent=1 // pred_check
      _
    $region375: #{unet1d_forward_pallas.1} parent=1 // pred_check_branch
      %1016 = sbr.rel (0) target = $region377
    $region376: #{unet1d_forward_pallas.1} parent=1 // pred_region
      %1017 = dma.done [#allocation27], 2048
    $region377: #{unet1d_forward_pallas.1} parent=1 // pred_fallthru
      _
    // Predicated region
    $region378: #{unet1d_forward_pallas.1} parent=1 // pred_check
      _
    $region379: #{unet1d_forward_pallas.1} parent=1 // pred_check_branch
      %1019 = sbr.rel (0) target = $region381
    $region380: #{unet1d_forward_pallas.1} parent=1 // pred_region
      %1020 = dma.done [#allocation30], 2048
    $region381: #{unet1d_forward_pallas.1} parent=1 // pred_fallthru
      _
    // Predicated region
    $region382: #{unet1d_forward_pallas.1} parent=1 // pred_check
      _
    $region383: #{unet1d_forward_pallas.1} parent=1 // pred_check_branch
      %1022 = sbr.rel (0) target = $region385
    $region384: #{unet1d_forward_pallas.1} parent=1 // pred_region
      %1023 = dma.done [#allocation30], 16
    $region385: #{unet1d_forward_pallas.1} parent=1 // pred_fallthru
      _
    // Predicated region
    $region386: #{unet1d_forward_pallas.1} parent=1 // pred_check
      _
    $region387: #{unet1d_forward_pallas.1} parent=1 // pred_check_branch
      %1025 = sbr.rel (0) target = $region389
    $region388: #{unet1d_forward_pallas.1} parent=1 // pred_region
      %1026 = dma.done [#allocation33], 16
    $region389: #{unet1d_forward_pallas.1} parent=1 // pred_fallthru
      _
    // Predicated region
    $region390: #{unet1d_forward_pallas.1} parent=1 // pred_check
      _
    $region391: #{unet1d_forward_pallas.1} parent=1 // pred_check_branch
      %1028 = sbr.rel (0) target = $region393
    $region392: #{unet1d_forward_pallas.1} parent=1 // pred_region
      %1029 = dma.done [#allocation33], 16
    $region393: #{unet1d_forward_pallas.1} parent=1 // pred_fallthru
      _
    // Predicated region
    $region394: #{unet1d_forward_pallas.1} parent=1 // pred_check
      _
    $region395: #{unet1d_forward_pallas.1} parent=1 // pred_check_branch
      %1031 = sbr.rel (0) target = $region397
    $region396: #{unet1d_forward_pallas.1} parent=1 // pred_region
      %1032 = dma.done [#allocation36], 16
    $region397: #{unet1d_forward_pallas.1} parent=1 // pred_fallthru
      _
    // Predicated region
    $region398: #{unet1d_forward_pallas.1} parent=1 // pred_check
      _
    $region399: #{unet1d_forward_pallas.1} parent=1 // pred_check_branch
      %1034 = sbr.rel (0) target = $region401
    $region400: #{unet1d_forward_pallas.1} parent=1 // pred_region
      %1035 = dma.done [#allocation36], 16
    $region401: #{unet1d_forward_pallas.1} parent=1 // pred_fallthru
      _
    // Predicated region
    $region402: #{unet1d_forward_pallas.1} parent=1 // pred_check
      _
    $region403: #{unet1d_forward_pallas.1} parent=1 // pred_check_branch
      %1037 = sbr.rel (0) target = $region405
    $region404: #{unet1d_forward_pallas.1} parent=1 // pred_region
      %1038 = dma.done [#allocation39], 128
    $region405: #{unet1d_forward_pallas.1} parent=1 // pred_fallthru
      _
    // Predicated region
    $region406: #{unet1d_forward_pallas.1} parent=1 // pred_check
      _
    $region407: #{unet1d_forward_pallas.1} parent=1 // pred_check_branch
      %1040 = sbr.rel (0) target = $region409
    $region408: #{unet1d_forward_pallas.1} parent=1 // pred_region
      %1041 = dma.done [#allocation39], 2048
    $region409: #{unet1d_forward_pallas.1} parent=1 // pred_fallthru
      _
    // Predicated region
    $region410: #{unet1d_forward_pallas.1} parent=1 // pred_check
      _
    $region411: #{unet1d_forward_pallas.1} parent=1 // pred_check_branch
      %1043 = sbr.rel (0) target = $region413
    $region412: #{unet1d_forward_pallas.1} parent=1 // pred_region
      %1044 = dma.done [#allocation42], 2048
    $region413: #{unet1d_forward_pallas.1} parent=1 // pred_fallthru
      _
    // Predicated region
    $region414: #{unet1d_forward_pallas.1} parent=1 // pred_check
      _
    $region415: #{unet1d_forward_pallas.1} parent=1 // pred_check_branch
      %1046 = sbr.rel (0) target = $region417
    $region416: #{unet1d_forward_pallas.1} parent=1 // pred_region
      %1047 = dma.done [#allocation42], 2048
    $region417: #{unet1d_forward_pallas.1} parent=1 // pred_fallthru
      _
    // Predicated region
    $region418: #{unet1d_forward_pallas.1} parent=1 // pred_check
      _
    $region419: #{unet1d_forward_pallas.1} parent=1 // pred_check_branch
      %1049 = sbr.rel (0) target = $region421
    $region420: #{unet1d_forward_pallas.1} parent=1 // pred_region
      %1050 = dma.done [#allocation45], 2048
    $region421: #{unet1d_forward_pallas.1} parent=1 // pred_fallthru
      _
    // Predicated region
    $region422: #{unet1d_forward_pallas.1} parent=1 // pred_check
      _
    $region423: #{unet1d_forward_pallas.1} parent=1 // pred_check_branch
      %1052 = sbr.rel (0) target = $region425
    $region424: #{unet1d_forward_pallas.1} parent=1 // pred_region
      %1053 = dma.done [#allocation45], 2048
    $region425: #{unet1d_forward_pallas.1} parent=1 // pred_fallthru
      _
    // Predicated region
    $region426: #{unet1d_forward_pallas.1} parent=1 // pred_check
      _
    $region427: #{unet1d_forward_pallas.1} parent=1 // pred_check_branch
      %1055 = sbr.rel (0) target = $region429
    $region428: #{unet1d_forward_pallas.1} parent=1 // pred_region
      %1056 = dma.done [#allocation48], 16
    $region429: #{unet1d_forward_pallas.1} parent=1 // pred_fallthru
      _
    // Predicated region
    $region430: #{unet1d_forward_pallas.1} parent=1 // pred_check
      _
    $region431: #{unet1d_forward_pallas.1} parent=1 // pred_check_branch
      %1058 = sbr.rel (0) target = $region433
    $region432: #{unet1d_forward_pallas.1} parent=1 // pred_region
      %1059 = dma.done [#allocation48], 16
    $region433: #{unet1d_forward_pallas.1} parent=1 // pred_fallthru
      _
    // Predicated region
    $region434: #{unet1d_forward_pallas.1} parent=1 // pred_check
      _
    $region435: #{unet1d_forward_pallas.1} parent=1 // pred_check_branch
      %1061 = sbr.rel (0) target = $region437
    $region436: #{unet1d_forward_pallas.1} parent=1 // pred_region
      %1062 = dma.done [#allocation51], 16
    $region437: #{unet1d_forward_pallas.1} parent=1 // pred_fallthru
      _
    // Predicated region
    $region438: #{unet1d_forward_pallas.1} parent=1 // pred_check
      _
    $region439: #{unet1d_forward_pallas.1} parent=1 // pred_check_branch
      %1064 = sbr.rel (0) target = $region441
    $region440: #{unet1d_forward_pallas.1} parent=1 // pred_region
      %1065 = dma.done [#allocation51], 16
    $region441: #{unet1d_forward_pallas.1} parent=1 // pred_fallthru
      _
    // Predicated region
    $region442: #{unet1d_forward_pallas.1} parent=1 // pred_check
      _
    $region443: #{unet1d_forward_pallas.1} parent=1 // pred_check_branch
      %1067 = sbr.rel (0) target = $region445
    $region444: #{unet1d_forward_pallas.1} parent=1 // pred_region
      %1068 = dma.done [#allocation54], 16
    $region445: #{unet1d_forward_pallas.1} parent=1 // pred_fallthru
      _
    // Predicated region
    $region446: #{unet1d_forward_pallas.1} parent=1 // pred_check
      _
    $region447: #{unet1d_forward_pallas.1} parent=1 // pred_check_branch
      %1070 = sbr.rel (0) target = $region449
    $region448: #{unet1d_forward_pallas.1} parent=1 // pred_region
      %1071 = dma.done [#allocation54], 128
    $region449: #{unet1d_forward_pallas.1} parent=1 // pred_fallthru
      _
    // Predicated region
    $region450: #{unet1d_forward_pallas.1} parent=1 // pred_check
      _
    $region451: #{unet1d_forward_pallas.1} parent=1 // pred_check_branch
      %1073 = sbr.rel (0) target = $region453
    $region452: #{unet1d_forward_pallas.1} parent=1 // pred_region
      %1074 = dma.done [#allocation57], 2048
    $region453: #{unet1d_forward_pallas.1} parent=1 // pred_fallthru
      _
    // Predicated region
    $region454: #{unet1d_forward_pallas.1} parent=1 // pred_check
      _
    $region455: #{unet1d_forward_pallas.1} parent=1 // pred_check_branch
      %1076 = sbr.rel (0) target = $region457
    $region456: #{unet1d_forward_pallas.1} parent=1 // pred_region
      %1077 = dma.done [#allocation57], 2048
    $region457: #{unet1d_forward_pallas.1} parent=1 // pred_fallthru
      _
    // Predicated region
    $region458: #{unet1d_forward_pallas.1} parent=1 // pred_check
      _
    $region459: #{unet1d_forward_pallas.1} parent=1 // pred_check_branch
      %1079 = sbr.rel (0) target = $region461
    $region460: #{unet1d_forward_pallas.1} parent=1 // pred_region
      %1080 = dma.done [#allocation60], 2048
    $region461: #{unet1d_forward_pallas.1} parent=1 // pred_fallthru
      _
    // Predicated region
    $region462: #{unet1d_forward_pallas.1} parent=1 // pred_check
      _
    $region463: #{unet1d_forward_pallas.1} parent=1 // pred_check_branch
      %1082 = sbr.rel (0) target = $region465
    $region464: #{unet1d_forward_pallas.1} parent=1 // pred_region
      %1083 = dma.done [#allocation60], 2048
    $region465: #{unet1d_forward_pallas.1} parent=1 // pred_fallthru
      _
    // Predicated region
    $region466: #{unet1d_forward_pallas.1} parent=1 // pred_check
      _
    $region467: #{unet1d_forward_pallas.1} parent=1 // pred_check_branch
      %1085 = sbr.rel (0) target = $region469
    $region468: #{unet1d_forward_pallas.1} parent=1 // pred_region
      %1086 = dma.done [#allocation63], 2048
    $region469: #{unet1d_forward_pallas.1} parent=1 // pred_fallthru
      _
    // Predicated region
    $region470: #{unet1d_forward_pallas.1} parent=1 // pred_check
      _
    $region471: #{unet1d_forward_pallas.1} parent=1 // pred_check_branch
      %1088 = sbr.rel (0) target = $region473
    $region472: #{unet1d_forward_pallas.1} parent=1 // pred_region
      %1089 = dma.done [#allocation63], 32
    $region473: #{unet1d_forward_pallas.1} parent=1 // pred_fallthru
      _
    // Predicated region
    $region474: #{unet1d_forward_pallas.1} parent=1 // pred_check
      _
    $region475: #{unet1d_forward_pallas.1} parent=1 // pred_check_branch
      %1091 = sbr.rel (0) target = $region477
    $region476: #{unet1d_forward_pallas.1} parent=1 // pred_region
      %1092 = dma.done [#allocation66], 16
    $region477: #{unet1d_forward_pallas.1} parent=1 // pred_fallthru
      _
    // Predicated region
    $region478: #{unet1d_forward_pallas.1} parent=1 // pred_check
      _
    $region479: #{unet1d_forward_pallas.1} parent=1 // pred_check_branch
      %1094 = sbr.rel (0) target = $region481
    $region480: #{unet1d_forward_pallas.1} parent=1 // pred_region
      %1095 = dma.done [#allocation66], 16
    $region481: #{unet1d_forward_pallas.1} parent=1 // pred_fallthru
      _
    // Predicated region
    $region482: #{unet1d_forward_pallas.1} parent=1 // pred_check
      _
    $region483: #{unet1d_forward_pallas.1} parent=1 // pred_check_branch
      %1097 = sbr.rel (0) target = $region485
    $region484: #{unet1d_forward_pallas.1} parent=1 // pred_region
      %1098 = dma.done [#allocation69], 16
    $region485: #{unet1d_forward_pallas.1} parent=1 // pred_fallthru
      _
    // Predicated region
    $region486: #{unet1d_forward_pallas.1} parent=1 // pred_check
      _
    $region487: #{unet1d_forward_pallas.1} parent=1 // pred_check_branch
      %1100 = sbr.rel (0) target = $region489
    $region488: #{unet1d_forward_pallas.1} parent=1 // pred_region
      %1101 = dma.done [#allocation69], 16
    $region489: #{unet1d_forward_pallas.1} parent=1 // pred_fallthru
      _
    // Predicated region
    $region490: #{unet1d_forward_pallas.1} parent=1 // pred_check
      _
    $region491: #{unet1d_forward_pallas.1} parent=1 // pred_check_branch
      %1103 = sbr.rel (0) target = $region493
    $region492: #{unet1d_forward_pallas.1} parent=1 // pred_region
      %1104 = dma.done [#allocation72], 4096
    $region493: #{unet1d_forward_pallas.1} parent=1 // pred_fallthru
      _
    // Predicated region
    $region494: #{unet1d_forward_pallas.1} parent=1 // pred_check
      _
    $region495: #{unet1d_forward_pallas.1} parent=1 // pred_check_branch
      %1106 = sbr.rel (0) target = $region497
    $region496: #{unet1d_forward_pallas.1} parent=1 // pred_region
      %1107 = dma.done [#allocation72], 2048
    $region497: #{unet1d_forward_pallas.1} parent=1 // pred_fallthru
      _
    // Predicated region
    $region498: #{unet1d_forward_pallas.1} parent=1 // pred_check
      _
    $region499: #{unet1d_forward_pallas.1} parent=1 // pred_check_branch
      %1109 = sbr.rel (0) target = $region501
    $region500: #{unet1d_forward_pallas.1} parent=1 // pred_region
      %1110 = dma.done [#allocation75], 128
    $region501: #{unet1d_forward_pallas.1} parent=1 // pred_fallthru
      _
    // Predicated region
    $region502: #{unet1d_forward_pallas.1} parent=1 // pred_check
      _
    $region503: #{unet1d_forward_pallas.1} parent=1 // pred_check_branch
      %1112 = sbr.rel (0) target = $region505
    $region504: #{unet1d_forward_pallas.1} parent=1 // pred_region
      %1113 = dma.done [#allocation75], 2048
    $region505: #{unet1d_forward_pallas.1} parent=1 // pred_fallthru
      _
    // Predicated region
    $region506: #{unet1d_forward_pallas.1} parent=1 // pred_check
      _
    $region507: #{unet1d_forward_pallas.1} parent=1 // pred_check_branch
      %1115 = sbr.rel (0) target = $region509
    $region508: #{unet1d_forward_pallas.1} parent=1 // pred_region
      %1116 = dma.done [#allocation78], 16
    $region509: #{unet1d_forward_pallas.1} parent=1 // pred_fallthru
      _
    // Predicated region
    $region510: #{unet1d_forward_pallas.1} parent=1 // pred_check
      _
    $region511: #{unet1d_forward_pallas.1} parent=1 // pred_check_branch
      %1118 = sbr.rel (0) target = $region513
    $region512: #{unet1d_forward_pallas.1} parent=1 // pred_region
      %1119 = dma.done [#allocation78], 16
    $region513: #{unet1d_forward_pallas.1} parent=1 // pred_fallthru
      _
    // Predicated region
    $region514: #{unet1d_forward_pallas.1} parent=1 // pred_check
      _
    $region515: #{unet1d_forward_pallas.1} parent=1 // pred_check_branch
      %1121 = sbr.rel (0) target = $region517
    $region516: #{unet1d_forward_pallas.1} parent=1 // pred_region
      %1122 = dma.done [#allocation81], 16
    $region517: #{unet1d_forward_pallas.1} parent=1 // pred_fallthru
      _
    // Predicated region
    $region518: #{unet1d_forward_pallas.1} parent=1 // pred_check
      _
    $region519: #{unet1d_forward_pallas.1} parent=1 // pred_check_branch
      %1124 = sbr.rel (0) target = $region521
    $region520: #{unet1d_forward_pallas.1} parent=1 // pred_region
      %1125 = dma.done [#allocation81], 128
    $region521: #{unet1d_forward_pallas.1} parent=1 // pred_fallthru
      _
    // Predicated region
    $region522: #{unet1d_forward_pallas.1} parent=1 // pred_check
      _
    $region523: #{unet1d_forward_pallas.1} parent=1 // pred_check_branch
      %1127 = sbr.rel (0) target = $region525
    $region524: #{unet1d_forward_pallas.1} parent=1 // pred_region
      %1128 = dma.done [#allocation84], 1024
    $region525: #{unet1d_forward_pallas.1} parent=1 // pred_fallthru
      _
    // Predicated region
    $region526: #{unet1d_forward_pallas.1} parent=1 // pred_check
      _
    $region527: #{unet1d_forward_pallas.1} parent=1 // pred_check_branch
      %1130 = sbr.rel (0) target = $region529
    $region528: #{unet1d_forward_pallas.1} parent=1 // pred_region
      %1131 = dma.done [#allocation84], 32
    $region529: #{unet1d_forward_pallas.1} parent=1 // pred_fallthru
      _
    // Predicated region
    $region530: #{unet1d_forward_pallas.1} parent=1 // pred_check
      _
    $region531: #{unet1d_forward_pallas.1} parent=1 // pred_check_branch
      %1133 = sbr.rel (0) target = $region533
    $region532: #{unet1d_forward_pallas.1} parent=1 // pred_region
      %1134 = dma.done [#allocation87], 32
    $region533: #{unet1d_forward_pallas.1} parent=1 // pred_fallthru
      _
    // Predicated region
    $region534: #{unet1d_forward_pallas.1} parent=1 // pred_check
      _
    $region535: #{unet1d_forward_pallas.1} parent=1 // pred_check_branch
      %1136 = sbr.rel (0) target = $region537
    $region536: #{unet1d_forward_pallas.1} parent=1 // pred_region
      %1137 = dma.done [#allocation87], 16
    $region537: #{unet1d_forward_pallas.1} parent=1 // pred_fallthru
      _
    // Predicated region
    $region538: #{unet1d_forward_pallas.1} parent=1 // pred_check
      _
    $region539: #{unet1d_forward_pallas.1} parent=1 // pred_check_branch
      %1139 = sbr.rel (0) target = $region541
    $region540: #{unet1d_forward_pallas.1} parent=1 // pred_region
      %1140 = dma.done [#allocation90], 32
    $region541: #{unet1d_forward_pallas.1} parent=1 // pred_fallthru
      _
    // Predicated region
    $region542: #{unet1d_forward_pallas.1} parent=1 // pred_check
      _
    $region543: #{unet1d_forward_pallas.1} parent=1 // pred_check_branch
      %1142 = sbr.rel (0) target = $region545
    $region544: #{unet1d_forward_pallas.1} parent=1 // pred_region
      %1143 = dma.done [#allocation90], 256
    $region545: #{unet1d_forward_pallas.1} parent=1 // pred_fallthru
      _
    // Predicated region
    $region546: #{unet1d_forward_pallas.1} parent=1 // pred_check
      _
    $region547: #{unet1d_forward_pallas.1} parent=1 // pred_check_branch
      %1145 = sbr.rel (0) target = $region549
    $region548: #{unet1d_forward_pallas.1} parent=1 // pred_region
      %1146 = dma.done [#allocation93], 4096
    $region549: #{unet1d_forward_pallas.1} parent=1 // pred_fallthru
      _
    // Predicated region
    $region550: #{unet1d_forward_pallas.1} parent=1 // pred_check
      _
    $region551: #{unet1d_forward_pallas.1} parent=1 // pred_check_branch
      %1148 = sbr.rel (0) target = $region553
    $region552: #{unet1d_forward_pallas.1} parent=1 // pred_region
      %1149 = dma.done [#allocation93], 8192
    $region553: #{unet1d_forward_pallas.1} parent=1 // pred_fallthru
      _
    // Predicated region
    $region554: #{unet1d_forward_pallas.1} parent=1 // pred_check
      _
    $region555: #{unet1d_forward_pallas.1} parent=1 // pred_check_branch
      %1151 = sbr.rel (0) target = $region557
    $region556: #{unet1d_forward_pallas.1} parent=1 // pred_region
      %1152 = dma.done [#allocation96], 4096
    $region557: #{unet1d_forward_pallas.1} parent=1 // pred_fallthru
      _
    // Predicated region
    $region558: #{unet1d_forward_pallas.1} parent=1 // pred_check
      _
    $region559: #{unet1d_forward_pallas.1} parent=1 // pred_check_branch
      %1154 = sbr.rel (0) target = $region561
    $region560: #{unet1d_forward_pallas.1} parent=1 // pred_region
      %1155 = dma.done [#allocation96], 32
    $region561: #{unet1d_forward_pallas.1} parent=1 // pred_fallthru
      _
    // Predicated region
    $region562: #{unet1d_forward_pallas.1} parent=1 // pred_check
      _
    $region563: #{unet1d_forward_pallas.1} parent=1 // pred_check_branch
      %1157 = sbr.rel (0) target = $region565
    $region564: #{unet1d_forward_pallas.1} parent=1 // pred_region
      %1158 = dma.done [#allocation99], 32
    $region565: #{unet1d_forward_pallas.1} parent=1 // pred_fallthru
      _
    // Predicated region
    $region566: #{unet1d_forward_pallas.1} parent=1 // pred_check
      _
    $region567: #{unet1d_forward_pallas.1} parent=1 // pred_check_branch
      %1160 = sbr.rel (0) target = $region569
    $region568: #{unet1d_forward_pallas.1} parent=1 // pred_region
      %1161 = dma.done [#allocation99], 16
    $region569: #{unet1d_forward_pallas.1} parent=1 // pred_fallthru
      _
    // Predicated region
    $region570: #{unet1d_forward_pallas.1} parent=1 // pred_check
      _
    $region571: #{unet1d_forward_pallas.1} parent=1 // pred_check_branch
      %1163 = sbr.rel (0) target = $region573
    $region572: #{unet1d_forward_pallas.1} parent=1 // pred_region
      %1164 = dma.done [#allocation102], 32
    $region573: #{unet1d_forward_pallas.1} parent=1 // pred_fallthru
      _
    // Predicated region
    $region574: #{unet1d_forward_pallas.1} parent=1 // pred_check
      _
    $region575: #{unet1d_forward_pallas.1} parent=1 // pred_check_branch
      %1166 = sbr.rel (0) target = $region577
    $region576: #{unet1d_forward_pallas.1} parent=1 // pred_region
      %1167 = dma.done [#allocation102], 256
    $region577: #{unet1d_forward_pallas.1} parent=1 // pred_fallthru
      _
    // Predicated region
    $region578: #{unet1d_forward_pallas.1} parent=1 // pred_check
      _
    $region579: #{unet1d_forward_pallas.1} parent=1 // pred_check_branch
      %1169 = sbr.rel (0) target = $region581
    $region580: #{unet1d_forward_pallas.1} parent=1 // pred_region
      %1170 = dma.done [#allocation105], 4096
    $region581: #{unet1d_forward_pallas.1} parent=1 // pred_fallthru
      _
    // Predicated region
    $region582: #{unet1d_forward_pallas.1} parent=1 // pred_check
      _
    $region583: #{unet1d_forward_pallas.1} parent=1 // pred_check_branch
      %1172 = sbr.rel (0) target = $region585
    $region584: #{unet1d_forward_pallas.1} parent=1 // pred_region
      %1173 = dma.done [#allocation105], 8192
    $region585: #{unet1d_forward_pallas.1} parent=1 // pred_fallthru
      _
    // Predicated region
    $region586: #{unet1d_forward_pallas.1} parent=1 // pred_check
      _
    $region587: #{unet1d_forward_pallas.1} parent=1 // pred_check_branch
      %1175 = sbr.rel (0) target = $region589
    $region588: #{unet1d_forward_pallas.1} parent=1 // pred_region
      %1176 = dma.done [#allocation108], 4096
    $region589: #{unet1d_forward_pallas.1} parent=1 // pred_fallthru
      _
    %v1177 = vld [vmem:[%s3] sm:$0x3]
    %v1178 = vld [vmem:[%s1] sm:$0x3]
    %v1179 = vld [vmem:[#allocation83] sm:$0xff]
    %v1180 = vld [vmem:[#allocation83 + $0x8] sm:$0xff]
    %v1181 = vld [vmem:[#allocation83 + $0x10] sm:$0xff]
    %v1182 = vld [vmem:[#allocation83 + $0x18] sm:$0xff]
    %v1183 = vld [vmem:[#allocation83 + $0x20] sm:$0xff]
    %v1184 = vld [vmem:[#allocation83 + $0x28] sm:$0xff]
    %v1185 = vld [vmem:[#allocation83 + $0x30] sm:$0xff]
    %v1186 = vld [vmem:[#allocation83 + $0x38] sm:$0xff]
    %v1187 = vld [vmem:[#allocation77] sm:$0x1]
    %v1189 = vlaneseq
    %v1190 = vshrl.u32 %v1189, 7
    %v1191 = vsub.s32 0, %v1190
    %v1192 = vrot.slane %v1187, %v1191
    %vm1194 = vcmask 523264
    %v1196 = vsel %vm1194, %v1178, 0
    %1198 = vmatprep.subr.mxu0 0.0
    %1199 = vmatpush1.msra.mxu0 %v1179
    %1200 = vmatprep.subr.mxu0 0.0
    %1201 = vmatpush1.msra.mxu0 %v1180
    %1202 = vmatprep.subr.mxu0 0.0
    %1203 = vmatpush1.msra.mxu0 %v1181
    %1204 = vmatprep.subr.mxu0 0.0
    %1205 = vmatpush1.msra.mxu0 %v1182
    %1206 = vmatprep.subr.mxu0 0.0
    %1207 = vmatpush1.msra.mxu0 %v1183
    %1208 = vmatprep.subr.mxu0 0.0
    %1209 = vmatpush1.msra.mxu0 %v1184
    %1210 = vmatprep.subr.mxu0 0.0
    %1211 = vmatpush1.msra.mxu0 %v1185
    %1212 = vmatprep.subr.mxu0 0.0
    %1213 = vmatpush1.msra.mxu0 %v1186
    %1214 = vmatprep.subr.mxu0 0.0
    %1215 = vmatpush1.msra.mxu0 0.0
    %1216 = vmatprep.subr.mxu0 0.0
    %1217 = vmatpush1.msra.mxu0 0.0
    %1218 = vmatprep.subr.mxu0 0.0
    %1219 = vmatpush1.msra.mxu0 0.0
    %1220 = vmatprep.subr.mxu0 0.0
    %1221 = vmatpush1.msra.mxu0 0.0
    %1222 = vmatprep.subr.mxu0 0.0
    %1223 = vmatpush1.msra.mxu0 0.0
    %1224 = vmatprep.subr.mxu0 0.0
    %1225 = vmatpush1.msra.mxu0 0.0
    %1226 = vmatprep.subr.mxu0 0.0
    %1227 = vmatpush1.msra.mxu0 0.0
    %1228 = vmatprep.subr.mxu0 0.0
    %1229 = vmatpush1.msra.mxu0 0.0
    %1230 = vmatprep.subr.mxu0 0.0
    %1231 = vmatpush1.msra.mxu0 0.0
    %1232 = vmatprep.subr.mxu0 0.0
    %1233 = vmatpush1.msra.mxu0 0.0
    %1234 = vmatprep.subr.mxu0 0.0
    %1235 = vmatpush1.msra.mxu0 0.0
    %1236 = vmatprep.subr.mxu0 0.0
    %1237 = vmatpush1.msra.mxu0 0.0
    %1238 = vmatprep.subr.mxu0 0.0
    %1239 = vmatpush1.msra.mxu0 0.0
    %1240 = vmatprep.subr.mxu0 0.0
    %1241 = vmatpush1.msra.mxu0 0.0
    %1242 = vmatprep.subr.mxu0 0.0
    %1243 = vmatpush1.msra.mxu0 0.0
    %1244 = vmatprep.subr.mxu0 0.0
    %1245 = vmatpush1.msra.mxu0 0.0
    %1246 = vmatprep.subr.mxu0 0.0
    %1247 = vmatpush1.msra.mxu0 0.0
    %1248 = vmatprep.subr.mxu0 0.0
    %1249 = vmatpush1.msra.mxu0 0.0
    %1250 = vmatprep.subr.mxu0 0.0
    %1251 = vmatpush1.msra.mxu0 0.0
    %1252 = vmatprep.subr.mxu0 0.0
    %1253 = vmatpush1.msra.mxu0 0.0
    %1254 = vmatprep.subr.mxu0 0.0
    %1255 = vmatpush1.msra.mxu0 0.0
    %1256 = vmatprep.subr.mxu0 0.0
    %1257 = vmatpush1.msra.mxu0 0.0
    %1258 = vmatprep.subr.mxu0 0.0
    %1259 = vmatpush1.msra.mxu0 0.0
    %1260 = vmatprep.subr.mxu0 0.0
    %1261 = vmatpush1.msra.mxu0 0.0
    %1262 = vmatprep.mubr.f32.mxu0 0.0
    %1263 = vmatmul.mubr.f32.gmra.mrb[0].mxu0 %v1196
    %v1264 = vpop.f32.mrb[0].mxu0
    %v1265 = vadd.f32 %v1192, %v1264
    %v1266 = vpop.f32.mrb[0].mxu0
    %1267 = vdwg.mxu0
    %v1268 = vxor.u32 %v1265, 2147483648
    %v1269 = vmul.f32 %v1268, 1.442695
    %v1270 = vpow.pop %v1269
    %v1271 = vadd.f32 %v1270, 1.0
    %v1272 = vrcp.pop %v1271
    %v1273 = vmul.f32 1.0, %v1272
    %v1274 = vmul.f32 %v1265, %v1273
    %v1275 = vld [vmem:[%s117] sm:$0xff]
    %v1276 = vld [vmem:[%s117 + $0x8] sm:$0xff]
    %v1277 = vld [vmem:[%s117 + $0x10] sm:$0xff]
    %v1278 = vld [vmem:[%s117 + $0x18] sm:$0xff]
    %v1279 = vld [vmem:[%s117 + $0x20] sm:$0xff]
    %v1280 = vld [vmem:[%s117 + $0x28] sm:$0xff]
    %v1281 = vld [vmem:[%s117 + $0x30] sm:$0xff]
    %v1282 = vld [vmem:[%s117 + $0x38] sm:$0xff]
    %v1283 = vld [vmem:[%s117 + $0x40] sm:$0xff]
    %v1284 = vld [vmem:[%s117 + $0x48] sm:$0xff]
    %v1285 = vld [vmem:[%s117 + $0x50] sm:$0xff]
    %v1286 = vld [vmem:[%s117 + $0x58] sm:$0xff]
    %v1287 = vld [vmem:[%s117 + $0x60] sm:$0xff]
    %v1288 = vld [vmem:[%s117 + $0x68] sm:$0xff]
    %v1289 = vld [vmem:[%s117 + $0x70] sm:$0xff]
    %v1290 = vld [vmem:[%s117 + $0x78] sm:$0xff]
    %v1291 = vld [vmem:[#allocation79] sm:$0x1]
    %v1293 = vlaneseq
    %v1294 = vshrl.u32 %v1293, 7
    %v1295 = vsub.s32 0, %v1294
    %v1296 = vrot.slane %v1291, %v1295
    %1298 = vmatprep.subr.mxu0 0.0
    %1299 = vmatpush1.msra.mxu0 %v1275
    %1300 = vmatprep.subr.mxu0 0.0
    %1301 = vmatpush1.msra.mxu0 %v1276
    %1302 = vmatprep.subr.mxu0 0.0
    %1303 = vmatpush1.msra.mxu0 %v1277
    %1304 = vmatprep.subr.mxu0 0.0
    %1305 = vmatpush1.msra.mxu0 %v1278
    %1306 = vmatprep.subr.mxu0 0.0
    %1307 = vmatpush1.msra.mxu0 %v1279
    %1308 = vmatprep.subr.mxu0 0.0
    %1309 = vmatpush1.msra.mxu0 %v1280
    %1310 = vmatprep.subr.mxu0 0.0
    %1311 = vmatpush1.msra.mxu0 %v1281
    %1312 = vmatprep.subr.mxu0 0.0
    %1313 = vmatpush1.msra.mxu0 %v1282
    %1314 = vmatprep.subr.mxu0 0.0
    %1315 = vmatpush1.msra.mxu0 %v1283
    %1316 = vmatprep.subr.mxu0 0.0
    %1317 = vmatpush1.msra.mxu0 %v1284
    %1318 = vmatprep.subr.mxu0 0.0
    %1319 = vmatpush1.msra.mxu0 %v1285
    %1320 = vmatprep.subr.mxu0 0.0
    %1321 = vmatpush1.msra.mxu0 %v1286
    %1322 = vmatprep.subr.mxu0 0.0
    %1323 = vmatpush1.msra.mxu0 %v1287
    %1324 = vmatprep.subr.mxu0 0.0
    %1325 = vmatpush1.msra.mxu0 %v1288
    %1326 = vmatprep.subr.mxu0 0.0
    %1327 = vmatpush1.msra.mxu0 %v1289
    %1328 = vmatprep.subr.mxu0 0.0
    %1329 = vmatpush1.msra.mxu0 %v1290
    %1330 = vmatprep.subr.mxu0 0.0
    %1331 = vmatpush1.msra.mxu0 0.0
    %1332 = vmatprep.subr.mxu0 0.0
    %1333 = vmatpush1.msra.mxu0 0.0
    %1334 = vmatprep.subr.mxu0 0.0
    %1335 = vmatpush1.msra.mxu0 0.0
    %1336 = vmatprep.subr.mxu0 0.0
    %1337 = vmatpush1.msra.mxu0 0.0
    %1338 = vmatprep.subr.mxu0 0.0
    %1339 = vmatpush1.msra.mxu0 0.0
    %1340 = vmatprep.subr.mxu0 0.0
    %1341 = vmatpush1.msra.mxu0 0.0
    %1342 = vmatprep.subr.mxu0 0.0
    %1343 = vmatpush1.msra.mxu0 0.0
    %1344 = vmatprep.subr.mxu0 0.0
    %1345 = vmatpush1.msra.mxu0 0.0
    %1346 = vmatprep.subr.mxu0 0.0
    %1347 = vmatpush1.msra.mxu0 0.0
    %1348 = vmatprep.subr.mxu0 0.0
    %1349 = vmatpush1.msra.mxu0 0.0
    %1350 = vmatprep.subr.mxu0 0.0
    %1351 = vmatpush1.msra.mxu0 0.0
    %1352 = vmatprep.subr.mxu0 0.0
    %1353 = vmatpush1.msra.mxu0 0.0
    %1354 = vmatprep.subr.mxu0 0.0
    %1355 = vmatpush1.msra.mxu0 0.0
    %1356 = vmatprep.subr.mxu0 0.0
    %1357 = vmatpush1.msra.mxu0 0.0
    %1358 = vmatprep.subr.mxu0 0.0
    %1359 = vmatpush1.msra.mxu0 0.0
    %1360 = vmatprep.subr.mxu0 0.0
    %1361 = vmatpush1.msra.mxu0 0.0
    %1362 = vmatprep.mubr.f32.mxu0 0.0
    %1363 = vmatmul.mubr.f32.gmra.mrb[0].mxu0 %v1274
    %v1364 = vpop.f32.mrb[0].mxu0
    %v1365 = vadd.f32 %v1296, %v1364
    %v1366 = vpop.f32.mrb[0].mxu0
    %1367 = vdwg.mxu0
    %v1368 = vxor.u32 %v1365, 2147483648
    %v1369 = vmul.f32 %v1368, 1.442695
    %v1370 = vpow.pop %v1369
    %v1371 = vadd.f32 %v1370, 1.0
    %v1372 = vrcp.pop %v1371
    %v1373 = vmul.f32 1.0, %v1372
    %v1374 = vmul.f32 %v1365, %v1373
    %v1375 = vld [vmem:[#allocation82] sm:$0xff]
    %v1376 = vld [vmem:[#allocation80] sm:$0x1]
    %v1378 = vlaneseq
    %v1379 = vshrl.u32 %v1378, 7
    %v1380 = vsub.s32 0, %v1379
    %v1381 = vrot.slane %v1376, %v1380
    %vm1383 = vcmask 64512
    %v1385 = vsel %vm1383, %v1177, 0
    %1387 = vmatprep.subr.mxu0 0.0
    %1388 = vmatpush1.msra.mxu0 %v1375
    %1389 = vmatprep.subr.mxu0 0.0
    %1390 = vmatpush1.msra.mxu0 0.0
    %1391 = vmatprep.subr.mxu0 0.0
    %1392 = vmatpush1.msra.mxu0 0.0
    %1393 = vmatprep.subr.mxu0 0.0
    %1394 = vmatpush1.msra.mxu0 0.0
    %1395 = vmatprep.subr.mxu0 0.0
    %1396 = vmatpush1.msra.mxu0 0.0
    %1397 = vmatprep.subr.mxu0 0.0
    %1398 = vmatpush1.msra.mxu0 0.0
    %1399 = vmatprep.subr.mxu0 0.0
    %1400 = vmatpush1.msra.mxu0 0.0
    %1401 = vmatprep.subr.mxu0 0.0
    %1402 = vmatpush1.msra.mxu0 0.0
    %1403 = vmatprep.subr.mxu0 0.0
    %1404 = vmatpush1.msra.mxu0 0.0
    %1405 = vmatprep.subr.mxu0 0.0
    %1406 = vmatpush1.msra.mxu0 0.0
    %1407 = vmatprep.subr.mxu0 0.0
    %1408 = vmatpush1.msra.mxu0 0.0
    %1409 = vmatprep.subr.mxu0 0.0
    %1410 = vmatpush1.msra.mxu0 0.0
    %1411 = vmatprep.subr.mxu0 0.0
    %1412 = vmatpush1.msra.mxu0 0.0
    %1413 = vmatprep.subr.mxu0 0.0
    %1414 = vmatpush1.msra.mxu0 0.0
    %1415 = vmatprep.subr.mxu0 0.0
    %1416 = vmatpush1.msra.mxu0 0.0
    %1417 = vmatprep.subr.mxu0 0.0
    %1418 = vmatpush1.msra.mxu0 0.0
    %1419 = vmatprep.subr.mxu0 0.0
    %1420 = vmatpush1.msra.mxu0 0.0
    %1421 = vmatprep.subr.mxu0 0.0
    %1422 = vmatpush1.msra.mxu0 0.0
    %1423 = vmatprep.subr.mxu0 0.0
    %1424 = vmatpush1.msra.mxu0 0.0
    %1425 = vmatprep.subr.mxu0 0.0
    %1426 = vmatpush1.msra.mxu0 0.0
    %1427 = vmatprep.subr.mxu0 0.0
    %1428 = vmatpush1.msra.mxu0 0.0
    %1429 = vmatprep.subr.mxu0 0.0
    %1430 = vmatpush1.msra.mxu0 0.0
    %1431 = vmatprep.subr.mxu0 0.0
    %1432 = vmatpush1.msra.mxu0 0.0
    %1433 = vmatprep.subr.mxu0 0.0
    %1434 = vmatpush1.msra.mxu0 0.0
    %1435 = vmatprep.subr.mxu0 0.0
    %1436 = vmatpush1.msra.mxu0 0.0
    %1437 = vmatprep.subr.mxu0 0.0
    %1438 = vmatpush1.msra.mxu0 0.0
    %1439 = vmatprep.subr.mxu0 0.0
    %1440 = vmatpush1.msra.mxu0 0.0
    %1441 = vmatprep.subr.mxu0 0.0
    %1442 = vmatpush1.msra.mxu0 0.0
    %1443 = vmatprep.subr.mxu0 0.0
    %1444 = vmatpush1.msra.mxu0 0.0
    %1445 = vmatprep.subr.mxu0 0.0
    %1446 = vmatpush1.msra.mxu0 0.0
    %1447 = vmatprep.subr.mxu0 0.0
    %1448 = vmatpush1.msra.mxu0 0.0
    %1449 = vmatprep.subr.mxu0 0.0
    %1450 = vmatpush1.msra.mxu0 0.0
    %1451 = vmatprep.mubr.f32.mxu0 0.0
    %1452 = vmatmul.mubr.f32.gmra.mrb[0].mxu0 %v1385
    %v1453 = vpop.f32.mrb[0].mxu0
    %v1454 = vadd.f32 %v1381, %v1453
    %v1455 = vpop.f32.mrb[0].mxu0
    %1456 = vdwg.mxu0
    %v1457 = vadd.f32 %v1374, %v1454
    %v1458 = vld [vmem:[#allocation92] sm:$0xff]
    %v1459 = vld [vmem:[#allocation92 + $0x8] sm:$0xff]
    %v1460 = vld [vmem:[#allocation92 + $0x10] sm:$0xff]
    %v1461 = vld [vmem:[#allocation92 + $0x18] sm:$0xff]
    %v1462 = vld [vmem:[#allocation92 + $0x20] sm:$0xff]
    %v1463 = vld [vmem:[#allocation92 + $0x28] sm:$0xff]
    %v1464 = vld [vmem:[#allocation92 + $0x30] sm:$0xff]
    %v1465 = vld [vmem:[#allocation92 + $0x38] sm:$0xff]
    %v1466 = vld [vmem:[#allocation92 + $0x40] sm:$0xff]
    %v1467 = vld [vmem:[#allocation92 + $0x48] sm:$0xff]
    %v1468 = vld [vmem:[#allocation92 + $0x50] sm:$0xff]
    %v1469 = vld [vmem:[#allocation92 + $0x58] sm:$0xff]
    %v1470 = vld [vmem:[#allocation92 + $0x60] sm:$0xff]
    %v1471 = vld [vmem:[#allocation92 + $0x68] sm:$0xff]
    %v1472 = vld [vmem:[#allocation92 + $0x70] sm:$0xff]
    %v1473 = vld [vmem:[#allocation92 + $0x78] sm:$0xff]
    %v1474 = vld [vmem:[#allocation92 + $0x80] sm:$0xff]
    %v1475 = vld [vmem:[#allocation92 + $0x88] sm:$0xff]
    %v1476 = vld [vmem:[#allocation92 + $0x90] sm:$0xff]
    %v1477 = vld [vmem:[#allocation92 + $0x98] sm:$0xff]
    %v1478 = vld [vmem:[#allocation92 + $0xa0] sm:$0xff]
    %v1479 = vld [vmem:[#allocation92 + $0xa8] sm:$0xff]
    %v1480 = vld [vmem:[#allocation92 + $0xb0] sm:$0xff]
    %v1481 = vld [vmem:[#allocation92 + $0xb8] sm:$0xff]
    %v1482 = vld [vmem:[#allocation92 + $0xc0] sm:$0xff]
    %v1483 = vld [vmem:[#allocation92 + $0xc8] sm:$0xff]
    %v1484 = vld [vmem:[#allocation92 + $0xd0] sm:$0xff]
    %v1485 = vld [vmem:[#allocation92 + $0xd8] sm:$0xff]
    %v1486 = vld [vmem:[#allocation92 + $0xe0] sm:$0xff]
    %v1487 = vld [vmem:[#allocation92 + $0xe8] sm:$0xff]
    %v1488 = vld [vmem:[#allocation92 + $0xf0] sm:$0xff]
    %v1489 = vld [vmem:[#allocation92 + $0xf8] sm:$0xff]
    %v1490 = vld [vmem:[#allocation85] sm:$0x3]
    %v1492 = vlaneseq
    %v1493 = vshrl.u32 %v1492, 7
    %v1494 = vsub.s32 0, %v1493
    %v1495 = vrot.slane %v1490, %v1494
    %v1496 = vlaneseq
    %v1497 = vshrl.u32 %v1496, 7
    %v1498 = vsub.s32 1, %v1497
    %v1499 = vrot.slane %v1490, %v1498
    %1502 = vmatprep.subr.mxu0 %v1459
    %1503 = vmatpush1.msra.mxu0 %v1458
    %1504 = vmatprep.subr.mxu0 %v1461
    %1505 = vmatpush1.msra.mxu0 %v1460
    %1506 = vmatprep.subr.mxu0 %v1463
    %1507 = vmatpush1.msra.mxu0 %v1462
    %1508 = vmatprep.subr.mxu0 %v1465
    %1509 = vmatpush1.msra.mxu0 %v1464
    %1510 = vmatprep.subr.mxu0 %v1467
    %1511 = vmatpush1.msra.mxu0 %v1466
    %1512 = vmatprep.subr.mxu0 %v1469
    %1513 = vmatpush1.msra.mxu0 %v1468
    %1514 = vmatprep.subr.mxu0 %v1471
    %1515 = vmatpush1.msra.mxu0 %v1470
    %1516 = vmatprep.subr.mxu0 %v1473
    %1517 = vmatpush1.msra.mxu0 %v1472
    %1518 = vmatprep.subr.mxu0 %v1475
    %1519 = vmatpush1.msra.mxu0 %v1474
    %1520 = vmatprep.subr.mxu0 %v1477
    %1521 = vmatpush1.msra.mxu0 %v1476
    %1522 = vmatprep.subr.mxu0 %v1479
    %1523 = vmatpush1.msra.mxu0 %v1478
    %1524 = vmatprep.subr.mxu0 %v1481
    %1525 = vmatpush1.msra.mxu0 %v1480
    %1526 = vmatprep.subr.mxu0 %v1483
    %1527 = vmatpush1.msra.mxu0 %v1482
    %1528 = vmatprep.subr.mxu0 %v1485
    %1529 = vmatpush1.msra.mxu0 %v1484
    %1530 = vmatprep.subr.mxu0 %v1487
    %1531 = vmatpush1.msra.mxu0 %v1486
    %1532 = vmatprep.subr.mxu0 %v1489
    %1533 = vmatpush1.msra.mxu0 %v1488
    %1534 = vmatprep.subr.mxu0 0.0
    %1535 = vmatpush1.msra.mxu0 0.0
    %1536 = vmatprep.subr.mxu0 0.0
    %1537 = vmatpush1.msra.mxu0 0.0
    %1538 = vmatprep.subr.mxu0 0.0
    %1539 = vmatpush1.msra.mxu0 0.0
    %1540 = vmatprep.subr.mxu0 0.0
    %1541 = vmatpush1.msra.mxu0 0.0
    %1542 = vmatprep.subr.mxu0 0.0
    %1543 = vmatpush1.msra.mxu0 0.0
    %1544 = vmatprep.subr.mxu0 0.0
    %1545 = vmatpush1.msra.mxu0 0.0
    %1546 = vmatprep.subr.mxu0 0.0
    %1547 = vmatpush1.msra.mxu0 0.0
    %1548 = vmatprep.subr.mxu0 0.0
    %1549 = vmatpush1.msra.mxu0 0.0
    %1550 = vmatprep.subr.mxu0 0.0
    %1551 = vmatpush1.msra.mxu0 0.0
    %1552 = vmatprep.subr.mxu0 0.0
    %1553 = vmatpush1.msra.mxu0 0.0
    %1554 = vmatprep.subr.mxu0 0.0
    %1555 = vmatpush1.msra.mxu0 0.0
    %1556 = vmatprep.subr.mxu0 0.0
    %1557 = vmatpush1.msra.mxu0 0.0
    %1558 = vmatprep.subr.mxu0 0.0
    %1559 = vmatpush1.msra.mxu0 0.0
    %1560 = vmatprep.subr.mxu0 0.0
    %1561 = vmatpush1.msra.mxu0 0.0
    %1562 = vmatprep.subr.mxu0 0.0
    %1563 = vmatpush1.msra.mxu0 0.0
    %1564 = vmatprep.subr.mxu0 0.0
    %1565 = vmatpush1.msra.mxu0 0.0
    %1566 = vmatprep.mubr.f32.mxu0 0.0
    %1567 = vmatmul.mubr.f32.gmra.mrb[0].mxu0 %v1457
    %v1568 = vpop.f32.mrb[0].mxu0
    %v1569 = vadd.f32 %v1495, %v1568
    %v1570 = vpop.f32.mrb[0].mxu0
    %v1571 = vadd.f32 %v1499, %v1570
    %1572 = vdwg.mxu0
    %v1573 = vxor.u32 %v1569, 2147483648
    %v1574 = vxor.u32 %v1571, 2147483648
    %v1575 = vmul.f32 %v1573, 1.442695
    %v1576 = vpow.pop %v1575
    %v1577 = vmul.f32 %v1574, 1.442695
    %v1578 = vpow.pop %v1577
    %v1579 = vadd.f32 %v1576, 1.0
    %v1580 = vadd.f32 %v1578, 1.0
    %v1581 = vrcp.pop %v1579
    %v1582 = vmul.f32 1.0, %v1581
    %v1583 = vrcp.pop %v1580
    %v1584 = vmul.f32 1.0, %v1583
    %v1585 = vmul.f32 %v1569, %v1582
    %v1586 = vmul.f32 %v1571, %v1584
    %v1587 = vld [vmem:[#allocation94] sm:$0xff]
    %v1588 = vld [vmem:[#allocation94 + $0x8] sm:$0xff]
    %v1589 = vld [vmem:[#allocation94 + $0x10] sm:$0xff]
    %v1590 = vld [vmem:[#allocation94 + $0x18] sm:$0xff]
    %v1591 = vld [vmem:[#allocation94 + $0x20] sm:$0xff]
    %v1592 = vld [vmem:[#allocation94 + $0x28] sm:$0xff]
    %v1593 = vld [vmem:[#allocation94 + $0x30] sm:$0xff]
    %v1594 = vld [vmem:[#allocation94 + $0x38] sm:$0xff]
    %v1595 = vld [vmem:[#allocation94 + $0x40] sm:$0xff]
    %v1596 = vld [vmem:[#allocation94 + $0x48] sm:$0xff]
    %v1597 = vld [vmem:[#allocation94 + $0x50] sm:$0xff]
    %v1598 = vld [vmem:[#allocation94 + $0x58] sm:$0xff]
    %v1599 = vld [vmem:[#allocation94 + $0x60] sm:$0xff]
    %v1600 = vld [vmem:[#allocation94 + $0x68] sm:$0xff]
    %v1601 = vld [vmem:[#allocation94 + $0x70] sm:$0xff]
    %v1602 = vld [vmem:[#allocation94 + $0x78] sm:$0xff]
    %v1603 = vld [vmem:[#allocation94 + $0x80] sm:$0xff]
    %v1604 = vld [vmem:[#allocation94 + $0x88] sm:$0xff]
    %v1605 = vld [vmem:[#allocation94 + $0x90] sm:$0xff]
    %v1606 = vld [vmem:[#allocation94 + $0x98] sm:$0xff]
    %v1607 = vld [vmem:[#allocation94 + $0xa0] sm:$0xff]
    %v1608 = vld [vmem:[#allocation94 + $0xa8] sm:$0xff]
    %v1609 = vld [vmem:[#allocation94 + $0xb0] sm:$0xff]
    %v1610 = vld [vmem:[#allocation94 + $0xb8] sm:$0xff]
    %v1611 = vld [vmem:[#allocation94 + $0xc0] sm:$0xff]
    %v1612 = vld [vmem:[#allocation94 + $0xc8] sm:$0xff]
    %v1613 = vld [vmem:[#allocation94 + $0xd0] sm:$0xff]
    %v1614 = vld [vmem:[#allocation94 + $0xd8] sm:$0xff]
    %v1615 = vld [vmem:[#allocation94 + $0xe0] sm:$0xff]
    %v1616 = vld [vmem:[#allocation94 + $0xe8] sm:$0xff]
    %v1617 = vld [vmem:[#allocation94 + $0xf0] sm:$0xff]
    %v1618 = vld [vmem:[#allocation94 + $0xf8] sm:$0xff]
    %v1619 = vld [vmem:[#allocation94 + $0x100] sm:$0xff]
    %v1620 = vld [vmem:[#allocation94 + $0x108] sm:$0xff]
    %v1621 = vld [vmem:[#allocation94 + $0x110] sm:$0xff]
    %v1622 = vld [vmem:[#allocation94 + $0x118] sm:$0xff]
    %v1623 = vld [vmem:[#allocation94 + $0x120] sm:$0xff]
    %v1624 = vld [vmem:[#allocation94 + $0x128] sm:$0xff]
    %v1625 = vld [vmem:[#allocation94 + $0x130] sm:$0xff]
    %v1626 = vld [vmem:[#allocation94 + $0x138] sm:$0xff]
    %v1627 = vld [vmem:[#allocation94 + $0x140] sm:$0xff]
    %v1628 = vld [vmem:[#allocation94 + $0x148] sm:$0xff]
    %v1629 = vld [vmem:[#allocation94 + $0x150] sm:$0xff]
    %v1630 = vld [vmem:[#allocation94 + $0x158] sm:$0xff]
    %v1631 = vld [vmem:[#allocation94 + $0x160] sm:$0xff]
    %v1632 = vld [vmem:[#allocation94 + $0x168] sm:$0xff]
    %v1633 = vld [vmem:[#allocation94 + $0x170] sm:$0xff]
    %v1634 = vld [vmem:[#allocation94 + $0x178] sm:$0xff]
    %v1635 = vld [vmem:[#allocation94 + $0x180] sm:$0xff]
    %v1636 = vld [vmem:[#allocation94 + $0x188] sm:$0xff]
    %v1637 = vld [vmem:[#allocation94 + $0x190] sm:$0xff]
    %v1638 = vld [vmem:[#allocation94 + $0x198] sm:$0xff]
    %v1639 = vld [vmem:[#allocation94 + $0x1a0] sm:$0xff]
    %v1640 = vld [vmem:[#allocation94 + $0x1a8] sm:$0xff]
    %v1641 = vld [vmem:[#allocation94 + $0x1b0] sm:$0xff]
    %v1642 = vld [vmem:[#allocation94 + $0x1b8] sm:$0xff]
    %v1643 = vld [vmem:[#allocation94 + $0x1c0] sm:$0xff]
    %v1644 = vld [vmem:[#allocation94 + $0x1c8] sm:$0xff]
    %v1645 = vld [vmem:[#allocation94 + $0x1d0] sm:$0xff]
    %v1646 = vld [vmem:[#allocation94 + $0x1d8] sm:$0xff]
    %v1647 = vld [vmem:[#allocation94 + $0x1e0] sm:$0xff]
    %v1648 = vld [vmem:[#allocation94 + $0x1e8] sm:$0xff]
    %v1649 = vld [vmem:[#allocation94 + $0x1f0] sm:$0xff]
    %v1650 = vld [vmem:[#allocation94 + $0x1f8] sm:$0xff]
    %v1651 = vld [vmem:[#allocation86] sm:$0x3]
    %v1653 = vlaneseq
    %v1654 = vshrl.u32 %v1653, 7
    %v1655 = vsub.s32 0, %v1654
    %v1656 = vrot.slane %v1651, %v1655
    %v1657 = vlaneseq
    %v1658 = vshrl.u32 %v1657, 7
    %v1659 = vsub.s32 1, %v1658
    %v1660 = vrot.slane %v1651, %v1659
    %1663 = vmatprep.subr.mxu0 %v1588
    %1664 = vmatpush1.msra.mxu0 %v1587
    %1665 = vmatprep.subr.mxu0 %v1590
    %1666 = vmatpush1.msra.mxu0 %v1589
    %1667 = vmatprep.subr.mxu0 %v1592
    %1668 = vmatpush1.msra.mxu0 %v1591
    %1669 = vmatprep.subr.mxu0 %v1594
    %1670 = vmatpush1.msra.mxu0 %v1593
    %1671 = vmatprep.subr.mxu0 %v1596
    %1672 = vmatpush1.msra.mxu0 %v1595
    %1673 = vmatprep.subr.mxu0 %v1598
    %1674 = vmatpush1.msra.mxu0 %v1597
    %1675 = vmatprep.subr.mxu0 %v1600
    %1676 = vmatpush1.msra.mxu0 %v1599
    %1677 = vmatprep.subr.mxu0 %v1602
    %1678 = vmatpush1.msra.mxu0 %v1601
    %1679 = vmatprep.subr.mxu0 %v1604
    %1680 = vmatpush1.msra.mxu0 %v1603
    %1681 = vmatprep.subr.mxu0 %v1606
    %1682 = vmatpush1.msra.mxu0 %v1605
    %1683 = vmatprep.subr.mxu0 %v1608
    %1684 = vmatpush1.msra.mxu0 %v1607
    %1685 = vmatprep.subr.mxu0 %v1610
    %1686 = vmatpush1.msra.mxu0 %v1609
    %1687 = vmatprep.subr.mxu0 %v1612
    %1688 = vmatpush1.msra.mxu0 %v1611
    %1689 = vmatprep.subr.mxu0 %v1614
    %1690 = vmatpush1.msra.mxu0 %v1613
    %1691 = vmatprep.subr.mxu0 %v1616
    %1692 = vmatpush1.msra.mxu0 %v1615
    %1693 = vmatprep.subr.mxu0 %v1618
    %1694 = vmatpush1.msra.mxu0 %v1617
    %1695 = vmatprep.subr.mxu0 %v1620
    %1696 = vmatpush1.msra.mxu0 %v1619
    %1697 = vmatprep.subr.mxu0 %v1622
    %1698 = vmatpush1.msra.mxu0 %v1621
    %1699 = vmatprep.subr.mxu0 %v1624
    %1700 = vmatpush1.msra.mxu0 %v1623
    %1701 = vmatprep.subr.mxu0 %v1626
    %1702 = vmatpush1.msra.mxu0 %v1625
    %1703 = vmatprep.subr.mxu0 %v1628
    %1704 = vmatpush1.msra.mxu0 %v1627
    %1705 = vmatprep.subr.mxu0 %v1630
    %1706 = vmatpush1.msra.mxu0 %v1629
    %1707 = vmatprep.subr.mxu0 %v1632
    %1708 = vmatpush1.msra.mxu0 %v1631
    %1709 = vmatprep.subr.mxu0 %v1634
    %1710 = vmatpush1.msra.mxu0 %v1633
    %1711 = vmatprep.subr.mxu0 %v1636
    %1712 = vmatpush1.msra.mxu0 %v1635
    %1713 = vmatprep.subr.mxu0 %v1638
    %1714 = vmatpush1.msra.mxu0 %v1637
    %1715 = vmatprep.subr.mxu0 %v1640
    %1716 = vmatpush1.msra.mxu0 %v1639
    %1717 = vmatprep.subr.mxu0 %v1642
    %1718 = vmatpush1.msra.mxu0 %v1641
    %1719 = vmatprep.subr.mxu0 %v1644
    %1720 = vmatpush1.msra.mxu0 %v1643
    %1721 = vmatprep.subr.mxu0 %v1646
    %1722 = vmatpush1.msra.mxu0 %v1645
    %1723 = vmatprep.subr.mxu0 %v1648
    %1724 = vmatpush1.msra.mxu0 %v1647
    %1725 = vmatprep.subr.mxu0 %v1650
    %1726 = vmatpush1.msra.mxu0 %v1649
    %1727 = vmatprep.mubr.f32.mxu0 %v1586
    %1728 = vmatmul.mubr.f32.gmra.mrb[0].mxu0 %v1585
    %v1729 = vpop.f32.mrb[0].mxu0
    %v1730 = vadd.f32 %v1656, %v1729
    %v1731 = vpop.f32.mrb[0].mxu0
    %v1732 = vadd.f32 %v1660, %v1731
    %1733 = vdwg.mxu0
    %v1734 = vxor.u32 %v1730, 2147483648
    %v1735 = vxor.u32 %v1732, 2147483648
    %v1736 = vmul.f32 %v1734, 1.442695
    %v1737 = vpow.pop %v1736
    %v1738 = vmul.f32 %v1735, 1.442695
    %v1739 = vpow.pop %v1738
    %v1740 = vadd.f32 %v1737, 1.0
    %v1741 = vadd.f32 %v1739, 1.0
    %v1742 = vrcp.pop %v1740
    %v1743 = vmul.f32 1.0, %v1742
    %v1744 = vrcp.pop %v1741
    %v1745 = vmul.f32 1.0, %v1744
    %v1746 = vmul.f32 %v1730, %v1743
    %v1747 = vmul.f32 %v1732, %v1745
    %v1748 = vld [vmem:[#allocation91] sm:$0xff]
    %v1749 = vld [vmem:[#allocation91 + $0x8] sm:$0xff]
    %v1750 = vld [vmem:[#allocation89] sm:$0x3]
    %v1752 = vlaneseq
    %v1753 = vshrl.u32 %v1752, 7
    %v1754 = vsub.s32 0, %v1753
    %v1755 = vrot.slane %v1750, %v1754
    %v1756 = vlaneseq
    %v1757 = vshrl.u32 %v1756, 7
    %v1758 = vsub.s32 1, %v1757
    %v1759 = vrot.slane %v1750, %v1758
    %1762 = vmatprep.subr.mxu0 %v1749
    %1763 = vmatpush1.msra.mxu0 %v1748
    %1764 = vmatprep.subr.mxu0 0.0
    %1765 = vmatpush1.msra.mxu0 0.0
    %1766 = vmatprep.subr.mxu0 0.0
    %1767 = vmatpush1.msra.mxu0 0.0
    %1768 = vmatprep.subr.mxu0 0.0
    %1769 = vmatpush1.msra.mxu0 0.0
    %1770 = vmatprep.subr.mxu0 0.0
    %1771 = vmatpush1.msra.mxu0 0.0
    %1772 = vmatprep.subr.mxu0 0.0
    %1773 = vmatpush1.msra.mxu0 0.0
    %1774 = vmatprep.subr.mxu0 0.0
    %1775 = vmatpush1.msra.mxu0 0.0
    %1776 = vmatprep.subr.mxu0 0.0
    %1777 = vmatpush1.msra.mxu0 0.0
    %1778 = vmatprep.subr.mxu0 0.0
    %1779 = vmatpush1.msra.mxu0 0.0
    %1780 = vmatprep.subr.mxu0 0.0
    %1781 = vmatpush1.msra.mxu0 0.0
    %1782 = vmatprep.subr.mxu0 0.0
    %1783 = vmatpush1.msra.mxu0 0.0
    %1784 = vmatprep.subr.mxu0 0.0
    %1785 = vmatpush1.msra.mxu0 0.0
    %1786 = vmatprep.subr.mxu0 0.0
    %1787 = vmatpush1.msra.mxu0 0.0
    %1788 = vmatprep.subr.mxu0 0.0
    %1789 = vmatpush1.msra.mxu0 0.0
    %1790 = vmatprep.subr.mxu0 0.0
    %1791 = vmatpush1.msra.mxu0 0.0
    %1792 = vmatprep.subr.mxu0 0.0
    %1793 = vmatpush1.msra.mxu0 0.0
    %1794 = vmatprep.subr.mxu0 0.0
    %1795 = vmatpush1.msra.mxu0 0.0
    %1796 = vmatprep.subr.mxu0 0.0
    %1797 = vmatpush1.msra.mxu0 0.0
    %1798 = vmatprep.subr.mxu0 0.0
    %1799 = vmatpush1.msra.mxu0 0.0
    %1800 = vmatprep.subr.mxu0 0.0
    %1801 = vmatpush1.msra.mxu0 0.0
    %1802 = vmatprep.subr.mxu0 0.0
    %1803 = vmatpush1.msra.mxu0 0.0
    %1804 = vmatprep.subr.mxu0 0.0
    %1805 = vmatpush1.msra.mxu0 0.0
    %1806 = vmatprep.subr.mxu0 0.0
    %1807 = vmatpush1.msra.mxu0 0.0
    %1808 = vmatprep.subr.mxu0 0.0
    %1809 = vmatpush1.msra.mxu0 0.0
    %1810 = vmatprep.subr.mxu0 0.0
    %1811 = vmatpush1.msra.mxu0 0.0
    %1812 = vmatprep.subr.mxu0 0.0
    %1813 = vmatpush1.msra.mxu0 0.0
    %1814 = vmatprep.subr.mxu0 0.0
    %1815 = vmatpush1.msra.mxu0 0.0
    %1816 = vmatprep.subr.mxu0 0.0
    %1817 = vmatpush1.msra.mxu0 0.0
    %1818 = vmatprep.subr.mxu0 0.0
    %1819 = vmatpush1.msra.mxu0 0.0
    %1820 = vmatprep.subr.mxu0 0.0
    %1821 = vmatpush1.msra.mxu0 0.0
    %1822 = vmatprep.subr.mxu0 0.0
    %1823 = vmatpush1.msra.mxu0 0.0
    %1824 = vmatprep.subr.mxu0 0.0
    %1825 = vmatpush1.msra.mxu0 0.0
    %1826 = vmatprep.mubr.f32.mxu0 0.0
    %1827 = vmatmul.mubr.f32.gmra.mrb[0].mxu0 %v1385
    %v1828 = vpop.f32.mrb[0].mxu0
    %v1829 = vadd.f32 %v1755, %v1828
    %v1830 = vpop.f32.mrb[0].mxu0
    %v1831 = vadd.f32 %v1759, %v1830
    %1832 = vdwg.mxu0
    %v1833 = vadd.f32 %v1746, %v1829
    %v1834 = vadd.f32 %v1747, %v1831
    %v1835 = vld [vmem:[#allocation95] sm:$0xff]
    %v1836 = vld [vmem:[#allocation95 + $0x8] sm:$0xff]
    %v1837 = vld [vmem:[#allocation95 + $0x10] sm:$0xff]
    %v1838 = vld [vmem:[#allocation95 + $0x18] sm:$0xff]
    %v1839 = vld [vmem:[#allocation95 + $0x20] sm:$0xff]
    %v1840 = vld [vmem:[#allocation95 + $0x28] sm:$0xff]
    %v1841 = vld [vmem:[#allocation95 + $0x30] sm:$0xff]
    %v1842 = vld [vmem:[#allocation95 + $0x38] sm:$0xff]
    %v1843 = vld [vmem:[#allocation95 + $0x40] sm:$0xff]
    %v1844 = vld [vmem:[#allocation95 + $0x48] sm:$0xff]
    %v1845 = vld [vmem:[#allocation95 + $0x50] sm:$0xff]
    %v1846 = vld [vmem:[#allocation95 + $0x58] sm:$0xff]
    %v1847 = vld [vmem:[#allocation95 + $0x60] sm:$0xff]
    %v1848 = vld [vmem:[#allocation95 + $0x68] sm:$0xff]
    %v1849 = vld [vmem:[#allocation95 + $0x70] sm:$0xff]
    %v1850 = vld [vmem:[#allocation95 + $0x78] sm:$0xff]
    %v1851 = vld [vmem:[#allocation95 + $0x80] sm:$0xff]
    %v1852 = vld [vmem:[#allocation95 + $0x88] sm:$0xff]
    %v1853 = vld [vmem:[#allocation95 + $0x90] sm:$0xff]
    %v1854 = vld [vmem:[#allocation95 + $0x98] sm:$0xff]
    %v1855 = vld [vmem:[#allocation95 + $0xa0] sm:$0xff]
    %v1856 = vld [vmem:[#allocation95 + $0xa8] sm:$0xff]
    %v1857 = vld [vmem:[#allocation95 + $0xb0] sm:$0xff]
    %v1858 = vld [vmem:[#allocation95 + $0xb8] sm:$0xff]
    %v1859 = vld [vmem:[#allocation95 + $0xc0] sm:$0xff]
    %v1860 = vld [vmem:[#allocation95 + $0xc8] sm:$0xff]
    %v1861 = vld [vmem:[#allocation95 + $0xd0] sm:$0xff]
    %v1862 = vld [vmem:[#allocation95 + $0xd8] sm:$0xff]
    %v1863 = vld [vmem:[#allocation95 + $0xe0] sm:$0xff]
    %v1864 = vld [vmem:[#allocation95 + $0xe8] sm:$0xff]
    %v1865 = vld [vmem:[#allocation95 + $0xf0] sm:$0xff]
    %v1866 = vld [vmem:[#allocation95 + $0xf8] sm:$0xff]
    %v1867 = vld [vmem:[#allocation88] sm:$0x1]
    %v1869 = vlaneseq
    %v1870 = vshrl.u32 %v1869, 7
    %v1871 = vsub.s32 0, %v1870
    %v1872 = vrot.slane %v1867, %v1871
    %1874 = vmatprep.subr.mxu0 0.0
    %1875 = vmatpush1.msra.mxu0 %v1835
    %1876 = vmatprep.subr.mxu0 0.0
    %1877 = vmatpush1.msra.mxu0 %v1836
    %1878 = vmatprep.subr.mxu0 0.0
    %1879 = vmatpush1.msra.mxu0 %v1837
    %1880 = vmatprep.subr.mxu0 0.0
    %1881 = vmatpush1.msra.mxu0 %v1838
    %1882 = vmatprep.subr.mxu0 0.0
    %1883 = vmatpush1.msra.mxu0 %v1839
    %1884 = vmatprep.subr.mxu0 0.0
    %1885 = vmatpush1.msra.mxu0 %v1840
    %1886 = vmatprep.subr.mxu0 0.0
    %1887 = vmatpush1.msra.mxu0 %v1841
    %1888 = vmatprep.subr.mxu0 0.0
    %1889 = vmatpush1.msra.mxu0 %v1842
    %1890 = vmatprep.subr.mxu0 0.0
    %1891 = vmatpush1.msra.mxu0 %v1843
    %1892 = vmatprep.subr.mxu0 0.0
    %1893 = vmatpush1.msra.mxu0 %v1844
    %1894 = vmatprep.subr.mxu0 0.0
    %1895 = vmatpush1.msra.mxu0 %v1845
    %1896 = vmatprep.subr.mxu0 0.0
    %1897 = vmatpush1.msra.mxu0 %v1846
    %1898 = vmatprep.subr.mxu0 0.0
    %1899 = vmatpush1.msra.mxu0 %v1847
    %1900 = vmatprep.subr.mxu0 0.0
    %1901 = vmatpush1.msra.mxu0 %v1848
    %1902 = vmatprep.subr.mxu0 0.0
    %1903 = vmatpush1.msra.mxu0 %v1849
    %1904 = vmatprep.subr.mxu0 0.0
    %1905 = vmatpush1.msra.mxu0 %v1850
    %1906 = vmatprep.subr.mxu0 0.0
    %1907 = vmatpush1.msra.mxu0 %v1851
    %1908 = vmatprep.subr.mxu0 0.0
    %1909 = vmatpush1.msra.mxu0 %v1852
    %1910 = vmatprep.subr.mxu0 0.0
    %1911 = vmatpush1.msra.mxu0 %v1853
    %1912 = vmatprep.subr.mxu0 0.0
    %1913 = vmatpush1.msra.mxu0 %v1854
    %1914 = vmatprep.subr.mxu0 0.0
    %1915 = vmatpush1.msra.mxu0 %v1855
    %1916 = vmatprep.subr.mxu0 0.0
    %1917 = vmatpush1.msra.mxu0 %v1856
    %1918 = vmatprep.subr.mxu0 0.0
    %1919 = vmatpush1.msra.mxu0 %v1857
    %1920 = vmatprep.subr.mxu0 0.0
    %1921 = vmatpush1.msra.mxu0 %v1858
    %1922 = vmatprep.subr.mxu0 0.0
    %1923 = vmatpush1.msra.mxu0 %v1859
    %1924 = vmatprep.subr.mxu0 0.0
    %1925 = vmatpush1.msra.mxu0 %v1860
    %1926 = vmatprep.subr.mxu0 0.0
    %1927 = vmatpush1.msra.mxu0 %v1861
    %1928 = vmatprep.subr.mxu0 0.0
    %1929 = vmatpush1.msra.mxu0 %v1862
    %1930 = vmatprep.subr.mxu0 0.0
    %1931 = vmatpush1.msra.mxu0 %v1863
    %1932 = vmatprep.subr.mxu0 0.0
    %1933 = vmatpush1.msra.mxu0 %v1864
    %1934 = vmatprep.subr.mxu0 0.0
    %1935 = vmatpush1.msra.mxu0 %v1865
    %1936 = vmatprep.subr.mxu0 0.0
    %1937 = vmatpush1.msra.mxu0 %v1866
    %1938 = vmatprep.mubr.f32.mxu0 %v1834
    %1939 = vmatmul.mubr.f32.gmra.mrb[0].mxu0 %v1833
    %v1940 = vpop.f32.mrb[0].mxu0
    %v1941 = vadd.f32 %v1872, %v1940
    %v1942 = vpop.f32.mrb[0].mxu0
    %1943 = vdwg.mxu0
    %v1944 = vld [vmem:[#allocation104] sm:$0xff]
    %v1945 = vld [vmem:[#allocation104 + $0x8] sm:$0xff]
    %v1946 = vld [vmem:[#allocation104 + $0x10] sm:$0xff]
    %v1947 = vld [vmem:[#allocation104 + $0x18] sm:$0xff]
    %v1948 = vld [vmem:[#allocation104 + $0x20] sm:$0xff]
    %v1949 = vld [vmem:[#allocation104 + $0x28] sm:$0xff]
    %v1950 = vld [vmem:[#allocation104 + $0x30] sm:$0xff]
    %v1951 = vld [vmem:[#allocation104 + $0x38] sm:$0xff]
    %v1952 = vld [vmem:[#allocation104 + $0x40] sm:$0xff]
    %v1953 = vld [vmem:[#allocation104 + $0x48] sm:$0xff]
    %v1954 = vld [vmem:[#allocation104 + $0x50] sm:$0xff]
    %v1955 = vld [vmem:[#allocation104 + $0x58] sm:$0xff]
    %v1956 = vld [vmem:[#allocation104 + $0x60] sm:$0xff]
    %v1957 = vld [vmem:[#allocation104 + $0x68] sm:$0xff]
    %v1958 = vld [vmem:[#allocation104 + $0x70] sm:$0xff]
    %v1959 = vld [vmem:[#allocation104 + $0x78] sm:$0xff]
    %v1960 = vld [vmem:[#allocation104 + $0x80] sm:$0xff]
    %v1961 = vld [vmem:[#allocation104 + $0x88] sm:$0xff]
    %v1962 = vld [vmem:[#allocation104 + $0x90] sm:$0xff]
    %v1963 = vld [vmem:[#allocation104 + $0x98] sm:$0xff]
    %v1964 = vld [vmem:[#allocation104 + $0xa0] sm:$0xff]
    %v1965 = vld [vmem:[#allocation104 + $0xa8] sm:$0xff]
    %v1966 = vld [vmem:[#allocation104 + $0xb0] sm:$0xff]
    %v1967 = vld [vmem:[#allocation104 + $0xb8] sm:$0xff]
    %v1968 = vld [vmem:[#allocation104 + $0xc0] sm:$0xff]
    %v1969 = vld [vmem:[#allocation104 + $0xc8] sm:$0xff]
    %v1970 = vld [vmem:[#allocation104 + $0xd0] sm:$0xff]
    %v1971 = vld [vmem:[#allocation104 + $0xd8] sm:$0xff]
    %v1972 = vld [vmem:[#allocation104 + $0xe0] sm:$0xff]
    %v1973 = vld [vmem:[#allocation104 + $0xe8] sm:$0xff]
    %v1974 = vld [vmem:[#allocation104 + $0xf0] sm:$0xff]
    %v1975 = vld [vmem:[#allocation104 + $0xf8] sm:$0xff]
    %v1976 = vld [vmem:[#allocation97] sm:$0x3]
    %v1978 = vlaneseq
    %v1979 = vshrl.u32 %v1978, 7
    %v1980 = vsub.s32 0, %v1979
    %v1981 = vrot.slane %v1976, %v1980
    %v1982 = vlaneseq
    %v1983 = vshrl.u32 %v1982, 7
    %v1984 = vsub.s32 1, %v1983
    %v1985 = vrot.slane %v1976, %v1984
    %1988 = vmatprep.subr.mxu0 %v1945
    %1989 = vmatpush1.msra.mxu0 %v1944
    %1990 = vmatprep.subr.mxu0 %v1947
    %1991 = vmatpush1.msra.mxu0 %v1946
    %1992 = vmatprep.subr.mxu0 %v1949
    %1993 = vmatpush1.msra.mxu0 %v1948
    %1994 = vmatprep.subr.mxu0 %v1951
    %1995 = vmatpush1.msra.mxu0 %v1950
    %1996 = vmatprep.subr.mxu0 %v1953
    %1997 = vmatpush1.msra.mxu0 %v1952
    %1998 = vmatprep.subr.mxu0 %v1955
    %1999 = vmatpush1.msra.mxu0 %v1954
    %2000 = vmatprep.subr.mxu0 %v1957
    %2001 = vmatpush1.msra.mxu0 %v1956
    %2002 = vmatprep.subr.mxu0 %v1959
    %2003 = vmatpush1.msra.mxu0 %v1958
    %2004 = vmatprep.subr.mxu0 %v1961
    %2005 = vmatpush1.msra.mxu0 %v1960
    %2006 = vmatprep.subr.mxu0 %v1963
    %2007 = vmatpush1.msra.mxu0 %v1962
    %2008 = vmatprep.subr.mxu0 %v1965
    %2009 = vmatpush1.msra.mxu0 %v1964
    %2010 = vmatprep.subr.mxu0 %v1967
    %2011 = vmatpush1.msra.mxu0 %v1966
    %2012 = vmatprep.subr.mxu0 %v1969
    %2013 = vmatpush1.msra.mxu0 %v1968
    %2014 = vmatprep.subr.mxu0 %v1971
    %2015 = vmatpush1.msra.mxu0 %v1970
    %2016 = vmatprep.subr.mxu0 %v1973
    %2017 = vmatpush1.msra.mxu0 %v1972
    %2018 = vmatprep.subr.mxu0 %v1975
    %2019 = vmatpush1.msra.mxu0 %v1974
    %2020 = vmatprep.subr.mxu0 0.0
    %2021 = vmatpush1.msra.mxu0 0.0
    %2022 = vmatprep.subr.mxu0 0.0
    %2023 = vmatpush1.msra.mxu0 0.0
    %2024 = vmatprep.subr.mxu0 0.0
    %2025 = vmatpush1.msra.mxu0 0.0
    %2026 = vmatprep.subr.mxu0 0.0
    %2027 = vmatpush1.msra.mxu0 0.0
    %2028 = vmatprep.subr.mxu0 0.0
    %2029 = vmatpush1.msra.mxu0 0.0
    %2030 = vmatprep.subr.mxu0 0.0
    %2031 = vmatpush1.msra.mxu0 0.0
    %2032 = vmatprep.subr.mxu0 0.0
    %2033 = vmatpush1.msra.mxu0 0.0
    %2034 = vmatprep.subr.mxu0 0.0
    %2035 = vmatpush1.msra.mxu0 0.0
    %2036 = vmatprep.subr.mxu0 0.0
    %2037 = vmatpush1.msra.mxu0 0.0
    %2038 = vmatprep.subr.mxu0 0.0
    %2039 = vmatpush1.msra.mxu0 0.0
    %2040 = vmatprep.subr.mxu0 0.0
    %2041 = vmatpush1.msra.mxu0 0.0
    %2042 = vmatprep.subr.mxu0 0.0
    %2043 = vmatpush1.msra.mxu0 0.0
    %2044 = vmatprep.subr.mxu0 0.0
    %2045 = vmatpush1.msra.mxu0 0.0
    %2046 = vmatprep.subr.mxu0 0.0
    %2047 = vmatpush1.msra.mxu0 0.0
    %2048 = vmatprep.subr.mxu0 0.0
    %2049 = vmatpush1.msra.mxu0 0.0
    %2050 = vmatprep.subr.mxu0 0.0
    %2051 = vmatpush1.msra.mxu0 0.0
    %2052 = vmatprep.mubr.f32.mxu0 0.0
    %2053 = vmatmul.mubr.f32.gmra.mrb[0].mxu0 %v1941
    %v2054 = vpop.f32.mrb[0].mxu0
    %v2055 = vadd.f32 %v1981, %v2054
    %v2056 = vpop.f32.mrb[0].mxu0
    %v2057 = vadd.f32 %v1985, %v2056
    %2058 = vdwg.mxu0
    %v2059 = vxor.u32 %v2055, 2147483648
    %v2060 = vxor.u32 %v2057, 2147483648
    %v2061 = vmul.f32 %v2059, 1.442695
    %v2062 = vpow.pop %v2061
    %v2063 = vmul.f32 %v2060, 1.442695
    %v2064 = vpow.pop %v2063
    %v2065 = vadd.f32 %v2062, 1.0
    %v2066 = vadd.f32 %v2064, 1.0
    %v2067 = vrcp.pop %v2065
    %v2068 = vmul.f32 1.0, %v2067
    %v2069 = vrcp.pop %v2066
    %v2070 = vmul.f32 1.0, %v2069
    %v2071 = vmul.f32 %v2055, %v2068
    %v2072 = vmul.f32 %v2057, %v2070
    %v2073 = vld [vmem:[#allocation106] sm:$0xff]
    %v2074 = vld [vmem:[#allocation106 + $0x8] sm:$0xff]
    %v2075 = vld [vmem:[#allocation106 + $0x10] sm:$0xff]
    %v2076 = vld [vmem:[#allocation106 + $0x18] sm:$0xff]
    %v2077 = vld [vmem:[#allocation106 + $0x20] sm:$0xff]
    %v2078 = vld [vmem:[#allocation106 + $0x28] sm:$0xff]
    %v2079 = vld [vmem:[#allocation106 + $0x30] sm:$0xff]
    %v2080 = vld [vmem:[#allocation106 + $0x38] sm:$0xff]
    %v2081 = vld [vmem:[#allocation106 + $0x40] sm:$0xff]
    %v2082 = vld [vmem:[#allocation106 + $0x48] sm:$0xff]
    %v2083 = vld [vmem:[#allocation106 + $0x50] sm:$0xff]
    %v2084 = vld [vmem:[#allocation106 + $0x58] sm:$0xff]
    %v2085 = vld [vmem:[#allocation106 + $0x60] sm:$0xff]
    %v2086 = vld [vmem:[#allocation106 + $0x68] sm:$0xff]
    %v2087 = vld [vmem:[#allocation106 + $0x70] sm:$0xff]
    %v2088 = vld [vmem:[#allocation106 + $0x78] sm:$0xff]
    %v2089 = vld [vmem:[#allocation106 + $0x80] sm:$0xff]
    %v2090 = vld [vmem:[#allocation106 + $0x88] sm:$0xff]
    %v2091 = vld [vmem:[#allocation106 + $0x90] sm:$0xff]
    %v2092 = vld [vmem:[#allocation106 + $0x98] sm:$0xff]
    %v2093 = vld [vmem:[#allocation106 + $0xa0] sm:$0xff]
    %v2094 = vld [vmem:[#allocation106 + $0xa8] sm:$0xff]
    %v2095 = vld [vmem:[#allocation106 + $0xb0] sm:$0xff]
    %v2096 = vld [vmem:[#allocation106 + $0xb8] sm:$0xff]
    %v2097 = vld [vmem:[#allocation106 + $0xc0] sm:$0xff]
    %v2098 = vld [vmem:[#allocation106 + $0xc8] sm:$0xff]
    %v2099 = vld [vmem:[#allocation106 + $0xd0] sm:$0xff]
    %v2100 = vld [vmem:[#allocation106 + $0xd8] sm:$0xff]
    %v2101 = vld [vmem:[#allocation106 + $0xe0] sm:$0xff]
    %v2102 = vld [vmem:[#allocation106 + $0xe8] sm:$0xff]
    %v2103 = vld [vmem:[#allocation106 + $0xf0] sm:$0xff]
    %v2104 = vld [vmem:[#allocation106 + $0xf8] sm:$0xff]
    %v2105 = vld [vmem:[#allocation106 + $0x100] sm:$0xff]
    %v2106 = vld [vmem:[#allocation106 + $0x108] sm:$0xff]
    %v2107 = vld [vmem:[#allocation106 + $0x110] sm:$0xff]
    %v2108 = vld [vmem:[#allocation106 + $0x118] sm:$0xff]
    %v2109 = vld [vmem:[#allocation106 + $0x120] sm:$0xff]
    %v2110 = vld [vmem:[#allocation106 + $0x128] sm:$0xff]
    %v2111 = vld [vmem:[#allocation106 + $0x130] sm:$0xff]
    %v2112 = vld [vmem:[#allocation106 + $0x138] sm:$0xff]
    %v2113 = vld [vmem:[#allocation106 + $0x140] sm:$0xff]
    %v2114 = vld [vmem:[#allocation106 + $0x148] sm:$0xff]
    %v2115 = vld [vmem:[#allocation106 + $0x150] sm:$0xff]
    %v2116 = vld [vmem:[#allocation106 + $0x158] sm:$0xff]
    %v2117 = vld [vmem:[#allocation106 + $0x160] sm:$0xff]
    %v2118 = vld [vmem:[#allocation106 + $0x168] sm:$0xff]
    %v2119 = vld [vmem:[#allocation106 + $0x170] sm:$0xff]
    %v2120 = vld [vmem:[#allocation106 + $0x178] sm:$0xff]
    %v2121 = vld [vmem:[#allocation106 + $0x180] sm:$0xff]
    %v2122 = vld [vmem:[#allocation106 + $0x188] sm:$0xff]
    %v2123 = vld [vmem:[#allocation106 + $0x190] sm:$0xff]
    %v2124 = vld [vmem:[#allocation106 + $0x198] sm:$0xff]
    %v2125 = vld [vmem:[#allocation106 + $0x1a0] sm:$0xff]
    %v2126 = vld [vmem:[#allocation106 + $0x1a8] sm:$0xff]
    %v2127 = vld [vmem:[#allocation106 + $0x1b0] sm:$0xff]
    %v2128 = vld [vmem:[#allocation106 + $0x1b8] sm:$0xff]
    %v2129 = vld [vmem:[#allocation106 + $0x1c0] sm:$0xff]
    %v2130 = vld [vmem:[#allocation106 + $0x1c8] sm:$0xff]
    %v2131 = vld [vmem:[#allocation106 + $0x1d0] sm:$0xff]
    %v2132 = vld [vmem:[#allocation106 + $0x1d8] sm:$0xff]
    %v2133 = vld [vmem:[#allocation106 + $0x1e0] sm:$0xff]
    %v2134 = vld [vmem:[#allocation106 + $0x1e8] sm:$0xff]
    %v2135 = vld [vmem:[#allocation106 + $0x1f0] sm:$0xff]
    %v2136 = vld [vmem:[#allocation106 + $0x1f8] sm:$0xff]
    %v2137 = vld [vmem:[#allocation98] sm:$0x3]
    %v2139 = vlaneseq
    %v2140 = vshrl.u32 %v2139, 7
    %v2141 = vsub.s32 0, %v2140
    %v2142 = vrot.slane %v2137, %v2141
    %v2143 = vlaneseq
    %v2144 = vshrl.u32 %v2143, 7
    %v2145 = vsub.s32 1, %v2144
    %v2146 = vrot.slane %v2137, %v2145
    %2149 = vmatprep.subr.mxu0 %v2074
    %2150 = vmatpush1.msra.mxu0 %v2073
    %2151 = vmatprep.subr.mxu0 %v2076
    %2152 = vmatpush1.msra.mxu0 %v2075
    %2153 = vmatprep.subr.mxu0 %v2078
    %2154 = vmatpush1.msra.mxu0 %v2077
    %2155 = vmatprep.subr.mxu0 %v2080
    %2156 = vmatpush1.msra.mxu0 %v2079
    %2157 = vmatprep.subr.mxu0 %v2082
    %2158 = vmatpush1.msra.mxu0 %v2081
    %2159 = vmatprep.subr.mxu0 %v2084
    %2160 = vmatpush1.msra.mxu0 %v2083
    %2161 = vmatprep.subr.mxu0 %v2086
    %2162 = vmatpush1.msra.mxu0 %v2085
    %2163 = vmatprep.subr.mxu0 %v2088
    %2164 = vmatpush1.msra.mxu0 %v2087
    %2165 = vmatprep.subr.mxu0 %v2090
    %2166 = vmatpush1.msra.mxu0 %v2089
    %2167 = vmatprep.subr.mxu0 %v2092
    %2168 = vmatpush1.msra.mxu0 %v2091
    %2169 = vmatprep.subr.mxu0 %v2094
    %2170 = vmatpush1.msra.mxu0 %v2093
    %2171 = vmatprep.subr.mxu0 %v2096
    %2172 = vmatpush1.msra.mxu0 %v2095
    %2173 = vmatprep.subr.mxu0 %v2098
    %2174 = vmatpush1.msra.mxu0 %v2097
    %2175 = vmatprep.subr.mxu0 %v2100
    %2176 = vmatpush1.msra.mxu0 %v2099
    %2177 = vmatprep.subr.mxu0 %v2102
    %2178 = vmatpush1.msra.mxu0 %v2101
    %2179 = vmatprep.subr.mxu0 %v2104
    %2180 = vmatpush1.msra.mxu0 %v2103
    %2181 = vmatprep.subr.mxu0 %v2106
    %2182 = vmatpush1.msra.mxu0 %v2105
    %2183 = vmatprep.subr.mxu0 %v2108
    %2184 = vmatpush1.msra.mxu0 %v2107
    %2185 = vmatprep.subr.mxu0 %v2110
    %2186 = vmatpush1.msra.mxu0 %v2109
    %2187 = vmatprep.subr.mxu0 %v2112
    %2188 = vmatpush1.msra.mxu0 %v2111
    %2189 = vmatprep.subr.mxu0 %v2114
    %2190 = vmatpush1.msra.mxu0 %v2113
    %2191 = vmatprep.subr.mxu0 %v2116
    %2192 = vmatpush1.msra.mxu0 %v2115
    %2193 = vmatprep.subr.mxu0 %v2118
    %2194 = vmatpush1.msra.mxu0 %v2117
    %2195 = vmatprep.subr.mxu0 %v2120
    %2196 = vmatpush1.msra.mxu0 %v2119
    %2197 = vmatprep.subr.mxu0 %v2122
    %2198 = vmatpush1.msra.mxu0 %v2121
    %2199 = vmatprep.subr.mxu0 %v2124
    %2200 = vmatpush1.msra.mxu0 %v2123
    %2201 = vmatprep.subr.mxu0 %v2126
    %2202 = vmatpush1.msra.mxu0 %v2125
    %2203 = vmatprep.subr.mxu0 %v2128
    %2204 = vmatpush1.msra.mxu0 %v2127
    %2205 = vmatprep.subr.mxu0 %v2130
    %2206 = vmatpush1.msra.mxu0 %v2129
    %2207 = vmatprep.subr.mxu0 %v2132
    %2208 = vmatpush1.msra.mxu0 %v2131
    %2209 = vmatprep.subr.mxu0 %v2134
    %2210 = vmatpush1.msra.mxu0 %v2133
    %2211 = vmatprep.subr.mxu0 %v2136
    %2212 = vmatpush1.msra.mxu0 %v2135
    %2213 = vmatprep.mubr.f32.mxu0 %v2072
    %2214 = vmatmul.mubr.f32.gmra.mrb[0].mxu0 %v2071
    %v2215 = vpop.f32.mrb[0].mxu0
    %v2216 = vadd.f32 %v2142, %v2215
    %v2217 = vpop.f32.mrb[0].mxu0
    %v2218 = vadd.f32 %v2146, %v2217
    %2219 = vdwg.mxu0
    %v2220 = vxor.u32 %v2216, 2147483648
    %v2221 = vxor.u32 %v2218, 2147483648
    %v2222 = vmul.f32 %v2220, 1.442695
    %v2223 = vpow.pop %v2222
    %v2224 = vmul.f32 %v2221, 1.442695
    %v2225 = vpow.pop %v2224
    %v2226 = vadd.f32 %v2223, 1.0
    %v2227 = vadd.f32 %v2225, 1.0
    %v2228 = vrcp.pop %v2226
    %v2229 = vmul.f32 1.0, %v2228
    %v2230 = vrcp.pop %v2227
    %v2231 = vmul.f32 1.0, %v2230
    %v2232 = vmul.f32 %v2216, %v2229
    %v2233 = vmul.f32 %v2218, %v2231
    %v2234 = vld [vmem:[#allocation103] sm:$0xff]
    %v2235 = vld [vmem:[#allocation103 + $0x8] sm:$0xff]
    %v2236 = vld [vmem:[#allocation101] sm:$0x3]
    %v2238 = vlaneseq
    %v2239 = vshrl.u32 %v2238, 7
    %v2240 = vsub.s32 0, %v2239
    %v2241 = vrot.slane %v2236, %v2240
    %v2242 = vlaneseq
    %v2243 = vshrl.u32 %v2242, 7
    %v2244 = vsub.s32 1, %v2243
    %v2245 = vrot.slane %v2236, %v2244
    %2248 = vmatprep.subr.mxu0 %v2235
    %2249 = vmatpush1.msra.mxu0 %v2234
    %2250 = vmatprep.subr.mxu0 0.0
    %2251 = vmatpush1.msra.mxu0 0.0
    %2252 = vmatprep.subr.mxu0 0.0
    %2253 = vmatpush1.msra.mxu0 0.0
    %2254 = vmatprep.subr.mxu0 0.0
    %2255 = vmatpush1.msra.mxu0 0.0
    %2256 = vmatprep.subr.mxu0 0.0
    %2257 = vmatpush1.msra.mxu0 0.0
    %2258 = vmatprep.subr.mxu0 0.0
    %2259 = vmatpush1.msra.mxu0 0.0
    %2260 = vmatprep.subr.mxu0 0.0
    %2261 = vmatpush1.msra.mxu0 0.0
    %2262 = vmatprep.subr.mxu0 0.0
    %2263 = vmatpush1.msra.mxu0 0.0
    %2264 = vmatprep.subr.mxu0 0.0
    %2265 = vmatpush1.msra.mxu0 0.0
    %2266 = vmatprep.subr.mxu0 0.0
    %2267 = vmatpush1.msra.mxu0 0.0
    %2268 = vmatprep.subr.mxu0 0.0
    %2269 = vmatpush1.msra.mxu0 0.0
    %2270 = vmatprep.subr.mxu0 0.0
    %2271 = vmatpush1.msra.mxu0 0.0
    %2272 = vmatprep.subr.mxu0 0.0
    %2273 = vmatpush1.msra.mxu0 0.0
    %2274 = vmatprep.subr.mxu0 0.0
    %2275 = vmatpush1.msra.mxu0 0.0
    %2276 = vmatprep.subr.mxu0 0.0
    %2277 = vmatpush1.msra.mxu0 0.0
    %2278 = vmatprep.subr.mxu0 0.0
    %2279 = vmatpush1.msra.mxu0 0.0
    %2280 = vmatprep.subr.mxu0 0.0
    %2281 = vmatpush1.msra.mxu0 0.0
    %2282 = vmatprep.subr.mxu0 0.0
    %2283 = vmatpush1.msra.mxu0 0.0
    %2284 = vmatprep.subr.mxu0 0.0
    %2285 = vmatpush1.msra.mxu0 0.0
    %2286 = vmatprep.subr.mxu0 0.0
    %2287 = vmatpush1.msra.mxu0 0.0
    %2288 = vmatprep.subr.mxu0 0.0
    %2289 = vmatpush1.msra.mxu0 0.0
    %2290 = vmatprep.subr.mxu0 0.0
    %2291 = vmatpush1.msra.mxu0 0.0
    %2292 = vmatprep.subr.mxu0 0.0
    %2293 = vmatpush1.msra.mxu0 0.0
    %2294 = vmatprep.subr.mxu0 0.0
    %2295 = vmatpush1.msra.mxu0 0.0
    %2296 = vmatprep.subr.mxu0 0.0
    %2297 = vmatpush1.msra.mxu0 0.0
    %2298 = vmatprep.subr.mxu0 0.0
    %2299 = vmatpush1.msra.mxu0 0.0
    %2300 = vmatprep.subr.mxu0 0.0
    %2301 = vmatpush1.msra.mxu0 0.0
    %2302 = vmatprep.subr.mxu0 0.0
    %2303 = vmatpush1.msra.mxu0 0.0
    %2304 = vmatprep.subr.mxu0 0.0
    %2305 = vmatpush1.msra.mxu0 0.0
    %2306 = vmatprep.subr.mxu0 0.0
    %2307 = vmatpush1.msra.mxu0 0.0
    %2308 = vmatprep.subr.mxu0 0.0
    %2309 = vmatpush1.msra.mxu0 0.0
    %2310 = vmatprep.subr.mxu0 0.0
    %2311 = vmatpush1.msra.mxu0 0.0
    %2312 = vmatprep.mubr.f32.mxu0 0.0
    %2313 = vmatmul.mubr.f32.gmra.mrb[0].mxu0 %v1385
    %v2314 = vpop.f32.mrb[0].mxu0
    %v2315 = vadd.f32 %v2241, %v2314
    %v2316 = vpop.f32.mrb[0].mxu0
    %v2317 = vadd.f32 %v2245, %v2316
    %2318 = vdwg.mxu0
    %v2319 = vadd.f32 %v2232, %v2315
    %v2320 = vadd.f32 %v2233, %v2317
    %v2321 = vld [vmem:[#allocation107] sm:$0xff]
    %v2322 = vld [vmem:[#allocation107 + $0x8] sm:$0xff]
    %v2323 = vld [vmem:[#allocation107 + $0x10] sm:$0xff]
    %v2324 = vld [vmem:[#allocation107 + $0x18] sm:$0xff]
    %v2325 = vld [vmem:[#allocation107 + $0x20] sm:$0xff]
    %v2326 = vld [vmem:[#allocation107 + $0x28] sm:$0xff]
    %v2327 = vld [vmem:[#allocation107 + $0x30] sm:$0xff]
    %v2328 = vld [vmem:[#allocation107 + $0x38] sm:$0xff]
    %v2329 = vld [vmem:[#allocation107 + $0x40] sm:$0xff]
    %v2330 = vld [vmem:[#allocation107 + $0x48] sm:$0xff]
    %v2331 = vld [vmem:[#allocation107 + $0x50] sm:$0xff]
    %v2332 = vld [vmem:[#allocation107 + $0x58] sm:$0xff]
    %v2333 = vld [vmem:[#allocation107 + $0x60] sm:$0xff]
    %v2334 = vld [vmem:[#allocation107 + $0x68] sm:$0xff]
    %v2335 = vld [vmem:[#allocation107 + $0x70] sm:$0xff]
    %v2336 = vld [vmem:[#allocation107 + $0x78] sm:$0xff]
    %v2337 = vld [vmem:[#allocation107 + $0x80] sm:$0xff]
    %v2338 = vld [vmem:[#allocation107 + $0x88] sm:$0xff]
    %v2339 = vld [vmem:[#allocation107 + $0x90] sm:$0xff]
    %v2340 = vld [vmem:[#allocation107 + $0x98] sm:$0xff]
    %v2341 = vld [vmem:[#allocation107 + $0xa0] sm:$0xff]
    %v2342 = vld [vmem:[#allocation107 + $0xa8] sm:$0xff]
    %v2343 = vld [vmem:[#allocation107 + $0xb0] sm:$0xff]
    %v2344 = vld [vmem:[#allocation107 + $0xb8] sm:$0xff]
    %v2345 = vld [vmem:[#allocation107 + $0xc0] sm:$0xff]
    %v2346 = vld [vmem:[#allocation107 + $0xc8] sm:$0xff]
    %v2347 = vld [vmem:[#allocation107 + $0xd0] sm:$0xff]
    %v2348 = vld [vmem:[#allocation107 + $0xd8] sm:$0xff]
    %v2349 = vld [vmem:[#allocation107 + $0xe0] sm:$0xff]
    %v2350 = vld [vmem:[#allocation107 + $0xe8] sm:$0xff]
    %v2351 = vld [vmem:[#allocation107 + $0xf0] sm:$0xff]
    %v2352 = vld [vmem:[#allocation107 + $0xf8] sm:$0xff]
    %v2353 = vld [vmem:[#allocation100] sm:$0x1]
    %v2355 = vlaneseq
    %v2356 = vshrl.u32 %v2355, 7
    %v2357 = vsub.s32 0, %v2356
    %v2358 = vrot.slane %v2353, %v2357
    %2360 = vmatprep.subr.mxu0 0.0
    %2361 = vmatpush1.msra.mxu0 %v2321
    %2362 = vmatprep.subr.mxu0 0.0
    %2363 = vmatpush1.msra.mxu0 %v2322
    %2364 = vmatprep.subr.mxu0 0.0
    %2365 = vmatpush1.msra.mxu0 %v2323
    %2366 = vmatprep.subr.mxu0 0.0
    %2367 = vmatpush1.msra.mxu0 %v2324
    %2368 = vmatprep.subr.mxu0 0.0
    %2369 = vmatpush1.msra.mxu0 %v2325
    %2370 = vmatprep.subr.mxu0 0.0
    %2371 = vmatpush1.msra.mxu0 %v2326
    %2372 = vmatprep.subr.mxu0 0.0
    %2373 = vmatpush1.msra.mxu0 %v2327
    %2374 = vmatprep.subr.mxu0 0.0
    %2375 = vmatpush1.msra.mxu0 %v2328
    %2376 = vmatprep.subr.mxu0 0.0
    %2377 = vmatpush1.msra.mxu0 %v2329
    %2378 = vmatprep.subr.mxu0 0.0
    %2379 = vmatpush1.msra.mxu0 %v2330
    %2380 = vmatprep.subr.mxu0 0.0
    %2381 = vmatpush1.msra.mxu0 %v2331
    %2382 = vmatprep.subr.mxu0 0.0
    %2383 = vmatpush1.msra.mxu0 %v2332
    %2384 = vmatprep.subr.mxu0 0.0
    %2385 = vmatpush1.msra.mxu0 %v2333
    %2386 = vmatprep.subr.mxu0 0.0
    %2387 = vmatpush1.msra.mxu0 %v2334
    %2388 = vmatprep.subr.mxu0 0.0
    %2389 = vmatpush1.msra.mxu0 %v2335
    %2390 = vmatprep.subr.mxu0 0.0
    %2391 = vmatpush1.msra.mxu0 %v2336
    %2392 = vmatprep.subr.mxu0 0.0
    %2393 = vmatpush1.msra.mxu0 %v2337
    %2394 = vmatprep.subr.mxu0 0.0
    %2395 = vmatpush1.msra.mxu0 %v2338
    %2396 = vmatprep.subr.mxu0 0.0
    %2397 = vmatpush1.msra.mxu0 %v2339
    %2398 = vmatprep.subr.mxu0 0.0
    %2399 = vmatpush1.msra.mxu0 %v2340
    %2400 = vmatprep.subr.mxu0 0.0
    %2401 = vmatpush1.msra.mxu0 %v2341
    %2402 = vmatprep.subr.mxu0 0.0
    %2403 = vmatpush1.msra.mxu0 %v2342
    %2404 = vmatprep.subr.mxu0 0.0
    %2405 = vmatpush1.msra.mxu0 %v2343
    %2406 = vmatprep.subr.mxu0 0.0
    %2407 = vmatpush1.msra.mxu0 %v2344
    %2408 = vmatprep.subr.mxu0 0.0
    %2409 = vmatpush1.msra.mxu0 %v2345
    %2410 = vmatprep.subr.mxu0 0.0
    %2411 = vmatpush1.msra.mxu0 %v2346
    %2412 = vmatprep.subr.mxu0 0.0
    %2413 = vmatpush1.msra.mxu0 %v2347
    %2414 = vmatprep.subr.mxu0 0.0
    %2415 = vmatpush1.msra.mxu0 %v2348
    %2416 = vmatprep.subr.mxu0 0.0
    %2417 = vmatpush1.msra.mxu0 %v2349
    %2418 = vmatprep.subr.mxu0 0.0
    %2419 = vmatpush1.msra.mxu0 %v2350
    %2420 = vmatprep.subr.mxu0 0.0
    %2421 = vmatpush1.msra.mxu0 %v2351
    %2422 = vmatprep.subr.mxu0 0.0
    %2423 = vmatpush1.msra.mxu0 %v2352
    %2424 = vmatprep.mubr.f32.mxu0 %v2320
    %2425 = vmatmul.mubr.f32.gmra.mrb[0].mxu0 %v2319
    %v2426 = vpop.f32.mrb[0].mxu0
    %v2427 = vadd.f32 %v2358, %v2426
    %v2428 = vpop.f32.mrb[0].mxu0
    %2429 = vdwg.mxu0
    %v2430 = vld [vmem:[#allocation10] sm:$0xff]
    %v2431 = vld [vmem:[#allocation10 + $0x8] sm:$0xff]
    %v2432 = vld [vmem:[#allocation10 + $0x10] sm:$0xff]
    %v2433 = vld [vmem:[#allocation10 + $0x18] sm:$0xff]
    %v2434 = vld [vmem:[#allocation10 + $0x20] sm:$0xff]
    %v2435 = vld [vmem:[#allocation10 + $0x28] sm:$0xff]
    %v2436 = vld [vmem:[#allocation10 + $0x30] sm:$0xff]
    %v2437 = vld [vmem:[#allocation10 + $0x38] sm:$0xff]
    %v2438 = vld [vmem:[#allocation10 + $0x40] sm:$0xff]
    %v2439 = vld [vmem:[#allocation10 + $0x48] sm:$0xff]
    %v2440 = vld [vmem:[#allocation10 + $0x50] sm:$0xff]
    %v2441 = vld [vmem:[#allocation10 + $0x58] sm:$0xff]
    %v2442 = vld [vmem:[#allocation10 + $0x60] sm:$0xff]
    %v2443 = vld [vmem:[#allocation10 + $0x68] sm:$0xff]
    %v2444 = vld [vmem:[#allocation10 + $0x70] sm:$0xff]
    %v2445 = vld [vmem:[#allocation10 + $0x78] sm:$0xff]
    %v2446 = vld [vmem:[#allocation10 + $0x80] sm:$0xff]
    %v2447 = vld [vmem:[#allocation10 + $0x88] sm:$0xff]
    %v2448 = vld [vmem:[#allocation10 + $0x90] sm:$0xff]
    %v2449 = vld [vmem:[#allocation10 + $0x98] sm:$0xff]
    %v2450 = vld [vmem:[#allocation10 + $0xa0] sm:$0xff]
    %v2451 = vld [vmem:[#allocation10 + $0xa8] sm:$0xff]
    %v2452 = vld [vmem:[#allocation10 + $0xb0] sm:$0xff]
    %v2453 = vld [vmem:[#allocation10 + $0xb8] sm:$0xff]
    %v2454 = vld [vmem:[#allocation10 + $0xc0] sm:$0xff]
    %v2455 = vld [vmem:[#allocation10 + $0xc8] sm:$0xff]
    %v2456 = vld [vmem:[#allocation10 + $0xd0] sm:$0xff]
    %v2457 = vld [vmem:[#allocation10 + $0xd8] sm:$0xff]
    %v2458 = vld [vmem:[#allocation10 + $0xe0] sm:$0xff]
    %v2459 = vld [vmem:[#allocation10 + $0xe8] sm:$0xff]
    %v2460 = vld [vmem:[#allocation10 + $0xf0] sm:$0xff]
    %v2461 = vld [vmem:[#allocation10 + $0xf8] sm:$0xff]
    %v2462 = vld [vmem:[#allocation2] sm:$0x3]
    %v2464 = vlaneseq
    %v2465 = vshrl.u32 %v2464, 7
    %v2466 = vsub.s32 0, %v2465
    %v2467 = vrot.slane %v2462, %v2466
    %v2468 = vlaneseq
    %v2469 = vshrl.u32 %v2468, 7
    %v2470 = vsub.s32 1, %v2469
    %v2471 = vrot.slane %v2462, %v2470
    %2474 = vmatprep.subr.mxu0 %v2431
    %2475 = vmatpush1.msra.mxu0 %v2430
    %2476 = vmatprep.subr.mxu0 %v2433
    %2477 = vmatpush1.msra.mxu0 %v2432
    %2478 = vmatprep.subr.mxu0 %v2435
    %2479 = vmatpush1.msra.mxu0 %v2434
    %2480 = vmatprep.subr.mxu0 %v2437
    %2481 = vmatpush1.msra.mxu0 %v2436
    %2482 = vmatprep.subr.mxu0 %v2439
    %2483 = vmatpush1.msra.mxu0 %v2438
    %2484 = vmatprep.subr.mxu0 %v2441
    %2485 = vmatpush1.msra.mxu0 %v2440
    %2486 = vmatprep.subr.mxu0 %v2443
    %2487 = vmatpush1.msra.mxu0 %v2442
    %2488 = vmatprep.subr.mxu0 %v2445
    %2489 = vmatpush1.msra.mxu0 %v2444
    %2490 = vmatprep.subr.mxu0 %v2447
    %2491 = vmatpush1.msra.mxu0 %v2446
    %2492 = vmatprep.subr.mxu0 %v2449
    %2493 = vmatpush1.msra.mxu0 %v2448
    %2494 = vmatprep.subr.mxu0 %v2451
    %2495 = vmatpush1.msra.mxu0 %v2450
    %2496 = vmatprep.subr.mxu0 %v2453
    %2497 = vmatpush1.msra.mxu0 %v2452
    %2498 = vmatprep.subr.mxu0 %v2455
    %2499 = vmatpush1.msra.mxu0 %v2454
    %2500 = vmatprep.subr.mxu0 %v2457
    %2501 = vmatpush1.msra.mxu0 %v2456
    %2502 = vmatprep.subr.mxu0 %v2459
    %2503 = vmatpush1.msra.mxu0 %v2458
    %2504 = vmatprep.subr.mxu0 %v2461
    %2505 = vmatpush1.msra.mxu0 %v2460
    %2506 = vmatprep.subr.mxu0 0.0
    %2507 = vmatpush1.msra.mxu0 0.0
    %2508 = vmatprep.subr.mxu0 0.0
    %2509 = vmatpush1.msra.mxu0 0.0
    %2510 = vmatprep.subr.mxu0 0.0
    %2511 = vmatpush1.msra.mxu0 0.0
    %2512 = vmatprep.subr.mxu0 0.0
    %2513 = vmatpush1.msra.mxu0 0.0
    %2514 = vmatprep.subr.mxu0 0.0
    %2515 = vmatpush1.msra.mxu0 0.0
    %2516 = vmatprep.subr.mxu0 0.0
    %2517 = vmatpush1.msra.mxu0 0.0
    %2518 = vmatprep.subr.mxu0 0.0
    %2519 = vmatpush1.msra.mxu0 0.0
    %2520 = vmatprep.subr.mxu0 0.0
    %2521 = vmatpush1.msra.mxu0 0.0
    %2522 = vmatprep.subr.mxu0 0.0
    %2523 = vmatpush1.msra.mxu0 0.0
    %2524 = vmatprep.subr.mxu0 0.0
    %2525 = vmatpush1.msra.mxu0 0.0
    %2526 = vmatprep.subr.mxu0 0.0
    %2527 = vmatpush1.msra.mxu0 0.0
    %2528 = vmatprep.subr.mxu0 0.0
    %2529 = vmatpush1.msra.mxu0 0.0
    %2530 = vmatprep.subr.mxu0 0.0
    %2531 = vmatpush1.msra.mxu0 0.0
    %2532 = vmatprep.subr.mxu0 0.0
    %2533 = vmatpush1.msra.mxu0 0.0
    %2534 = vmatprep.subr.mxu0 0.0
    %2535 = vmatpush1.msra.mxu0 0.0
    %2536 = vmatprep.subr.mxu0 0.0
    %2537 = vmatpush1.msra.mxu0 0.0
    %2538 = vmatprep.mubr.f32.mxu0 0.0
    %2539 = vmatmul.mubr.f32.gmra.mrb[0].mxu0 %v2427
    %v2540 = vpop.f32.mrb[0].mxu0
    %v2541 = vadd.f32 %v2467, %v2540
    %v2542 = vpop.f32.mrb[0].mxu0
    %v2543 = vadd.f32 %v2471, %v2542
    %2544 = vdwg.mxu0
    %v2545 = vxor.u32 %v2541, 2147483648
    %v2546 = vxor.u32 %v2543, 2147483648
    %v2547 = vmul.f32 %v2545, 1.442695
    %v2548 = vpow.pop %v2547
    %v2549 = vmul.f32 %v2546, 1.442695
    %v2550 = vpow.pop %v2549
    %v2551 = vadd.f32 %v2548, 1.0
    %v2552 = vadd.f32 %v2550, 1.0
    %v2553 = vrcp.pop %v2551
    %v2554 = vmul.f32 1.0, %v2553
    %v2555 = vrcp.pop %v2552
    %v2556 = vmul.f32 1.0, %v2555
    %v2557 = vmul.f32 %v2541, %v2554
    %v2558 = vmul.f32 %v2543, %v2556
    %v2559 = vld [vmem:[#allocation11] sm:$0xff]
    %v2560 = vld [vmem:[#allocation11 + $0x8] sm:$0xff]
    %v2561 = vld [vmem:[#allocation11 + $0x10] sm:$0xff]
    %v2562 = vld [vmem:[#allocation11 + $0x18] sm:$0xff]
    %v2563 = vld [vmem:[#allocation11 + $0x20] sm:$0xff]
    %v2564 = vld [vmem:[#allocation11 + $0x28] sm:$0xff]
    %v2565 = vld [vmem:[#allocation11 + $0x30] sm:$0xff]
    %v2566 = vld [vmem:[#allocation11 + $0x38] sm:$0xff]
    %v2567 = vld [vmem:[#allocation11 + $0x40] sm:$0xff]
    %v2568 = vld [vmem:[#allocation11 + $0x48] sm:$0xff]
    %v2569 = vld [vmem:[#allocation11 + $0x50] sm:$0xff]
    %v2570 = vld [vmem:[#allocation11 + $0x58] sm:$0xff]
    %v2571 = vld [vmem:[#allocation11 + $0x60] sm:$0xff]
    %v2572 = vld [vmem:[#allocation11 + $0x68] sm:$0xff]
    %v2573 = vld [vmem:[#allocation11 + $0x70] sm:$0xff]
    %v2574 = vld [vmem:[#allocation11 + $0x78] sm:$0xff]
    %v2575 = vld [vmem:[#allocation11 + $0x80] sm:$0xff]
    %v2576 = vld [vmem:[#allocation11 + $0x88] sm:$0xff]
    %v2577 = vld [vmem:[#allocation11 + $0x90] sm:$0xff]
    %v2578 = vld [vmem:[#allocation11 + $0x98] sm:$0xff]
    %v2579 = vld [vmem:[#allocation11 + $0xa0] sm:$0xff]
    %v2580 = vld [vmem:[#allocation11 + $0xa8] sm:$0xff]
    %v2581 = vld [vmem:[#allocation11 + $0xb0] sm:$0xff]
    %v2582 = vld [vmem:[#allocation11 + $0xb8] sm:$0xff]
    %v2583 = vld [vmem:[#allocation11 + $0xc0] sm:$0xff]
    %v2584 = vld [vmem:[#allocation11 + $0xc8] sm:$0xff]
    %v2585 = vld [vmem:[#allocation11 + $0xd0] sm:$0xff]
    %v2586 = vld [vmem:[#allocation11 + $0xd8] sm:$0xff]
    %v2587 = vld [vmem:[#allocation11 + $0xe0] sm:$0xff]
    %v2588 = vld [vmem:[#allocation11 + $0xe8] sm:$0xff]
    %v2589 = vld [vmem:[#allocation11 + $0xf0] sm:$0xff]
    %v2590 = vld [vmem:[#allocation11 + $0xf8] sm:$0xff]
    %v2591 = vld [vmem:[#allocation11 + $0x100] sm:$0xff]
    %v2592 = vld [vmem:[#allocation11 + $0x108] sm:$0xff]
    %v2593 = vld [vmem:[#allocation11 + $0x110] sm:$0xff]
    %v2594 = vld [vmem:[#allocation11 + $0x118] sm:$0xff]
    %v2595 = vld [vmem:[#allocation11 + $0x120] sm:$0xff]
    %v2596 = vld [vmem:[#allocation11 + $0x128] sm:$0xff]
    %v2597 = vld [vmem:[#allocation11 + $0x130] sm:$0xff]
    %v2598 = vld [vmem:[#allocation11 + $0x138] sm:$0xff]
    %v2599 = vld [vmem:[#allocation11 + $0x140] sm:$0xff]
    %v2600 = vld [vmem:[#allocation11 + $0x148] sm:$0xff]
    %v2601 = vld [vmem:[#allocation11 + $0x150] sm:$0xff]
    %v2602 = vld [vmem:[#allocation11 + $0x158] sm:$0xff]
    %v2603 = vld [vmem:[#allocation11 + $0x160] sm:$0xff]
    %v2604 = vld [vmem:[#allocation11 + $0x168] sm:$0xff]
    %v2605 = vld [vmem:[#allocation11 + $0x170] sm:$0xff]
    %v2606 = vld [vmem:[#allocation11 + $0x178] sm:$0xff]
    %v2607 = vld [vmem:[#allocation11 + $0x180] sm:$0xff]
    %v2608 = vld [vmem:[#allocation11 + $0x188] sm:$0xff]
    %v2609 = vld [vmem:[#allocation11 + $0x190] sm:$0xff]
    %v2610 = vld [vmem:[#allocation11 + $0x198] sm:$0xff]
    %v2611 = vld [vmem:[#allocation11 + $0x1a0] sm:$0xff]
    %v2612 = vld [vmem:[#allocation11 + $0x1a8] sm:$0xff]
    %v2613 = vld [vmem:[#allocation11 + $0x1b0] sm:$0xff]
    %v2614 = vld [vmem:[#allocation11 + $0x1b8] sm:$0xff]
    %v2615 = vld [vmem:[#allocation11 + $0x1c0] sm:$0xff]
    %v2616 = vld [vmem:[#allocation11 + $0x1c8] sm:$0xff]
    %v2617 = vld [vmem:[#allocation11 + $0x1d0] sm:$0xff]
    %v2618 = vld [vmem:[#allocation11 + $0x1d8] sm:$0xff]
    %v2619 = vld [vmem:[#allocation11 + $0x1e0] sm:$0xff]
    %v2620 = vld [vmem:[#allocation11 + $0x1e8] sm:$0xff]
    %v2621 = vld [vmem:[#allocation11 + $0x1f0] sm:$0xff]
    %v2622 = vld [vmem:[#allocation11 + $0x1f8] sm:$0xff]
    %v2623 = vld [vmem:[#allocation5] sm:$0x3]
    %v2625 = vlaneseq
    %v2626 = vshrl.u32 %v2625, 7
    %v2627 = vsub.s32 0, %v2626
    %v2628 = vrot.slane %v2623, %v2627
    %v2629 = vlaneseq
    %v2630 = vshrl.u32 %v2629, 7
    %v2631 = vsub.s32 1, %v2630
    %v2632 = vrot.slane %v2623, %v2631
    %2635 = vmatprep.subr.mxu0 %v2560
    %2636 = vmatpush1.msra.mxu0 %v2559
    %2637 = vmatprep.subr.mxu0 %v2562
    %2638 = vmatpush1.msra.mxu0 %v2561
    %2639 = vmatprep.subr.mxu0 %v2564
    %2640 = vmatpush1.msra.mxu0 %v2563
    %2641 = vmatprep.subr.mxu0 %v2566
    %2642 = vmatpush1.msra.mxu0 %v2565
    %2643 = vmatprep.subr.mxu0 %v2568
    %2644 = vmatpush1.msra.mxu0 %v2567
    %2645 = vmatprep.subr.mxu0 %v2570
    %2646 = vmatpush1.msra.mxu0 %v2569
    %2647 = vmatprep.subr.mxu0 %v2572
    %2648 = vmatpush1.msra.mxu0 %v2571
    %2649 = vmatprep.subr.mxu0 %v2574
    %2650 = vmatpush1.msra.mxu0 %v2573
    %2651 = vmatprep.subr.mxu0 %v2576
    %2652 = vmatpush1.msra.mxu0 %v2575
    %2653 = vmatprep.subr.mxu0 %v2578
    %2654 = vmatpush1.msra.mxu0 %v2577
    %2655 = vmatprep.subr.mxu0 %v2580
    %2656 = vmatpush1.msra.mxu0 %v2579
    %2657 = vmatprep.subr.mxu0 %v2582
    %2658 = vmatpush1.msra.mxu0 %v2581
    %2659 = vmatprep.subr.mxu0 %v2584
    %2660 = vmatpush1.msra.mxu0 %v2583
    %2661 = vmatprep.subr.mxu0 %v2586
    %2662 = vmatpush1.msra.mxu0 %v2585
    %2663 = vmatprep.subr.mxu0 %v2588
    %2664 = vmatpush1.msra.mxu0 %v2587
    %2665 = vmatprep.subr.mxu0 %v2590
    %2666 = vmatpush1.msra.mxu0 %v2589
    %2667 = vmatprep.subr.mxu0 %v2592
    %2668 = vmatpush1.msra.mxu0 %v2591
    %2669 = vmatprep.subr.mxu0 %v2594
    %2670 = vmatpush1.msra.mxu0 %v2593
    %2671 = vmatprep.subr.mxu0 %v2596
    %2672 = vmatpush1.msra.mxu0 %v2595
    %2673 = vmatprep.subr.mxu0 %v2598
    %2674 = vmatpush1.msra.mxu0 %v2597
    %2675 = vmatprep.subr.mxu0 %v2600
    %2676 = vmatpush1.msra.mxu0 %v2599
    %2677 = vmatprep.subr.mxu0 %v2602
    %2678 = vmatpush1.msra.mxu0 %v2601
    %2679 = vmatprep.subr.mxu0 %v2604
    %2680 = vmatpush1.msra.mxu0 %v2603
    %2681 = vmatprep.subr.mxu0 %v2606
    %2682 = vmatpush1.msra.mxu0 %v2605
    %2683 = vmatprep.subr.mxu0 %v2608
    %2684 = vmatpush1.msra.mxu0 %v2607
    %2685 = vmatprep.subr.mxu0 %v2610
    %2686 = vmatpush1.msra.mxu0 %v2609
    %2687 = vmatprep.subr.mxu0 %v2612
    %2688 = vmatpush1.msra.mxu0 %v2611
    %2689 = vmatprep.subr.mxu0 %v2614
    %2690 = vmatpush1.msra.mxu0 %v2613
    %2691 = vmatprep.subr.mxu0 %v2616
    %2692 = vmatpush1.msra.mxu0 %v2615
    %2693 = vmatprep.subr.mxu0 %v2618
    %2694 = vmatpush1.msra.mxu0 %v2617
    %2695 = vmatprep.subr.mxu0 %v2620
    %2696 = vmatpush1.msra.mxu0 %v2619
    %2697 = vmatprep.subr.mxu0 %v2622
    %2698 = vmatpush1.msra.mxu0 %v2621
    %2699 = vmatprep.mubr.f32.mxu0 %v2558
    %2700 = vmatmul.mubr.f32.gmra.mrb[0].mxu0 %v2557
    %v2701 = vpop.f32.mrb[0].mxu0
    %v2702 = vadd.f32 %v2628, %v2701
    %v2703 = vpop.f32.mrb[0].mxu0
    %v2704 = vadd.f32 %v2632, %v2703
    %2705 = vdwg.mxu0
    %v2706 = vxor.u32 %v2702, 2147483648
    %v2707 = vxor.u32 %v2704, 2147483648
    %v2708 = vmul.f32 %v2706, 1.442695
    %v2709 = vpow.pop %v2708
    %v2710 = vmul.f32 %v2707, 1.442695
    %v2711 = vpow.pop %v2710
    %v2712 = vadd.f32 %v2709, 1.0
    %v2713 = vadd.f32 %v2711, 1.0
    %v2714 = vrcp.pop %v2712
    %v2715 = vmul.f32 1.0, %v2714
    %v2716 = vrcp.pop %v2713
    %v2717 = vmul.f32 1.0, %v2716
    %v2718 = vmul.f32 %v2702, %v2715
    %v2719 = vmul.f32 %v2704, %v2717
    %v2720 = vld [vmem:[#allocation8] sm:$0xff]
    %v2721 = vld [vmem:[#allocation8 + $0x8] sm:$0xff]
    %v2722 = vld [vmem:[#allocation7] sm:$0x3]
    %v2724 = vlaneseq
    %v2725 = vshrl.u32 %v2724, 7
    %v2726 = vsub.s32 0, %v2725
    %v2727 = vrot.slane %v2722, %v2726
    %v2728 = vlaneseq
    %v2729 = vshrl.u32 %v2728, 7
    %v2730 = vsub.s32 1, %v2729
    %v2731 = vrot.slane %v2722, %v2730
    %2734 = vmatprep.subr.mxu0 %v2721
    %2735 = vmatpush1.msra.mxu0 %v2720
    %2736 = vmatprep.subr.mxu0 0.0
    %2737 = vmatpush1.msra.mxu0 0.0
    %2738 = vmatprep.subr.mxu0 0.0
    %2739 = vmatpush1.msra.mxu0 0.0
    %2740 = vmatprep.subr.mxu0 0.0
    %2741 = vmatpush1.msra.mxu0 0.0
    %2742 = vmatprep.subr.mxu0 0.0
    %2743 = vmatpush1.msra.mxu0 0.0
    %2744 = vmatprep.subr.mxu0 0.0
    %2745 = vmatpush1.msra.mxu0 0.0
    %2746 = vmatprep.subr.mxu0 0.0
    %2747 = vmatpush1.msra.mxu0 0.0
    %2748 = vmatprep.subr.mxu0 0.0
    %2749 = vmatpush1.msra.mxu0 0.0
    %2750 = vmatprep.subr.mxu0 0.0
    %2751 = vmatpush1.msra.mxu0 0.0
    %2752 = vmatprep.subr.mxu0 0.0
    %2753 = vmatpush1.msra.mxu0 0.0
    %2754 = vmatprep.subr.mxu0 0.0
    %2755 = vmatpush1.msra.mxu0 0.0
    %2756 = vmatprep.subr.mxu0 0.0
    %2757 = vmatpush1.msra.mxu0 0.0
    %2758 = vmatprep.subr.mxu0 0.0
    %2759 = vmatpush1.msra.mxu0 0.0
    %2760 = vmatprep.subr.mxu0 0.0
    %2761 = vmatpush1.msra.mxu0 0.0
    %2762 = vmatprep.subr.mxu0 0.0
    %2763 = vmatpush1.msra.mxu0 0.0
    %2764 = vmatprep.subr.mxu0 0.0
    %2765 = vmatpush1.msra.mxu0 0.0
    %2766 = vmatprep.subr.mxu0 0.0
    %2767 = vmatpush1.msra.mxu0 0.0
    %2768 = vmatprep.subr.mxu0 0.0
    %2769 = vmatpush1.msra.mxu0 0.0
    %2770 = vmatprep.subr.mxu0 0.0
    %2771 = vmatpush1.msra.mxu0 0.0
    %2772 = vmatprep.subr.mxu0 0.0
    %2773 = vmatpush1.msra.mxu0 0.0
    %2774 = vmatprep.subr.mxu0 0.0
    %2775 = vmatpush1.msra.mxu0 0.0
    %2776 = vmatprep.subr.mxu0 0.0
    %2777 = vmatpush1.msra.mxu0 0.0
    %2778 = vmatprep.subr.mxu0 0.0
    %2779 = vmatpush1.msra.mxu0 0.0
    %2780 = vmatprep.subr.mxu0 0.0
    %2781 = vmatpush1.msra.mxu0 0.0
    %2782 = vmatprep.subr.mxu0 0.0
    %2783 = vmatpush1.msra.mxu0 0.0
    %2784 = vmatprep.subr.mxu0 0.0
    %2785 = vmatpush1.msra.mxu0 0.0
    %2786 = vmatprep.subr.mxu0 0.0
    %2787 = vmatpush1.msra.mxu0 0.0
    %2788 = vmatprep.subr.mxu0 0.0
    %2789 = vmatpush1.msra.mxu0 0.0
    %2790 = vmatprep.subr.mxu0 0.0
    %2791 = vmatpush1.msra.mxu0 0.0
    %2792 = vmatprep.subr.mxu0 0.0
    %2793 = vmatpush1.msra.mxu0 0.0
    %2794 = vmatprep.subr.mxu0 0.0
    %2795 = vmatpush1.msra.mxu0 0.0
    %2796 = vmatprep.subr.mxu0 0.0
    %2797 = vmatpush1.msra.mxu0 0.0
    %2798 = vmatprep.mubr.f32.mxu0 0.0
    %2799 = vmatmul.mubr.f32.gmra.mrb[0].mxu0 %v1385
    %v2800 = vpop.f32.mrb[0].mxu0
    %v2801 = vadd.f32 %v2727, %v2800
    %v2802 = vpop.f32.mrb[0].mxu0
    %v2803 = vadd.f32 %v2731, %v2802
    %2804 = vdwg.mxu0
    %v2805 = vadd.f32 %v2718, %v2801
    %v2806 = vadd.f32 %v2719, %v2803
    %v2807 = vld [vmem:[#allocation13] sm:$0xff]
    %v2808 = vld [vmem:[#allocation13 + $0x8] sm:$0xff]
    %v2809 = vld [vmem:[#allocation13 + $0x10] sm:$0xff]
    %v2810 = vld [vmem:[#allocation13 + $0x18] sm:$0xff]
    %v2811 = vld [vmem:[#allocation13 + $0x20] sm:$0xff]
    %v2812 = vld [vmem:[#allocation13 + $0x28] sm:$0xff]
    %v2813 = vld [vmem:[#allocation13 + $0x30] sm:$0xff]
    %v2814 = vld [vmem:[#allocation13 + $0x38] sm:$0xff]
    %v2815 = vld [vmem:[#allocation13 + $0x40] sm:$0xff]
    %v2816 = vld [vmem:[#allocation13 + $0x48] sm:$0xff]
    %v2817 = vld [vmem:[#allocation13 + $0x50] sm:$0xff]
    %v2818 = vld [vmem:[#allocation13 + $0x58] sm:$0xff]
    %v2819 = vld [vmem:[#allocation13 + $0x60] sm:$0xff]
    %v2820 = vld [vmem:[#allocation13 + $0x68] sm:$0xff]
    %v2821 = vld [vmem:[#allocation13 + $0x70] sm:$0xff]
    %v2822 = vld [vmem:[#allocation13 + $0x78] sm:$0xff]
    %v2823 = vld [vmem:[#allocation13 + $0x80] sm:$0xff]
    %v2824 = vld [vmem:[#allocation13 + $0x88] sm:$0xff]
    %v2825 = vld [vmem:[#allocation13 + $0x90] sm:$0xff]
    %v2826 = vld [vmem:[#allocation13 + $0x98] sm:$0xff]
    %v2827 = vld [vmem:[#allocation13 + $0xa0] sm:$0xff]
    %v2828 = vld [vmem:[#allocation13 + $0xa8] sm:$0xff]
    %v2829 = vld [vmem:[#allocation13 + $0xb0] sm:$0xff]
    %v2830 = vld [vmem:[#allocation13 + $0xb8] sm:$0xff]
    %v2831 = vld [vmem:[#allocation13 + $0xc0] sm:$0xff]
    %v2832 = vld [vmem:[#allocation13 + $0xc8] sm:$0xff]
    %v2833 = vld [vmem:[#allocation13 + $0xd0] sm:$0xff]
    %v2834 = vld [vmem:[#allocation13 + $0xd8] sm:$0xff]
    %v2835 = vld [vmem:[#allocation13 + $0xe0] sm:$0xff]
    %v2836 = vld [vmem:[#allocation13 + $0xe8] sm:$0xff]
    %v2837 = vld [vmem:[#allocation13 + $0xf0] sm:$0xff]
    %v2838 = vld [vmem:[#allocation13 + $0xf8] sm:$0xff]
    %v2839 = vld [vmem:[%s9] sm:$0x1]
    %v2841 = vlaneseq
    %v2842 = vshrl.u32 %v2841, 7
    %v2843 = vsub.s32 0, %v2842
    %v2844 = vrot.slane %v2839, %v2843
    %2846 = vmatprep.subr.mxu0 0.0
    %2847 = vmatpush1.msra.mxu0 %v2807
    %2848 = vmatprep.subr.mxu0 0.0
    %2849 = vmatpush1.msra.mxu0 %v2808
    %2850 = vmatprep.subr.mxu0 0.0
    %2851 = vmatpush1.msra.mxu0 %v2809
    %2852 = vmatprep.subr.mxu0 0.0
    %2853 = vmatpush1.msra.mxu0 %v2810
    %2854 = vmatprep.subr.mxu0 0.0
    %2855 = vmatpush1.msra.mxu0 %v2811
    %2856 = vmatprep.subr.mxu0 0.0
    %2857 = vmatpush1.msra.mxu0 %v2812
    %2858 = vmatprep.subr.mxu0 0.0
    %2859 = vmatpush1.msra.mxu0 %v2813
    %2860 = vmatprep.subr.mxu0 0.0
    %2861 = vmatpush1.msra.mxu0 %v2814
    %2862 = vmatprep.subr.mxu0 0.0
    %2863 = vmatpush1.msra.mxu0 %v2815
    %2864 = vmatprep.subr.mxu0 0.0
    %2865 = vmatpush1.msra.mxu0 %v2816
    %2866 = vmatprep.subr.mxu0 0.0
    %2867 = vmatpush1.msra.mxu0 %v2817
    %2868 = vmatprep.subr.mxu0 0.0
    %2869 = vmatpush1.msra.mxu0 %v2818
    %2870 = vmatprep.subr.mxu0 0.0
    %2871 = vmatpush1.msra.mxu0 %v2819
    %2872 = vmatprep.subr.mxu0 0.0
    %2873 = vmatpush1.msra.mxu0 %v2820
    %2874 = vmatprep.subr.mxu0 0.0
    %2875 = vmatpush1.msra.mxu0 %v2821
    %2876 = vmatprep.subr.mxu0 0.0
    %2877 = vmatpush1.msra.mxu0 %v2822
    %2878 = vmatprep.subr.mxu0 0.0
    %2879 = vmatpush1.msra.mxu0 %v2823
    %2880 = vmatprep.subr.mxu0 0.0
    %2881 = vmatpush1.msra.mxu0 %v2824
    %2882 = vmatprep.subr.mxu0 0.0
    %2883 = vmatpush1.msra.mxu0 %v2825
    %2884 = vmatprep.subr.mxu0 0.0
    %2885 = vmatpush1.msra.mxu0 %v2826
    %2886 = vmatprep.subr.mxu0 0.0
    %2887 = vmatpush1.msra.mxu0 %v2827
    %2888 = vmatprep.subr.mxu0 0.0
    %2889 = vmatpush1.msra.mxu0 %v2828
    %2890 = vmatprep.subr.mxu0 0.0
    %2891 = vmatpush1.msra.mxu0 %v2829
    %2892 = vmatprep.subr.mxu0 0.0
    %2893 = vmatpush1.msra.mxu0 %v2830
    %2894 = vmatprep.subr.mxu0 0.0
    %2895 = vmatpush1.msra.mxu0 %v2831
    %2896 = vmatprep.subr.mxu0 0.0
    %2897 = vmatpush1.msra.mxu0 %v2832
    %2898 = vmatprep.subr.mxu0 0.0
    %2899 = vmatpush1.msra.mxu0 %v2833
    %2900 = vmatprep.subr.mxu0 0.0
    %2901 = vmatpush1.msra.mxu0 %v2834
    %2902 = vmatprep.subr.mxu0 0.0
    %2903 = vmatpush1.msra.mxu0 %v2835
    %2904 = vmatprep.subr.mxu0 0.0
    %2905 = vmatpush1.msra.mxu0 %v2836
    %2906 = vmatprep.subr.mxu0 0.0
    %2907 = vmatpush1.msra.mxu0 %v2837
    %2908 = vmatprep.subr.mxu0 0.0
    %2909 = vmatpush1.msra.mxu0 %v2838
    %2910 = vmatprep.mubr.f32.mxu0 %v2806
    %2911 = vmatmul.mubr.f32.gmra.mrb[0].mxu0 %v2805
    %v2912 = vpop.f32.mrb[0].mxu0
    %v2913 = vadd.f32 %v2844, %v2912
    %v2914 = vpop.f32.mrb[0].mxu0
    %2915 = vdwg.mxu0
    %v2916 = vld [vmem:[%s97] sm:$0xff]
    %v2917 = vld [vmem:[%s97 + $0x8] sm:$0xff]
    %v2918 = vld [vmem:[%s97 + $0x10] sm:$0xff]
    %v2919 = vld [vmem:[%s97 + $0x18] sm:$0xff]
    %v2920 = vld [vmem:[%s97 + $0x20] sm:$0xff]
    %v2921 = vld [vmem:[%s97 + $0x28] sm:$0xff]
    %v2922 = vld [vmem:[%s97 + $0x30] sm:$0xff]
    %v2923 = vld [vmem:[%s97 + $0x38] sm:$0xff]
    %v2924 = vld [vmem:[%s97 + $0x40] sm:$0xff]
    %v2925 = vld [vmem:[%s97 + $0x48] sm:$0xff]
    %v2926 = vld [vmem:[%s97 + $0x50] sm:$0xff]
    %v2927 = vld [vmem:[%s97 + $0x58] sm:$0xff]
    %v2928 = vld [vmem:[%s97 + $0x60] sm:$0xff]
    %v2929 = vld [vmem:[%s97 + $0x68] sm:$0xff]
    %v2930 = vld [vmem:[%s97 + $0x70] sm:$0xff]
    %v2931 = vld [vmem:[%s97 + $0x78] sm:$0xff]
    %v2932 = vld [vmem:[%s97 + $0x80] sm:$0xff]
    %v2933 = vld [vmem:[%s97 + $0x88] sm:$0xff]
    %v2934 = vld [vmem:[%s97 + $0x90] sm:$0xff]
    %v2935 = vld [vmem:[%s97 + $0x98] sm:$0xff]
    %v2936 = vld [vmem:[%s97 + $0xa0] sm:$0xff]
    %v2937 = vld [vmem:[%s97 + $0xa8] sm:$0xff]
    %v2938 = vld [vmem:[%s97 + $0xb0] sm:$0xff]
    %v2939 = vld [vmem:[%s97 + $0xb8] sm:$0xff]
    %v2940 = vld [vmem:[%s97 + $0xc0] sm:$0xff]
    %v2941 = vld [vmem:[%s97 + $0xc8] sm:$0xff]
    %v2942 = vld [vmem:[%s97 + $0xd0] sm:$0xff]
    %v2943 = vld [vmem:[%s97 + $0xd8] sm:$0xff]
    %v2944 = vld [vmem:[%s97 + $0xe0] sm:$0xff]
    %v2945 = vld [vmem:[%s97 + $0xe8] sm:$0xff]
    %v2946 = vld [vmem:[%s97 + $0xf0] sm:$0xff]
    %v2947 = vld [vmem:[%s97 + $0xf8] sm:$0xff]
    %v2948 = vld [vmem:[#allocation64] sm:$0x3]
    %v2950 = vlaneseq
    %v2951 = vshrl.u32 %v2950, 7
    %v2952 = vsub.s32 0, %v2951
    %v2953 = vrot.slane %v2948, %v2952
    %v2954 = vlaneseq
    %v2955 = vshrl.u32 %v2954, 7
    %v2956 = vsub.s32 1, %v2955
    %v2957 = vrot.slane %v2948, %v2956
    %2960 = vmatprep.subr.mxu0 %v2917
    %2961 = vmatpush1.msra.mxu0 %v2916
    %2962 = vmatprep.subr.mxu0 %v2919
    %2963 = vmatpush1.msra.mxu0 %v2918
    %2964 = vmatprep.subr.mxu0 %v2921
    %2965 = vmatpush1.msra.mxu0 %v2920
    %2966 = vmatprep.subr.mxu0 %v2923
    %2967 = vmatpush1.msra.mxu0 %v2922
    %2968 = vmatprep.subr.mxu0 %v2925
    %2969 = vmatpush1.msra.mxu0 %v2924
    %2970 = vmatprep.subr.mxu0 %v2927
    %2971 = vmatpush1.msra.mxu0 %v2926
    %2972 = vmatprep.subr.mxu0 %v2929
    %2973 = vmatpush1.msra.mxu0 %v2928
    %2974 = vmatprep.subr.mxu0 %v2931
    %2975 = vmatpush1.msra.mxu0 %v2930
    %2976 = vmatprep.subr.mxu0 %v2933
    %2977 = vmatpush1.msra.mxu0 %v2932
    %2978 = vmatprep.subr.mxu0 %v2935
    %2979 = vmatpush1.msra.mxu0 %v2934
    %2980 = vmatprep.subr.mxu0 %v2937
    %2981 = vmatpush1.msra.mxu0 %v2936
    %2982 = vmatprep.subr.mxu0 %v2939
    %2983 = vmatpush1.msra.mxu0 %v2938
    %2984 = vmatprep.subr.mxu0 %v2941
    %2985 = vmatpush1.msra.mxu0 %v2940
    %2986 = vmatprep.subr.mxu0 %v2943
    %2987 = vmatpush1.msra.mxu0 %v2942
    %2988 = vmatprep.subr.mxu0 %v2945
    %2989 = vmatpush1.msra.mxu0 %v2944
    %2990 = vmatprep.subr.mxu0 %v2947
    %2991 = vmatpush1.msra.mxu0 %v2946
    %2992 = vmatprep.subr.mxu0 0.0
    %2993 = vmatpush1.msra.mxu0 0.0
    %2994 = vmatprep.subr.mxu0 0.0
    %2995 = vmatpush1.msra.mxu0 0.0
    %2996 = vmatprep.subr.mxu0 0.0
    %2997 = vmatpush1.msra.mxu0 0.0
    %2998 = vmatprep.subr.mxu0 0.0
    %2999 = vmatpush1.msra.mxu0 0.0
    %3000 = vmatprep.subr.mxu0 0.0
    %3001 = vmatpush1.msra.mxu0 0.0
    %3002 = vmatprep.subr.mxu0 0.0
    %3003 = vmatpush1.msra.mxu0 0.0
    %3004 = vmatprep.subr.mxu0 0.0
    %3005 = vmatpush1.msra.mxu0 0.0
    %3006 = vmatprep.subr.mxu0 0.0
    %3007 = vmatpush1.msra.mxu0 0.0
    %3008 = vmatprep.subr.mxu0 0.0
    %3009 = vmatpush1.msra.mxu0 0.0
    %3010 = vmatprep.subr.mxu0 0.0
    %3011 = vmatpush1.msra.mxu0 0.0
    %3012 = vmatprep.subr.mxu0 0.0
    %3013 = vmatpush1.msra.mxu0 0.0
    %3014 = vmatprep.subr.mxu0 0.0
    %3015 = vmatpush1.msra.mxu0 0.0
    %3016 = vmatprep.subr.mxu0 0.0
    %3017 = vmatpush1.msra.mxu0 0.0
    %3018 = vmatprep.subr.mxu0 0.0
    %3019 = vmatpush1.msra.mxu0 0.0
    %3020 = vmatprep.subr.mxu0 0.0
    %3021 = vmatpush1.msra.mxu0 0.0
    %3022 = vmatprep.subr.mxu0 0.0
    %3023 = vmatpush1.msra.mxu0 0.0
    %3024 = vmatprep.mubr.f32.mxu0 0.0
    %3025 = vmatmul.mubr.f32.gmra.mrb[0].mxu0 %v2913
    %v3026 = vpop.f32.mrb[0].mxu0
    %v3027 = vadd.f32 %v2953, %v3026
    %v3028 = vpop.f32.mrb[0].mxu0
    %v3029 = vadd.f32 %v2957, %v3028
    %3030 = vdwg.mxu0
    %v3031 = vxor.u32 %v3027, 2147483648
    %v3032 = vxor.u32 %v3029, 2147483648
    %v3033 = vmul.f32 %v3031, 1.442695
    %v3034 = vpow.pop %v3033
    %v3035 = vmul.f32 %v3032, 1.442695
    %v3036 = vpow.pop %v3035
    %v3037 = vadd.f32 %v3034, 1.0
    %v3038 = vadd.f32 %v3036, 1.0
    %v3039 = vrcp.pop %v3037
    %v3040 = vmul.f32 1.0, %v3039
    %v3041 = vrcp.pop %v3038
    %v3042 = vmul.f32 1.0, %v3041
    %v3043 = vmul.f32 %v3027, %v3040
    %v3044 = vmul.f32 %v3029, %v3042
    %v3045 = vld [vmem:[#allocation71] sm:$0xff]
    %v3046 = vld [vmem:[#allocation71 + $0x8] sm:$0xff]
    %v3047 = vld [vmem:[#allocation71 + $0x10] sm:$0xff]
    %v3048 = vld [vmem:[#allocation71 + $0x18] sm:$0xff]
    %v3049 = vld [vmem:[#allocation71 + $0x20] sm:$0xff]
    %v3050 = vld [vmem:[#allocation71 + $0x28] sm:$0xff]
    %v3051 = vld [vmem:[#allocation71 + $0x30] sm:$0xff]
    %v3052 = vld [vmem:[#allocation71 + $0x38] sm:$0xff]
    %v3053 = vld [vmem:[#allocation71 + $0x40] sm:$0xff]
    %v3054 = vld [vmem:[#allocation71 + $0x48] sm:$0xff]
    %v3055 = vld [vmem:[#allocation71 + $0x50] sm:$0xff]
    %v3056 = vld [vmem:[#allocation71 + $0x58] sm:$0xff]
    %v3057 = vld [vmem:[#allocation71 + $0x60] sm:$0xff]
    %v3058 = vld [vmem:[#allocation71 + $0x68] sm:$0xff]
    %v3059 = vld [vmem:[#allocation71 + $0x70] sm:$0xff]
    %v3060 = vld [vmem:[#allocation71 + $0x78] sm:$0xff]
    %v3061 = vld [vmem:[#allocation71 + $0x80] sm:$0xff]
    %v3062 = vld [vmem:[#allocation71 + $0x88] sm:$0xff]
    %v3063 = vld [vmem:[#allocation71 + $0x90] sm:$0xff]
    %v3064 = vld [vmem:[#allocation71 + $0x98] sm:$0xff]
    %v3065 = vld [vmem:[#allocation71 + $0xa0] sm:$0xff]
    %v3066 = vld [vmem:[#allocation71 + $0xa8] sm:$0xff]
    %v3067 = vld [vmem:[#allocation71 + $0xb0] sm:$0xff]
    %v3068 = vld [vmem:[#allocation71 + $0xb8] sm:$0xff]
    %v3069 = vld [vmem:[#allocation71 + $0xc0] sm:$0xff]
    %v3070 = vld [vmem:[#allocation71 + $0xc8] sm:$0xff]
    %v3071 = vld [vmem:[#allocation71 + $0xd0] sm:$0xff]
    %v3072 = vld [vmem:[#allocation71 + $0xd8] sm:$0xff]
    %v3073 = vld [vmem:[#allocation71 + $0xe0] sm:$0xff]
    %v3074 = vld [vmem:[#allocation71 + $0xe8] sm:$0xff]
    %v3075 = vld [vmem:[#allocation71 + $0xf0] sm:$0xff]
    %v3076 = vld [vmem:[#allocation71 + $0xf8] sm:$0xff]
    %v3077 = vld [vmem:[#allocation65] sm:$0x1]
    %v3079 = vlaneseq
    %v3080 = vshrl.u32 %v3079, 7
    %v3081 = vsub.s32 0, %v3080
    %v3082 = vrot.slane %v3077, %v3081
    %3084 = vmatprep.subr.mxu0 0.0
    %3085 = vmatpush1.msra.mxu0 %v3045
    %3086 = vmatprep.subr.mxu0 0.0
    %3087 = vmatpush1.msra.mxu0 %v3046
    %3088 = vmatprep.subr.mxu0 0.0
    %3089 = vmatpush1.msra.mxu0 %v3047
    %3090 = vmatprep.subr.mxu0 0.0
    %3091 = vmatpush1.msra.mxu0 %v3048
    %3092 = vmatprep.subr.mxu0 0.0
    %3093 = vmatpush1.msra.mxu0 %v3049
    %3094 = vmatprep.subr.mxu0 0.0
    %3095 = vmatpush1.msra.mxu0 %v3050
    %3096 = vmatprep.subr.mxu0 0.0
    %3097 = vmatpush1.msra.mxu0 %v3051
    %3098 = vmatprep.subr.mxu0 0.0
    %3099 = vmatpush1.msra.mxu0 %v3052
    %3100 = vmatprep.subr.mxu0 0.0
    %3101 = vmatpush1.msra.mxu0 %v3053
    %3102 = vmatprep.subr.mxu0 0.0
    %3103 = vmatpush1.msra.mxu0 %v3054
    %3104 = vmatprep.subr.mxu0 0.0
    %3105 = vmatpush1.msra.mxu0 %v3055
    %3106 = vmatprep.subr.mxu0 0.0
    %3107 = vmatpush1.msra.mxu0 %v3056
    %3108 = vmatprep.subr.mxu0 0.0
    %3109 = vmatpush1.msra.mxu0 %v3057
    %3110 = vmatprep.subr.mxu0 0.0
    %3111 = vmatpush1.msra.mxu0 %v3058
    %3112 = vmatprep.subr.mxu0 0.0
    %3113 = vmatpush1.msra.mxu0 %v3059
    %3114 = vmatprep.subr.mxu0 0.0
    %3115 = vmatpush1.msra.mxu0 %v3060
    %3116 = vmatprep.subr.mxu0 0.0
    %3117 = vmatpush1.msra.mxu0 %v3061
    %3118 = vmatprep.subr.mxu0 0.0
    %3119 = vmatpush1.msra.mxu0 %v3062
    %3120 = vmatprep.subr.mxu0 0.0
    %3121 = vmatpush1.msra.mxu0 %v3063
    %3122 = vmatprep.subr.mxu0 0.0
    %3123 = vmatpush1.msra.mxu0 %v3064
    %3124 = vmatprep.subr.mxu0 0.0
    %3125 = vmatpush1.msra.mxu0 %v3065
    %3126 = vmatprep.subr.mxu0 0.0
    %3127 = vmatpush1.msra.mxu0 %v3066
    %3128 = vmatprep.subr.mxu0 0.0
    %3129 = vmatpush1.msra.mxu0 %v3067
    %3130 = vmatprep.subr.mxu0 0.0
    %3131 = vmatpush1.msra.mxu0 %v3068
    %3132 = vmatprep.subr.mxu0 0.0
    %3133 = vmatpush1.msra.mxu0 %v3069
    %3134 = vmatprep.subr.mxu0 0.0
    %3135 = vmatpush1.msra.mxu0 %v3070
    %3136 = vmatprep.subr.mxu0 0.0
    %3137 = vmatpush1.msra.mxu0 %v3071
    %3138 = vmatprep.subr.mxu0 0.0
    %3139 = vmatpush1.msra.mxu0 %v3072
    %3140 = vmatprep.subr.mxu0 0.0
    %3141 = vmatpush1.msra.mxu0 %v3073
    %3142 = vmatprep.subr.mxu0 0.0
    %3143 = vmatpush1.msra.mxu0 %v3074
    %3144 = vmatprep.subr.mxu0 0.0
    %3145 = vmatpush1.msra.mxu0 %v3075
    %3146 = vmatprep.subr.mxu0 0.0
    %3147 = vmatpush1.msra.mxu0 %v3076
    %3148 = vmatprep.mubr.f32.mxu0 %v3044
    %3149 = vmatmul.mubr.f32.gmra.mrb[0].mxu0 %v3043
    %v3150 = vpop.f32.mrb[0].mxu0
    %v3151 = vadd.f32 %v3082, %v3150
    %v3152 = vpop.f32.mrb[0].mxu0
    %3153 = vdwg.mxu0
    %v3154 = vxor.u32 %v3151, 2147483648
    %v3155 = vmul.f32 %v3154, 1.442695
    %v3156 = vpow.pop %v3155
    %v3157 = vadd.f32 %v3156, 1.0
    %v3158 = vrcp.pop %v3157
    %v3159 = vmul.f32 1.0, %v3158
    %v3160 = vmul.f32 %v3151, %v3159
    %v3161 = vld [vmem:[#allocation73] sm:$0xff]
    %v3162 = vld [vmem:[#allocation73 + $0x8] sm:$0xff]
    %v3163 = vld [vmem:[#allocation73 + $0x10] sm:$0xff]
    %v3164 = vld [vmem:[#allocation73 + $0x18] sm:$0xff]
    %v3165 = vld [vmem:[#allocation73 + $0x20] sm:$0xff]
    %v3166 = vld [vmem:[#allocation73 + $0x28] sm:$0xff]
    %v3167 = vld [vmem:[#allocation73 + $0x30] sm:$0xff]
    %v3168 = vld [vmem:[#allocation73 + $0x38] sm:$0xff]
    %v3169 = vld [vmem:[#allocation73 + $0x40] sm:$0xff]
    %v3170 = vld [vmem:[#allocation73 + $0x48] sm:$0xff]
    %v3171 = vld [vmem:[#allocation73 + $0x50] sm:$0xff]
    %v3172 = vld [vmem:[#allocation73 + $0x58] sm:$0xff]
    %v3173 = vld [vmem:[#allocation73 + $0x60] sm:$0xff]
    %v3174 = vld [vmem:[#allocation73 + $0x68] sm:$0xff]
    %v3175 = vld [vmem:[#allocation73 + $0x70] sm:$0xff]
    %v3176 = vld [vmem:[#allocation73 + $0x78] sm:$0xff]
    %v3177 = vld [vmem:[#allocation67] sm:$0x1]
    %v3179 = vlaneseq
    %v3180 = vshrl.u32 %v3179, 7
    %v3181 = vsub.s32 0, %v3180
    %v3182 = vrot.slane %v3177, %v3181
    %3184 = vmatprep.subr.mxu0 0.0
    %3185 = vmatpush1.msra.mxu0 %v3161
    %3186 = vmatprep.subr.mxu0 0.0
    %3187 = vmatpush1.msra.mxu0 %v3162
    %3188 = vmatprep.subr.mxu0 0.0
    %3189 = vmatpush1.msra.mxu0 %v3163
    %3190 = vmatprep.subr.mxu0 0.0
    %3191 = vmatpush1.msra.mxu0 %v3164
    %3192 = vmatprep.subr.mxu0 0.0
    %3193 = vmatpush1.msra.mxu0 %v3165
    %3194 = vmatprep.subr.mxu0 0.0
    %3195 = vmatpush1.msra.mxu0 %v3166
    %3196 = vmatprep.subr.mxu0 0.0
    %3197 = vmatpush1.msra.mxu0 %v3167
    %3198 = vmatprep.subr.mxu0 0.0
    %3199 = vmatpush1.msra.mxu0 %v3168
    %3200 = vmatprep.subr.mxu0 0.0
    %3201 = vmatpush1.msra.mxu0 %v3169
    %3202 = vmatprep.subr.mxu0 0.0
    %3203 = vmatpush1.msra.mxu0 %v3170
    %3204 = vmatprep.subr.mxu0 0.0
    %3205 = vmatpush1.msra.mxu0 %v3171
    %3206 = vmatprep.subr.mxu0 0.0
    %3207 = vmatpush1.msra.mxu0 %v3172
    %3208 = vmatprep.subr.mxu0 0.0
    %3209 = vmatpush1.msra.mxu0 %v3173
    %3210 = vmatprep.subr.mxu0 0.0
    %3211 = vmatpush1.msra.mxu0 %v3174
    %3212 = vmatprep.subr.mxu0 0.0
    %3213 = vmatpush1.msra.mxu0 %v3175
    %3214 = vmatprep.subr.mxu0 0.0
    %3215 = vmatpush1.msra.mxu0 %v3176
    %3216 = vmatprep.subr.mxu0 0.0
    %3217 = vmatpush1.msra.mxu0 0.0
    %3218 = vmatprep.subr.mxu0 0.0
    %3219 = vmatpush1.msra.mxu0 0.0
    %3220 = vmatprep.subr.mxu0 0.0
    %3221 = vmatpush1.msra.mxu0 0.0
    %3222 = vmatprep.subr.mxu0 0.0
    %3223 = vmatpush1.msra.mxu0 0.0
    %3224 = vmatprep.subr.mxu0 0.0
    %3225 = vmatpush1.msra.mxu0 0.0
    %3226 = vmatprep.subr.mxu0 0.0
    %3227 = vmatpush1.msra.mxu0 0.0
    %3228 = vmatprep.subr.mxu0 0.0
    %3229 = vmatpush1.msra.mxu0 0.0
    %3230 = vmatprep.subr.mxu0 0.0
    %3231 = vmatpush1.msra.mxu0 0.0
    %3232 = vmatprep.subr.mxu0 0.0
    %3233 = vmatpush1.msra.mxu0 0.0
    %3234 = vmatprep.subr.mxu0 0.0
    %3235 = vmatpush1.msra.mxu0 0.0
    %3236 = vmatprep.subr.mxu0 0.0
    %3237 = vmatpush1.msra.mxu0 0.0
    %3238 = vmatprep.subr.mxu0 0.0
    %3239 = vmatpush1.msra.mxu0 0.0
    %3240 = vmatprep.subr.mxu0 0.0
    %3241 = vmatpush1.msra.mxu0 0.0
    %3242 = vmatprep.subr.mxu0 0.0
    %3243 = vmatpush1.msra.mxu0 0.0
    %3244 = vmatprep.subr.mxu0 0.0
    %3245 = vmatpush1.msra.mxu0 0.0
    %3246 = vmatprep.subr.mxu0 0.0
    %3247 = vmatpush1.msra.mxu0 0.0
    %3248 = vmatprep.mubr.f32.mxu0 0.0
    %3249 = vmatmul.mubr.f32.gmra.mrb[0].mxu0 %v3160
    %v3250 = vpop.f32.mrb[0].mxu0
    %v3251 = vadd.f32 %v3182, %v3250
    %v3252 = vpop.f32.mrb[0].mxu0
    %3253 = vdwg.mxu0
    %v3254 = vld [vmem:[#allocation74] sm:$0xff]
    %v3255 = vld [vmem:[#allocation68] sm:$0x1]
    %v3257 = vlaneseq
    %v3258 = vshrl.u32 %v3257, 7
    %v3259 = vsub.s32 0, %v3258
    %v3260 = vrot.slane %v3255, %v3259
    %3262 = vmatprep.subr.mxu0 0.0
    %3263 = vmatpush1.msra.mxu0 %v3254
    %3264 = vmatprep.subr.mxu0 0.0
    %3265 = vmatpush1.msra.mxu0 0.0
    %3266 = vmatprep.subr.mxu0 0.0
    %3267 = vmatpush1.msra.mxu0 0.0
    %3268 = vmatprep.subr.mxu0 0.0
    %3269 = vmatpush1.msra.mxu0 0.0
    %3270 = vmatprep.subr.mxu0 0.0
    %3271 = vmatpush1.msra.mxu0 0.0
    %3272 = vmatprep.subr.mxu0 0.0
    %3273 = vmatpush1.msra.mxu0 0.0
    %3274 = vmatprep.subr.mxu0 0.0
    %3275 = vmatpush1.msra.mxu0 0.0
    %3276 = vmatprep.subr.mxu0 0.0
    %3277 = vmatpush1.msra.mxu0 0.0
    %3278 = vmatprep.subr.mxu0 0.0
    %3279 = vmatpush1.msra.mxu0 0.0
    %3280 = vmatprep.subr.mxu0 0.0
    %3281 = vmatpush1.msra.mxu0 0.0
    %3282 = vmatprep.subr.mxu0 0.0
    %3283 = vmatpush1.msra.mxu0 0.0
    %3284 = vmatprep.subr.mxu0 0.0
    %3285 = vmatpush1.msra.mxu0 0.0
    %3286 = vmatprep.subr.mxu0 0.0
    %3287 = vmatpush1.msra.mxu0 0.0
    %3288 = vmatprep.subr.mxu0 0.0
    %3289 = vmatpush1.msra.mxu0 0.0
    %3290 = vmatprep.subr.mxu0 0.0
    %3291 = vmatpush1.msra.mxu0 0.0
    %3292 = vmatprep.subr.mxu0 0.0
    %3293 = vmatpush1.msra.mxu0 0.0
    %3294 = vmatprep.subr.mxu0 0.0
    %3295 = vmatpush1.msra.mxu0 0.0
    %3296 = vmatprep.subr.mxu0 0.0
    %3297 = vmatpush1.msra.mxu0 0.0
    %3298 = vmatprep.subr.mxu0 0.0
    %3299 = vmatpush1.msra.mxu0 0.0
    %3300 = vmatprep.subr.mxu0 0.0
    %3301 = vmatpush1.msra.mxu0 0.0
    %3302 = vmatprep.subr.mxu0 0.0
    %3303 = vmatpush1.msra.mxu0 0.0
    %3304 = vmatprep.subr.mxu0 0.0
    %3305 = vmatpush1.msra.mxu0 0.0
    %3306 = vmatprep.subr.mxu0 0.0
    %3307 = vmatpush1.msra.mxu0 0.0
    %3308 = vmatprep.subr.mxu0 0.0
    %3309 = vmatpush1.msra.mxu0 0.0
    %3310 = vmatprep.subr.mxu0 0.0
    %3311 = vmatpush1.msra.mxu0 0.0
    %3312 = vmatprep.subr.mxu0 0.0
    %3313 = vmatpush1.msra.mxu0 0.0
    %3314 = vmatprep.subr.mxu0 0.0
    %3315 = vmatpush1.msra.mxu0 0.0
    %3316 = vmatprep.subr.mxu0 0.0
    %3317 = vmatpush1.msra.mxu0 0.0
    %3318 = vmatprep.subr.mxu0 0.0
    %3319 = vmatpush1.msra.mxu0 0.0
    %3320 = vmatprep.subr.mxu0 0.0
    %3321 = vmatpush1.msra.mxu0 0.0
    %3322 = vmatprep.subr.mxu0 0.0
    %3323 = vmatpush1.msra.mxu0 0.0
    %3324 = vmatprep.subr.mxu0 0.0
    %3325 = vmatpush1.msra.mxu0 0.0
    %3326 = vmatprep.mubr.f32.mxu0 0.0
    %3327 = vmatmul.mubr.f32.gmra.mrb[0].mxu0 %v1385
    %v3328 = vpop.f32.mrb[0].mxu0
    %v3329 = vadd.f32 %v3260, %v3328
    %v3330 = vpop.f32.mrb[0].mxu0
    %3331 = vdwg.mxu0
    %v3332 = vxor.u32 %v3329, 2147483648
    %v3333 = vmul.f32 %v3332, 1.442695
    %v3334 = vpow.pop %v3333
    %v3335 = vadd.f32 %v3334, 1.0
    %v3336 = vrcp.pop %v3335
    %v3337 = vmul.f32 1.0, %v3336
    %v3338 = vmul.f32 %v3329, %v3337
    %v3339 = vld [vmem:[#allocation76] sm:$0xff]
    %v3340 = vld [vmem:[#allocation76 + $0x8] sm:$0xff]
    %v3341 = vld [vmem:[#allocation76 + $0x10] sm:$0xff]
    %v3342 = vld [vmem:[#allocation76 + $0x18] sm:$0xff]
    %v3343 = vld [vmem:[#allocation76 + $0x20] sm:$0xff]
    %v3344 = vld [vmem:[#allocation76 + $0x28] sm:$0xff]
    %v3345 = vld [vmem:[#allocation76 + $0x30] sm:$0xff]
    %v3346 = vld [vmem:[#allocation76 + $0x38] sm:$0xff]
    %v3347 = vld [vmem:[#allocation76 + $0x40] sm:$0xff]
    %v3348 = vld [vmem:[#allocation76 + $0x48] sm:$0xff]
    %v3349 = vld [vmem:[#allocation76 + $0x50] sm:$0xff]
    %v3350 = vld [vmem:[#allocation76 + $0x58] sm:$0xff]
    %v3351 = vld [vmem:[#allocation76 + $0x60] sm:$0xff]
    %v3352 = vld [vmem:[#allocation76 + $0x68] sm:$0xff]
    %v3353 = vld [vmem:[#allocation76 + $0x70] sm:$0xff]
    %v3354 = vld [vmem:[#allocation76 + $0x78] sm:$0xff]
    %v3355 = vld [vmem:[#allocation70] sm:$0x1]
    %v3357 = vlaneseq
    %v3358 = vshrl.u32 %v3357, 7
    %v3359 = vsub.s32 0, %v3358
    %v3360 = vrot.slane %v3355, %v3359
    %3362 = vmatprep.subr.mxu0 0.0
    %3363 = vmatpush1.msra.mxu0 %v3339
    %3364 = vmatprep.subr.mxu0 0.0
    %3365 = vmatpush1.msra.mxu0 %v3340
    %3366 = vmatprep.subr.mxu0 0.0
    %3367 = vmatpush1.msra.mxu0 %v3341
    %3368 = vmatprep.subr.mxu0 0.0
    %3369 = vmatpush1.msra.mxu0 %v3342
    %3370 = vmatprep.subr.mxu0 0.0
    %3371 = vmatpush1.msra.mxu0 %v3343
    %3372 = vmatprep.subr.mxu0 0.0
    %3373 = vmatpush1.msra.mxu0 %v3344
    %3374 = vmatprep.subr.mxu0 0.0
    %3375 = vmatpush1.msra.mxu0 %v3345
    %3376 = vmatprep.subr.mxu0 0.0
    %3377 = vmatpush1.msra.mxu0 %v3346
    %3378 = vmatprep.subr.mxu0 0.0
    %3379 = vmatpush1.msra.mxu0 %v3347
    %3380 = vmatprep.subr.mxu0 0.0
    %3381 = vmatpush1.msra.mxu0 %v3348
    %3382 = vmatprep.subr.mxu0 0.0
    %3383 = vmatpush1.msra.mxu0 %v3349
    %3384 = vmatprep.subr.mxu0 0.0
    %3385 = vmatpush1.msra.mxu0 %v3350
    %3386 = vmatprep.subr.mxu0 0.0
    %3387 = vmatpush1.msra.mxu0 %v3351
    %3388 = vmatprep.subr.mxu0 0.0
    %3389 = vmatpush1.msra.mxu0 %v3352
    %3390 = vmatprep.subr.mxu0 0.0
    %3391 = vmatpush1.msra.mxu0 %v3353
    %3392 = vmatprep.subr.mxu0 0.0
    %3393 = vmatpush1.msra.mxu0 %v3354
    %3394 = vmatprep.subr.mxu0 0.0
    %3395 = vmatpush1.msra.mxu0 0.0
    %3396 = vmatprep.subr.mxu0 0.0
    %3397 = vmatpush1.msra.mxu0 0.0
    %3398 = vmatprep.subr.mxu0 0.0
    %3399 = vmatpush1.msra.mxu0 0.0
    %3400 = vmatprep.subr.mxu0 0.0
    %3401 = vmatpush1.msra.mxu0 0.0
    %3402 = vmatprep.subr.mxu0 0.0
    %3403 = vmatpush1.msra.mxu0 0.0
    %3404 = vmatprep.subr.mxu0 0.0
    %3405 = vmatpush1.msra.mxu0 0.0
    %3406 = vmatprep.subr.mxu0 0.0
    %3407 = vmatpush1.msra.mxu0 0.0
    %3408 = vmatprep.subr.mxu0 0.0
    %3409 = vmatpush1.msra.mxu0 0.0
    %3410 = vmatprep.subr.mxu0 0.0
    %3411 = vmatpush1.msra.mxu0 0.0
    %3412 = vmatprep.subr.mxu0 0.0
    %3413 = vmatpush1.msra.mxu0 0.0
    %3414 = vmatprep.subr.mxu0 0.0
    %3415 = vmatpush1.msra.mxu0 0.0
    %3416 = vmatprep.subr.mxu0 0.0
    %3417 = vmatpush1.msra.mxu0 0.0
    %3418 = vmatprep.subr.mxu0 0.0
    %3419 = vmatpush1.msra.mxu0 0.0
    %3420 = vmatprep.subr.mxu0 0.0
    %3421 = vmatpush1.msra.mxu0 0.0
    %3422 = vmatprep.subr.mxu0 0.0
    %3423 = vmatpush1.msra.mxu0 0.0
    %3424 = vmatprep.subr.mxu0 0.0
    %3425 = vmatpush1.msra.mxu0 0.0
    %3426 = vmatprep.mubr.f32.mxu0 0.0
    %3427 = vmatmul.mubr.f32.gmra.mrb[0].mxu0 %v3338
    %v3428 = vpop.f32.mrb[0].mxu0
    %v3429 = vadd.f32 %v3360, %v3428
    %v3430 = vpop.f32.mrb[0].mxu0
    %3431 = vdwg.mxu0
    %v3432 = vadd.f32 %v3251, %v3429
    %v3433 = vld [vmem:[#allocation29] sm:$0xff]
    %v3434 = vld [vmem:[#allocation29 + $0x8] sm:$0xff]
    %v3435 = vld [vmem:[#allocation29 + $0x10] sm:$0xff]
    %v3436 = vld [vmem:[#allocation29 + $0x18] sm:$0xff]
    %v3437 = vld [vmem:[#allocation29 + $0x20] sm:$0xff]
    %v3438 = vld [vmem:[#allocation29 + $0x28] sm:$0xff]
    %v3439 = vld [vmem:[#allocation29 + $0x30] sm:$0xff]
    %v3440 = vld [vmem:[#allocation29 + $0x38] sm:$0xff]
    %v3441 = vld [vmem:[#allocation29 + $0x40] sm:$0xff]
    %v3442 = vld [vmem:[#allocation29 + $0x48] sm:$0xff]
    %v3443 = vld [vmem:[#allocation29 + $0x50] sm:$0xff]
    %v3444 = vld [vmem:[#allocation29 + $0x58] sm:$0xff]
    %v3445 = vld [vmem:[#allocation29 + $0x60] sm:$0xff]
    %v3446 = vld [vmem:[#allocation29 + $0x68] sm:$0xff]
    %v3447 = vld [vmem:[#allocation29 + $0x70] sm:$0xff]
    %v3448 = vld [vmem:[#allocation29 + $0x78] sm:$0xff]
    %v3449 = vld [vmem:[#allocation19] sm:$0x1]
    %v3451 = vlaneseq
    %v3452 = vshrl.u32 %v3451, 7
    %v3453 = vsub.s32 0, %v3452
    %v3454 = vrot.slane %v3449, %v3453
    %3456 = vmatprep.subr.mxu0 0.0
    %3457 = vmatpush1.msra.mxu0 %v3433
    %3458 = vmatprep.subr.mxu0 0.0
    %3459 = vmatpush1.msra.mxu0 %v3434
    %3460 = vmatprep.subr.mxu0 0.0
    %3461 = vmatpush1.msra.mxu0 %v3435
    %3462 = vmatprep.subr.mxu0 0.0
    %3463 = vmatpush1.msra.mxu0 %v3436
    %3464 = vmatprep.subr.mxu0 0.0
    %3465 = vmatpush1.msra.mxu0 %v3437
    %3466 = vmatprep.subr.mxu0 0.0
    %3467 = vmatpush1.msra.mxu0 %v3438
    %3468 = vmatprep.subr.mxu0 0.0
    %3469 = vmatpush1.msra.mxu0 %v3439
    %3470 = vmatprep.subr.mxu0 0.0
    %3471 = vmatpush1.msra.mxu0 %v3440
    %3472 = vmatprep.subr.mxu0 0.0
    %3473 = vmatpush1.msra.mxu0 %v3441
    %3474 = vmatprep.subr.mxu0 0.0
    %3475 = vmatpush1.msra.mxu0 %v3442
    %3476 = vmatprep.subr.mxu0 0.0
    %3477 = vmatpush1.msra.mxu0 %v3443
    %3478 = vmatprep.subr.mxu0 0.0
    %3479 = vmatpush1.msra.mxu0 %v3444
    %3480 = vmatprep.subr.mxu0 0.0
    %3481 = vmatpush1.msra.mxu0 %v3445
    %3482 = vmatprep.subr.mxu0 0.0
    %3483 = vmatpush1.msra.mxu0 %v3446
    %3484 = vmatprep.subr.mxu0 0.0
    %3485 = vmatpush1.msra.mxu0 %v3447
    %3486 = vmatprep.subr.mxu0 0.0
    %3487 = vmatpush1.msra.mxu0 %v3448
    %3488 = vmatprep.subr.mxu0 0.0
    %3489 = vmatpush1.msra.mxu0 0.0
    %3490 = vmatprep.subr.mxu0 0.0
    %3491 = vmatpush1.msra.mxu0 0.0
    %3492 = vmatprep.subr.mxu0 0.0
    %3493 = vmatpush1.msra.mxu0 0.0
    %3494 = vmatprep.subr.mxu0 0.0
    %3495 = vmatpush1.msra.mxu0 0.0
    %3496 = vmatprep.subr.mxu0 0.0
    %3497 = vmatpush1.msra.mxu0 0.0
    %3498 = vmatprep.subr.mxu0 0.0
    %3499 = vmatpush1.msra.mxu0 0.0
    %3500 = vmatprep.subr.mxu0 0.0
    %3501 = vmatpush1.msra.mxu0 0.0
    %3502 = vmatprep.subr.mxu0 0.0
    %3503 = vmatpush1.msra.mxu0 0.0
    %3504 = vmatprep.subr.mxu0 0.0
    %3505 = vmatpush1.msra.mxu0 0.0
    %3506 = vmatprep.subr.mxu0 0.0
    %3507 = vmatpush1.msra.mxu0 0.0
    %3508 = vmatprep.subr.mxu0 0.0
    %3509 = vmatpush1.msra.mxu0 0.0
    %3510 = vmatprep.subr.mxu0 0.0
    %3511 = vmatpush1.msra.mxu0 0.0
    %3512 = vmatprep.subr.mxu0 0.0
    %3513 = vmatpush1.msra.mxu0 0.0
    %3514 = vmatprep.subr.mxu0 0.0
    %3515 = vmatpush1.msra.mxu0 0.0
    %3516 = vmatprep.subr.mxu0 0.0
    %3517 = vmatpush1.msra.mxu0 0.0
    %3518 = vmatprep.subr.mxu0 0.0
    %3519 = vmatpush1.msra.mxu0 0.0
    %3520 = vmatprep.mubr.f32.mxu0 0.0
    %3521 = vmatmul.mubr.f32.gmra.mrb[0].mxu0 %v3432
    %v3522 = vpop.f32.mrb[0].mxu0
    %v3523 = vadd.f32 %v3454, %v3522
    %v3524 = vpop.f32.mrb[0].mxu0
    %3525 = vdwg.mxu0
    %v3526 = vld [vmem:[#allocation28] sm:$0xff]
    %v3527 = vld [vmem:[#allocation28 + $0x8] sm:$0xff]
    %v3528 = vld [vmem:[#allocation28 + $0x10] sm:$0xff]
    %v3529 = vld [vmem:[#allocation28 + $0x18] sm:$0xff]
    %v3530 = vld [vmem:[#allocation28 + $0x20] sm:$0xff]
    %v3531 = vld [vmem:[#allocation28 + $0x28] sm:$0xff]
    %v3532 = vld [vmem:[#allocation28 + $0x30] sm:$0xff]
    %v3533 = vld [vmem:[#allocation28 + $0x38] sm:$0xff]
    %v3534 = vld [vmem:[#allocation28 + $0x40] sm:$0xff]
    %v3535 = vld [vmem:[#allocation28 + $0x48] sm:$0xff]
    %v3536 = vld [vmem:[#allocation28 + $0x50] sm:$0xff]
    %v3537 = vld [vmem:[#allocation28 + $0x58] sm:$0xff]
    %v3538 = vld [vmem:[#allocation28 + $0x60] sm:$0xff]
    %v3539 = vld [vmem:[#allocation28 + $0x68] sm:$0xff]
    %v3540 = vld [vmem:[#allocation28 + $0x70] sm:$0xff]
    %v3541 = vld [vmem:[#allocation28 + $0x78] sm:$0xff]
    %v3542 = vld [vmem:[#allocation17] sm:$0x1]
    %v3544 = vlaneseq
    %v3545 = vshrl.u32 %v3544, 7
    %v3546 = vsub.s32 0, %v3545
    %v3547 = vrot.slane %v3542, %v3546
    %3549 = vmatprep.subr.mxu0 0.0
    %3550 = vmatpush1.msra.mxu0 %v3526
    %3551 = vmatprep.subr.mxu0 0.0
    %3552 = vmatpush1.msra.mxu0 %v3527
    %3553 = vmatprep.subr.mxu0 0.0
    %3554 = vmatpush1.msra.mxu0 %v3528
    %3555 = vmatprep.subr.mxu0 0.0
    %3556 = vmatpush1.msra.mxu0 %v3529
    %3557 = vmatprep.subr.mxu0 0.0
    %3558 = vmatpush1.msra.mxu0 %v3530
    %3559 = vmatprep.subr.mxu0 0.0
    %3560 = vmatpush1.msra.mxu0 %v3531
    %3561 = vmatprep.subr.mxu0 0.0
    %3562 = vmatpush1.msra.mxu0 %v3532
    %3563 = vmatprep.subr.mxu0 0.0
    %3564 = vmatpush1.msra.mxu0 %v3533
    %3565 = vmatprep.subr.mxu0 0.0
    %3566 = vmatpush1.msra.mxu0 %v3534
    %3567 = vmatprep.subr.mxu0 0.0
    %3568 = vmatpush1.msra.mxu0 %v3535
    %3569 = vmatprep.subr.mxu0 0.0
    %3570 = vmatpush1.msra.mxu0 %v3536
    %3571 = vmatprep.subr.mxu0 0.0
    %3572 = vmatpush1.msra.mxu0 %v3537
    %3573 = vmatprep.subr.mxu0 0.0
    %3574 = vmatpush1.msra.mxu0 %v3538
    %3575 = vmatprep.subr.mxu0 0.0
    %3576 = vmatpush1.msra.mxu0 %v3539
    %3577 = vmatprep.subr.mxu0 0.0
    %3578 = vmatpush1.msra.mxu0 %v3540
    %3579 = vmatprep.subr.mxu0 0.0
    %3580 = vmatpush1.msra.mxu0 %v3541
    %3581 = vmatprep.subr.mxu0 0.0
    %3582 = vmatpush1.msra.mxu0 0.0
    %3583 = vmatprep.subr.mxu0 0.0
    %3584 = vmatpush1.msra.mxu0 0.0
    %3585 = vmatprep.subr.mxu0 0.0
    %3586 = vmatpush1.msra.mxu0 0.0
    %3587 = vmatprep.subr.mxu0 0.0
    %3588 = vmatpush1.msra.mxu0 0.0
    %3589 = vmatprep.subr.mxu0 0.0
    %3590 = vmatpush1.msra.mxu0 0.0
    %3591 = vmatprep.subr.mxu0 0.0
    %3592 = vmatpush1.msra.mxu0 0.0
    %3593 = vmatprep.subr.mxu0 0.0
    %3594 = vmatpush1.msra.mxu0 0.0
    %3595 = vmatprep.subr.mxu0 0.0
    %3596 = vmatpush1.msra.mxu0 0.0
    %3597 = vmatprep.subr.mxu0 0.0
    %3598 = vmatpush1.msra.mxu0 0.0
    %3599 = vmatprep.subr.mxu0 0.0
    %3600 = vmatpush1.msra.mxu0 0.0
    %3601 = vmatprep.subr.mxu0 0.0
    %3602 = vmatpush1.msra.mxu0 0.0
    %3603 = vmatprep.subr.mxu0 0.0
    %3604 = vmatpush1.msra.mxu0 0.0
    %3605 = vmatprep.subr.mxu0 0.0
    %3606 = vmatpush1.msra.mxu0 0.0
    %3607 = vmatprep.subr.mxu0 0.0
    %3608 = vmatpush1.msra.mxu0 0.0
    %3609 = vmatprep.subr.mxu0 0.0
    %3610 = vmatpush1.msra.mxu0 0.0
    %3611 = vmatprep.subr.mxu0 0.0
    %3612 = vmatpush1.msra.mxu0 0.0
    %3613 = vmatprep.mubr.f32.mxu0 0.0
    %3614 = vmatmul.mubr.f32.gmra.mrb[0].mxu0 %v2427
    %v3615 = vpop.f32.mrb[0].mxu0
    %v3616 = vadd.f32 %v3547, %v3615
    %v3617 = vpop.f32.mrb[0].mxu0
    %3618 = vdwg.mxu0
    %v3619 = vld [vmem:[#allocation23] sm:$0xff]
    %v3620 = vld [vmem:[#allocation23 + $0x8] sm:$0xff]
    %v3621 = vld [vmem:[#allocation23 + $0x10] sm:$0xff]
    %v3622 = vld [vmem:[#allocation23 + $0x18] sm:$0xff]
    %v3623 = vld [vmem:[#allocation23 + $0x20] sm:$0xff]
    %v3624 = vld [vmem:[#allocation23 + $0x28] sm:$0xff]
    %v3625 = vld [vmem:[#allocation23 + $0x30] sm:$0xff]
    %v3626 = vld [vmem:[#allocation23 + $0x38] sm:$0xff]
    %v3627 = vld [vmem:[#allocation23 + $0x40] sm:$0xff]
    %v3628 = vld [vmem:[#allocation23 + $0x48] sm:$0xff]
    %v3629 = vld [vmem:[#allocation23 + $0x50] sm:$0xff]
    %v3630 = vld [vmem:[#allocation23 + $0x58] sm:$0xff]
    %v3631 = vld [vmem:[#allocation23 + $0x60] sm:$0xff]
    %v3632 = vld [vmem:[#allocation23 + $0x68] sm:$0xff]
    %v3633 = vld [vmem:[#allocation23 + $0x70] sm:$0xff]
    %v3634 = vld [vmem:[#allocation23 + $0x78] sm:$0xff]
    %v3635 = vld [vmem:[#allocation25] sm:$0xff]
    %v3636 = vld [vmem:[#allocation25 + $0x8] sm:$0xff]
    %v3637 = vld [vmem:[#allocation25 + $0x10] sm:$0xff]
    %v3638 = vld [vmem:[#allocation25 + $0x18] sm:$0xff]
    %v3639 = vld [vmem:[#allocation25 + $0x20] sm:$0xff]
    %v3640 = vld [vmem:[#allocation25 + $0x28] sm:$0xff]
    %v3641 = vld [vmem:[#allocation25 + $0x30] sm:$0xff]
    %v3642 = vld [vmem:[#allocation25 + $0x38] sm:$0xff]
    %v3643 = vld [vmem:[#allocation25 + $0x40] sm:$0xff]
    %v3644 = vld [vmem:[#allocation25 + $0x48] sm:$0xff]
    %v3645 = vld [vmem:[#allocation25 + $0x50] sm:$0xff]
    %v3646 = vld [vmem:[#allocation25 + $0x58] sm:$0xff]
    %v3647 = vld [vmem:[#allocation25 + $0x60] sm:$0xff]
    %v3648 = vld [vmem:[#allocation25 + $0x68] sm:$0xff]
    %v3649 = vld [vmem:[#allocation25 + $0x70] sm:$0xff]
    %v3650 = vld [vmem:[#allocation25 + $0x78] sm:$0xff]
    %3651 = vmatprep.subr.mxu0 0.0
    %3652 = vmatpush1.msra.mxu0 %v3635
    %3653 = vmatprep.subr.mxu0 0.0
    %3654 = vmatpush1.msra.mxu0 %v3636
    %3655 = vmatprep.subr.mxu0 0.0
    %3656 = vmatpush1.msra.mxu0 %v3637
    %3657 = vmatprep.subr.mxu0 0.0
    %3658 = vmatpush1.msra.mxu0 %v3638
    %3659 = vmatprep.subr.mxu0 0.0
    %3660 = vmatpush1.msra.mxu0 %v3639
    %3661 = vmatprep.subr.mxu0 0.0
    %3662 = vmatpush1.msra.mxu0 %v3640
    %3663 = vmatprep.subr.mxu0 0.0
    %3664 = vmatpush1.msra.mxu0 %v3641
    %3665 = vmatprep.subr.mxu0 0.0
    %3666 = vmatpush1.msra.mxu0 %v3642
    %3667 = vmatprep.subr.mxu0 0.0
    %3668 = vmatpush1.msra.mxu0 %v3643
    %3669 = vmatprep.subr.mxu0 0.0
    %3670 = vmatpush1.msra.mxu0 %v3644
    %3671 = vmatprep.subr.mxu0 0.0
    %3672 = vmatpush1.msra.mxu0 %v3645
    %3673 = vmatprep.subr.mxu0 0.0
    %3674 = vmatpush1.msra.mxu0 %v3646
    %3675 = vmatprep.subr.mxu0 0.0
    %3676 = vmatpush1.msra.mxu0 %v3647
    %3677 = vmatprep.subr.mxu0 0.0
    %3678 = vmatpush1.msra.mxu0 %v3648
    %3679 = vmatprep.subr.mxu0 0.0
    %3680 = vmatpush1.msra.mxu0 %v3649
    %3681 = vmatprep.subr.mxu0 0.0
    %3682 = vmatpush1.msra.mxu0 %v3650
    %3683 = vmatprep.subr.mxu0 0.0
    %3684 = vmatpush1.msra.mxu0 0.0
    %3685 = vmatprep.subr.mxu0 0.0
    %3686 = vmatpush1.msra.mxu0 0.0
    %3687 = vmatprep.subr.mxu0 0.0
    %3688 = vmatpush1.msra.mxu0 0.0
    %3689 = vmatprep.subr.mxu0 0.0
    %3690 = vmatpush1.msra.mxu0 0.0
    %3691 = vmatprep.subr.mxu0 0.0
    %3692 = vmatpush1.msra.mxu0 0.0
    %3693 = vmatprep.subr.mxu0 0.0
    %3694 = vmatpush1.msra.mxu0 0.0
    %3695 = vmatprep.subr.mxu0 0.0
    %3696 = vmatpush1.msra.mxu0 0.0
    %3697 = vmatprep.subr.mxu0 0.0
    %3698 = vmatpush1.msra.mxu0 0.0
    %3699 = vmatprep.subr.mxu0 0.0
    %3700 = vmatpush1.msra.mxu0 0.0
    %3701 = vmatprep.subr.mxu0 0.0
    %3702 = vmatpush1.msra.mxu0 0.0
    %3703 = vmatprep.subr.mxu0 0.0
    %3704 = vmatpush1.msra.mxu0 0.0
    %3705 = vmatprep.subr.mxu0 0.0
    %3706 = vmatpush1.msra.mxu0 0.0
    %3707 = vmatprep.subr.mxu0 0.0
    %3708 = vmatpush1.msra.mxu0 0.0
    %3709 = vmatprep.subr.mxu0 0.0
    %3710 = vmatpush1.msra.mxu0 0.0
    %3711 = vmatprep.subr.mxu0 0.0
    %3712 = vmatpush1.msra.mxu0 0.0
    %3713 = vmatprep.subr.mxu0 0.0
    %3714 = vmatpush1.msra.mxu0 0.0
    %3715 = vmatprep.mubr.f32.mxu0 0.0
    %3716 = vmatmul.mubr.f32.gmra.mrb[0].mxu0 %v3616
    %v3717 = vpop.f32.mrb[0].mxu0
    %v3718 = vadd.f32 0.0, %v3717
    %v3719 = vpop.f32.mrb[0].mxu0
    %3720 = vdwg.mxu0
    %3721 = vmatprep.subr.mxu0 0.0
    %3722 = vmatpush1.msra.mxu0 %v3619
    %3723 = vmatprep.subr.mxu0 0.0
    %3724 = vmatpush1.msra.mxu0 %v3620
    %3725 = vmatprep.subr.mxu0 0.0
    %3726 = vmatpush1.msra.mxu0 %v3621
    %3727 = vmatprep.subr.mxu0 0.0
    %3728 = vmatpush1.msra.mxu0 %v3622
    %3729 = vmatprep.subr.mxu0 0.0
    %3730 = vmatpush1.msra.mxu0 %v3623
    %3731 = vmatprep.subr.mxu0 0.0
    %3732 = vmatpush1.msra.mxu0 %v3624
    %3733 = vmatprep.subr.mxu0 0.0
    %3734 = vmatpush1.msra.mxu0 %v3625
    %3735 = vmatprep.subr.mxu0 0.0
    %3736 = vmatpush1.msra.mxu0 %v3626
    %3737 = vmatprep.subr.mxu0 0.0
    %3738 = vmatpush1.msra.mxu0 %v3627
    %3739 = vmatprep.subr.mxu0 0.0
    %3740 = vmatpush1.msra.mxu0 %v3628
    %3741 = vmatprep.subr.mxu0 0.0
    %3742 = vmatpush1.msra.mxu0 %v3629
    %3743 = vmatprep.subr.mxu0 0.0
    %3744 = vmatpush1.msra.mxu0 %v3630
    %3745 = vmatprep.subr.mxu0 0.0
    %3746 = vmatpush1.msra.mxu0 %v3631
    %3747 = vmatprep.subr.mxu0 0.0
    %3748 = vmatpush1.msra.mxu0 %v3632
    %3749 = vmatprep.subr.mxu0 0.0
    %3750 = vmatpush1.msra.mxu0 %v3633
    %3751 = vmatprep.subr.mxu0 0.0
    %3752 = vmatpush1.msra.mxu0 %v3634
    %3753 = vmatprep.subr.mxu0 0.0
    %3754 = vmatpush1.msra.mxu0 0.0
    %3755 = vmatprep.subr.mxu0 0.0
    %3756 = vmatpush1.msra.mxu0 0.0
    %3757 = vmatprep.subr.mxu0 0.0
    %3758 = vmatpush1.msra.mxu0 0.0
    %3759 = vmatprep.subr.mxu0 0.0
    %3760 = vmatpush1.msra.mxu0 0.0
    %3761 = vmatprep.subr.mxu0 0.0
    %3762 = vmatpush1.msra.mxu0 0.0
    %3763 = vmatprep.subr.mxu0 0.0
    %3764 = vmatpush1.msra.mxu0 0.0
    %3765 = vmatprep.subr.mxu0 0.0
    %3766 = vmatpush1.msra.mxu0 0.0
    %3767 = vmatprep.subr.mxu0 0.0
    %3768 = vmatpush1.msra.mxu0 0.0
    %3769 = vmatprep.subr.mxu0 0.0
    %3770 = vmatpush1.msra.mxu0 0.0
    %3771 = vmatprep.subr.mxu0 0.0
    %3772 = vmatpush1.msra.mxu0 0.0
    %3773 = vmatprep.subr.mxu0 0.0
    %3774 = vmatpush1.msra.mxu0 0.0
    %3775 = vmatprep.subr.mxu0 0.0
    %3776 = vmatpush1.msra.mxu0 0.0
    %3777 = vmatprep.subr.mxu0 0.0
    %3778 = vmatpush1.msra.mxu0 0.0
    %3779 = vmatprep.subr.mxu0 0.0
    %3780 = vmatpush1.msra.mxu0 0.0
    %3781 = vmatprep.subr.mxu0 0.0
    %3782 = vmatpush1.msra.mxu0 0.0
    %3783 = vmatprep.subr.mxu0 0.0
    %3784 = vmatpush1.msra.mxu0 0.0
    %3785 = vmatprep.mubr.f32.mxu0 0.0
    %3786 = vmatmul.mubr.f32.gmra.mrb[0].mxu0 %v3523
    %v3787 = vpop.f32.mrb[0].mxu0
    %v3788 = vadd.f32 %v3718, %v3787
    %v3789 = vpop.f32.mrb[0].mxu0
    %3790 = vdwg.mxu0
    %v3791 = vld [vmem:[#allocation14] sm:$0x1]
    %v3793 = vlaneseq
    %v3794 = vshrl.u32 %v3793, 7
    %v3795 = vsub.s32 0, %v3794
    %v3796 = vrot.slane %v3791, %v3795
    %v3798 = vadd.f32 %v3788, %v3796
    %v3799 = vxor.u32 %v3798, 2147483648
    %v3800 = vmul.f32 %v3799, 1.442695
    %v3801 = vpow.pop %v3800
    %v3802 = vadd.f32 %v3801, 1.0
    %v3803 = vrcp.pop %v3802
    %v3804 = vmul.f32 1.0, %v3803
    %v3805 = vmul.f32 %v3798, %v3804
    %v3806 = vld [vmem:[#allocation26] sm:$0xff]
    %v3807 = vld [vmem:[#allocation26 + $0x8] sm:$0xff]
    %v3808 = vld [vmem:[#allocation26 + $0x10] sm:$0xff]
    %v3809 = vld [vmem:[#allocation26 + $0x18] sm:$0xff]
    %v3810 = vld [vmem:[#allocation26 + $0x20] sm:$0xff]
    %v3811 = vld [vmem:[#allocation26 + $0x28] sm:$0xff]
    %v3812 = vld [vmem:[#allocation26 + $0x30] sm:$0xff]
    %v3813 = vld [vmem:[#allocation26 + $0x38] sm:$0xff]
    %v3814 = vld [vmem:[#allocation26 + $0x40] sm:$0xff]
    %v3815 = vld [vmem:[#allocation26 + $0x48] sm:$0xff]
    %v3816 = vld [vmem:[#allocation26 + $0x50] sm:$0xff]
    %v3817 = vld [vmem:[#allocation26 + $0x58] sm:$0xff]
    %v3818 = vld [vmem:[#allocation26 + $0x60] sm:$0xff]
    %v3819 = vld [vmem:[#allocation26 + $0x68] sm:$0xff]
    %v3820 = vld [vmem:[#allocation26 + $0x70] sm:$0xff]
    %v3821 = vld [vmem:[#allocation26 + $0x78] sm:$0xff]
    %v3822 = vld [vmem:[#allocation16] sm:$0x1]
    %v3824 = vlaneseq
    %v3825 = vshrl.u32 %v3824, 7
    %v3826 = vsub.s32 0, %v3825
    %v3827 = vrot.slane %v3822, %v3826
    %3829 = vmatprep.subr.mxu0 0.0
    %3830 = vmatpush1.msra.mxu0 %v3806
    %3831 = vmatprep.subr.mxu0 0.0
    %3832 = vmatpush1.msra.mxu0 %v3807
    %3833 = vmatprep.subr.mxu0 0.0
    %3834 = vmatpush1.msra.mxu0 %v3808
    %3835 = vmatprep.subr.mxu0 0.0
    %3836 = vmatpush1.msra.mxu0 %v3809
    %3837 = vmatprep.subr.mxu0 0.0
    %3838 = vmatpush1.msra.mxu0 %v3810
    %3839 = vmatprep.subr.mxu0 0.0
    %3840 = vmatpush1.msra.mxu0 %v3811
    %3841 = vmatprep.subr.mxu0 0.0
    %3842 = vmatpush1.msra.mxu0 %v3812
    %3843 = vmatprep.subr.mxu0 0.0
    %3844 = vmatpush1.msra.mxu0 %v3813
    %3845 = vmatprep.subr.mxu0 0.0
    %3846 = vmatpush1.msra.mxu0 %v3814
    %3847 = vmatprep.subr.mxu0 0.0
    %3848 = vmatpush1.msra.mxu0 %v3815
    %3849 = vmatprep.subr.mxu0 0.0
    %3850 = vmatpush1.msra.mxu0 %v3816
    %3851 = vmatprep.subr.mxu0 0.0
    %3852 = vmatpush1.msra.mxu0 %v3817
    %3853 = vmatprep.subr.mxu0 0.0
    %3854 = vmatpush1.msra.mxu0 %v3818
    %3855 = vmatprep.subr.mxu0 0.0
    %3856 = vmatpush1.msra.mxu0 %v3819
    %3857 = vmatprep.subr.mxu0 0.0
    %3858 = vmatpush1.msra.mxu0 %v3820
    %3859 = vmatprep.subr.mxu0 0.0
    %3860 = vmatpush1.msra.mxu0 %v3821
    %3861 = vmatprep.subr.mxu0 0.0
    %3862 = vmatpush1.msra.mxu0 0.0
    %3863 = vmatprep.subr.mxu0 0.0
    %3864 = vmatpush1.msra.mxu0 0.0
    %3865 = vmatprep.subr.mxu0 0.0
    %3866 = vmatpush1.msra.mxu0 0.0
    %3867 = vmatprep.subr.mxu0 0.0
    %3868 = vmatpush1.msra.mxu0 0.0
    %3869 = vmatprep.subr.mxu0 0.0
    %3870 = vmatpush1.msra.mxu0 0.0
    %3871 = vmatprep.subr.mxu0 0.0
    %3872 = vmatpush1.msra.mxu0 0.0
    %3873 = vmatprep.subr.mxu0 0.0
    %3874 = vmatpush1.msra.mxu0 0.0
    %3875 = vmatprep.subr.mxu0 0.0
    %3876 = vmatpush1.msra.mxu0 0.0
    %3877 = vmatprep.subr.mxu0 0.0
    %3878 = vmatpush1.msra.mxu0 0.0
    %3879 = vmatprep.subr.mxu0 0.0
    %3880 = vmatpush1.msra.mxu0 0.0
    %3881 = vmatprep.subr.mxu0 0.0
    %3882 = vmatpush1.msra.mxu0 0.0
    %3883 = vmatprep.subr.mxu0 0.0
    %3884 = vmatpush1.msra.mxu0 0.0
    %3885 = vmatprep.subr.mxu0 0.0
    %3886 = vmatpush1.msra.mxu0 0.0
    %3887 = vmatprep.subr.mxu0 0.0
    %3888 = vmatpush1.msra.mxu0 0.0
    %3889 = vmatprep.subr.mxu0 0.0
    %3890 = vmatpush1.msra.mxu0 0.0
    %3891 = vmatprep.subr.mxu0 0.0
    %3892 = vmatpush1.msra.mxu0 0.0
    %3893 = vmatprep.mubr.f32.mxu0 0.0
    %3894 = vmatmul.mubr.f32.gmra.mrb[0].mxu0 %v3805
    %v3895 = vpop.f32.mrb[0].mxu0
    %v3896 = vadd.f32 %v3827, %v3895
    %v3897 = vpop.f32.mrb[0].mxu0
    %3898 = vdwg.mxu0
    %v3899 = vxor.u32 %v3896, 2147483648
    %v3900 = vmul.f32 %v3899, 1.442695
    %v3901 = vpow.pop %v3900
    %v3902 = vadd.f32 %v3901, 1.0
    %v3903 = vrcp.pop %v3902
    %v3904 = vmul.f32 1.0, %v3903
    %v3905 = vmul.f32 %v3896, %v3904
    %v3906 = vld [vmem:[#allocation22] sm:$0xff]
    %v3907 = vld [vmem:[#allocation20] sm:$0x1]
    %v3909 = vlaneseq
    %v3910 = vshrl.u32 %v3909, 7
    %v3911 = vsub.s32 0, %v3910
    %v3912 = vrot.slane %v3907, %v3911
    %3914 = vmatprep.subr.mxu0 0.0
    %3915 = vmatpush1.msra.mxu0 %v3906
    %3916 = vmatprep.subr.mxu0 0.0
    %3917 = vmatpush1.msra.mxu0 0.0
    %3918 = vmatprep.subr.mxu0 0.0
    %3919 = vmatpush1.msra.mxu0 0.0
    %3920 = vmatprep.subr.mxu0 0.0
    %3921 = vmatpush1.msra.mxu0 0.0
    %3922 = vmatprep.subr.mxu0 0.0
    %3923 = vmatpush1.msra.mxu0 0.0
    %3924 = vmatprep.subr.mxu0 0.0
    %3925 = vmatpush1.msra.mxu0 0.0
    %3926 = vmatprep.subr.mxu0 0.0
    %3927 = vmatpush1.msra.mxu0 0.0
    %3928 = vmatprep.subr.mxu0 0.0
    %3929 = vmatpush1.msra.mxu0 0.0
    %3930 = vmatprep.subr.mxu0 0.0
    %3931 = vmatpush1.msra.mxu0 0.0
    %3932 = vmatprep.subr.mxu0 0.0
    %3933 = vmatpush1.msra.mxu0 0.0
    %3934 = vmatprep.subr.mxu0 0.0
    %3935 = vmatpush1.msra.mxu0 0.0
    %3936 = vmatprep.subr.mxu0 0.0
    %3937 = vmatpush1.msra.mxu0 0.0
    %3938 = vmatprep.subr.mxu0 0.0
    %3939 = vmatpush1.msra.mxu0 0.0
    %3940 = vmatprep.subr.mxu0 0.0
    %3941 = vmatpush1.msra.mxu0 0.0
    %3942 = vmatprep.subr.mxu0 0.0
    %3943 = vmatpush1.msra.mxu0 0.0
    %3944 = vmatprep.subr.mxu0 0.0
    %3945 = vmatpush1.msra.mxu0 0.0
    %3946 = vmatprep.subr.mxu0 0.0
    %3947 = vmatpush1.msra.mxu0 0.0
    %3948 = vmatprep.subr.mxu0 0.0
    %3949 = vmatpush1.msra.mxu0 0.0
    %3950 = vmatprep.subr.mxu0 0.0
    %3951 = vmatpush1.msra.mxu0 0.0
    %3952 = vmatprep.subr.mxu0 0.0
    %3953 = vmatpush1.msra.mxu0 0.0
    %3954 = vmatprep.subr.mxu0 0.0
    %3955 = vmatpush1.msra.mxu0 0.0
    %3956 = vmatprep.subr.mxu0 0.0
    %3957 = vmatpush1.msra.mxu0 0.0
    %3958 = vmatprep.subr.mxu0 0.0
    %3959 = vmatpush1.msra.mxu0 0.0
    %3960 = vmatprep.subr.mxu0 0.0
    %3961 = vmatpush1.msra.mxu0 0.0
    %3962 = vmatprep.subr.mxu0 0.0
    %3963 = vmatpush1.msra.mxu0 0.0
    %3964 = vmatprep.subr.mxu0 0.0
    %3965 = vmatpush1.msra.mxu0 0.0
    %3966 = vmatprep.subr.mxu0 0.0
    %3967 = vmatpush1.msra.mxu0 0.0
    %3968 = vmatprep.subr.mxu0 0.0
    %3969 = vmatpush1.msra.mxu0 0.0
    %3970 = vmatprep.subr.mxu0 0.0
    %3971 = vmatpush1.msra.mxu0 0.0
    %3972 = vmatprep.subr.mxu0 0.0
    %3973 = vmatpush1.msra.mxu0 0.0
    %3974 = vmatprep.subr.mxu0 0.0
    %3975 = vmatpush1.msra.mxu0 0.0
    %3976 = vmatprep.subr.mxu0 0.0
    %3977 = vmatpush1.msra.mxu0 0.0
    %3978 = vmatprep.mubr.f32.mxu0 0.0
    %3979 = vmatmul.mubr.f32.gmra.mrb[0].mxu0 %v1385
    %v3980 = vpop.f32.mrb[0].mxu0
    %v3981 = vadd.f32 %v3912, %v3980
    %v3982 = vpop.f32.mrb[0].mxu0
    %3983 = vdwg.mxu0
    %v3984 = vadd.f32 %v3905, %v3981
    %v3985 = vld [vmem:[#allocation46] sm:$0xff]
    %v3986 = vld [vmem:[#allocation46 + $0x8] sm:$0xff]
    %v3987 = vld [vmem:[#allocation46 + $0x10] sm:$0xff]
    %v3988 = vld [vmem:[#allocation46 + $0x18] sm:$0xff]
    %v3989 = vld [vmem:[#allocation46 + $0x20] sm:$0xff]
    %v3990 = vld [vmem:[#allocation46 + $0x28] sm:$0xff]
    %v3991 = vld [vmem:[#allocation46 + $0x30] sm:$0xff]
    %v3992 = vld [vmem:[#allocation46 + $0x38] sm:$0xff]
    %v3993 = vld [vmem:[#allocation46 + $0x40] sm:$0xff]
    %v3994 = vld [vmem:[#allocation46 + $0x48] sm:$0xff]
    %v3995 = vld [vmem:[#allocation46 + $0x50] sm:$0xff]
    %v3996 = vld [vmem:[#allocation46 + $0x58] sm:$0xff]
    %v3997 = vld [vmem:[#allocation46 + $0x60] sm:$0xff]
    %v3998 = vld [vmem:[#allocation46 + $0x68] sm:$0xff]
    %v3999 = vld [vmem:[#allocation46 + $0x70] sm:$0xff]
    %v4000 = vld [vmem:[#allocation46 + $0x78] sm:$0xff]
    %v4001 = vld [vmem:[#allocation35] sm:$0x1]
    %v4003 = vlaneseq
    %v4004 = vshrl.u32 %v4003, 7
    %v4005 = vsub.s32 0, %v4004
    %v4006 = vrot.slane %v4001, %v4005
    %4008 = vmatprep.subr.mxu0 0.0
    %4009 = vmatpush1.msra.mxu0 %v3985
    %4010 = vmatprep.subr.mxu0 0.0
    %4011 = vmatpush1.msra.mxu0 %v3986
    %4012 = vmatprep.subr.mxu0 0.0
    %4013 = vmatpush1.msra.mxu0 %v3987
    %4014 = vmatprep.subr.mxu0 0.0
    %4015 = vmatpush1.msra.mxu0 %v3988
    %4016 = vmatprep.subr.mxu0 0.0
    %4017 = vmatpush1.msra.mxu0 %v3989
    %4018 = vmatprep.subr.mxu0 0.0
    %4019 = vmatpush1.msra.mxu0 %v3990
    %4020 = vmatprep.subr.mxu0 0.0
    %4021 = vmatpush1.msra.mxu0 %v3991
    %4022 = vmatprep.subr.mxu0 0.0
    %4023 = vmatpush1.msra.mxu0 %v3992
    %4024 = vmatprep.subr.mxu0 0.0
    %4025 = vmatpush1.msra.mxu0 %v3993
    %4026 = vmatprep.subr.mxu0 0.0
    %4027 = vmatpush1.msra.mxu0 %v3994
    %4028 = vmatprep.subr.mxu0 0.0
    %4029 = vmatpush1.msra.mxu0 %v3995
    %4030 = vmatprep.subr.mxu0 0.0
    %4031 = vmatpush1.msra.mxu0 %v3996
    %4032 = vmatprep.subr.mxu0 0.0
    %4033 = vmatpush1.msra.mxu0 %v3997
    %4034 = vmatprep.subr.mxu0 0.0
    %4035 = vmatpush1.msra.mxu0 %v3998
    %4036 = vmatprep.subr.mxu0 0.0
    %4037 = vmatpush1.msra.mxu0 %v3999
    %4038 = vmatprep.subr.mxu0 0.0
    %4039 = vmatpush1.msra.mxu0 %v4000
    %4040 = vmatprep.subr.mxu0 0.0
    %4041 = vmatpush1.msra.mxu0 0.0
    %4042 = vmatprep.subr.mxu0 0.0
    %4043 = vmatpush1.msra.mxu0 0.0
    %4044 = vmatprep.subr.mxu0 0.0
    %4045 = vmatpush1.msra.mxu0 0.0
    %4046 = vmatprep.subr.mxu0 0.0
    %4047 = vmatpush1.msra.mxu0 0.0
    %4048 = vmatprep.subr.mxu0 0.0
    %4049 = vmatpush1.msra.mxu0 0.0
    %4050 = vmatprep.subr.mxu0 0.0
    %4051 = vmatpush1.msra.mxu0 0.0
    %4052 = vmatprep.subr.mxu0 0.0
    %4053 = vmatpush1.msra.mxu0 0.0
    %4054 = vmatprep.subr.mxu0 0.0
    %4055 = vmatpush1.msra.mxu0 0.0
    %4056 = vmatprep.subr.mxu0 0.0
    %4057 = vmatpush1.msra.mxu0 0.0
    %4058 = vmatprep.subr.mxu0 0.0
    %4059 = vmatpush1.msra.mxu0 0.0
    %4060 = vmatprep.subr.mxu0 0.0
    %4061 = vmatpush1.msra.mxu0 0.0
    %4062 = vmatprep.subr.mxu0 0.0
    %4063 = vmatpush1.msra.mxu0 0.0
    %4064 = vmatprep.subr.mxu0 0.0
    %4065 = vmatpush1.msra.mxu0 0.0
    %4066 = vmatprep.subr.mxu0 0.0
    %4067 = vmatpush1.msra.mxu0 0.0
    %4068 = vmatprep.subr.mxu0 0.0
    %4069 = vmatpush1.msra.mxu0 0.0
    %4070 = vmatprep.subr.mxu0 0.0
    %4071 = vmatpush1.msra.mxu0 0.0
    %4072 = vmatprep.mubr.f32.mxu0 0.0
    %4073 = vmatmul.mubr.f32.gmra.mrb[0].mxu0 %v3984
    %v4074 = vpop.f32.mrb[0].mxu0
    %v4075 = vadd.f32 %v4006, %v4074
    %v4076 = vpop.f32.mrb[0].mxu0
    %4077 = vdwg.mxu0
    %v4078 = vld [vmem:[#allocation44] sm:$0xff]
    %v4079 = vld [vmem:[#allocation44 + $0x8] sm:$0xff]
    %v4080 = vld [vmem:[#allocation44 + $0x10] sm:$0xff]
    %v4081 = vld [vmem:[#allocation44 + $0x18] sm:$0xff]
    %v4082 = vld [vmem:[#allocation44 + $0x20] sm:$0xff]
    %v4083 = vld [vmem:[#allocation44 + $0x28] sm:$0xff]
    %v4084 = vld [vmem:[#allocation44 + $0x30] sm:$0xff]
    %v4085 = vld [vmem:[#allocation44 + $0x38] sm:$0xff]
    %v4086 = vld [vmem:[#allocation44 + $0x40] sm:$0xff]
    %v4087 = vld [vmem:[#allocation44 + $0x48] sm:$0xff]
    %v4088 = vld [vmem:[#allocation44 + $0x50] sm:$0xff]
    %v4089 = vld [vmem:[#allocation44 + $0x58] sm:$0xff]
    %v4090 = vld [vmem:[#allocation44 + $0x60] sm:$0xff]
    %v4091 = vld [vmem:[#allocation44 + $0x68] sm:$0xff]
    %v4092 = vld [vmem:[#allocation44 + $0x70] sm:$0xff]
    %v4093 = vld [vmem:[#allocation44 + $0x78] sm:$0xff]
    %v4094 = vld [vmem:[#allocation34] sm:$0x1]
    %v4096 = vlaneseq
    %v4097 = vshrl.u32 %v4096, 7
    %v4098 = vsub.s32 0, %v4097
    %v4099 = vrot.slane %v4094, %v4098
    %4101 = vmatprep.subr.mxu0 0.0
    %4102 = vmatpush1.msra.mxu0 %v4078
    %4103 = vmatprep.subr.mxu0 0.0
    %4104 = vmatpush1.msra.mxu0 %v4079
    %4105 = vmatprep.subr.mxu0 0.0
    %4106 = vmatpush1.msra.mxu0 %v4080
    %4107 = vmatprep.subr.mxu0 0.0
    %4108 = vmatpush1.msra.mxu0 %v4081
    %4109 = vmatprep.subr.mxu0 0.0
    %4110 = vmatpush1.msra.mxu0 %v4082
    %4111 = vmatprep.subr.mxu0 0.0
    %4112 = vmatpush1.msra.mxu0 %v4083
    %4113 = vmatprep.subr.mxu0 0.0
    %4114 = vmatpush1.msra.mxu0 %v4084
    %4115 = vmatprep.subr.mxu0 0.0
    %4116 = vmatpush1.msra.mxu0 %v4085
    %4117 = vmatprep.subr.mxu0 0.0
    %4118 = vmatpush1.msra.mxu0 %v4086
    %4119 = vmatprep.subr.mxu0 0.0
    %4120 = vmatpush1.msra.mxu0 %v4087
    %4121 = vmatprep.subr.mxu0 0.0
    %4122 = vmatpush1.msra.mxu0 %v4088
    %4123 = vmatprep.subr.mxu0 0.0
    %4124 = vmatpush1.msra.mxu0 %v4089
    %4125 = vmatprep.subr.mxu0 0.0
    %4126 = vmatpush1.msra.mxu0 %v4090
    %4127 = vmatprep.subr.mxu0 0.0
    %4128 = vmatpush1.msra.mxu0 %v4091
    %4129 = vmatprep.subr.mxu0 0.0
    %4130 = vmatpush1.msra.mxu0 %v4092
    %4131 = vmatprep.subr.mxu0 0.0
    %4132 = vmatpush1.msra.mxu0 %v4093
    %4133 = vmatprep.subr.mxu0 0.0
    %4134 = vmatpush1.msra.mxu0 0.0
    %4135 = vmatprep.subr.mxu0 0.0
    %4136 = vmatpush1.msra.mxu0 0.0
    %4137 = vmatprep.subr.mxu0 0.0
    %4138 = vmatpush1.msra.mxu0 0.0
    %4139 = vmatprep.subr.mxu0 0.0
    %4140 = vmatpush1.msra.mxu0 0.0
    %4141 = vmatprep.subr.mxu0 0.0
    %4142 = vmatpush1.msra.mxu0 0.0
    %4143 = vmatprep.subr.mxu0 0.0
    %4144 = vmatpush1.msra.mxu0 0.0
    %4145 = vmatprep.subr.mxu0 0.0
    %4146 = vmatpush1.msra.mxu0 0.0
    %4147 = vmatprep.subr.mxu0 0.0
    %4148 = vmatpush1.msra.mxu0 0.0
    %4149 = vmatprep.subr.mxu0 0.0
    %4150 = vmatpush1.msra.mxu0 0.0
    %4151 = vmatprep.subr.mxu0 0.0
    %4152 = vmatpush1.msra.mxu0 0.0
    %4153 = vmatprep.subr.mxu0 0.0
    %4154 = vmatpush1.msra.mxu0 0.0
    %4155 = vmatprep.subr.mxu0 0.0
    %4156 = vmatpush1.msra.mxu0 0.0
    %4157 = vmatprep.subr.mxu0 0.0
    %4158 = vmatpush1.msra.mxu0 0.0
    %4159 = vmatprep.subr.mxu0 0.0
    %4160 = vmatpush1.msra.mxu0 0.0
    %4161 = vmatprep.subr.mxu0 0.0
    %4162 = vmatpush1.msra.mxu0 0.0
    %4163 = vmatprep.subr.mxu0 0.0
    %4164 = vmatpush1.msra.mxu0 0.0
    %4165 = vmatprep.mubr.f32.mxu0 0.0
    %4166 = vmatmul.mubr.f32.gmra.mrb[0].mxu0 %v1941
    %v4167 = vpop.f32.mrb[0].mxu0
    %v4168 = vadd.f32 %v4099, %v4167
    %v4169 = vpop.f32.mrb[0].mxu0
    %4170 = vdwg.mxu0
    %v4171 = vld [vmem:[#allocation40] sm:$0xff]
    %v4172 = vld [vmem:[#allocation40 + $0x8] sm:$0xff]
    %v4173 = vld [vmem:[#allocation40 + $0x10] sm:$0xff]
    %v4174 = vld [vmem:[#allocation40 + $0x18] sm:$0xff]
    %v4175 = vld [vmem:[#allocation40 + $0x20] sm:$0xff]
    %v4176 = vld [vmem:[#allocation40 + $0x28] sm:$0xff]
    %v4177 = vld [vmem:[#allocation40 + $0x30] sm:$0xff]
    %v4178 = vld [vmem:[#allocation40 + $0x38] sm:$0xff]
    %v4179 = vld [vmem:[#allocation40 + $0x40] sm:$0xff]
    %v4180 = vld [vmem:[#allocation40 + $0x48] sm:$0xff]
    %v4181 = vld [vmem:[#allocation40 + $0x50] sm:$0xff]
    %v4182 = vld [vmem:[#allocation40 + $0x58] sm:$0xff]
    %v4183 = vld [vmem:[#allocation40 + $0x60] sm:$0xff]
    %v4184 = vld [vmem:[#allocation40 + $0x68] sm:$0xff]
    %v4185 = vld [vmem:[#allocation40 + $0x70] sm:$0xff]
    %v4186 = vld [vmem:[#allocation40 + $0x78] sm:$0xff]
    %v4187 = vld [vmem:[#allocation41] sm:$0xff]
    %v4188 = vld [vmem:[#allocation41 + $0x8] sm:$0xff]
    %v4189 = vld [vmem:[#allocation41 + $0x10] sm:$0xff]
    %v4190 = vld [vmem:[#allocation41 + $0x18] sm:$0xff]
    %v4191 = vld [vmem:[#allocation41 + $0x20] sm:$0xff]
    %v4192 = vld [vmem:[#allocation41 + $0x28] sm:$0xff]
    %v4193 = vld [vmem:[#allocation41 + $0x30] sm:$0xff]
    %v4194 = vld [vmem:[#allocation41 + $0x38] sm:$0xff]
    %v4195 = vld [vmem:[#allocation41 + $0x40] sm:$0xff]
    %v4196 = vld [vmem:[#allocation41 + $0x48] sm:$0xff]
    %v4197 = vld [vmem:[#allocation41 + $0x50] sm:$0xff]
    %v4198 = vld [vmem:[#allocation41 + $0x58] sm:$0xff]
    %v4199 = vld [vmem:[#allocation41 + $0x60] sm:$0xff]
    %v4200 = vld [vmem:[#allocation41 + $0x68] sm:$0xff]
    %v4201 = vld [vmem:[#allocation41 + $0x70] sm:$0xff]
    %v4202 = vld [vmem:[#allocation41 + $0x78] sm:$0xff]
    %4203 = vmatprep.subr.mxu0 0.0
    %4204 = vmatpush1.msra.mxu0 %v4187
    %4205 = vmatprep.subr.mxu0 0.0
    %4206 = vmatpush1.msra.mxu0 %v4188
    %4207 = vmatprep.subr.mxu0 0.0
    %4208 = vmatpush1.msra.mxu0 %v4189
    %4209 = vmatprep.subr.mxu0 0.0
    %4210 = vmatpush1.msra.mxu0 %v4190
    %4211 = vmatprep.subr.mxu0 0.0
    %4212 = vmatpush1.msra.mxu0 %v4191
    %4213 = vmatprep.subr.mxu0 0.0
    %4214 = vmatpush1.msra.mxu0 %v4192
    %4215 = vmatprep.subr.mxu0 0.0
    %4216 = vmatpush1.msra.mxu0 %v4193
    %4217 = vmatprep.subr.mxu0 0.0
    %4218 = vmatpush1.msra.mxu0 %v4194
    %4219 = vmatprep.subr.mxu0 0.0
    %4220 = vmatpush1.msra.mxu0 %v4195
    %4221 = vmatprep.subr.mxu0 0.0
    %4222 = vmatpush1.msra.mxu0 %v4196
    %4223 = vmatprep.subr.mxu0 0.0
    %4224 = vmatpush1.msra.mxu0 %v4197
    %4225 = vmatprep.subr.mxu0 0.0
    %4226 = vmatpush1.msra.mxu0 %v4198
    %4227 = vmatprep.subr.mxu0 0.0
    %4228 = vmatpush1.msra.mxu0 %v4199
    %4229 = vmatprep.subr.mxu0 0.0
    %4230 = vmatpush1.msra.mxu0 %v4200
    %4231 = vmatprep.subr.mxu0 0.0
    %4232 = vmatpush1.msra.mxu0 %v4201
    %4233 = vmatprep.subr.mxu0 0.0
    %4234 = vmatpush1.msra.mxu0 %v4202
    %4235 = vmatprep.subr.mxu0 0.0
    %4236 = vmatpush1.msra.mxu0 0.0
    %4237 = vmatprep.subr.mxu0 0.0
    %4238 = vmatpush1.msra.mxu0 0.0
    %4239 = vmatprep.subr.mxu0 0.0
    %4240 = vmatpush1.msra.mxu0 0.0
    %4241 = vmatprep.subr.mxu0 0.0
    %4242 = vmatpush1.msra.mxu0 0.0
    %4243 = vmatprep.subr.mxu0 0.0
    %4244 = vmatpush1.msra.mxu0 0.0
    %4245 = vmatprep.subr.mxu0 0.0
    %4246 = vmatpush1.msra.mxu0 0.0
    %4247 = vmatprep.subr.mxu0 0.0
    %4248 = vmatpush1.msra.mxu0 0.0
    %4249 = vmatprep.subr.mxu0 0.0
    %4250 = vmatpush1.msra.mxu0 0.0
    %4251 = vmatprep.subr.mxu0 0.0
    %4252 = vmatpush1.msra.mxu0 0.0
    %4253 = vmatprep.subr.mxu0 0.0
    %4254 = vmatpush1.msra.mxu0 0.0
    %4255 = vmatprep.subr.mxu0 0.0
    %4256 = vmatpush1.msra.mxu0 0.0
    %4257 = vmatprep.subr.mxu0 0.0
    %4258 = vmatpush1.msra.mxu0 0.0
    %4259 = vmatprep.subr.mxu0 0.0
    %4260 = vmatpush1.msra.mxu0 0.0
    %4261 = vmatprep.subr.mxu0 0.0
    %4262 = vmatpush1.msra.mxu0 0.0
    %4263 = vmatprep.subr.mxu0 0.0
    %4264 = vmatpush1.msra.mxu0 0.0
    %4265 = vmatprep.subr.mxu0 0.0
    %4266 = vmatpush1.msra.mxu0 0.0
    %4267 = vmatprep.mubr.f32.mxu0 0.0
    %4268 = vmatmul.mubr.f32.gmra.mrb[0].mxu0 %v4168
    %v4269 = vpop.f32.mrb[0].mxu0
    %v4270 = vadd.f32 0.0, %v4269
    %v4271 = vpop.f32.mrb[0].mxu0
    %4272 = vdwg.mxu0
    %4273 = vmatprep.subr.mxu0 0.0
    %4274 = vmatpush1.msra.mxu0 %v4171
    %4275 = vmatprep.subr.mxu0 0.0
    %4276 = vmatpush1.msra.mxu0 %v4172
    %4277 = vmatprep.subr.mxu0 0.0
    %4278 = vmatpush1.msra.mxu0 %v4173
    %4279 = vmatprep.subr.mxu0 0.0
    %4280 = vmatpush1.msra.mxu0 %v4174
    %4281 = vmatprep.subr.mxu0 0.0
    %4282 = vmatpush1.msra.mxu0 %v4175
    %4283 = vmatprep.subr.mxu0 0.0
    %4284 = vmatpush1.msra.mxu0 %v4176
    %4285 = vmatprep.subr.mxu0 0.0
    %4286 = vmatpush1.msra.mxu0 %v4177
    %4287 = vmatprep.subr.mxu0 0.0
    %4288 = vmatpush1.msra.mxu0 %v4178
    %4289 = vmatprep.subr.mxu0 0.0
    %4290 = vmatpush1.msra.mxu0 %v4179
    %4291 = vmatprep.subr.mxu0 0.0
    %4292 = vmatpush1.msra.mxu0 %v4180
    %4293 = vmatprep.subr.mxu0 0.0
    %4294 = vmatpush1.msra.mxu0 %v4181
    %4295 = vmatprep.subr.mxu0 0.0
    %4296 = vmatpush1.msra.mxu0 %v4182
    %4297 = vmatprep.subr.mxu0 0.0
    %4298 = vmatpush1.msra.mxu0 %v4183
    %4299 = vmatprep.subr.mxu0 0.0
    %4300 = vmatpush1.msra.mxu0 %v4184
    %4301 = vmatprep.subr.mxu0 0.0
    %4302 = vmatpush1.msra.mxu0 %v4185
    %4303 = vmatprep.subr.mxu0 0.0
    %4304 = vmatpush1.msra.mxu0 %v4186
    %4305 = vmatprep.subr.mxu0 0.0
    %4306 = vmatpush1.msra.mxu0 0.0
    %4307 = vmatprep.subr.mxu0 0.0
    %4308 = vmatpush1.msra.mxu0 0.0
    %4309 = vmatprep.subr.mxu0 0.0
    %4310 = vmatpush1.msra.mxu0 0.0
    %4311 = vmatprep.subr.mxu0 0.0
    %4312 = vmatpush1.msra.mxu0 0.0
    %4313 = vmatprep.subr.mxu0 0.0
    %4314 = vmatpush1.msra.mxu0 0.0
    %4315 = vmatprep.subr.mxu0 0.0
    %4316 = vmatpush1.msra.mxu0 0.0
    %4317 = vmatprep.subr.mxu0 0.0
    %4318 = vmatpush1.msra.mxu0 0.0
    %4319 = vmatprep.subr.mxu0 0.0
    %4320 = vmatpush1.msra.mxu0 0.0
    %4321 = vmatprep.subr.mxu0 0.0
    %4322 = vmatpush1.msra.mxu0 0.0
    %4323 = vmatprep.subr.mxu0 0.0
    %4324 = vmatpush1.msra.mxu0 0.0
    %4325 = vmatprep.subr.mxu0 0.0
    %4326 = vmatpush1.msra.mxu0 0.0
    %4327 = vmatprep.subr.mxu0 0.0
    %4328 = vmatpush1.msra.mxu0 0.0
    %4329 = vmatprep.subr.mxu0 0.0
    %4330 = vmatpush1.msra.mxu0 0.0
    %4331 = vmatprep.subr.mxu0 0.0
    %4332 = vmatpush1.msra.mxu0 0.0
    %4333 = vmatprep.subr.mxu0 0.0
    %4334 = vmatpush1.msra.mxu0 0.0
    %4335 = vmatprep.subr.mxu0 0.0
    %4336 = vmatpush1.msra.mxu0 0.0
    %4337 = vmatprep.mubr.f32.mxu0 0.0
    %4338 = vmatmul.mubr.f32.gmra.mrb[0].mxu0 %v4075
    %v4339 = vpop.f32.mrb[0].mxu0
    %v4340 = vadd.f32 %v4270, %v4339
    %v4341 = vpop.f32.mrb[0].mxu0
    %4342 = vdwg.mxu0
    %v4343 = vld [vmem:[#allocation31] sm:$0x1]
    %v4345 = vlaneseq
    %v4346 = vshrl.u32 %v4345, 7
    %v4347 = vsub.s32 0, %v4346
    %v4348 = vrot.slane %v4343, %v4347
    %v4350 = vadd.f32 %v4340, %v4348
    %v4351 = vxor.u32 %v4350, 2147483648
    %v4352 = vmul.f32 %v4351, 1.442695
    %v4353 = vpow.pop %v4352
    %v4354 = vadd.f32 %v4353, 1.0
    %v4355 = vrcp.pop %v4354
    %v4356 = vmul.f32 1.0, %v4355
    %v4357 = vmul.f32 %v4350, %v4356
    %v4358 = vld [vmem:[#allocation43] sm:$0xff]
    %v4359 = vld [vmem:[#allocation43 + $0x8] sm:$0xff]
    %v4360 = vld [vmem:[#allocation43 + $0x10] sm:$0xff]
    %v4361 = vld [vmem:[#allocation43 + $0x18] sm:$0xff]
    %v4362 = vld [vmem:[#allocation43 + $0x20] sm:$0xff]
    %v4363 = vld [vmem:[#allocation43 + $0x28] sm:$0xff]
    %v4364 = vld [vmem:[#allocation43 + $0x30] sm:$0xff]
    %v4365 = vld [vmem:[#allocation43 + $0x38] sm:$0xff]
    %v4366 = vld [vmem:[#allocation43 + $0x40] sm:$0xff]
    %v4367 = vld [vmem:[#allocation43 + $0x48] sm:$0xff]
    %v4368 = vld [vmem:[#allocation43 + $0x50] sm:$0xff]
    %v4369 = vld [vmem:[#allocation43 + $0x58] sm:$0xff]
    %v4370 = vld [vmem:[#allocation43 + $0x60] sm:$0xff]
    %v4371 = vld [vmem:[#allocation43 + $0x68] sm:$0xff]
    %v4372 = vld [vmem:[#allocation43 + $0x70] sm:$0xff]
    %v4373 = vld [vmem:[#allocation43 + $0x78] sm:$0xff]
    %v4374 = vld [vmem:[#allocation32] sm:$0x1]
    %v4376 = vlaneseq
    %v4377 = vshrl.u32 %v4376, 7
    %v4378 = vsub.s32 0, %v4377
    %v4379 = vrot.slane %v4374, %v4378
    %4381 = vmatprep.subr.mxu0 0.0
    %4382 = vmatpush1.msra.mxu0 %v4358
    %4383 = vmatprep.subr.mxu0 0.0
    %4384 = vmatpush1.msra.mxu0 %v4359
    %4385 = vmatprep.subr.mxu0 0.0
    %4386 = vmatpush1.msra.mxu0 %v4360
    %4387 = vmatprep.subr.mxu0 0.0
    %4388 = vmatpush1.msra.mxu0 %v4361
    %4389 = vmatprep.subr.mxu0 0.0
    %4390 = vmatpush1.msra.mxu0 %v4362
    %4391 = vmatprep.subr.mxu0 0.0
    %4392 = vmatpush1.msra.mxu0 %v4363
    %4393 = vmatprep.subr.mxu0 0.0
    %4394 = vmatpush1.msra.mxu0 %v4364
    %4395 = vmatprep.subr.mxu0 0.0
    %4396 = vmatpush1.msra.mxu0 %v4365
    %4397 = vmatprep.subr.mxu0 0.0
    %4398 = vmatpush1.msra.mxu0 %v4366
    %4399 = vmatprep.subr.mxu0 0.0
    %4400 = vmatpush1.msra.mxu0 %v4367
    %4401 = vmatprep.subr.mxu0 0.0
    %4402 = vmatpush1.msra.mxu0 %v4368
    %4403 = vmatprep.subr.mxu0 0.0
    %4404 = vmatpush1.msra.mxu0 %v4369
    %4405 = vmatprep.subr.mxu0 0.0
    %4406 = vmatpush1.msra.mxu0 %v4370
    %4407 = vmatprep.subr.mxu0 0.0
    %4408 = vmatpush1.msra.mxu0 %v4371
    %4409 = vmatprep.subr.mxu0 0.0
    %4410 = vmatpush1.msra.mxu0 %v4372
    %4411 = vmatprep.subr.mxu0 0.0
    %4412 = vmatpush1.msra.mxu0 %v4373
    %4413 = vmatprep.subr.mxu0 0.0
    %4414 = vmatpush1.msra.mxu0 0.0
    %4415 = vmatprep.subr.mxu0 0.0
    %4416 = vmatpush1.msra.mxu0 0.0
    %4417 = vmatprep.subr.mxu0 0.0
    %4418 = vmatpush1.msra.mxu0 0.0
    %4419 = vmatprep.subr.mxu0 0.0
    %4420 = vmatpush1.msra.mxu0 0.0
    %4421 = vmatprep.subr.mxu0 0.0
    %4422 = vmatpush1.msra.mxu0 0.0
    %4423 = vmatprep.subr.mxu0 0.0
    %4424 = vmatpush1.msra.mxu0 0.0
    %4425 = vmatprep.subr.mxu0 0.0
    %4426 = vmatpush1.msra.mxu0 0.0
    %4427 = vmatprep.subr.mxu0 0.0
    %4428 = vmatpush1.msra.mxu0 0.0
    %4429 = vmatprep.subr.mxu0 0.0
    %4430 = vmatpush1.msra.mxu0 0.0
    %4431 = vmatprep.subr.mxu0 0.0
    %4432 = vmatpush1.msra.mxu0 0.0
    %4433 = vmatprep.subr.mxu0 0.0
    %4434 = vmatpush1.msra.mxu0 0.0
    %4435 = vmatprep.subr.mxu0 0.0
    %4436 = vmatpush1.msra.mxu0 0.0
    %4437 = vmatprep.subr.mxu0 0.0
    %4438 = vmatpush1.msra.mxu0 0.0
    %4439 = vmatprep.subr.mxu0 0.0
    %4440 = vmatpush1.msra.mxu0 0.0
    %4441 = vmatprep.subr.mxu0 0.0
    %4442 = vmatpush1.msra.mxu0 0.0
    %4443 = vmatprep.subr.mxu0 0.0
    %4444 = vmatpush1.msra.mxu0 0.0
    %4445 = vmatprep.mubr.f32.mxu0 0.0
    %4446 = vmatmul.mubr.f32.gmra.mrb[0].mxu0 %v4357
    %v4447 = vpop.f32.mrb[0].mxu0
    %v4448 = vadd.f32 %v4379, %v4447
    %v4449 = vpop.f32.mrb[0].mxu0
    %4450 = vdwg.mxu0
    %v4451 = vxor.u32 %v4448, 2147483648
    %v4452 = vmul.f32 %v4451, 1.442695
    %v4453 = vpow.pop %v4452
    %v4454 = vadd.f32 %v4453, 1.0
    %v4455 = vrcp.pop %v4454
    %v4456 = vmul.f32 1.0, %v4455
    %v4457 = vmul.f32 %v4448, %v4456
    %v4458 = vld [vmem:[#allocation38] sm:$0xff]
    %v4459 = vld [vmem:[#allocation37] sm:$0x1]
    %v4461 = vlaneseq
    %v4462 = vshrl.u32 %v4461, 7
    %v4463 = vsub.s32 0, %v4462
    %v4464 = vrot.slane %v4459, %v4463
    %4466 = vmatprep.subr.mxu0 0.0
    %4467 = vmatpush1.msra.mxu0 %v4458
    %4468 = vmatprep.subr.mxu0 0.0
    %4469 = vmatpush1.msra.mxu0 0.0
    %4470 = vmatprep.subr.mxu0 0.0
    %4471 = vmatpush1.msra.mxu0 0.0
    %4472 = vmatprep.subr.mxu0 0.0
    %4473 = vmatpush1.msra.mxu0 0.0
    %4474 = vmatprep.subr.mxu0 0.0
    %4475 = vmatpush1.msra.mxu0 0.0
    %4476 = vmatprep.subr.mxu0 0.0
    %4477 = vmatpush1.msra.mxu0 0.0
    %4478 = vmatprep.subr.mxu0 0.0
    %4479 = vmatpush1.msra.mxu0 0.0
    %4480 = vmatprep.subr.mxu0 0.0
    %4481 = vmatpush1.msra.mxu0 0.0
    %4482 = vmatprep.subr.mxu0 0.0
    %4483 = vmatpush1.msra.mxu0 0.0
    %4484 = vmatprep.subr.mxu0 0.0
    %4485 = vmatpush1.msra.mxu0 0.0
    %4486 = vmatprep.subr.mxu0 0.0
    %4487 = vmatpush1.msra.mxu0 0.0
    %4488 = vmatprep.subr.mxu0 0.0
    %4489 = vmatpush1.msra.mxu0 0.0
    %4490 = vmatprep.subr.mxu0 0.0
    %4491 = vmatpush1.msra.mxu0 0.0
    %4492 = vmatprep.subr.mxu0 0.0
    %4493 = vmatpush1.msra.mxu0 0.0
    %4494 = vmatprep.subr.mxu0 0.0
    %4495 = vmatpush1.msra.mxu0 0.0
    %4496 = vmatprep.subr.mxu0 0.0
    %4497 = vmatpush1.msra.mxu0 0.0
    %4498 = vmatprep.subr.mxu0 0.0
    %4499 = vmatpush1.msra.mxu0 0.0
    %4500 = vmatprep.subr.mxu0 0.0
    %4501 = vmatpush1.msra.mxu0 0.0
    %4502 = vmatprep.subr.mxu0 0.0
    %4503 = vmatpush1.msra.mxu0 0.0
    %4504 = vmatprep.subr.mxu0 0.0
    %4505 = vmatpush1.msra.mxu0 0.0
    %4506 = vmatprep.subr.mxu0 0.0
    %4507 = vmatpush1.msra.mxu0 0.0
    %4508 = vmatprep.subr.mxu0 0.0
    %4509 = vmatpush1.msra.mxu0 0.0
    %4510 = vmatprep.subr.mxu0 0.0
    %4511 = vmatpush1.msra.mxu0 0.0
    %4512 = vmatprep.subr.mxu0 0.0
    %4513 = vmatpush1.msra.mxu0 0.0
    %4514 = vmatprep.subr.mxu0 0.0
    %4515 = vmatpush1.msra.mxu0 0.0
    %4516 = vmatprep.subr.mxu0 0.0
    %4517 = vmatpush1.msra.mxu0 0.0
    %4518 = vmatprep.subr.mxu0 0.0
    %4519 = vmatpush1.msra.mxu0 0.0
    %4520 = vmatprep.subr.mxu0 0.0
    %4521 = vmatpush1.msra.mxu0 0.0
    %4522 = vmatprep.subr.mxu0 0.0
    %4523 = vmatpush1.msra.mxu0 0.0
    %4524 = vmatprep.subr.mxu0 0.0
    %4525 = vmatpush1.msra.mxu0 0.0
    %4526 = vmatprep.subr.mxu0 0.0
    %4527 = vmatpush1.msra.mxu0 0.0
    %4528 = vmatprep.subr.mxu0 0.0
    %4529 = vmatpush1.msra.mxu0 0.0
    %4530 = vmatprep.mubr.f32.mxu0 0.0
    %4531 = vmatmul.mubr.f32.gmra.mrb[0].mxu0 %v1385
    %v4532 = vpop.f32.mrb[0].mxu0
    %v4533 = vadd.f32 %v4464, %v4532
    %v4534 = vpop.f32.mrb[0].mxu0
    %4535 = vdwg.mxu0
    %v4536 = vadd.f32 %v4457, %v4533
    %v4537 = vld [vmem:[#allocation62] sm:$0xff]
    %v4538 = vld [vmem:[#allocation62 + $0x8] sm:$0xff]
    %v4539 = vld [vmem:[#allocation62 + $0x10] sm:$0xff]
    %v4540 = vld [vmem:[#allocation62 + $0x18] sm:$0xff]
    %v4541 = vld [vmem:[#allocation62 + $0x20] sm:$0xff]
    %v4542 = vld [vmem:[#allocation62 + $0x28] sm:$0xff]
    %v4543 = vld [vmem:[#allocation62 + $0x30] sm:$0xff]
    %v4544 = vld [vmem:[#allocation62 + $0x38] sm:$0xff]
    %v4545 = vld [vmem:[#allocation62 + $0x40] sm:$0xff]
    %v4546 = vld [vmem:[#allocation62 + $0x48] sm:$0xff]
    %v4547 = vld [vmem:[#allocation62 + $0x50] sm:$0xff]
    %v4548 = vld [vmem:[#allocation62 + $0x58] sm:$0xff]
    %v4549 = vld [vmem:[#allocation62 + $0x60] sm:$0xff]
    %v4550 = vld [vmem:[#allocation62 + $0x68] sm:$0xff]
    %v4551 = vld [vmem:[#allocation62 + $0x70] sm:$0xff]
    %v4552 = vld [vmem:[#allocation62 + $0x78] sm:$0xff]
    %v4553 = vld [vmem:[#allocation52] sm:$0x1]
    %v4555 = vlaneseq
    %v4556 = vshrl.u32 %v4555, 7
    %v4557 = vsub.s32 0, %v4556
    %v4558 = vrot.slane %v4553, %v4557
    %4560 = vmatprep.subr.mxu0 0.0
    %4561 = vmatpush1.msra.mxu0 %v4537
    %4562 = vmatprep.subr.mxu0 0.0
    %4563 = vmatpush1.msra.mxu0 %v4538
    %4564 = vmatprep.subr.mxu0 0.0
    %4565 = vmatpush1.msra.mxu0 %v4539
    %4566 = vmatprep.subr.mxu0 0.0
    %4567 = vmatpush1.msra.mxu0 %v4540
    %4568 = vmatprep.subr.mxu0 0.0
    %4569 = vmatpush1.msra.mxu0 %v4541
    %4570 = vmatprep.subr.mxu0 0.0
    %4571 = vmatpush1.msra.mxu0 %v4542
    %4572 = vmatprep.subr.mxu0 0.0
    %4573 = vmatpush1.msra.mxu0 %v4543
    %4574 = vmatprep.subr.mxu0 0.0
    %4575 = vmatpush1.msra.mxu0 %v4544
    %4576 = vmatprep.subr.mxu0 0.0
    %4577 = vmatpush1.msra.mxu0 %v4545
    %4578 = vmatprep.subr.mxu0 0.0
    %4579 = vmatpush1.msra.mxu0 %v4546
    %4580 = vmatprep.subr.mxu0 0.0
    %4581 = vmatpush1.msra.mxu0 %v4547
    %4582 = vmatprep.subr.mxu0 0.0
    %4583 = vmatpush1.msra.mxu0 %v4548
    %4584 = vmatprep.subr.mxu0 0.0
    %4585 = vmatpush1.msra.mxu0 %v4549
    %4586 = vmatprep.subr.mxu0 0.0
    %4587 = vmatpush1.msra.mxu0 %v4550
    %4588 = vmatprep.subr.mxu0 0.0
    %4589 = vmatpush1.msra.mxu0 %v4551
    %4590 = vmatprep.subr.mxu0 0.0
    %4591 = vmatpush1.msra.mxu0 %v4552
    %4592 = vmatprep.subr.mxu0 0.0
    %4593 = vmatpush1.msra.mxu0 0.0
    %4594 = vmatprep.subr.mxu0 0.0
    %4595 = vmatpush1.msra.mxu0 0.0
    %4596 = vmatprep.subr.mxu0 0.0
    %4597 = vmatpush1.msra.mxu0 0.0
    %4598 = vmatprep.subr.mxu0 0.0
    %4599 = vmatpush1.msra.mxu0 0.0
    %4600 = vmatprep.subr.mxu0 0.0
    %4601 = vmatpush1.msra.mxu0 0.0
    %4602 = vmatprep.subr.mxu0 0.0
    %4603 = vmatpush1.msra.mxu0 0.0
    %4604 = vmatprep.subr.mxu0 0.0
    %4605 = vmatpush1.msra.mxu0 0.0
    %4606 = vmatprep.subr.mxu0 0.0
    %4607 = vmatpush1.msra.mxu0 0.0
    %4608 = vmatprep.subr.mxu0 0.0
    %4609 = vmatpush1.msra.mxu0 0.0
    %4610 = vmatprep.subr.mxu0 0.0
    %4611 = vmatpush1.msra.mxu0 0.0
    %4612 = vmatprep.subr.mxu0 0.0
    %4613 = vmatpush1.msra.mxu0 0.0
    %4614 = vmatprep.subr.mxu0 0.0
    %4615 = vmatpush1.msra.mxu0 0.0
    %4616 = vmatprep.subr.mxu0 0.0
    %4617 = vmatpush1.msra.mxu0 0.0
    %4618 = vmatprep.subr.mxu0 0.0
    %4619 = vmatpush1.msra.mxu0 0.0
    %4620 = vmatprep.subr.mxu0 0.0
    %4621 = vmatpush1.msra.mxu0 0.0
    %4622 = vmatprep.subr.mxu0 0.0
    %4623 = vmatpush1.msra.mxu0 0.0
    %4624 = vmatprep.mubr.f32.mxu0 0.0
    %4625 = vmatmul.mubr.f32.gmra.mrb[0].mxu0 %v4536
    %v4626 = vpop.f32.mrb[0].mxu0
    %v4627 = vadd.f32 %v4558, %v4626
    %v4628 = vpop.f32.mrb[0].mxu0
    %4629 = vdwg.mxu0
    %v4630 = vld [vmem:[#allocation61] sm:$0xff]
    %v4631 = vld [vmem:[#allocation61 + $0x8] sm:$0xff]
    %v4632 = vld [vmem:[#allocation61 + $0x10] sm:$0xff]
    %v4633 = vld [vmem:[#allocation61 + $0x18] sm:$0xff]
    %v4634 = vld [vmem:[#allocation61 + $0x20] sm:$0xff]
    %v4635 = vld [vmem:[#allocation61 + $0x28] sm:$0xff]
    %v4636 = vld [vmem:[#allocation61 + $0x30] sm:$0xff]
    %v4637 = vld [vmem:[#allocation61 + $0x38] sm:$0xff]
    %v4638 = vld [vmem:[#allocation61 + $0x40] sm:$0xff]
    %v4639 = vld [vmem:[#allocation61 + $0x48] sm:$0xff]
    %v4640 = vld [vmem:[#allocation61 + $0x50] sm:$0xff]
    %v4641 = vld [vmem:[#allocation61 + $0x58] sm:$0xff]
    %v4642 = vld [vmem:[#allocation61 + $0x60] sm:$0xff]
    %v4643 = vld [vmem:[#allocation61 + $0x68] sm:$0xff]
    %v4644 = vld [vmem:[#allocation61 + $0x70] sm:$0xff]
    %v4645 = vld [vmem:[#allocation61 + $0x78] sm:$0xff]
    %v4646 = vld [vmem:[#allocation50] sm:$0x1]
    %v4648 = vlaneseq
    %v4649 = vshrl.u32 %v4648, 7
    %v4650 = vsub.s32 0, %v4649
    %v4651 = vrot.slane %v4646, %v4650
    %4653 = vmatprep.subr.mxu0 0.0
    %4654 = vmatpush1.msra.mxu0 %v4630
    %4655 = vmatprep.subr.mxu0 0.0
    %4656 = vmatpush1.msra.mxu0 %v4631
    %4657 = vmatprep.subr.mxu0 0.0
    %4658 = vmatpush1.msra.mxu0 %v4632
    %4659 = vmatprep.subr.mxu0 0.0
    %4660 = vmatpush1.msra.mxu0 %v4633
    %4661 = vmatprep.subr.mxu0 0.0
    %4662 = vmatpush1.msra.mxu0 %v4634
    %4663 = vmatprep.subr.mxu0 0.0
    %4664 = vmatpush1.msra.mxu0 %v4635
    %4665 = vmatprep.subr.mxu0 0.0
    %4666 = vmatpush1.msra.mxu0 %v4636
    %4667 = vmatprep.subr.mxu0 0.0
    %4668 = vmatpush1.msra.mxu0 %v4637
    %4669 = vmatprep.subr.mxu0 0.0
    %4670 = vmatpush1.msra.mxu0 %v4638
    %4671 = vmatprep.subr.mxu0 0.0
    %4672 = vmatpush1.msra.mxu0 %v4639
    %4673 = vmatprep.subr.mxu0 0.0
    %4674 = vmatpush1.msra.mxu0 %v4640
    %4675 = vmatprep.subr.mxu0 0.0
    %4676 = vmatpush1.msra.mxu0 %v4641
    %4677 = vmatprep.subr.mxu0 0.0
    %4678 = vmatpush1.msra.mxu0 %v4642
    %4679 = vmatprep.subr.mxu0 0.0
    %4680 = vmatpush1.msra.mxu0 %v4643
    %4681 = vmatprep.subr.mxu0 0.0
    %4682 = vmatpush1.msra.mxu0 %v4644
    %4683 = vmatprep.subr.mxu0 0.0
    %4684 = vmatpush1.msra.mxu0 %v4645
    %4685 = vmatprep.subr.mxu0 0.0
    %4686 = vmatpush1.msra.mxu0 0.0
    %4687 = vmatprep.subr.mxu0 0.0
    %4688 = vmatpush1.msra.mxu0 0.0
    %4689 = vmatprep.subr.mxu0 0.0
    %4690 = vmatpush1.msra.mxu0 0.0
    %4691 = vmatprep.subr.mxu0 0.0
    %4692 = vmatpush1.msra.mxu0 0.0
    %4693 = vmatprep.subr.mxu0 0.0
    %4694 = vmatpush1.msra.mxu0 0.0
    %4695 = vmatprep.subr.mxu0 0.0
    %4696 = vmatpush1.msra.mxu0 0.0
    %4697 = vmatprep.subr.mxu0 0.0
    %4698 = vmatpush1.msra.mxu0 0.0
    %4699 = vmatprep.subr.mxu0 0.0
    %4700 = vmatpush1.msra.mxu0 0.0
    %4701 = vmatprep.subr.mxu0 0.0
    %4702 = vmatpush1.msra.mxu0 0.0
    %4703 = vmatprep.subr.mxu0 0.0
    %4704 = vmatpush1.msra.mxu0 0.0
    %4705 = vmatprep.subr.mxu0 0.0
    %4706 = vmatpush1.msra.mxu0 0.0
    %4707 = vmatprep.subr.mxu0 0.0
    %4708 = vmatpush1.msra.mxu0 0.0
    %4709 = vmatprep.subr.mxu0 0.0
    %4710 = vmatpush1.msra.mxu0 0.0
    %4711 = vmatprep.subr.mxu0 0.0
    %4712 = vmatpush1.msra.mxu0 0.0
    %4713 = vmatprep.subr.mxu0 0.0
    %4714 = vmatpush1.msra.mxu0 0.0
    %4715 = vmatprep.subr.mxu0 0.0
    %4716 = vmatpush1.msra.mxu0 0.0
    %4717 = vmatprep.mubr.f32.mxu0 0.0
    %4718 = vmatmul.mubr.f32.gmra.mrb[0].mxu0 %v1457
    %v4719 = vpop.f32.mrb[0].mxu0
    %v4720 = vadd.f32 %v4651, %v4719
    %v4721 = vpop.f32.mrb[0].mxu0
    %4722 = vdwg.mxu0
    %v4723 = vld [vmem:[#allocation56] sm:$0xff]
    %v4724 = vld [vmem:[#allocation56 + $0x8] sm:$0xff]
    %v4725 = vld [vmem:[#allocation56 + $0x10] sm:$0xff]
    %v4726 = vld [vmem:[#allocation56 + $0x18] sm:$0xff]
    %v4727 = vld [vmem:[#allocation56 + $0x20] sm:$0xff]
    %v4728 = vld [vmem:[#allocation56 + $0x28] sm:$0xff]
    %v4729 = vld [vmem:[#allocation56 + $0x30] sm:$0xff]
    %v4730 = vld [vmem:[#allocation56 + $0x38] sm:$0xff]
    %v4731 = vld [vmem:[#allocation56 + $0x40] sm:$0xff]
    %v4732 = vld [vmem:[#allocation56 + $0x48] sm:$0xff]
    %v4733 = vld [vmem:[#allocation56 + $0x50] sm:$0xff]
    %v4734 = vld [vmem:[#allocation56 + $0x58] sm:$0xff]
    %v4735 = vld [vmem:[#allocation56 + $0x60] sm:$0xff]
    %v4736 = vld [vmem:[#allocation56 + $0x68] sm:$0xff]
    %v4737 = vld [vmem:[#allocation56 + $0x70] sm:$0xff]
    %v4738 = vld [vmem:[#allocation56 + $0x78] sm:$0xff]
    %v4739 = vld [vmem:[#allocation58] sm:$0xff]
    %v4740 = vld [vmem:[#allocation58 + $0x8] sm:$0xff]
    %v4741 = vld [vmem:[#allocation58 + $0x10] sm:$0xff]
    %v4742 = vld [vmem:[#allocation58 + $0x18] sm:$0xff]
    %v4743 = vld [vmem:[#allocation58 + $0x20] sm:$0xff]
    %v4744 = vld [vmem:[#allocation58 + $0x28] sm:$0xff]
    %v4745 = vld [vmem:[#allocation58 + $0x30] sm:$0xff]
    %v4746 = vld [vmem:[#allocation58 + $0x38] sm:$0xff]
    %v4747 = vld [vmem:[#allocation58 + $0x40] sm:$0xff]
    %v4748 = vld [vmem:[#allocation58 + $0x48] sm:$0xff]
    %v4749 = vld [vmem:[#allocation58 + $0x50] sm:$0xff]
    %v4750 = vld [vmem:[#allocation58 + $0x58] sm:$0xff]
    %v4751 = vld [vmem:[#allocation58 + $0x60] sm:$0xff]
    %v4752 = vld [vmem:[#allocation58 + $0x68] sm:$0xff]
    %v4753 = vld [vmem:[#allocation58 + $0x70] sm:$0xff]
    %v4754 = vld [vmem:[#allocation58 + $0x78] sm:$0xff]
    %4755 = vmatprep.subr.mxu0 0.0
    %4756 = vmatpush1.msra.mxu0 %v4739
    %4757 = vmatprep.subr.mxu0 0.0
    %4758 = vmatpush1.msra.mxu0 %v4740
    %4759 = vmatprep.subr.mxu0 0.0
    %4760 = vmatpush1.msra.mxu0 %v4741
    %4761 = vmatprep.subr.mxu0 0.0
    %4762 = vmatpush1.msra.mxu0 %v4742
    %4763 = vmatprep.subr.mxu0 0.0
    %4764 = vmatpush1.msra.mxu0 %v4743
    %4765 = vmatprep.subr.mxu0 0.0
    %4766 = vmatpush1.msra.mxu0 %v4744
    %4767 = vmatprep.subr.mxu0 0.0
    %4768 = vmatpush1.msra.mxu0 %v4745
    %4769 = vmatprep.subr.mxu0 0.0
    %4770 = vmatpush1.msra.mxu0 %v4746
    %4771 = vmatprep.subr.mxu0 0.0
    %4772 = vmatpush1.msra.mxu0 %v4747
    %4773 = vmatprep.subr.mxu0 0.0
    %4774 = vmatpush1.msra.mxu0 %v4748
    %4775 = vmatprep.subr.mxu0 0.0
    %4776 = vmatpush1.msra.mxu0 %v4749
    %4777 = vmatprep.subr.mxu0 0.0
    %4778 = vmatpush1.msra.mxu0 %v4750
    %4779 = vmatprep.subr.mxu0 0.0
    %4780 = vmatpush1.msra.mxu0 %v4751
    %4781 = vmatprep.subr.mxu0 0.0
    %4782 = vmatpush1.msra.mxu0 %v4752
    %4783 = vmatprep.subr.mxu0 0.0
    %4784 = vmatpush1.msra.mxu0 %v4753
    %4785 = vmatprep.subr.mxu0 0.0
    %4786 = vmatpush1.msra.mxu0 %v4754
    %4787 = vmatprep.subr.mxu0 0.0
    %4788 = vmatpush1.msra.mxu0 0.0
    %4789 = vmatprep.subr.mxu0 0.0
    %4790 = vmatpush1.msra.mxu0 0.0
    %4791 = vmatprep.subr.mxu0 0.0
    %4792 = vmatpush1.msra.mxu0 0.0
    %4793 = vmatprep.subr.mxu0 0.0
    %4794 = vmatpush1.msra.mxu0 0.0
    %4795 = vmatprep.subr.mxu0 0.0
    %4796 = vmatpush1.msra.mxu0 0.0
    %4797 = vmatprep.subr.mxu0 0.0
    %4798 = vmatpush1.msra.mxu0 0.0
    %4799 = vmatprep.subr.mxu0 0.0
    %4800 = vmatpush1.msra.mxu0 0.0
    %4801 = vmatprep.subr.mxu0 0.0
    %4802 = vmatpush1.msra.mxu0 0.0
    %4803 = vmatprep.subr.mxu0 0.0
    %4804 = vmatpush1.msra.mxu0 0.0
    %4805 = vmatprep.subr.mxu0 0.0
    %4806 = vmatpush1.msra.mxu0 0.0
    %4807 = vmatprep.subr.mxu0 0.0
    %4808 = vmatpush1.msra.mxu0 0.0
    %4809 = vmatprep.subr.mxu0 0.0
    %4810 = vmatpush1.msra.mxu0 0.0
    %4811 = vmatprep.subr.mxu0 0.0
    %4812 = vmatpush1.msra.mxu0 0.0
    %4813 = vmatprep.subr.mxu0 0.0
    %4814 = vmatpush1.msra.mxu0 0.0
    %4815 = vmatprep.subr.mxu0 0.0
    %4816 = vmatpush1.msra.mxu0 0.0
    %4817 = vmatprep.subr.mxu0 0.0
    %4818 = vmatpush1.msra.mxu0 0.0
    %4819 = vmatprep.mubr.f32.mxu0 0.0
    %4820 = vmatmul.mubr.f32.gmra.mrb[0].mxu0 %v4720
    %v4821 = vpop.f32.mrb[0].mxu0
    %v4822 = vadd.f32 0.0, %v4821
    %v4823 = vpop.f32.mrb[0].mxu0
    %4824 = vdwg.mxu0
    %4825 = vmatprep.subr.mxu0 0.0
    %4826 = vmatpush1.msra.mxu0 %v4723
    %4827 = vmatprep.subr.mxu0 0.0
    %4828 = vmatpush1.msra.mxu0 %v4724
    %4829 = vmatprep.subr.mxu0 0.0
    %4830 = vmatpush1.msra.mxu0 %v4725
    %4831 = vmatprep.subr.mxu0 0.0
    %4832 = vmatpush1.msra.mxu0 %v4726
    %4833 = vmatprep.subr.mxu0 0.0
    %4834 = vmatpush1.msra.mxu0 %v4727
    %4835 = vmatprep.subr.mxu0 0.0
    %4836 = vmatpush1.msra.mxu0 %v4728
    %4837 = vmatprep.subr.mxu0 0.0
    %4838 = vmatpush1.msra.mxu0 %v4729
    %4839 = vmatprep.subr.mxu0 0.0
    %4840 = vmatpush1.msra.mxu0 %v4730
    %4841 = vmatprep.subr.mxu0 0.0
    %4842 = vmatpush1.msra.mxu0 %v4731
    %4843 = vmatprep.subr.mxu0 0.0
    %4844 = vmatpush1.msra.mxu0 %v4732
    %4845 = vmatprep.subr.mxu0 0.0
    %4846 = vmatpush1.msra.mxu0 %v4733
    %4847 = vmatprep.subr.mxu0 0.0
    %4848 = vmatpush1.msra.mxu0 %v4734
    %4849 = vmatprep.subr.mxu0 0.0
    %4850 = vmatpush1.msra.mxu0 %v4735
    %4851 = vmatprep.subr.mxu0 0.0
    %4852 = vmatpush1.msra.mxu0 %v4736
    %4853 = vmatprep.subr.mxu0 0.0
    %4854 = vmatpush1.msra.mxu0 %v4737
    %4855 = vmatprep.subr.mxu0 0.0
    %4856 = vmatpush1.msra.mxu0 %v4738
    %4857 = vmatprep.subr.mxu0 0.0
    %4858 = vmatpush1.msra.mxu0 0.0
    %4859 = vmatprep.subr.mxu0 0.0
    %4860 = vmatpush1.msra.mxu0 0.0
    %4861 = vmatprep.subr.mxu0 0.0
    %4862 = vmatpush1.msra.mxu0 0.0
    %4863 = vmatprep.subr.mxu0 0.0
    %4864 = vmatpush1.msra.mxu0 0.0
    %4865 = vmatprep.subr.mxu0 0.0
    %4866 = vmatpush1.msra.mxu0 0.0
    %4867 = vmatprep.subr.mxu0 0.0
    %4868 = vmatpush1.msra.mxu0 0.0
    %4869 = vmatprep.subr.mxu0 0.0
    %4870 = vmatpush1.msra.mxu0 0.0
    %4871 = vmatprep.subr.mxu0 0.0
    %4872 = vmatpush1.msra.mxu0 0.0
    %4873 = vmatprep.subr.mxu0 0.0
    %4874 = vmatpush1.msra.mxu0 0.0
    %4875 = vmatprep.subr.mxu0 0.0
    %4876 = vmatpush1.msra.mxu0 0.0
    %4877 = vmatprep.subr.mxu0 0.0
    %4878 = vmatpush1.msra.mxu0 0.0
    %4879 = vmatprep.subr.mxu0 0.0
    %4880 = vmatpush1.msra.mxu0 0.0
    %4881 = vmatprep.subr.mxu0 0.0
    %4882 = vmatpush1.msra.mxu0 0.0
    %4883 = vmatprep.subr.mxu0 0.0
    %4884 = vmatpush1.msra.mxu0 0.0
    %4885 = vmatprep.subr.mxu0 0.0
    %4886 = vmatpush1.msra.mxu0 0.0
    %4887 = vmatprep.subr.mxu0 0.0
    %4888 = vmatpush1.msra.mxu0 0.0
    %4889 = vmatprep.mubr.f32.mxu0 0.0
    %4890 = vmatmul.mubr.f32.gmra.mrb[0].mxu0 %v4627
    %v4891 = vpop.f32.mrb[0].mxu0
    %v4892 = vadd.f32 %v4822, %v4891
    %v4893 = vpop.f32.mrb[0].mxu0
    %4894 = vdwg.mxu0
    %v4895 = vld [vmem:[#allocation47] sm:$0x1]
    %v4897 = vlaneseq
    %v4898 = vshrl.u32 %v4897, 7
    %v4899 = vsub.s32 0, %v4898
    %v4900 = vrot.slane %v4895, %v4899
    %v4902 = vadd.f32 %v4892, %v4900
    %v4903 = vxor.u32 %v4902, 2147483648
    %v4904 = vmul.f32 %v4903, 1.442695
    %v4905 = vpow.pop %v4904
    %v4906 = vadd.f32 %v4905, 1.0
    %v4907 = vrcp.pop %v4906
    %v4908 = vmul.f32 1.0, %v4907
    %v4909 = vmul.f32 %v4902, %v4908
    %v4910 = vld [vmem:[#allocation59] sm:$0xff]
    %v4911 = vld [vmem:[#allocation59 + $0x8] sm:$0xff]
    %v4912 = vld [vmem:[#allocation59 + $0x10] sm:$0xff]
    %v4913 = vld [vmem:[#allocation59 + $0x18] sm:$0xff]
    %v4914 = vld [vmem:[#allocation59 + $0x20] sm:$0xff]
    %v4915 = vld [vmem:[#allocation59 + $0x28] sm:$0xff]
    %v4916 = vld [vmem:[#allocation59 + $0x30] sm:$0xff]
    %v4917 = vld [vmem:[#allocation59 + $0x38] sm:$0xff]
    %v4918 = vld [vmem:[#allocation59 + $0x40] sm:$0xff]
    %v4919 = vld [vmem:[#allocation59 + $0x48] sm:$0xff]
    %v4920 = vld [vmem:[#allocation59 + $0x50] sm:$0xff]
    %v4921 = vld [vmem:[#allocation59 + $0x58] sm:$0xff]
    %v4922 = vld [vmem:[#allocation59 + $0x60] sm:$0xff]
    %v4923 = vld [vmem:[#allocation59 + $0x68] sm:$0xff]
    %v4924 = vld [vmem:[#allocation59 + $0x70] sm:$0xff]
    %v4925 = vld [vmem:[#allocation59 + $0x78] sm:$0xff]
    %v4926 = vld [vmem:[#allocation49] sm:$0x1]
    %v4928 = vlaneseq
    %v4929 = vshrl.u32 %v4928, 7
    %v4930 = vsub.s32 0, %v4929
    %v4931 = vrot.slane %v4926, %v4930
    %4933 = vmatprep.subr.mxu0 0.0
    %4934 = vmatpush1.msra.mxu0 %v4910
    %4935 = vmatprep.subr.mxu0 0.0
    %4936 = vmatpush1.msra.mxu0 %v4911
    %4937 = vmatprep.subr.mxu0 0.0
    %4938 = vmatpush1.msra.mxu0 %v4912
    %4939 = vmatprep.subr.mxu0 0.0
    %4940 = vmatpush1.msra.mxu0 %v4913
    %4941 = vmatprep.subr.mxu0 0.0
    %4942 = vmatpush1.msra.mxu0 %v4914
    %4943 = vmatprep.subr.mxu0 0.0
    %4944 = vmatpush1.msra.mxu0 %v4915
    %4945 = vmatprep.subr.mxu0 0.0
    %4946 = vmatpush1.msra.mxu0 %v4916
    %4947 = vmatprep.subr.mxu0 0.0
    %4948 = vmatpush1.msra.mxu0 %v4917
    %4949 = vmatprep.subr.mxu0 0.0
    %4950 = vmatpush1.msra.mxu0 %v4918
    %4951 = vmatprep.subr.mxu0 0.0
    %4952 = vmatpush1.msra.mxu0 %v4919
    %4953 = vmatprep.subr.mxu0 0.0
    %4954 = vmatpush1.msra.mxu0 %v4920
    %4955 = vmatprep.subr.mxu0 0.0
    %4956 = vmatpush1.msra.mxu0 %v4921
    %4957 = vmatprep.subr.mxu0 0.0
    %4958 = vmatpush1.msra.mxu0 %v4922
    %4959 = vmatprep.subr.mxu0 0.0
    %4960 = vmatpush1.msra.mxu0 %v4923
    %4961 = vmatprep.subr.mxu0 0.0
    %4962 = vmatpush1.msra.mxu0 %v4924
    %4963 = vmatprep.subr.mxu0 0.0
    %4964 = vmatpush1.msra.mxu0 %v4925
    %4965 = vmatprep.subr.mxu0 0.0
    %4966 = vmatpush1.msra.mxu0 0.0
    %4967 = vmatprep.subr.mxu0 0.0
    %4968 = vmatpush1.msra.mxu0 0.0
    %4969 = vmatprep.subr.mxu0 0.0
    %4970 = vmatpush1.msra.mxu0 0.0
    %4971 = vmatprep.subr.mxu0 0.0
    %4972 = vmatpush1.msra.mxu0 0.0
    %4973 = vmatprep.subr.mxu0 0.0
    %4974 = vmatpush1.msra.mxu0 0.0
    %4975 = vmatprep.subr.mxu0 0.0
    %4976 = vmatpush1.msra.mxu0 0.0
    %4977 = vmatprep.subr.mxu0 0.0
    %4978 = vmatpush1.msra.mxu0 0.0
    %4979 = vmatprep.subr.mxu0 0.0
    %4980 = vmatpush1.msra.mxu0 0.0
    %4981 = vmatprep.subr.mxu0 0.0
    %4982 = vmatpush1.msra.mxu0 0.0
    %4983 = vmatprep.subr.mxu0 0.0
    %4984 = vmatpush1.msra.mxu0 0.0
    %4985 = vmatprep.subr.mxu0 0.0
    %4986 = vmatpush1.msra.mxu0 0.0
    %4987 = vmatprep.subr.mxu0 0.0
    %4988 = vmatpush1.msra.mxu0 0.0
    %4989 = vmatprep.subr.mxu0 0.0
    %4990 = vmatpush1.msra.mxu0 0.0
    %4991 = vmatprep.subr.mxu0 0.0
    %4992 = vmatpush1.msra.mxu0 0.0
    %4993 = vmatprep.subr.mxu0 0.0
    %4994 = vmatpush1.msra.mxu0 0.0
    %4995 = vmatprep.subr.mxu0 0.0
    %4996 = vmatpush1.msra.mxu0 0.0
    %4997 = vmatprep.mubr.f32.mxu0 0.0
    %4998 = vmatmul.mubr.f32.gmra.mrb[0].mxu0 %v4909
    %v4999 = vpop.f32.mrb[0].mxu0
    %v5000 = vadd.f32 %v4931, %v4999
    %v5001 = vpop.f32.mrb[0].mxu0
    %5002 = vdwg.mxu0
    %v5003 = vxor.u32 %v5000, 2147483648
    %v5004 = vmul.f32 %v5003, 1.442695
    %v5005 = vpow.pop %v5004
    %v5006 = vadd.f32 %v5005, 1.0
    %v5007 = vrcp.pop %v5006
    %v5008 = vmul.f32 1.0, %v5007
    %v5009 = vmul.f32 %v5000, %v5008
    %v5010 = vld [vmem:[#allocation55] sm:$0xff]
    %v5011 = vld [vmem:[#allocation53] sm:$0x1]
    %v5013 = vlaneseq
    %v5014 = vshrl.u32 %v5013, 7
    %v5015 = vsub.s32 0, %v5014
    %v5016 = vrot.slane %v5011, %v5015
    %5018 = vmatprep.subr.mxu0 0.0
    %5019 = vmatpush1.msra.mxu0 %v5010
    %5020 = vmatprep.subr.mxu0 0.0
    %5021 = vmatpush1.msra.mxu0 0.0
    %5022 = vmatprep.subr.mxu0 0.0
    %5023 = vmatpush1.msra.mxu0 0.0
    %5024 = vmatprep.subr.mxu0 0.0
    %5025 = vmatpush1.msra.mxu0 0.0
    %5026 = vmatprep.subr.mxu0 0.0
    %5027 = vmatpush1.msra.mxu0 0.0
    %5028 = vmatprep.subr.mxu0 0.0
    %5029 = vmatpush1.msra.mxu0 0.0
    %5030 = vmatprep.subr.mxu0 0.0
    %5031 = vmatpush1.msra.mxu0 0.0
    %5032 = vmatprep.subr.mxu0 0.0
    %5033 = vmatpush1.msra.mxu0 0.0
    %5034 = vmatprep.subr.mxu0 0.0
    %5035 = vmatpush1.msra.mxu0 0.0
    %5036 = vmatprep.subr.mxu0 0.0
    %5037 = vmatpush1.msra.mxu0 0.0
    %5038 = vmatprep.subr.mxu0 0.0
    %5039 = vmatpush1.msra.mxu0 0.0
    %5040 = vmatprep.subr.mxu0 0.0
    %5041 = vmatpush1.msra.mxu0 0.0
    %5042 = vmatprep.subr.mxu0 0.0
    %5043 = vmatpush1.msra.mxu0 0.0
    %5044 = vmatprep.subr.mxu0 0.0
    %5045 = vmatpush1.msra.mxu0 0.0
    %5046 = vmatprep.subr.mxu0 0.0
    %5047 = vmatpush1.msra.mxu0 0.0
    %5048 = vmatprep.subr.mxu0 0.0
    %5049 = vmatpush1.msra.mxu0 0.0
    %5050 = vmatprep.subr.mxu0 0.0
    %5051 = vmatpush1.msra.mxu0 0.0
    %5052 = vmatprep.subr.mxu0 0.0
    %5053 = vmatpush1.msra.mxu0 0.0
    %5054 = vmatprep.subr.mxu0 0.0
    %5055 = vmatpush1.msra.mxu0 0.0
    %5056 = vmatprep.subr.mxu0 0.0
    %5057 = vmatpush1.msra.mxu0 0.0
    %5058 = vmatprep.subr.mxu0 0.0
    %5059 = vmatpush1.msra.mxu0 0.0
    %5060 = vmatprep.subr.mxu0 0.0
    %5061 = vmatpush1.msra.mxu0 0.0
    %5062 = vmatprep.subr.mxu0 0.0
    %5063 = vmatpush1.msra.mxu0 0.0
    %5064 = vmatprep.subr.mxu0 0.0
    %5065 = vmatpush1.msra.mxu0 0.0
    %5066 = vmatprep.subr.mxu0 0.0
    %5067 = vmatpush1.msra.mxu0 0.0
    %5068 = vmatprep.subr.mxu0 0.0
    %5069 = vmatpush1.msra.mxu0 0.0
    %5070 = vmatprep.subr.mxu0 0.0
    %5071 = vmatpush1.msra.mxu0 0.0
    %5072 = vmatprep.subr.mxu0 0.0
    %5073 = vmatpush1.msra.mxu0 0.0
    %5074 = vmatprep.subr.mxu0 0.0
    %5075 = vmatpush1.msra.mxu0 0.0
    %5076 = vmatprep.subr.mxu0 0.0
    %5077 = vmatpush1.msra.mxu0 0.0
    %5078 = vmatprep.subr.mxu0 0.0
    %5079 = vmatpush1.msra.mxu0 0.0
    %5080 = vmatprep.subr.mxu0 0.0
    %5081 = vmatpush1.msra.mxu0 0.0
    %5082 = vmatprep.mubr.f32.mxu0 0.0
    %5083 = vmatmul.mubr.f32.gmra.mrb[0].mxu0 %v1385
    %v5084 = vpop.f32.mrb[0].mxu0
    %v5085 = vadd.f32 %v5016, %v5084
    %v5086 = vpop.f32.mrb[0].mxu0
    %5087 = vdwg.mxu0
    %v5088 = vadd.f32 %v5009, %v5085
    %v5089 = vld [vmem:[%s153] sm:$0xff]
    %v5090 = vld [vmem:[%s153 + $0x8] sm:$0xff]
    %v5091 = vld [vmem:[%s153 + $0x10] sm:$0xff]
    %v5092 = vld [vmem:[%s153 + $0x18] sm:$0xff]
    %v5093 = vld [vmem:[%s153 + $0x20] sm:$0xff]
    %v5094 = vld [vmem:[%s153 + $0x28] sm:$0xff]
    %v5095 = vld [vmem:[%s153 + $0x30] sm:$0xff]
    %v5096 = vld [vmem:[%s153 + $0x38] sm:$0xff]
    %v5097 = vld [vmem:[%s153 + $0x40] sm:$0xff]
    %v5098 = vld [vmem:[%s153 + $0x48] sm:$0xff]
    %v5099 = vld [vmem:[%s153 + $0x50] sm:$0xff]
    %v5100 = vld [vmem:[%s153 + $0x58] sm:$0xff]
    %v5101 = vld [vmem:[%s153 + $0x60] sm:$0xff]
    %v5102 = vld [vmem:[%s153 + $0x68] sm:$0xff]
    %v5103 = vld [vmem:[%s153 + $0x70] sm:$0xff]
    %v5104 = vld [vmem:[%s153 + $0x78] sm:$0xff]
    %v5105 = vld [vmem:[%s151] sm:$0x1]
    %v5107 = vlaneseq
    %v5108 = vshrl.u32 %v5107, 7
    %v5109 = vsub.s32 0, %v5108
    %v5110 = vrot.slane %v5105, %v5109
    %5112 = vmatprep.subr.mxu0 0.0
    %5113 = vmatpush1.msra.mxu0 %v5089
    %5114 = vmatprep.subr.mxu0 0.0
    %5115 = vmatpush1.msra.mxu0 %v5090
    %5116 = vmatprep.subr.mxu0 0.0
    %5117 = vmatpush1.msra.mxu0 %v5091
    %5118 = vmatprep.subr.mxu0 0.0
    %5119 = vmatpush1.msra.mxu0 %v5092
    %5120 = vmatprep.subr.mxu0 0.0
    %5121 = vmatpush1.msra.mxu0 %v5093
    %5122 = vmatprep.subr.mxu0 0.0
    %5123 = vmatpush1.msra.mxu0 %v5094
    %5124 = vmatprep.subr.mxu0 0.0
    %5125 = vmatpush1.msra.mxu0 %v5095
    %5126 = vmatprep.subr.mxu0 0.0
    %5127 = vmatpush1.msra.mxu0 %v5096
    %5128 = vmatprep.subr.mxu0 0.0
    %5129 = vmatpush1.msra.mxu0 %v5097
    %5130 = vmatprep.subr.mxu0 0.0
    %5131 = vmatpush1.msra.mxu0 %v5098
    %5132 = vmatprep.subr.mxu0 0.0
    %5133 = vmatpush1.msra.mxu0 %v5099
    %5134 = vmatprep.subr.mxu0 0.0
    %5135 = vmatpush1.msra.mxu0 %v5100
    %5136 = vmatprep.subr.mxu0 0.0
    %5137 = vmatpush1.msra.mxu0 %v5101
    %5138 = vmatprep.subr.mxu0 0.0
    %5139 = vmatpush1.msra.mxu0 %v5102
    %5140 = vmatprep.subr.mxu0 0.0
    %5141 = vmatpush1.msra.mxu0 %v5103
    %5142 = vmatprep.subr.mxu0 0.0
    %5143 = vmatpush1.msra.mxu0 %v5104
    %5144 = vmatprep.subr.mxu0 0.0
    %5145 = vmatpush1.msra.mxu0 0.0
    %5146 = vmatprep.subr.mxu0 0.0
    %5147 = vmatpush1.msra.mxu0 0.0
    %5148 = vmatprep.subr.mxu0 0.0
    %5149 = vmatpush1.msra.mxu0 0.0
    %5150 = vmatprep.subr.mxu0 0.0
    %5151 = vmatpush1.msra.mxu0 0.0
    %5152 = vmatprep.subr.mxu0 0.0
    %5153 = vmatpush1.msra.mxu0 0.0
    %5154 = vmatprep.subr.mxu0 0.0
    %5155 = vmatpush1.msra.mxu0 0.0
    %5156 = vmatprep.subr.mxu0 0.0
    %5157 = vmatpush1.msra.mxu0 0.0
    %5158 = vmatprep.subr.mxu0 0.0
    %5159 = vmatpush1.msra.mxu0 0.0
    %5160 = vmatprep.subr.mxu0 0.0
    %5161 = vmatpush1.msra.mxu0 0.0
    %5162 = vmatprep.subr.mxu0 0.0
    %5163 = vmatpush1.msra.mxu0 0.0
    %5164 = vmatprep.subr.mxu0 0.0
    %5165 = vmatpush1.msra.mxu0 0.0
    %5166 = vmatprep.subr.mxu0 0.0
    %5167 = vmatpush1.msra.mxu0 0.0
    %5168 = vmatprep.subr.mxu0 0.0
    %5169 = vmatpush1.msra.mxu0 0.0
    %5170 = vmatprep.subr.mxu0 0.0
    %5171 = vmatpush1.msra.mxu0 0.0
    %5172 = vmatprep.subr.mxu0 0.0
    %5173 = vmatpush1.msra.mxu0 0.0
    %5174 = vmatprep.subr.mxu0 0.0
    %5175 = vmatpush1.msra.mxu0 0.0
    %5176 = vmatprep.mubr.f32.mxu0 0.0
    %5177 = vmatmul.mubr.f32.gmra.mrb[0].mxu0 %v5088
    %v5178 = vpop.f32.mrb[0].mxu0
    %v5179 = vadd.f32 %v5110, %v5178
    %v5180 = vpop.f32.mrb[0].mxu0
    %5181 = vdwg.mxu0
    %vm5182 = vcmask 517120
    %5183 = vst.msk [vmem:[#allocation109] sm:$0x3] %vm5182, %v5179
    // Predicated region
    $region590: #{unet1d_forward_pallas.1} parent=1 // pred_check
      _
    $region591: #{unet1d_forward_pallas.1} parent=1 // pred_check_branch
      %5185 = sbr.rel (0) target = $region593
    $region592: #{unet1d_forward_pallas.1} parent=1 // pred_region
      %s5187 = ssub.s32 32, 32
      %5188 = vsyncadd [#allocation4], %s5187
      %s5190 = sshll.u32 [#allocation109], 4
      %s5191 = int_to_ptr.vmem [resolvable:$true] %s5190
      %5193 = dma.vmem_to_hbm [thread:$0]  %s5191, 32, %s155, [#allocation4]
    $region593: #{unet1d_forward_pallas.1} parent=1 // pred_fallthru
      _
    // Predicated region
    $region594: #{unet1d_forward_pallas.1} parent=1 // pred_check
      _
    $region595: #{unet1d_forward_pallas.1} parent=1 // pred_check_branch
      %5195 = sbr.rel (0) target = $region597
    $region596: #{unet1d_forward_pallas.1} parent=1 // pred_region
      %5196 = dma.done [#allocation4], 32
    $region597: #{unet1d_forward_pallas.1} parent=1 // pred_fallthru
      _
    %5197 = vsyncpa [#allocation3], 1
    %5198 = vsyncpa [#allocation6], 1
    %5199 = vsyncpa [#allocation9], 1
    %5200 = vsyncpa [#allocation12], 1
    %5201 = vsyncpa [#allocation15], 1
    %5202 = vsyncpa [#allocation18], 1
    %5203 = vsyncpa [#allocation21], 1
    %5204 = vsyncpa [#allocation24], 1
    %5205 = vsyncpa [#allocation27], 1
    %5206 = vsyncpa [#allocation30], 1
    %5207 = vsyncpa [#allocation33], 1
    %5208 = vsyncpa [#allocation36], 1
    %5209 = vsyncpa [#allocation39], 1
    %5210 = vsyncpa [#allocation42], 1
    %5211 = vsyncpa [#allocation45], 1
    %5212 = vsyncpa [#allocation48], 1
    %5213 = vsyncpa [#allocation51], 1
    %5214 = vsyncpa [#allocation54], 1
    %5215 = vsyncpa [#allocation57], 1
    %5216 = vsyncpa [#allocation60], 1
    %5217 = vsyncpa [#allocation63], 1
    %5218 = vsyncpa [#allocation66], 1
    %5219 = vsyncpa [#allocation69], 1
    %5220 = vsyncpa [#allocation72], 1
    %5221 = vsyncpa [#allocation75], 1
    %5222 = vsyncpa [#allocation78], 1
    %5223 = vsyncpa [#allocation81], 1
    %5224 = vsyncpa [#allocation84], 1
    %5225 = vsyncpa [#allocation87], 1
    %5226 = vsyncpa [#allocation90], 1
    %5227 = vsyncpa [#allocation93], 1
    %5228 = vsyncpa [#allocation96], 1
    %5229 = vsyncpa [#allocation99], 1
    %5230 = vsyncpa [#allocation102], 1
    %5231 = vsyncpa [#allocation105], 1
    %5232 = vsyncpa [#allocation108], 1
    %5233 = vsyncpa [#allocation4], 1

</llo_original>
